<compile_context>
chip_gen: v6e
topology: v6e:2x2x1
jax: 0.10.0
libtpu: 0.0.40
codegen_flags: <defaults>
</compile_context>

<pallas_src>
import jax
import jax.numpy as jnp
from jax import lax
from jax.experimental import pallas as pl
from jax.experimental.pallas import tpu as pltpu

BN_EPS = 1e-5


def baseline_lstm_kernel(
    x_ref,      # (T*B, I)  bf16  time-major flattened input (row = t*B + b)
    wih1_ref,   # (I, 4H)   bf16  g-gate columns pre-scaled by 2
    whh1_ref,   # (H, 4H)   bf16  g-gate columns pre-scaled by 2
    b1_ref,     # (1, 4H)   f32   b_ih + b_hh, g-gate columns pre-scaled by 2
    wih2_ref,   # (H, 4H)   bf16
    whh2_ref,   # (H, 4H)   bf16
    b2_ref,     # (1, 4H)   f32
    segT_ref,   # (T, T*B)  f32   one-hot segment matrix: segT[t, r] = (r // B == t)
    seg_ref,    # (T*B, T)  f32   transpose of segT (broadcast per-t scalars back to rows)
    gamma_ref,  # (T, 1)    f32   BatchNorm1d weight (channel axis == time == hidden_dim)
    beta_ref,   # (T, 1)    f32   BatchNorm1d bias
    wlin_ref,   # (1, H)    f32   Linear weight as a lane-dense row (output_dim == 1)
    blin_ref,   # (1, 1)    f32   Linear bias
    out_ref,    # (T*B, 1)  f32   sigmoid(logits), row = t*B + b
    xw_scr,     # VMEM (T*B, 4H) f32  hoisted input projections (reused by both layers)
    seq_scr,    # VMEM (T*B, H)  f32  per-layer hidden-state sequence (reused in place)
):
    TB = x_ref.shape[0]
    H = whh1_ref.shape[0]
    T = gamma_ref.shape[0]
    B = TB // T

    def run_recurrence(whh_ref):
        """Serial LSTM recurrence.  The input projection (x @ W_ih + b) is already in
        xw_scr, so each step's critical chain is only h @ W_hh (bf16 MXU), one sigmoid
        pass, and the VPU combine.  T is small & static -> full unroll, static slices."""
        # TODO(synk): keep W_hh resident in the MXU across the 32 steps via
        # pltpu.matmul_push_rhs / matmul_acc_lhs / matmul_pop; per-step accumulator-reset
        # semantics differ between MRF (v5e/v6e) and MRB (v7x), so the portable jnp.dot
        # path is kept here.
        whh = whh_ref[...]                       # (H, 4H) bf16, hoisted out of the loop
        h = jnp.zeros((B, H), jnp.float32)
        c = jnp.zeros((B, H), jnp.float32)
        for t in range(T):
            gates = xw_scr[pl.ds(t * B, B), :] + jnp.dot(
                h.astype(jnp.bfloat16), whh, preferred_element_type=jnp.float32)
            s = jax.nn.sigmoid(gates)            # one full-width EUP pass over (B, 4H)
            i_g = s[:, 0 * H:1 * H]
            f_g = s[:, 1 * H:2 * H]
            g_g = 2.0 * s[:, 2 * H:3 * H] - 1.0  # tanh(z) = 2*sigmoid(2z) - 1 (2x folded)
            o_g = s[:, 3 * H:4 * H]
            # TODO(synk): the lane realignments implied by the f/g/o slices sit on the
            # serial chain; a feature-on-sublanes (4H, B) recurrence removes them but
            # leaves 124/128 lanes idle at B=4, so it is not adopted at this batch size.
            c = f_g * c + i_g * g_g
            h = o_g * jnp.tanh(c)
            seq_scr[pl.ds(t * B, B), :] = h

    def batchnorm():
        """Train-mode BatchNorm1d on the flat (T*B, H) sequence; channel axis == t.
        Per-t Sum(x) / Sum(x^2) are fused into two segment matmuls (MXU is idle between
        recurrences); the per-t affine is broadcast back to rows with two tiny matvecs."""
        seq = seq_scr[...]                                                      # (T*B, H)
        n = jnp.float32(B * H)
        segT = segT_ref[...]
        sum_t = jnp.dot(segT, seq, preferred_element_type=jnp.float32)          # (T, H)
        sumsq_t = jnp.dot(segT, seq * seq, preferred_element_type=jnp.float32)  # (T, H)
        mean_t = jnp.sum(sum_t, axis=1, keepdims=True) / n                      # (T, 1)
        var_t = jnp.maximum(
            jnp.sum(sumsq_t, axis=1, keepdims=True) / n - mean_t * mean_t, 0.0)
        scale_t = gamma_ref[...] * lax.rsqrt(var_t + BN_EPS)    # gamma folded into scale
        shift_t = beta_ref[...] - scale_t * mean_t
        seg = seg_ref[...]
        scale_rows = jnp.dot(seg, scale_t, preferred_element_type=jnp.float32)  # (T*B, 1)
        shift_rows = jnp.dot(seg, shift_t, preferred_element_type=jnp.float32)  # (T*B, 1)
        return seq * scale_rows + shift_rows                                    # (T*B, H)

    # ---- layer 1: hoisted input projection as ONE (T*B, I) x (I, 4H) bf16 matmul ----
    xw_scr[...] = jnp.dot(
        x_ref[...], wih1_ref[...], preferred_element_type=jnp.float32) + b1_ref[...]
    run_recurrence(whh1_ref)

    # ---- batchnorm 1 (+ dropout p=0.0 -> identity) ----
    bn1 = batchnorm()

    # ---- layer 2: hoisted projection as ONE (T*B, H) x (H, 4H) bf16 matmul ----
    xw_scr[...] = jnp.dot(
        bn1.astype(jnp.bfloat16), wih2_ref[...],
        preferred_element_type=jnp.float32) + b2_ref[...]
    run_recurrence(whh2_ref)

    # ---- batchnorm 2 ----
    bn2 = batchnorm()

    # ---- linear (output_dim == 1) + sigmoid: VPU multiply + lane reduction over H ----
    logits = jnp.sum(bn2 * wlin_ref[...], axis=1, keepdims=True) + blin_ref[...]
    out_ref[...] = jax.nn.sigmoid(logits)


def prepare_params(params):
    """One-time parameter prep: fold the g-gate 2x scale (tanh-via-sigmoid trick),
    cast matmul weights to bf16, and lay the Linear weight out as a lane-dense row."""
    H = params["whh1"].shape[0]

    def fold_g_scale(w):
        return w.at[..., 2 * H:3 * H].multiply(2.0)

    return {
        "wih1": fold_g_scale(params["wih1"]).astype(jnp.bfloat16),
        "whh1": fold_g_scale(params["whh1"]).astype(jnp.bfloat16),
        "b1": fold_g_scale(params["b1"]).astype(jnp.float32),
        "wih2": fold_g_scale(params["wih2"]).astype(jnp.bfloat16),
        "whh2": fold_g_scale(params["whh2"]).astype(jnp.bfloat16),
        "b2": fold_g_scale(params["b2"]).astype(jnp.float32),
        "gamma": params["gamma"].astype(jnp.float32),
        "beta": params["beta"].astype(jnp.float32),
        "wlin_row": jnp.transpose(params["wlin"]).astype(jnp.float32),   # (1, H)
        "blin": params["blin"].astype(jnp.float32),                      # (1, 1)
    }


def baseline_lstm_forward(x, params):
    """x: (B, T, input_size) float32, batch_first like the PyTorch module.
    `params` must come from prepare_params().  Returns (B, T, 1)."""
    B, T, I = x.shape
    H = params["whh1"].shape[0]
    assert params["wlin_row"].shape[0] == 1, "kernel specialises output_dim == 1"
    assert T == params["gamma"].shape[0], (
        "BatchNorm1d(hidden_dim) on a (B, T, H) tensor requires seq_len == hidden_dim")

    # Time-major flatten (row = t*B + b) so each layer's input projection is ONE
    # (T*B, K) x (K, 4H) MXU matmul with bf16 operands and f32 accumulation.
    x_flat = jnp.transpose(x, (1, 0, 2)).reshape(T * B, I).astype(jnp.bfloat16)

    # One-hot segment matrices for per-time-step BatchNorm stats / row broadcast.
    segT = jnp.repeat(jnp.eye(T, dtype=jnp.float32), B, axis=1)   # (T, T*B)
    seg = segT.T                                                  # (T*B, T)

    vmem = pl.BlockSpec(memory_space=pltpu.MemorySpace.VMEM)
    out_col = pl.pallas_call(
        baseline_lstm_kernel,
        out_shape=jax.ShapeDtypeStruct((T * B, 1), jnp.float32),
        in_specs=[vmem] * 13,
        out_specs=vmem,
        scratch_shapes=[
            pltpu.VMEM((T * B, 4 * H), jnp.float32),
            pltpu.VMEM((T * B, H), jnp.float32),
        ],
        compiler_params=pltpu.CompilerParams(vmem_limit_bytes=32 * 1024 * 1024),
    )(
        x_flat,
        params["wih1"], params["whh1"], params["b1"],
        params["wih2"], params["whh2"], params["b2"],
        segT, seg,
        params["gamma"], params["beta"],
        params["wlin_row"], params["blin"],
    )
    # TODO(synk): batch-sharding across v7x's two TensorCores needs cross-core exchange
    # of the per-t BatchNorm partial sums (train-mode stats span the full batch), and at
    # large B/T the whole-array-resident inputs/scratch need retiling for v7x's 64 MiB
    # VMEM; the kernel stays grid-free at these toy sizes.
    return jnp.transpose(out_col.reshape(T, B))[:, :, None]       # (B, T, 1)


def init_params(key, input_size, hidden_dim, output_dim):
    """Deterministic synthetic init mirroring PyTorch parameter shapes (pre-transposed)."""
    k = 1.0 / jnp.sqrt(jnp.float32(hidden_dim))
    keys = jax.random.split(key, 10)

    def u(kk, shape):
        return jax.random.uniform(kk, shape, jnp.float32, -k, k)

    H, I, O = hidden_dim, input_size, output_dim
    params = {
        # lstm1: torch W_ih (4H, I) -> (I, 4H); W_hh (4H, H) -> (H, 4H); b = b_ih + b_hh
        "wih1": u(keys[0], (I, 4 * H)),
        "whh1": u(keys[1], (H, 4 * H)),
        "b1": (u(keys[2], (1, 4 * H)) + u(keys[3], (1, 4 * H))),
        # lstm2
        "wih2": u(keys[4], (H, 4 * H)),
        "whh2": u(keys[5], (H, 4 * H)),
        "b2": (u(keys[6], (1, 4 * H)) + u(keys[7], (1, 4 * H))),
        # BatchNorm1d(hidden_dim): torch default init weight=1, bias=0 (channels == seq_len)
        "gamma": jnp.ones((H, 1), jnp.float32),
        "beta": jnp.zeros((H, 1), jnp.float32),
        # Linear: torch W (O, H) -> (H, O); b (O,) -> (1, O)
        "wlin": u(keys[8], (H, O)),
        "blin": u(keys[9], (1, O)),
    }
    return params


if __name__ == "__main__":
    key = jax.random.PRNGKey(0)
    # seq_len must equal hidden_dim for the module's BatchNorm1d(hidden_dim) to be valid.
    B, T, I, H, O = 4, 32, 8, 32, 1

    kx, kp = jax.random.split(key)
    x = jax.random.normal(kx, (B, T, I), jnp.float32)
    params = prepare_params(init_params(kp, input_size=I, hidden_dim=H, output_dim=O))

    out = baseline_lstm_forward(x, params)
    out = jax.block_until_ready(out)
    assert out.shape == (B, T, O), out.shape
    assert bool(jnp.all(jnp.isfinite(out)))
    assert bool(jnp.all((out >= 0.0) & (out <= 1.0)))  # sigmoid output range
    print("KERNEL_OK")
</pallas_src>

<mosaic_0001>
module attributes {stable_mosaic.version = 11 : i64} {
  func.func @baseline_lstm_kernel(%arg0: memref<128x8xbf16, #tpu.memory_space<vmem>>, %arg1: memref<8x128xbf16, #tpu.memory_space<vmem>>, %arg2: memref<32x128xbf16, #tpu.memory_space<vmem>>, %arg3: memref<1x128xf32, #tpu.memory_space<vmem>>, %arg4: memref<32x128xbf16, #tpu.memory_space<vmem>>, %arg5: memref<32x128xbf16, #tpu.memory_space<vmem>>, %arg6: memref<1x128xf32, #tpu.memory_space<vmem>>, %arg7: memref<32x128xf32, #tpu.memory_space<vmem>>, %arg8: memref<128x32xf32, #tpu.memory_space<vmem>>, %arg9: memref<32x1xf32, #tpu.memory_space<vmem>>, %arg10: memref<32x1xf32, #tpu.memory_space<vmem>>, %arg11: memref<1x32xf32, #tpu.memory_space<vmem>>, %arg12: memref<1x1xf32, #tpu.memory_space<vmem>>, %arg13: memref<128x1xf32, #tpu.memory_space<vmem>>, %arg14: memref<128x128xf32, #tpu.memory_space<vmem>>, %arg15: memref<128x32xf32, #tpu.memory_space<vmem>>) attributes {dimension_semantics = [], scalar_prefetch = 0 : i64, scratch_operands = 2 : i64, tpu.core_type = #tpu.core_type<tc>} {
    %c0 = arith.constant 0 : index
    %c0_0 = arith.constant 0 : index
    %0 = vector.load %arg0[%c0, %c0_0] : memref<128x8xbf16, #tpu.memory_space<vmem>>, vector<128x8xbf16>
    %c0_1 = arith.constant 0 : index
    %c0_2 = arith.constant 0 : index
    %1 = vector.load %arg1[%c0_1, %c0_2] : memref<8x128xbf16, #tpu.memory_space<vmem>>, vector<8x128xbf16>
    %cst = arith.constant dense<0.000000e+00> : vector<128x128xf32>
    %2 = tpu.matmul %0, %1, %cst {dimension_numbers = #tpu.dot_dimension_numbers<[1], [0], [0], [1], [0, 0, 1, 1], [], []>} : vector<128x8xbf16>, vector<8x128xbf16>, vector<128x128xf32> -> vector<128x128xf32>
    %c0_3 = arith.constant 0 : index
    %c0_4 = arith.constant 0 : index
    %3 = vector.load %arg3[%c0_3, %c0_4] : memref<1x128xf32, #tpu.memory_space<vmem>>, vector<1x128xf32>
    %4 = vector.broadcast %3 : vector<1x128xf32> to vector<128x128xf32>
    %5 = arith.addf %2, %4 : vector<128x128xf32>
    %c0_5 = arith.constant 0 : index
    %c0_6 = arith.constant 0 : index
    %6 = vector.load %arg14[%c0_5, %c0_6] : memref<128x128xf32, #tpu.memory_space<vmem>>, vector<128x128xf32>
    tpu.vector_store %arg14[%c0_5, %c0_6], %5 {strides = array<i32>} : memref<128x128xf32, #tpu.memory_space<vmem>>, vector<128x128xf32>,
    %c0_7 = arith.constant 0 : index
    %c0_8 = arith.constant 0 : index
    %7 = vector.load %arg2[%c0_7, %c0_8] : memref<32x128xbf16, #tpu.memory_space<vmem>>, vector<32x128xbf16>
    %cst_9 = arith.constant 0.000000e+00 : f32
    %8 = vector.broadcast %cst_9 : f32 to vector<4x32xf32>
    %cst_10 = arith.constant 0.000000e+00 : f32
    %9 = vector.broadcast %cst_10 : f32 to vector<4x32xf32>
    %c0_11 = arith.constant 0 : index
    %c0_12 = arith.constant 0 : index
    %10 = vector.load %arg14[%c0_11, %c0_12] : memref<128x128xf32, #tpu.memory_space<vmem>>, vector<4x128xf32>
    %11 = arith.truncf %8 : vector<4x32xf32> to vector<4x32xbf16>
    %cst_13 = arith.constant dense<0.000000e+00> : vector<4x128xf32>
    %12 = tpu.matmul %11, %7, %cst_13 {dimension_numbers = #tpu.dot_dimension_numbers<[1], [0], [0], [1], [0, 0, 1, 1], [], []>} : vector<4x32xbf16>, vector<32x128xbf16>, vector<4x128xf32> -> vector<4x128xf32>
    %13 = arith.addf %10, %12 : vector<4x128xf32>
    %14 = arith.negf %13 : vector<4x128xf32>
    %15 = math.exp %14 : vector<4x128xf32>
    %cst_14 = arith.constant 1.000000e+00 : f32
    %16 = vector.broadcast %cst_14 : f32 to vector<4x128xf32>
    %17 = arith.addf %16, %15 : vector<4x128xf32>
    %18 = arith.divf %16, %17 : vector<4x128xf32>
    %19 = vector.extract_strided_slice %18 {offsets = [0, 0], sizes = [4, 32], strides = [1, 1]} : vector<4x128xf32> to vector<4x32xf32>
    %20 = vector.extract_strided_slice %18 {offsets = [0, 32], sizes = [4, 32], strides = [1, 1]} : vector<4x128xf32> to vector<4x32xf32>
    %21 = vector.extract_strided_slice %18 {offsets = [0, 64], sizes = [4, 32], strides = [1, 1]} : vector<4x128xf32> to vector<4x32xf32>
    %cst_15 = arith.constant 2.000000e+00 : f32
    %22 = vector.broadcast %cst_15 : f32 to vector<4x32xf32>
    %23 = arith.mulf %22, %21 : vector<4x32xf32>
    %cst_16 = arith.constant 1.000000e+00 : f32
    %24 = vector.broadcast %cst_16 : f32 to vector<4x32xf32>
    %25 = arith.subf %23, %24 : vector<4x32xf32>
    %26 = vector.extract_strided_slice %18 {offsets = [0, 96], sizes = [4, 32], strides = [1, 1]} : vector<4x128xf32> to vector<4x32xf32>
    %27 = arith.mulf %20, %9 : vector<4x32xf32>
    %28 = arith.mulf %19, %25 : vector<4x32xf32>
    %29 = arith.addf %27, %28 : vector<4x32xf32>
    %30 = math.tanh %29 : vector<4x32xf32>
    %31 = arith.mulf %26, %30 : vector<4x32xf32>
    %c0_17 = arith.constant 0 : index
    %c0_18 = arith.constant 0 : index
    %32 = vector.load %arg15[%c0_17, %c0_18] : memref<128x32xf32, #tpu.memory_space<vmem>>, vector<4x32xf32>
    tpu.vector_store %arg15[%c0_17, %c0_18], %31 {strides = array<i32>} : memref<128x32xf32, #tpu.memory_space<vmem>>, vector<4x32xf32>,
    %c4 = arith.constant 4 : index
    %c0_19 = arith.constant 0 : index
    %33 = vector.load %arg14[%c4, %c0_19] : memref<128x128xf32, #tpu.memory_space<vmem>>, vector<4x128xf32>
    %34 = arith.truncf %31 : vector<4x32xf32> to vector<4x32xbf16>
    %cst_20 = arith.constant dense<0.000000e+00> : vector<4x128xf32>
    %35 = tpu.matmul %34, %7, %cst_20 {dimension_numbers = #tpu.dot_dimension_numbers<[1], [0], [0], [1], [0, 0, 1, 1], [], []>} : vector<4x32xbf16>, vector<32x128xbf16>, vector<4x128xf32> -> vector<4x128xf32>
    %36 = arith.addf %33, %35 : vector<4x128xf32>
    %37 = arith.negf %36 : vector<4x128xf32>
    %38 = math.exp %37 : vector<4x128xf32>
    %cst_21 = arith.constant 1.000000e+00 : f32
    %39 = vector.broadcast %cst_21 : f32 to vector<4x128xf32>
    %40 = arith.addf %39, %38 : vector<4x128xf32>
    %41 = arith.divf %39, %40 : vector<4x128xf32>
    %42 = vector.extract_strided_slice %41 {offsets = [0, 0], sizes = [4, 32], strides = [1, 1]} : vector<4x128xf32> to vector<4x32xf32>
    %43 = vector.extract_strided_slice %41 {offsets = [0, 32], sizes = [4, 32], strides = [1, 1]} : vector<4x128xf32> to vector<4x32xf32>
    %44 = vector.extract_strided_slice %41 {offsets = [0, 64], sizes = [4, 32], strides = [1, 1]} : vector<4x128xf32> to vector<4x32xf32>
    %cst_22 = arith.constant 2.000000e+00 : f32
    %45 = vector.broadcast %cst_22 : f32 to vector<4x32xf32>
    %46 = arith.mulf %45, %44 : vector<4x32xf32>
    %cst_23 = arith.constant 1.000000e+00 : f32
    %47 = vector.broadcast %cst_23 : f32 to vector<4x32xf32>
    %48 = arith.subf %46, %47 : vector<4x32xf32>
    %49 = vector.extract_strided_slice %41 {offsets = [0, 96], sizes = [4, 32], strides = [1, 1]} : vector<4x128xf32> to vector<4x32xf32>
    %50 = arith.mulf %43, %29 : vector<4x32xf32>
    %51 = arith.mulf %42, %48 : vector<4x32xf32>
    %52 = arith.addf %50, %51 : vector<4x32xf32>
    %53 = math.tanh %52 : vector<4x32xf32>
    %54 = arith.mulf %49, %53 : vector<4x32xf32>
    %c4_24 = arith.constant 4 : index
    %c0_25 = arith.constant 0 : index
    %55 = vector.load %arg15[%c4_24, %c0_25] : memref<128x32xf32, #tpu.memory_space<vmem>>, vector<4x32xf32>
    tpu.vector_store %arg15[%c4_24, %c0_25], %54 {strides = array<i32>} : memref<128x32xf32, #tpu.memory_space<vmem>>, vector<4x32xf32>,
    %c8 = arith.constant 8 : index
    %c0_26 = arith.constant 0 : index
    %56 = vector.load %arg14[%c8, %c0_26] : memref<128x128xf32, #tpu.memory_space<vmem>>, vector<4x128xf32>
    %57 = arith.truncf %54 : vector<4x32xf32> to vector<4x32xbf16>
    %cst_27 = arith.constant dense<0.000000e+00> : vector<4x128xf32>
    %58 = tpu.matmul %57, %7, %cst_27 {dimension_numbers = #tpu.dot_dimension_numbers<[1], [0], [0], [1], [0, 0, 1, 1], [], []>} : vector<4x32xbf16>, vector<32x128xbf16>, vector<4x128xf32> -> vector<4x128xf32>
    %59 = arith.addf %56, %58 : vector<4x128xf32>
    %60 = arith.negf %59 : vector<4x128xf32>
    %61 = math.exp %60 : vector<4x128xf32>
    %cst_28 = arith.constant 1.000000e+00 : f32
    %62 = vector.broadcast %cst_28 : f32 to vector<4x128xf32>
    %63 = arith.addf %62, %61 : vector<4x128xf32>
    %64 = arith.divf %62, %63 : vector<4x128xf32>
    %65 = vector.extract_strided_slice %64 {offsets = [0, 0], sizes = [4, 32], strides = [1, 1]} : vector<4x128xf32> to vector<4x32xf32>
    %66 = vector.extract_strided_slice %64 {offsets = [0, 32], sizes = [4, 32], strides = [1, 1]} : vector<4x128xf32> to vector<4x32xf32>
    %67 = vector.extract_strided_slice %64 {offsets = [0, 64], sizes = [4, 32], strides = [1, 1]} : vector<4x128xf32> to vector<4x32xf32>
    %cst_29 = arith.constant 2.000000e+00 : f32
    %68 = vector.broadcast %cst_29 : f32 to vector<4x32xf32>
    %69 = arith.mulf %68, %67 : vector<4x32xf32>
    %cst_30 = arith.constant 1.000000e+00 : f32
    %70 = vector.broadcast %cst_30 : f32 to vector<4x32xf32>
    %71 = arith.subf %69, %70 : vector<4x32xf32>
    %72 = vector.extract_strided_slice %64 {offsets = [0, 96], sizes = [4, 32], strides = [1, 1]} : vector<4x128xf32> to vector<4x32xf32>
    %73 = arith.mulf %66, %52 : vector<4x32xf32>
    %74 = arith.mulf %65, %71 : vector<4x32xf32>
    %75 = arith.addf %73, %74 : vector<4x32xf32>
    %76 = math.tanh %75 : vector<4x32xf32>
    %77 = arith.mulf %72, %76 : vector<4x32xf32>
    %c8_31 = arith.constant 8 : index
    %c0_32 = arith.constant 0 : index
    %78 = vector.load %arg15[%c8_31, %c0_32] : memref<128x32xf32, #tpu.memory_space<vmem>>, vector<4x32xf32>
    tpu.vector_store %arg15[%c8_31, %c0_32], %77 {strides = array<i32>} : memref<128x32xf32, #tpu.memory_space<vmem>>, vector<4x32xf32>,
    %c12 = arith.constant 12 : index
    %c0_33 = arith.constant 0 : index
    %79 = vector.load %arg14[%c12, %c0_33] : memref<128x128xf32, #tpu.memory_space<vmem>>, vector<4x128xf32>
    %80 = arith.truncf %77 : vector<4x32xf32> to vector<4x32xbf16>
    %cst_34 = arith.constant dense<0.000000e+00> : vector<4x128xf32>
    %81 = tpu.matmul %80, %7, %cst_34 {dimension_numbers = #tpu.dot_dimension_numbers<[1], [0], [0], [1], [0, 0, 1, 1], [], []>} : vector<4x32xbf16>, vector<32x128xbf16>, vector<4x128xf32> -> vector<4x128xf32>
    %82 = arith.addf %79, %81 : vector<4x128xf32>
    %83 = arith.negf %82 : vector<4x128xf32>
    %84 = math.exp %83 : vector<4x128xf32>
    %cst_35 = arith.constant 1.000000e+00 : f32
    %85 = vector.broadcast %cst_35 : f32 to vector<4x128xf32>
    %86 = arith.addf %85, %84 : vector<4x128xf32>
    %87 = arith.divf %85, %86 : vector<4x128xf32>
    %88 = vector.extract_strided_slice %87 {offsets = [0, 0], sizes = [4, 32], strides = [1, 1]} : vector<4x128xf32> to vector<4x32xf32>
    %89 = vector.extract_strided_slice %87 {offsets = [0, 32], sizes = [4, 32], strides = [1, 1]} : vector<4x128xf32> to vector<4x32xf32>
    %90 = vector.extract_strided_slice %87 {offsets = [0, 64], sizes = [4, 32], strides = [1, 1]} : vector<4x128xf32> to vector<4x32xf32>
    %cst_36 = arith.constant 2.000000e+00 : f32
    %91 = vector.broadcast %cst_36 : f32 to vector<4x32xf32>
    %92 = arith.mulf %91, %90 : vector<4x32xf32>
    %cst_37 = arith.constant 1.000000e+00 : f32
    %93 = vector.broadcast %cst_37 : f32 to vector<4x32xf32>
    %94 = arith.subf %92, %93 : vector<4x32xf32>
    %95 = vector.extract_strided_slice %87 {offsets = [0, 96], sizes = [4, 32], strides = [1, 1]} : vector<4x128xf32> to vector<4x32xf32>
    %96 = arith.mulf %89, %75 : vector<4x32xf32>
    %97 = arith.mulf %88, %94 : vector<4x32xf32>
    %98 = arith.addf %96, %97 : vector<4x32xf32>
    %99 = math.tanh %98 : vector<4x32xf32>
    %100 = arith.mulf %95, %99 : vector<4x32xf32>
    %c12_38 = arith.constant 12 : index
    %c0_39 = arith.constant 0 : index
    %101 = vector.load %arg15[%c12_38, %c0_39] : memref<128x32xf32, #tpu.memory_space<vmem>>, vector<4x32xf32>
    tpu.vector_store %arg15[%c12_38, %c0_39], %100 {strides = array<i32>} : memref<128x32xf32, #tpu.memory_space<vmem>>, vector<4x32xf32>,
    %c16 = arith.constant 16 : index
    %c0_40 = arith.constant 0 : index
    %102 = vector.load %arg14[%c16, %c0_40] : memref<128x128xf32, #tpu.memory_space<vmem>>, vector<4x128xf32>
    %103 = arith.truncf %100 : vector<4x32xf32> to vector<4x32xbf16>
    %cst_41 = arith.constant dense<0.000000e+00> : vector<4x128xf32>
    %104 = tpu.matmul %103, %7, %cst_41 {dimension_numbers = #tpu.dot_dimension_numbers<[1], [0], [0], [1], [0, 0, 1, 1], [], []>} : vector<4x32xbf16>, vector<32x128xbf16>, vector<4x128xf32> -> vector<4x128xf32>
    %105 = arith.addf %102, %104 : vector<4x128xf32>
    %106 = arith.negf %105 : vector<4x128xf32>
    %107 = math.exp %106 : vector<4x128xf32>
    %cst_42 = arith.constant 1.000000e+00 : f32
    %108 = vector.broadcast %cst_42 : f32 to vector<4x128xf32>
    %109 = arith.addf %108, %107 : vector<4x128xf32>
    %110 = arith.divf %108, %109 : vector<4x128xf32>
    %111 = vector.extract_strided_slice %110 {offsets = [0, 0], sizes = [4, 32], strides = [1, 1]} : vector<4x128xf32> to vector<4x32xf32>
    %112 = vector.extract_strided_slice %110 {offsets = [0, 32], sizes = [4, 32], strides = [1, 1]} : vector<4x128xf32> to vector<4x32xf32>
    %113 = vector.extract_strided_slice %110 {offsets = [0, 64], sizes = [4, 32], strides = [1, 1]} : vector<4x128xf32> to vector<4x32xf32>
    %cst_43 = arith.constant 2.000000e+00 : f32
    %114 = vector.broadcast %cst_43 : f32 to vector<4x32xf32>
    %115 = arith.mulf %114, %113 : vector<4x32xf32>
    %cst_44 = arith.constant 1.000000e+00 : f32
    %116 = vector.broadcast %cst_44 : f32 to vector<4x32xf32>
    %117 = arith.subf %115, %116 : vector<4x32xf32>
    %118 = vector.extract_strided_slice %110 {offsets = [0, 96], sizes = [4, 32], strides = [1, 1]} : vector<4x128xf32> to vector<4x32xf32>
    %119 = arith.mulf %112, %98 : vector<4x32xf32>
    %120 = arith.mulf %111, %117 : vector<4x32xf32>
    %121 = arith.addf %119, %120 : vector<4x32xf32>
    %122 = math.tanh %121 : vector<4x32xf32>
    %123 = arith.mulf %118, %122 : vector<4x32xf32>
    %c16_45 = arith.constant 16 : index
    %c0_46 = arith.constant 0 : index
    %124 = vector.load %arg15[%c16_45, %c0_46] : memref<128x32xf32, #tpu.memory_space<vmem>>, vector<4x32xf32>
    tpu.vector_store %arg15[%c16_45, %c0_46], %123 {strides = array<i32>} : memref<128x32xf32, #tpu.memory_space<vmem>>, vector<4x32xf32>,
    %c20 = arith.constant 20 : index
    %c0_47 = arith.constant 0 : index
    %125 = vector.load %arg14[%c20, %c0_47] : memref<128x128xf32, #tpu.memory_space<vmem>>, vector<4x128xf32>
    %126 = arith.truncf %123 : vector<4x32xf32> to vector<4x32xbf16>
    %cst_48 = arith.constant dense<0.000000e+00> : vector<4x128xf32>
    %127 = tpu.matmul %126, %7, %cst_48 {dimension_numbers = #tpu.dot_dimension_numbers<[1], [0], [0], [1], [0, 0, 1, 1], [], []>} : vector<4x32xbf16>, vector<32x128xbf16>, vector<4x128xf32> -> vector<4x128xf32>
    %128 = arith.addf %125, %127 : vector<4x128xf32>
    %129 = arith.negf %128 : vector<4x128xf32>
    %130 = math.exp %129 : vector<4x128xf32>
    %cst_49 = arith.constant 1.000000e+00 : f32
    %131 = vector.broadcast %cst_49 : f32 to vector<4x128xf32>
    %132 = arith.addf %131, %130 : vector<4x128xf32>
    %133 = arith.divf %131, %132 : vector<4x128xf32>
    %134 = vector.extract_strided_slice %133 {offsets = [0, 0], sizes = [4, 32], strides = [1, 1]} : vector<4x128xf32> to vector<4x32xf32>
    %135 = vector.extract_strided_slice %133 {offsets = [0, 32], sizes = [4, 32], strides = [1, 1]} : vector<4x128xf32> to vector<4x32xf32>
    %136 = vector.extract_strided_slice %133 {offsets = [0, 64], sizes = [4, 32], strides = [1, 1]} : vector<4x128xf32> to vector<4x32xf32>
    %cst_50 = arith.constant 2.000000e+00 : f32
    %137 = vector.broadcast %cst_50 : f32 to vector<4x32xf32>
    %138 = arith.mulf %137, %136 : vector<4x32xf32>
    %cst_51 = arith.constant 1.000000e+00 : f32
    %139 = vector.broadcast %cst_51 : f32 to vector<4x32xf32>
    %140 = arith.subf %138, %139 : vector<4x32xf32>
    %141 = vector.extract_strided_slice %133 {offsets = [0, 96], sizes = [4, 32], strides = [1, 1]} : vector<4x128xf32> to vector<4x32xf32>
    %142 = arith.mulf %135, %121 : vector<4x32xf32>
    %143 = arith.mulf %134, %140 : vector<4x32xf32>
    %144 = arith.addf %142, %143 : vector<4x32xf32>
    %145 = math.tanh %144 : vector<4x32xf32>
    %146 = arith.mulf %141, %145 : vector<4x32xf32>
    %c20_52 = arith.constant 20 : index
    %c0_53 = arith.constant 0 : index
    %147 = vector.load %arg15[%c20_52, %c0_53] : memref<128x32xf32, #tpu.memory_space<vmem>>, vector<4x32xf32>
    tpu.vector_store %arg15[%c20_52, %c0_53], %146 {strides = array<i32>} : memref<128x32xf32, #tpu.memory_space<vmem>>, vector<4x32xf32>,
    %c24 = arith.constant 24 : index
    %c0_54 = arith.constant 0 : index
    %148 = vector.load %arg14[%c24, %c0_54] : memref<128x128xf32, #tpu.memory_space<vmem>>, vector<4x128xf32>
    %149 = arith.truncf %146 : vector<4x32xf32> to vector<4x32xbf16>
    %cst_55 = arith.constant dense<0.000000e+00> : vector<4x128xf32>
    %150 = tpu.matmul %149, %7, %cst_55 {dimension_numbers = #tpu.dot_dimension_numbers<[1], [0], [0], [1], [0, 0, 1, 1], [], []>} : vector<4x32xbf16>, vector<32x128xbf16>, vector<4x128xf32> -> vector<4x128xf32>
    %151 = arith.addf %148, %150 : vector<4x128xf32>
    %152 = arith.negf %151 : vector<4x128xf32>
    %153 = math.exp %152 : vector<4x128xf32>
    %cst_56 = arith.constant 1.000000e+00 : f32
    %154 = vector.broadcast %cst_56 : f32 to vector<4x128xf32>
    %155 = arith.addf %154, %153 : vector<4x128xf32>
    %156 = arith.divf %154, %155 : vector<4x128xf32>
    %157 = vector.extract_strided_slice %156 {offsets = [0, 0], sizes = [4, 32], strides = [1, 1]} : vector<4x128xf32> to vector<4x32xf32>
    %158 = vector.extract_strided_slice %156 {offsets = [0, 32], sizes = [4, 32], strides = [1, 1]} : vector<4x128xf32> to vector<4x32xf32>
    %159 = vector.extract_strided_slice %156 {offsets = [0, 64], sizes = [4, 32], strides = [1, 1]} : vector<4x128xf32> to vector<4x32xf32>
    %cst_57 = arith.constant 2.000000e+00 : f32
    %160 = vector.broadcast %cst_57 : f32 to vector<4x32xf32>
    %161 = arith.mulf %160, %159 : vector<4x32xf32>
    %cst_58 = arith.constant 1.000000e+00 : f32
    %162 = vector.broadcast %cst_58 : f32 to vector<4x32xf32>
    %163 = arith.subf %161, %162 : vector<4x32xf32>
    %164 = vector.extract_strided_slice %156 {offsets = [0, 96], sizes = [4, 32], strides = [1, 1]} : vector<4x128xf32> to vector<4x32xf32>
    %165 = arith.mulf %158, %144 : vector<4x32xf32>
    %166 = arith.mulf %157, %163 : vector<4x32xf32>
    %167 = arith.addf %165, %166 : vector<4x32xf32>
    %168 = math.tanh %167 : vector<4x32xf32>
    %169 = arith.mulf %164, %168 : vector<4x32xf32>
    %c24_59 = arith.constant 24 : index
    %c0_60 = arith.constant 0 : index
    %170 = vector.load %arg15[%c24_59, %c0_60] : memref<128x32xf32, #tpu.memory_space<vmem>>, vector<4x32xf32>
    tpu.vector_store %arg15[%c24_59, %c0_60], %169 {strides = array<i32>} : memref<128x32xf32, #tpu.memory_space<vmem>>, vector<4x32xf32>,
    %c28 = arith.constant 28 : index
    %c0_61 = arith.constant 0 : index
    %171 = vector.load %arg14[%c28, %c0_61] : memref<128x128xf32, #tpu.memory_space<vmem>>, vector<4x128xf32>
    %172 = arith.truncf %169 : vector<4x32xf32> to vector<4x32xbf16>
    %cst_62 = arith.constant dense<0.000000e+00> : vector<4x128xf32>
    %173 = tpu.matmul %172, %7, %cst_62 {dimension_numbers = #tpu.dot_dimension_numbers<[1], [0], [0], [1], [0, 0, 1, 1], [], []>} : vector<4x32xbf16>, vector<32x128xbf16>, vector<4x128xf32> -> vector<4x128xf32>
    %174 = arith.addf %171, %173 : vector<4x128xf32>
    %175 = arith.negf %174 : vector<4x128xf32>
    %176 = math.exp %175 : vector<4x128xf32>
    %cst_63 = arith.constant 1.000000e+00 : f32
    %177 = vector.broadcast %cst_63 : f32 to vector<4x128xf32>
    %178 = arith.addf %177, %176 : vector<4x128xf32>
    %179 = arith.divf %177, %178 : vector<4x128xf32>
    %180 = vector.extract_strided_slice %179 {offsets = [0, 0], sizes = [4, 32], strides = [1, 1]} : vector<4x128xf32> to vector<4x32xf32>
    %181 = vector.extract_strided_slice %179 {offsets = [0, 32], sizes = [4, 32], strides = [1, 1]} : vector<4x128xf32> to vector<4x32xf32>
    %182 = vector.extract_strided_slice %179 {offsets = [0, 64], sizes = [4, 32], strides = [1, 1]} : vector<4x128xf32> to vector<4x32xf32>
    %cst_64 = arith.constant 2.000000e+00 : f32
    %183 = vector.broadcast %cst_64 : f32 to vector<4x32xf32>
    %184 = arith.mulf %183, %182 : vector<4x32xf32>
    %cst_65 = arith.constant 1.000000e+00 : f32
    %185 = vector.broadcast %cst_65 : f32 to vector<4x32xf32>
    %186 = arith.subf %184, %185 : vector<4x32xf32>
    %187 = vector.extract_strided_slice %179 {offsets = [0, 96], sizes = [4, 32], strides = [1, 1]} : vector<4x128xf32> to vector<4x32xf32>
    %188 = arith.mulf %181, %167 : vector<4x32xf32>
    %189 = arith.mulf %180, %186 : vector<4x32xf32>
    %190 = arith.addf %188, %189 : vector<4x32xf32>
    %191 = math.tanh %190 : vector<4x32xf32>
    %192 = arith.mulf %187, %191 : vector<4x32xf32>
    %c28_66 = arith.constant 28 : index
    %c0_67 = arith.constant 0 : index
    %193 = vector.load %arg15[%c28_66, %c0_67] : memref<128x32xf32, #tpu.memory_space<vmem>>, vector<4x32xf32>
    tpu.vector_store %arg15[%c28_66, %c0_67], %192 {strides = array<i32>} : memref<128x32xf32, #tpu.memory_space<vmem>>, vector<4x32xf32>,
    %c32 = arith.constant 32 : index
    %c0_68 = arith.constant 0 : index
    %194 = vector.load %arg14[%c32, %c0_68] : memref<128x128xf32, #tpu.memory_space<vmem>>, vector<4x128xf32>
    %195 = arith.truncf %192 : vector<4x32xf32> to vector<4x32xbf16>
    %cst_69 = arith.constant dense<0.000000e+00> : vector<4x128xf32>
    %196 = tpu.matmul %195, %7, %cst_69 {dimension_numbers = #tpu.dot_dimension_numbers<[1], [0], [0], [1], [0, 0, 1, 1], [], []>} : vector<4x32xbf16>, vector<32x128xbf16>, vector<4x128xf32> -> vector<4x128xf32>
    %197 = arith.addf %194, %196 : vector<4x128xf32>
    %198 = arith.negf %197 : vector<4x128xf32>
    %199 = math.exp %198 : vector<4x128xf32>
    %cst_70 = arith.constant 1.000000e+00 : f32
    %200 = vector.broadcast %cst_70 : f32 to vector<4x128xf32>
    %201 = arith.addf %200, %199 : vector<4x128xf32>
    %202 = arith.divf %200, %201 : vector<4x128xf32>
    %203 = vector.extract_strided_slice %202 {offsets = [0, 0], sizes = [4, 32], strides = [1, 1]} : vector<4x128xf32> to vector<4x32xf32>
    %204 = vector.extract_strided_slice %202 {offsets = [0, 32], sizes = [4, 32], strides = [1, 1]} : vector<4x128xf32> to vector<4x32xf32>
    %205 = vector.extract_strided_slice %202 {offsets = [0, 64], sizes = [4, 32], strides = [1, 1]} : vector<4x128xf32> to vector<4x32xf32>
    %cst_71 = arith.constant 2.000000e+00 : f32
    %206 = vector.broadcast %cst_71 : f32 to vector<4x32xf32>
    %207 = arith.mulf %206, %205 : vector<4x32xf32>
    %cst_72 = arith.constant 1.000000e+00 : f32
    %208 = vector.broadcast %cst_72 : f32 to vector<4x32xf32>
    %209 = arith.subf %207, %208 : vector<4x32xf32>
    %210 = vector.extract_strided_slice %202 {offsets = [0, 96], sizes = [4, 32], strides = [1, 1]} : vector<4x128xf32> to vector<4x32xf32>
    %211 = arith.mulf %204, %190 : vector<4x32xf32>
    %212 = arith.mulf %203, %209 : vector<4x32xf32>
    %213 = arith.addf %211, %212 : vector<4x32xf32>
    %214 = math.tanh %213 : vector<4x32xf32>
    %215 = arith.mulf %210, %214 : vector<4x32xf32>
    %c32_73 = arith.constant 32 : index
    %c0_74 = arith.constant 0 : index
    %216 = vector.load %arg15[%c32_73, %c0_74] : memref<128x32xf32, #tpu.memory_space<vmem>>, vector<4x32xf32>
    tpu.vector_store %arg15[%c32_73, %c0_74], %215 {strides = array<i32>} : memref<128x32xf32, #tpu.memory_space<vmem>>, vector<4x32xf32>,
    %c36 = arith.constant 36 : index
    %c0_75 = arith.constant 0 : index
    %217 = vector.load %arg14[%c36, %c0_75] : memref<128x128xf32, #tpu.memory_space<vmem>>, vector<4x128xf32>
    %218 = arith.truncf %215 : vector<4x32xf32> to vector<4x32xbf16>
    %cst_76 = arith.constant dense<0.000000e+00> : vector<4x128xf32>
    %219 = tpu.matmul %218, %7, %cst_76 {dimension_numbers = #tpu.dot_dimension_numbers<[1], [0], [0], [1], [0, 0, 1, 1], [], []>} : vector<4x32xbf16>, vector<32x128xbf16>, vector<4x128xf32> -> vector<4x128xf32>
    %220 = arith.addf %217, %219 : vector<4x128xf32>
    %221 = arith.negf %220 : vector<4x128xf32>
    %222 = math.exp %221 : vector<4x128xf32>
    %cst_77 = arith.constant 1.000000e+00 : f32
    %223 = vector.broadcast %cst_77 : f32 to vector<4x128xf32>
    %224 = arith.addf %223, %222 : vector<4x128xf32>
    %225 = arith.divf %223, %224 : vector<4x128xf32>
    %226 = vector.extract_strided_slice %225 {offsets = [0, 0], sizes = [4, 32], strides = [1, 1]} : vector<4x128xf32> to vector<4x32xf32>
    %227 = vector.extract_strided_slice %225 {offsets = [0, 32], sizes = [4, 32], strides = [1, 1]} : vector<4x128xf32> to vector<4x32xf32>
    %228 = vector.extract_strided_slice %225 {offsets = [0, 64], sizes = [4, 32], strides = [1, 1]} : vector<4x128xf32> to vector<4x32xf32>
    %cst_78 = arith.constant 2.000000e+00 : f32
    %229 = vector.broadcast %cst_78 : f32 to vector<4x32xf32>
    %230 = arith.mulf %229, %228 : vector<4x32xf32>
    %cst_79 = arith.constant 1.000000e+00 : f32
    %231 = vector.broadcast %cst_79 : f32 to vector<4x32xf32>
    %232 = arith.subf %230, %231 : vector<4x32xf32>
    %233 = vector.extract_strided_slice %225 {offsets = [0, 96], sizes = [4, 32], strides = [1, 1]} : vector<4x128xf32> to vector<4x32xf32>
    %234 = arith.mulf %227, %213 : vector<4x32xf32>
    %235 = arith.mulf %226, %232 : vector<4x32xf32>
    %236 = arith.addf %234, %235 : vector<4x32xf32>
    %237 = math.tanh %236 : vector<4x32xf32>
    %238 = arith.mulf %233, %237 : vector<4x32xf32>
    %c36_80 = arith.constant 36 : index
    %c0_81 = arith.constant 0 : index
    %239 = vector.load %arg15[%c36_80, %c0_81] : memref<128x32xf32, #tpu.memory_space<vmem>>, vector<4x32xf32>
    tpu.vector_store %arg15[%c36_80, %c0_81], %238 {strides = array<i32>} : memref<128x32xf32, #tpu.memory_space<vmem>>, vector<4x32xf32>,
    %c40 = arith.constant 40 : index
    %c0_82 = arith.constant 0 : index
    %240 = vector.load %arg14[%c40, %c0_82] : memref<128x128xf32, #tpu.memory_space<vmem>>, vector<4x128xf32>
    %241 = arith.truncf %238 : vector<4x32xf32> to vector<4x32xbf16>
    %cst_83 = arith.constant dense<0.000000e+00> : vector<4x128xf32>
    %242 = tpu.matmul %241, %7, %cst_83 {dimension_numbers = #tpu.dot_dimension_numbers<[1], [0], [0], [1], [0, 0, 1, 1], [], []>} : vector<4x32xbf16>, vector<32x128xbf16>, vector<4x128xf32> -> vector<4x128xf32>
    %243 = arith.addf %240, %242 : vector<4x128xf32>
    %244 = arith.negf %243 : vector<4x128xf32>
    %245 = math.exp %244 : vector<4x128xf32>
    %cst_84 = arith.constant 1.000000e+00 : f32
    %246 = vector.broadcast %cst_84 : f32 to vector<4x128xf32>
    %247 = arith.addf %246, %245 : vector<4x128xf32>
    %248 = arith.divf %246, %247 : vector<4x128xf32>
    %249 = vector.extract_strided_slice %248 {offsets = [0, 0], sizes = [4, 32], strides = [1, 1]} : vector<4x128xf32> to vector<4x32xf32>
    %250 = vector.extract_strided_slice %248 {offsets = [0, 32], sizes = [4, 32], strides = [1, 1]} : vector<4x128xf32> to vector<4x32xf32>
    %251 = vector.extract_strided_slice %248 {offsets = [0, 64], sizes = [4, 32], strides = [1, 1]} : vector<4x128xf32> to vector<4x32xf32>
    %cst_85 = arith.constant 2.000000e+00 : f32
    %252 = vector.broadcast %cst_85 : f32 to vector<4x32xf32>
    %253 = arith.mulf %252, %251 : vector<4x32xf32>
    %cst_86 = arith.constant 1.000000e+00 : f32
    %254 = vector.broadcast %cst_86 : f32 to vector<4x32xf32>
    %255 = arith.subf %253, %254 : vector<4x32xf32>
    %256 = vector.extract_strided_slice %248 {offsets = [0, 96], sizes = [4, 32], strides = [1, 1]} : vector<4x128xf32> to vector<4x32xf32>
    %257 = arith.mulf %250, %236 : vector<4x32xf32>
    %258 = arith.mulf %249, %255 : vector<4x32xf32>
    %259 = arith.addf %257, %258 : vector<4x32xf32>
    %260 = math.tanh %259 : vector<4x32xf32>
    %261 = arith.mulf %256, %260 : vector<4x32xf32>
    %c40_87 = arith.constant 40 : index
    %c0_88 = arith.constant 0 : index
    %262 = vector.load %arg15[%c40_87, %c0_88] : memref<128x32xf32, #tpu.memory_space<vmem>>, vector<4x32xf32>
    tpu.vector_store %arg15[%c40_87, %c0_88], %261 {strides = array<i32>} : memref<128x32xf32, #tpu.memory_space<vmem>>, vector<4x32xf32>,
    %c44 = arith.constant 44 : index
    %c0_89 = arith.constant 0 : index
    %263 = vector.load %arg14[%c44, %c0_89] : memref<128x128xf32, #tpu.memory_space<vmem>>, vector<4x128xf32>
    %264 = arith.truncf %261 : vector<4x32xf32> to vector<4x32xbf16>
    %cst_90 = arith.constant dense<0.000000e+00> : vector<4x128xf32>
    %265 = tpu.matmul %264, %7, %cst_90 {dimension_numbers = #tpu.dot_dimension_numbers<[1], [0], [0], [1], [0, 0, 1, 1], [], []>} : vector<4x32xbf16>, vector<32x128xbf16>, vector<4x128xf32> -> vector<4x128xf32>
    %266 = arith.addf %263, %265 : vector<4x128xf32>
    %267 = arith.negf %266 : vector<4x128xf32>
    %268 = math.exp %267 : vector<4x128xf32>
    %cst_91 = arith.constant 1.000000e+00 : f32
    %269 = vector.broadcast %cst_91 : f32 to vector<4x128xf32>
    %270 = arith.addf %269, %268 : vector<4x128xf32>
    %271 = arith.divf %269, %270 : vector<4x128xf32>
    %272 = vector.extract_strided_slice %271 {offsets = [0, 0], sizes = [4, 32], strides = [1, 1]} : vector<4x128xf32> to vector<4x32xf32>
    %273 = vector.extract_strided_slice %271 {offsets = [0, 32], sizes = [4, 32], strides = [1, 1]} : vector<4x128xf32> to vector<4x32xf32>
    %274 = vector.extract_strided_slice %271 {offsets = [0, 64], sizes = [4, 32], strides = [1, 1]} : vector<4x128xf32> to vector<4x32xf32>
    %cst_92 = arith.constant 2.000000e+00 : f32
    %275 = vector.broadcast %cst_92 : f32 to vector<4x32xf32>
    %276 = arith.mulf %275, %274 : vector<4x32xf32>
    %cst_93 = arith.constant 1.000000e+00 : f32
    %277 = vector.broadcast %cst_93 : f32 to vector<4x32xf32>
    %278 = arith.subf %276, %277 : vector<4x32xf32>
    %279 = vector.extract_strided_slice %271 {offsets = [0, 96], sizes = [4, 32], strides = [1, 1]} : vector<4x128xf32> to vector<4x32xf32>
    %280 = arith.mulf %273, %259 : vector<4x32xf32>
    %281 = arith.mulf %272, %278 : vector<4x32xf32>
    %282 = arith.addf %280, %281 : vector<4x32xf32>
    %283 = math.tanh %282 : vector<4x32xf32>
    %284 = arith.mulf %279, %283 : vector<4x32xf32>
    %c44_94 = arith.constant 44 : index
    %c0_95 = arith.constant 0 : index
    %285 = vector.load %arg15[%c44_94, %c0_95] : memref<128x32xf32, #tpu.memory_space<vmem>>, vector<4x32xf32>
    tpu.vector_store %arg15[%c44_94, %c0_95], %284 {strides = array<i32>} : memref<128x32xf32, #tpu.memory_space<vmem>>, vector<4x32xf32>,
    %c48 = arith.constant 48 : index
    %c0_96 = arith.constant 0 : index
    %286 = vector.load %arg14[%c48, %c0_96] : memref<128x128xf32, #tpu.memory_space<vmem>>, vector<4x128xf32>
    %287 = arith.truncf %284 : vector<4x32xf32> to vector<4x32xbf16>
    %cst_97 = arith.constant dense<0.000000e+00> : vector<4x128xf32>
    %288 = tpu.matmul %287, %7, %cst_97 {dimension_numbers = #tpu.dot_dimension_numbers<[1], [0], [0], [1], [0, 0, 1, 1], [], []>} : vector<4x32xbf16>, vector<32x128xbf16>, vector<4x128xf32> -> vector<4x128xf32>
    %289 = arith.addf %286, %288 : vector<4x128xf32>
    %290 = arith.negf %289 : vector<4x128xf32>
    %291 = math.exp %290 : vector<4x128xf32>
    %cst_98 = arith.constant 1.000000e+00 : f32
    %292 = vector.broadcast %cst_98 : f32 to vector<4x128xf32>
    %293 = arith.addf %292, %291 : vector<4x128xf32>
    %294 = arith.divf %292, %293 : vector<4x128xf32>
    %295 = vector.extract_strided_slice %294 {offsets = [0, 0], sizes = [4, 32], strides = [1, 1]} : vector<4x128xf32> to vector<4x32xf32>
    %296 = vector.extract_strided_slice %294 {offsets = [0, 32], sizes = [4, 32], strides = [1, 1]} : vector<4x128xf32> to vector<4x32xf32>
    %297 = vector.extract_strided_slice %294 {offsets = [0, 64], sizes = [4, 32], strides = [1, 1]} : vector<4x128xf32> to vector<4x32xf32>
    %cst_99 = arith.constant 2.000000e+00 : f32
    %298 = vector.broadcast %cst_99 : f32 to vector<4x32xf32>
    %299 = arith.mulf %298, %297 : vector<4x32xf32>
    %cst_100 = arith.constant 1.000000e+00 : f32
    %300 = vector.broadcast %cst_100 : f32 to vector<4x32xf32>
    %301 = arith.subf %299, %300 : vector<4x32xf32>
    %302 = vector.extract_strided_slice %294 {offsets = [0, 96], sizes = [4, 32], strides = [1, 1]} : vector<4x128xf32> to vector<4x32xf32>
    %303 = arith.mulf %296, %282 : vector<4x32xf32>
    %304 = arith.mulf %295, %301 : vector<4x32xf32>
    %305 = arith.addf %303, %304 : vector<4x32xf32>
    %306 = math.tanh %305 : vector<4x32xf32>
    %307 = arith.mulf %302, %306 : vector<4x32xf32>
    %c48_101 = arith.constant 48 : index
    %c0_102 = arith.constant 0 : index
    %308 = vector.load %arg15[%c48_101, %c0_102] : memref<128x32xf32, #tpu.memory_space<vmem>>, vector<4x32xf32>
    tpu.vector_store %arg15[%c48_101, %c0_102], %307 {strides = array<i32>} : memref<128x32xf32, #tpu.memory_space<vmem>>, vector<4x32xf32>,
    %c52 = arith.constant 52 : index
    %c0_103 = arith.constant 0 : index
    %309 = vector.load %arg14[%c52, %c0_103] : memref<128x128xf32, #tpu.memory_space<vmem>>, vector<4x128xf32>
    %310 = arith.truncf %307 : vector<4x32xf32> to vector<4x32xbf16>
    %cst_104 = arith.constant dense<0.000000e+00> : vector<4x128xf32>
    %311 = tpu.matmul %310, %7, %cst_104 {dimension_numbers = #tpu.dot_dimension_numbers<[1], [0], [0], [1], [0, 0, 1, 1], [], []>} : vector<4x32xbf16>, vector<32x128xbf16>, vector<4x128xf32> -> vector<4x128xf32>
    %312 = arith.addf %309, %311 : vector<4x128xf32>
    %313 = arith.negf %312 : vector<4x128xf32>
    %314 = math.exp %313 : vector<4x128xf32>
    %cst_105 = arith.constant 1.000000e+00 : f32
    %315 = vector.broadcast %cst_105 : f32 to vector<4x128xf32>
    %316 = arith.addf %315, %314 : vector<4x128xf32>
    %317 = arith.divf %315, %316 : vector<4x128xf32>
    %318 = vector.extract_strided_slice %317 {offsets = [0, 0], sizes = [4, 32], strides = [1, 1]} : vector<4x128xf32> to vector<4x32xf32>
    %319 = vector.extract_strided_slice %317 {offsets = [0, 32], sizes = [4, 32], strides = [1, 1]} : vector<4x128xf32> to vector<4x32xf32>
    %320 = vector.extract_strided_slice %317 {offsets = [0, 64], sizes = [4, 32], strides = [1, 1]} : vector<4x128xf32> to vector<4x32xf32>
    %cst_106 = arith.constant 2.000000e+00 : f32
    %321 = vector.broadcast %cst_106 : f32 to vector<4x32xf32>
    %322 = arith.mulf %321, %320 : vector<4x32xf32>
    %cst_107 = arith.constant 1.000000e+00 : f32
    %323 = vector.broadcast %cst_107 : f32 to vector<4x32xf32>
    %324 = arith.subf %322, %323 : vector<4x32xf32>
    %325 = vector.extract_strided_slice %317 {offsets = [0, 96], sizes = [4, 32], strides = [1, 1]} : vector<4x128xf32> to vector<4x32xf32>
    %326 = arith.mulf %319, %305 : vector<4x32xf32>
    %327 = arith.mulf %318, %324 : vector<4x32xf32>
    %328 = arith.addf %326, %327 : vector<4x32xf32>
    %329 = math.tanh %328 : vector<4x32xf32>
    %330 = arith.mulf %325, %329 : vector<4x32xf32>
    %c52_108 = arith.constant 52 : index
    %c0_109 = arith.constant 0 : index
    %331 = vector.load %arg15[%c52_108, %c0_109] : memref<128x32xf32, #tpu.memory_space<vmem>>, vector<4x32xf32>
    tpu.vector_store %arg15[%c52_108, %c0_109], %330 {strides = array<i32>} : memref<128x32xf32, #tpu.memory_space<vmem>>, vector<4x32xf32>,
    %c56 = arith.constant 56 : index
    %c0_110 = arith.constant 0 : index
    %332 = vector.load %arg14[%c56, %c0_110] : memref<128x128xf32, #tpu.memory_space<vmem>>, vector<4x128xf32>
    %333 = arith.truncf %330 : vector<4x32xf32> to vector<4x32xbf16>
    %cst_111 = arith.constant dense<0.000000e+00> : vector<4x128xf32>
    %334 = tpu.matmul %333, %7, %cst_111 {dimension_numbers = #tpu.dot_dimension_numbers<[1], [0], [0], [1], [0, 0, 1, 1], [], []>} : vector<4x32xbf16>, vector<32x128xbf16>, vector<4x128xf32> -> vector<4x128xf32>
    %335 = arith.addf %332, %334 : vector<4x128xf32>
    %336 = arith.negf %335 : vector<4x128xf32>
    %337 = math.exp %336 : vector<4x128xf32>
    %cst_112 = arith.constant 1.000000e+00 : f32
    %338 = vector.broadcast %cst_112 : f32 to vector<4x128xf32>
    %339 = arith.addf %338, %337 : vector<4x128xf32>
    %340 = arith.divf %338, %339 : vector<4x128xf32>
    %341 = vector.extract_strided_slice %340 {offsets = [0, 0], sizes = [4, 32], strides = [1, 1]} : vector<4x128xf32> to vector<4x32xf32>
    %342 = vector.extract_strided_slice %340 {offsets = [0, 32], sizes = [4, 32], strides = [1, 1]} : vector<4x128xf32> to vector<4x32xf32>
    %343 = vector.extract_strided_slice %340 {offsets = [0, 64], sizes = [4, 32], strides = [1, 1]} : vector<4x128xf32> to vector<4x32xf32>
    %cst_113 = arith.constant 2.000000e+00 : f32
    %344 = vector.broadcast %cst_113 : f32 to vector<4x32xf32>
    %345 = arith.mulf %344, %343 : vector<4x32xf32>
    %cst_114 = arith.constant 1.000000e+00 : f32
    %346 = vector.broadcast %cst_114 : f32 to vector<4x32xf32>
    %347 = arith.subf %345, %346 : vector<4x32xf32>
    %348 = vector.extract_strided_slice %340 {offsets = [0, 96], sizes = [4, 32], strides = [1, 1]} : vector<4x128xf32> to vector<4x32xf32>
    %349 = arith.mulf %342, %328 : vector<4x32xf32>
    %350 = arith.mulf %341, %347 : vector<4x32xf32>
    %351 = arith.addf %349, %350 : vector<4x32xf32>
    %352 = math.tanh %351 : vector<4x32xf32>
    %353 = arith.mulf %348, %352 : vector<4x32xf32>
    %c56_115 = arith.constant 56 : index
    %c0_116 = arith.constant 0 : index
    %354 = vector.load %arg15[%c56_115, %c0_116] : memref<128x32xf32, #tpu.memory_space<vmem>>, vector<4x32xf32>
    tpu.vector_store %arg15[%c56_115, %c0_116], %353 {strides = array<i32>} : memref<128x32xf32, #tpu.memory_space<vmem>>, vector<4x32xf32>,
    %c60 = arith.constant 60 : index
    %c0_117 = arith.constant 0 : index
    %355 = vector.load %arg14[%c60, %c0_117] : memref<128x128xf32, #tpu.memory_space<vmem>>, vector<4x128xf32>
    %356 = arith.truncf %353 : vector<4x32xf32> to vector<4x32xbf16>
    %cst_118 = arith.constant dense<0.000000e+00> : vector<4x128xf32>
    %357 = tpu.matmul %356, %7, %cst_118 {dimension_numbers = #tpu.dot_dimension_numbers<[1], [0], [0], [1], [0, 0, 1, 1], [], []>} : vector<4x32xbf16>, vector<32x128xbf16>, vector<4x128xf32> -> vector<4x128xf32>
    %358 = arith.addf %355, %357 : vector<4x128xf32>
    %359 = arith.negf %358 : vector<4x128xf32>
    %360 = math.exp %359 : vector<4x128xf32>
    %cst_119 = arith.constant 1.000000e+00 : f32
    %361 = vector.broadcast %cst_119 : f32 to vector<4x128xf32>
    %362 = arith.addf %361, %360 : vector<4x128xf32>
    %363 = arith.divf %361, %362 : vector<4x128xf32>
    %364 = vector.extract_strided_slice %363 {offsets = [0, 0], sizes = [4, 32], strides = [1, 1]} : vector<4x128xf32> to vector<4x32xf32>
    %365 = vector.extract_strided_slice %363 {offsets = [0, 32], sizes = [4, 32], strides = [1, 1]} : vector<4x128xf32> to vector<4x32xf32>
    %366 = vector.extract_strided_slice %363 {offsets = [0, 64], sizes = [4, 32], strides = [1, 1]} : vector<4x128xf32> to vector<4x32xf32>
    %cst_120 = arith.constant 2.000000e+00 : f32
    %367 = vector.broadcast %cst_120 : f32 to vector<4x32xf32>
    %368 = arith.mulf %367, %366 : vector<4x32xf32>
    %cst_121 = arith.constant 1.000000e+00 : f32
    %369 = vector.broadcast %cst_121 : f32 to vector<4x32xf32>
    %370 = arith.subf %368, %369 : vector<4x32xf32>
    %371 = vector.extract_strided_slice %363 {offsets = [0, 96], sizes = [4, 32], strides = [1, 1]} : vector<4x128xf32> to vector<4x32xf32>
    %372 = arith.mulf %365, %351 : vector<4x32xf32>
    %373 = arith.mulf %364, %370 : vector<4x32xf32>
    %374 = arith.addf %372, %373 : vector<4x32xf32>
    %375 = math.tanh %374 : vector<4x32xf32>
    %376 = arith.mulf %371, %375 : vector<4x32xf32>
    %c60_122 = arith.constant 60 : index
    %c0_123 = arith.constant 0 : index
    %377 = vector.load %arg15[%c60_122, %c0_123] : memref<128x32xf32, #tpu.memory_space<vmem>>, vector<4x32xf32>
    tpu.vector_store %arg15[%c60_122, %c0_123], %376 {strides = array<i32>} : memref<128x32xf32, #tpu.memory_space<vmem>>, vector<4x32xf32>,
    %c64 = arith.constant 64 : index
    %c0_124 = arith.constant 0 : index
    %378 = vector.load %arg14[%c64, %c0_124] : memref<128x128xf32, #tpu.memory_space<vmem>>, vector<4x128xf32>
    %379 = arith.truncf %376 : vector<4x32xf32> to vector<4x32xbf16>
    %cst_125 = arith.constant dense<0.000000e+00> : vector<4x128xf32>
    %380 = tpu.matmul %379, %7, %cst_125 {dimension_numbers = #tpu.dot_dimension_numbers<[1], [0], [0], [1], [0, 0, 1, 1], [], []>} : vector<4x32xbf16>, vector<32x128xbf16>, vector<4x128xf32> -> vector<4x128xf32>
    %381 = arith.addf %378, %380 : vector<4x128xf32>
    %382 = arith.negf %381 : vector<4x128xf32>
    %383 = math.exp %382 : vector<4x128xf32>
    %cst_126 = arith.constant 1.000000e+00 : f32
    %384 = vector.broadcast %cst_126 : f32 to vector<4x128xf32>
    %385 = arith.addf %384, %383 : vector<4x128xf32>
    %386 = arith.divf %384, %385 : vector<4x128xf32>
    %387 = vector.extract_strided_slice %386 {offsets = [0, 0], sizes = [4, 32], strides = [1, 1]} : vector<4x128xf32> to vector<4x32xf32>
    %388 = vector.extract_strided_slice %386 {offsets = [0, 32], sizes = [4, 32], strides = [1, 1]} : vector<4x128xf32> to vector<4x32xf32>
    %389 = vector.extract_strided_slice %386 {offsets = [0, 64], sizes = [4, 32], strides = [1, 1]} : vector<4x128xf32> to vector<4x32xf32>
    %cst_127 = arith.constant 2.000000e+00 : f32
    %390 = vector.broadcast %cst_127 : f32 to vector<4x32xf32>
    %391 = arith.mulf %390, %389 : vector<4x32xf32>
    %cst_128 = arith.constant 1.000000e+00 : f32
    %392 = vector.broadcast %cst_128 : f32 to vector<4x32xf32>
    %393 = arith.subf %391, %392 : vector<4x32xf32>
    %394 = vector.extract_strided_slice %386 {offsets = [0, 96], sizes = [4, 32], strides = [1, 1]} : vector<4x128xf32> to vector<4x32xf32>
    %395 = arith.mulf %388, %374 : vector<4x32xf32>
    %396 = arith.mulf %387, %393 : vector<4x32xf32>
    %397 = arith.addf %395, %396 : vector<4x32xf32>
    %398 = math.tanh %397 : vector<4x32xf32>
    %399 = arith.mulf %394, %398 : vector<4x32xf32>
    %c64_129 = arith.constant 64 : index
    %c0_130 = arith.constant 0 : index
    %400 = vector.load %arg15[%c64_129, %c0_130] : memref<128x32xf32, #tpu.memory_space<vmem>>, vector<4x32xf32>
    tpu.vector_store %arg15[%c64_129, %c0_130], %399 {strides = array<i32>} : memref<128x32xf32, #tpu.memory_space<vmem>>, vector<4x32xf32>,
    %c68 = arith.constant 68 : index
    %c0_131 = arith.constant 0 : index
    %401 = vector.load %arg14[%c68, %c0_131] : memref<128x128xf32, #tpu.memory_space<vmem>>, vector<4x128xf32>
    %402 = arith.truncf %399 : vector<4x32xf32> to vector<4x32xbf16>
    %cst_132 = arith.constant dense<0.000000e+00> : vector<4x128xf32>
    %403 = tpu.matmul %402, %7, %cst_132 {dimension_numbers = #tpu.dot_dimension_numbers<[1], [0], [0], [1], [0, 0, 1, 1], [], []>} : vector<4x32xbf16>, vector<32x128xbf16>, vector<4x128xf32> -> vector<4x128xf32>
    %404 = arith.addf %401, %403 : vector<4x128xf32>
    %405 = arith.negf %404 : vector<4x128xf32>
    %406 = math.exp %405 : vector<4x128xf32>
    %cst_133 = arith.constant 1.000000e+00 : f32
    %407 = vector.broadcast %cst_133 : f32 to vector<4x128xf32>
    %408 = arith.addf %407, %406 : vector<4x128xf32>
    %409 = arith.divf %407, %408 : vector<4x128xf32>
    %410 = vector.extract_strided_slice %409 {offsets = [0, 0], sizes = [4, 32], strides = [1, 1]} : vector<4x128xf32> to vector<4x32xf32>
    %411 = vector.extract_strided_slice %409 {offsets = [0, 32], sizes = [4, 32], strides = [1, 1]} : vector<4x128xf32> to vector<4x32xf32>
    %412 = vector.extract_strided_slice %409 {offsets = [0, 64], sizes = [4, 32], strides = [1, 1]} : vector<4x128xf32> to vector<4x32xf32>
    %cst_134 = arith.constant 2.000000e+00 : f32
    %413 = vector.broadcast %cst_134 : f32 to vector<4x32xf32>
    %414 = arith.mulf %413, %412 : vector<4x32xf32>
    %cst_135 = arith.constant 1.000000e+00 : f32
    %415 = vector.broadcast %cst_135 : f32 to vector<4x32xf32>
    %416 = arith.subf %414, %415 : vector<4x32xf32>
    %417 = vector.extract_strided_slice %409 {offsets = [0, 96], sizes = [4, 32], strides = [1, 1]} : vector<4x128xf32> to vector<4x32xf32>
    %418 = arith.mulf %411, %397 : vector<4x32xf32>
    %419 = arith.mulf %410, %416 : vector<4x32xf32>
    %420 = arith.addf %418, %419 : vector<4x32xf32>
    %421 = math.tanh %420 : vector<4x32xf32>
    %422 = arith.mulf %417, %421 : vector<4x32xf32>
    %c68_136 = arith.constant 68 : index
    %c0_137 = arith.constant 0 : index
    %423 = vector.load %arg15[%c68_136, %c0_137] : memref<128x32xf32, #tpu.memory_space<vmem>>, vector<4x32xf32>
    tpu.vector_store %arg15[%c68_136, %c0_137], %422 {strides = array<i32>} : memref<128x32xf32, #tpu.memory_space<vmem>>, vector<4x32xf32>,
    %c72 = arith.constant 72 : index
    %c0_138 = arith.constant 0 : index
    %424 = vector.load %arg14[%c72, %c0_138] : memref<128x128xf32, #tpu.memory_space<vmem>>, vector<4x128xf32>
    %425 = arith.truncf %422 : vector<4x32xf32> to vector<4x32xbf16>
    %cst_139 = arith.constant dense<0.000000e+00> : vector<4x128xf32>
    %426 = tpu.matmul %425, %7, %cst_139 {dimension_numbers = #tpu.dot_dimension_numbers<[1], [0], [0], [1], [0, 0, 1, 1], [], []>} : vector<4x32xbf16>, vector<32x128xbf16>, vector<4x128xf32> -> vector<4x128xf32>
    %427 = arith.addf %424, %426 : vector<4x128xf32>
    %428 = arith.negf %427 : vector<4x128xf32>
    %429 = math.exp %428 : vector<4x128xf32>
    %cst_140 = arith.constant 1.000000e+00 : f32
    %430 = vector.broadcast %cst_140 : f32 to vector<4x128xf32>
    %431 = arith.addf %430, %429 : vector<4x128xf32>
    %432 = arith.divf %430, %431 : vector<4x128xf32>
    %433 = vector.extract_strided_slice %432 {offsets = [0, 0], sizes = [4, 32], strides = [1, 1]} : vector<4x128xf32> to vector<4x32xf32>
    %434 = vector.extract_strided_slice %432 {offsets = [0, 32], sizes = [4, 32], strides = [1, 1]} : vector<4x128xf32> to vector<4x32xf32>
    %435 = vector.extract_strided_slice %432 {offsets = [0, 64], sizes = [4, 32], strides = [1, 1]} : vector<4x128xf32> to vector<4x32xf32>
    %cst_141 = arith.constant 2.000000e+00 : f32
    %436 = vector.broadcast %cst_141 : f32 to vector<4x32xf32>
    %437 = arith.mulf %436, %435 : vector<4x32xf32>
    %cst_142 = arith.constant 1.000000e+00 : f32
    %438 = vector.broadcast %cst_142 : f32 to vector<4x32xf32>
    %439 = arith.subf %437, %438 : vector<4x32xf32>
    %440 = vector.extract_strided_slice %432 {offsets = [0, 96], sizes = [4, 32], strides = [1, 1]} : vector<4x128xf32> to vector<4x32xf32>
    %441 = arith.mulf %434, %420 : vector<4x32xf32>
    %442 = arith.mulf %433, %439 : vector<4x32xf32>
    %443 = arith.addf %441, %442 : vector<4x32xf32>
    %444 = math.tanh %443 : vector<4x32xf32>
    %445 = arith.mulf %440, %444 : vector<4x32xf32>
    %c72_143 = arith.constant 72 : index
    %c0_144 = arith.constant 0 : index
    %446 = vector.load %arg15[%c72_143, %c0_144] : memref<128x32xf32, #tpu.memory_space<vmem>>, vector<4x32xf32>
    tpu.vector_store %arg15[%c72_143, %c0_144], %445 {strides = array<i32>} : memref<128x32xf32, #tpu.memory_space<vmem>>, vector<4x32xf32>,
    %c76 = arith.constant 76 : index
    %c0_145 = arith.constant 0 : index
    %447 = vector.load %arg14[%c76, %c0_145] : memref<128x128xf32, #tpu.memory_space<vmem>>, vector<4x128xf32>
    %448 = arith.truncf %445 : vector<4x32xf32> to vector<4x32xbf16>
    %cst_146 = arith.constant dense<0.000000e+00> : vector<4x128xf32>
    %449 = tpu.matmul %448, %7, %cst_146 {dimension_numbers = #tpu.dot_dimension_numbers<[1], [0], [0], [1], [0, 0, 1, 1], [], []>} : vector<4x32xbf16>, vector<32x128xbf16>, vector<4x128xf32> -> vector<4x128xf32>
    %450 = arith.addf %447, %449 : vector<4x128xf32>
    %451 = arith.negf %450 : vector<4x128xf32>
    %452 = math.exp %451 : vector<4x128xf32>
    %cst_147 = arith.constant 1.000000e+00 : f32
    %453 = vector.broadcast %cst_147 : f32 to vector<4x128xf32>
    %454 = arith.addf %453, %452 : vector<4x128xf32>
    %455 = arith.divf %453, %454 : vector<4x128xf32>
    %456 = vector.extract_strided_slice %455 {offsets = [0, 0], sizes = [4, 32], strides = [1, 1]} : vector<4x128xf32> to vector<4x32xf32>
    %457 = vector.extract_strided_slice %455 {offsets = [0, 32], sizes = [4, 32], strides = [1, 1]} : vector<4x128xf32> to vector<4x32xf32>
    %458 = vector.extract_strided_slice %455 {offsets = [0, 64], sizes = [4, 32], strides = [1, 1]} : vector<4x128xf32> to vector<4x32xf32>
    %cst_148 = arith.constant 2.000000e+00 : f32
    %459 = vector.broadcast %cst_148 : f32 to vector<4x32xf32>
    %460 = arith.mulf %459, %458 : vector<4x32xf32>
    %cst_149 = arith.constant 1.000000e+00 : f32
    %461 = vector.broadcast %cst_149 : f32 to vector<4x32xf32>
    %462 = arith.subf %460, %461 : vector<4x32xf32>
    %463 = vector.extract_strided_slice %455 {offsets = [0, 96], sizes = [4, 32], strides = [1, 1]} : vector<4x128xf32> to vector<4x32xf32>
    %464 = arith.mulf %457, %443 : vector<4x32xf32>
    %465 = arith.mulf %456, %462 : vector<4x32xf32>
    %466 = arith.addf %464, %465 : vector<4x32xf32>
    %467 = math.tanh %466 : vector<4x32xf32>
    %468 = arith.mulf %463, %467 : vector<4x32xf32>
    %c76_150 = arith.constant 76 : index
    %c0_151 = arith.constant 0 : index
    %469 = vector.load %arg15[%c76_150, %c0_151] : memref<128x32xf32, #tpu.memory_space<vmem>>, vector<4x32xf32>
    tpu.vector_store %arg15[%c76_150, %c0_151], %468 {strides = array<i32>} : memref<128x32xf32, #tpu.memory_space<vmem>>, vector<4x32xf32>,
    %c80 = arith.constant 80 : index
    %c0_152 = arith.constant 0 : index
    %470 = vector.load %arg14[%c80, %c0_152] : memref<128x128xf32, #tpu.memory_space<vmem>>, vector<4x128xf32>
    %471 = arith.truncf %468 : vector<4x32xf32> to vector<4x32xbf16>
    %cst_153 = arith.constant dense<0.000000e+00> : vector<4x128xf32>
    %472 = tpu.matmul %471, %7, %cst_153 {dimension_numbers = #tpu.dot_dimension_numbers<[1], [0], [0], [1], [0, 0, 1, 1], [], []>} : vector<4x32xbf16>, vector<32x128xbf16>, vector<4x128xf32> -> vector<4x128xf32>
    %473 = arith.addf %470, %472 : vector<4x128xf32>
    %474 = arith.negf %473 : vector<4x128xf32>
    %475 = math.exp %474 : vector<4x128xf32>
    %cst_154 = arith.constant 1.000000e+00 : f32
    %476 = vector.broadcast %cst_154 : f32 to vector<4x128xf32>
    %477 = arith.addf %476, %475 : vector<4x128xf32>
    %478 = arith.divf %476, %477 : vector<4x128xf32>
    %479 = vector.extract_strided_slice %478 {offsets = [0, 0], sizes = [4, 32], strides = [1, 1]} : vector<4x128xf32> to vector<4x32xf32>
    %480 = vector.extract_strided_slice %478 {offsets = [0, 32], sizes = [4, 32], strides = [1, 1]} : vector<4x128xf32> to vector<4x32xf32>
    %481 = vector.extract_strided_slice %478 {offsets = [0, 64], sizes = [4, 32], strides = [1, 1]} : vector<4x128xf32> to vector<4x32xf32>
    %cst_155 = arith.constant 2.000000e+00 : f32
    %482 = vector.broadcast %cst_155 : f32 to vector<4x32xf32>
    %483 = arith.mulf %482, %481 : vector<4x32xf32>
    %cst_156 = arith.constant 1.000000e+00 : f32
    %484 = vector.broadcast %cst_156 : f32 to vector<4x32xf32>
    %485 = arith.subf %483, %484 : vector<4x32xf32>
    %486 = vector.extract_strided_slice %478 {offsets = [0, 96], sizes = [4, 32], strides = [1, 1]} : vector<4x128xf32> to vector<4x32xf32>
    %487 = arith.mulf %480, %466 : vector<4x32xf32>
    %488 = arith.mulf %479, %485 : vector<4x32xf32>
    %489 = arith.addf %487, %488 : vector<4x32xf32>
    %490 = math.tanh %489 : vector<4x32xf32>
    %491 = arith.mulf %486, %490 : vector<4x32xf32>
    %c80_157 = arith.constant 80 : index
    %c0_158 = arith.constant 0 : index
    %492 = vector.load %arg15[%c80_157, %c0_158] : memref<128x32xf32, #tpu.memory_space<vmem>>, vector<4x32xf32>
    tpu.vector_store %arg15[%c80_157, %c0_158], %491 {strides = array<i32>} : memref<128x32xf32, #tpu.memory_space<vmem>>, vector<4x32xf32>,
    %c84 = arith.constant 84 : index
    %c0_159 = arith.constant 0 : index
    %493 = vector.load %arg14[%c84, %c0_159] : memref<128x128xf32, #tpu.memory_space<vmem>>, vector<4x128xf32>
    %494 = arith.truncf %491 : vector<4x32xf32> to vector<4x32xbf16>
    %cst_160 = arith.constant dense<0.000000e+00> : vector<4x128xf32>
    %495 = tpu.matmul %494, %7, %cst_160 {dimension_numbers = #tpu.dot_dimension_numbers<[1], [0], [0], [1], [0, 0, 1, 1], [], []>} : vector<4x32xbf16>, vector<32x128xbf16>, vector<4x128xf32> -> vector<4x128xf32>
    %496 = arith.addf %493, %495 : vector<4x128xf32>
    %497 = arith.negf %496 : vector<4x128xf32>
    %498 = math.exp %497 : vector<4x128xf32>
    %cst_161 = arith.constant 1.000000e+00 : f32
    %499 = vector.broadcast %cst_161 : f32 to vector<4x128xf32>
    %500 = arith.addf %499, %498 : vector<4x128xf32>
    %501 = arith.divf %499, %500 : vector<4x128xf32>
    %502 = vector.extract_strided_slice %501 {offsets = [0, 0], sizes = [4, 32], strides = [1, 1]} : vector<4x128xf32> to vector<4x32xf32>
    %503 = vector.extract_strided_slice %501 {offsets = [0, 32], sizes = [4, 32], strides = [1, 1]} : vector<4x128xf32> to vector<4x32xf32>
    %504 = vector.extract_strided_slice %501 {offsets = [0, 64], sizes = [4, 32], strides = [1, 1]} : vector<4x128xf32> to vector<4x32xf32>
    %cst_162 = arith.constant 2.000000e+00 : f32
    %505 = vector.broadcast %cst_162 : f32 to vector<4x32xf32>
    %506 = arith.mulf %505, %504 : vector<4x32xf32>
    %cst_163 = arith.constant 1.000000e+00 : f32
    %507 = vector.broadcast %cst_163 : f32 to vector<4x32xf32>
    %508 = arith.subf %506, %507 : vector<4x32xf32>
    %509 = vector.extract_strided_slice %501 {offsets = [0, 96], sizes = [4, 32], strides = [1, 1]} : vector<4x128xf32> to vector<4x32xf32>
    %510 = arith.mulf %503, %489 : vector<4x32xf32>
    %511 = arith.mulf %502, %508 : vector<4x32xf32>
    %512 = arith.addf %510, %511 : vector<4x32xf32>
    %513 = math.tanh %512 : vector<4x32xf32>
    %514 = arith.mulf %509, %513 : vector<4x32xf32>
    %c84_164 = arith.constant 84 : index
    %c0_165 = arith.constant 0 : index
    %515 = vector.load %arg15[%c84_164, %c0_165] : memref<128x32xf32, #tpu.memory_space<vmem>>, vector<4x32xf32>
    tpu.vector_store %arg15[%c84_164, %c0_165], %514 {strides = array<i32>} : memref<128x32xf32, #tpu.memory_space<vmem>>, vector<4x32xf32>,
    %c88 = arith.constant 88 : index
    %c0_166 = arith.constant 0 : index
    %516 = vector.load %arg14[%c88, %c0_166] : memref<128x128xf32, #tpu.memory_space<vmem>>, vector<4x128xf32>
    %517 = arith.truncf %514 : vector<4x32xf32> to vector<4x32xbf16>
    %cst_167 = arith.constant dense<0.000000e+00> : vector<4x128xf32>
    %518 = tpu.matmul %517, %7, %cst_167 {dimension_numbers = #tpu.dot_dimension_numbers<[1], [0], [0], [1], [0, 0, 1, 1], [], []>} : vector<4x32xbf16>, vector<32x128xbf16>, vector<4x128xf32> -> vector<4x128xf32>
    %519 = arith.addf %516, %518 : vector<4x128xf32>
    %520 = arith.negf %519 : vector<4x128xf32>
    %521 = math.exp %520 : vector<4x128xf32>
    %cst_168 = arith.constant 1.000000e+00 : f32
    %522 = vector.broadcast %cst_168 : f32 to vector<4x128xf32>
    %523 = arith.addf %522, %521 : vector<4x128xf32>
    %524 = arith.divf %522, %523 : vector<4x128xf32>
    %525 = vector.extract_strided_slice %524 {offsets = [0, 0], sizes = [4, 32], strides = [1, 1]} : vector<4x128xf32> to vector<4x32xf32>
    %526 = vector.extract_strided_slice %524 {offsets = [0, 32], sizes = [4, 32], strides = [1, 1]} : vector<4x128xf32> to vector<4x32xf32>
    %527 = vector.extract_strided_slice %524 {offsets = [0, 64], sizes = [4, 32], strides = [1, 1]} : vector<4x128xf32> to vector<4x32xf32>
    %cst_169 = arith.constant 2.000000e+00 : f32
    %528 = vector.broadcast %cst_169 : f32 to vector<4x32xf32>
    %529 = arith.mulf %528, %527 : vector<4x32xf32>
    %cst_170 = arith.constant 1.000000e+00 : f32
    %530 = vector.broadcast %cst_170 : f32 to vector<4x32xf32>
    %531 = arith.subf %529, %530 : vector<4x32xf32>
    %532 = vector.extract_strided_slice %524 {offsets = [0, 96], sizes = [4, 32], strides = [1, 1]} : vector<4x128xf32> to vector<4x32xf32>
    %533 = arith.mulf %526, %512 : vector<4x32xf32>
    %534 = arith.mulf %525, %531 : vector<4x32xf32>
    %535 = arith.addf %533, %534 : vector<4x32xf32>
    %536 = math.tanh %535 : vector<4x32xf32>
    %537 = arith.mulf %532, %536 : vector<4x32xf32>
    %c88_171 = arith.constant 88 : index
    %c0_172 = arith.constant 0 : index
    %538 = vector.load %arg15[%c88_171, %c0_172] : memref<128x32xf32, #tpu.memory_space<vmem>>, vector<4x32xf32>
    tpu.vector_store %arg15[%c88_171, %c0_172], %537 {strides = array<i32>} : memref<128x32xf32, #tpu.memory_space<vmem>>, vector<4x32xf32>,
    %c92 = arith.constant 92 : index
    %c0_173 = arith.constant 0 : index
    %539 = vector.load %arg14[%c92, %c0_173] : memref<128x128xf32, #tpu.memory_space<vmem>>, vector<4x128xf32>
    %540 = arith.truncf %537 : vector<4x32xf32> to vector<4x32xbf16>
    %cst_174 = arith.constant dense<0.000000e+00> : vector<4x128xf32>
    %541 = tpu.matmul %540, %7, %cst_174 {dimension_numbers = #tpu.dot_dimension_numbers<[1], [0], [0], [1], [0, 0, 1, 1], [], []>} : vector<4x32xbf16>, vector<32x128xbf16>, vector<4x128xf32> -> vector<4x128xf32>
    %542 = arith.addf %539, %541 : vector<4x128xf32>
    %543 = arith.negf %542 : vector<4x128xf32>
    %544 = math.exp %543 : vector<4x128xf32>
    %cst_175 = arith.constant 1.000000e+00 : f32
    %545 = vector.broadcast %cst_175 : f32 to vector<4x128xf32>
    %546 = arith.addf %545, %544 : vector<4x128xf32>
    %547 = arith.divf %545, %546 : vector<4x128xf32>
    %548 = vector.extract_strided_slice %547 {offsets = [0, 0], sizes = [4, 32], strides = [1, 1]} : vector<4x128xf32> to vector<4x32xf32>
    %549 = vector.extract_strided_slice %547 {offsets = [0, 32], sizes = [4, 32], strides = [1, 1]} : vector<4x128xf32> to vector<4x32xf32>
    %550 = vector.extract_strided_slice %547 {offsets = [0, 64], sizes = [4, 32], strides = [1, 1]} : vector<4x128xf32> to vector<4x32xf32>
    %cst_176 = arith.constant 2.000000e+00 : f32
    %551 = vector.broadcast %cst_176 : f32 to vector<4x32xf32>
    %552 = arith.mulf %551, %550 : vector<4x32xf32>
    %cst_177 = arith.constant 1.000000e+00 : f32
    %553 = vector.broadcast %cst_177 : f32 to vector<4x32xf32>
    %554 = arith.subf %552, %553 : vector<4x32xf32>
    %555 = vector.extract_strided_slice %547 {offsets = [0, 96], sizes = [4, 32], strides = [1, 1]} : vector<4x128xf32> to vector<4x32xf32>
    %556 = arith.mulf %549, %535 : vector<4x32xf32>
    %557 = arith.mulf %548, %554 : vector<4x32xf32>
    %558 = arith.addf %556, %557 : vector<4x32xf32>
    %559 = math.tanh %558 : vector<4x32xf32>
    %560 = arith.mulf %555, %559 : vector<4x32xf32>
    %c92_178 = arith.constant 92 : index
    %c0_179 = arith.constant 0 : index
    %561 = vector.load %arg15[%c92_178, %c0_179] : memref<128x32xf32, #tpu.memory_space<vmem>>, vector<4x32xf32>
    tpu.vector_store %arg15[%c92_178, %c0_179], %560 {strides = array<i32>} : memref<128x32xf32, #tpu.memory_space<vmem>>, vector<4x32xf32>,
    %c96 = arith.constant 96 : index
    %c0_180 = arith.constant 0 : index
    %562 = vector.load %arg14[%c96, %c0_180] : memref<128x128xf32, #tpu.memory_space<vmem>>, vector<4x128xf32>
    %563 = arith.truncf %560 : vector<4x32xf32> to vector<4x32xbf16>
    %cst_181 = arith.constant dense<0.000000e+00> : vector<4x128xf32>
    %564 = tpu.matmul %563, %7, %cst_181 {dimension_numbers = #tpu.dot_dimension_numbers<[1], [0], [0], [1], [0, 0, 1, 1], [], []>} : vector<4x32xbf16>, vector<32x128xbf16>, vector<4x128xf32> -> vector<4x128xf32>
    %565 = arith.addf %562, %564 : vector<4x128xf32>
    %566 = arith.negf %565 : vector<4x128xf32>
    %567 = math.exp %566 : vector<4x128xf32>
    %cst_182 = arith.constant 1.000000e+00 : f32
    %568 = vector.broadcast %cst_182 : f32 to vector<4x128xf32>
    %569 = arith.addf %568, %567 : vector<4x128xf32>
    %570 = arith.divf %568, %569 : vector<4x128xf32>
    %571 = vector.extract_strided_slice %570 {offsets = [0, 0], sizes = [4, 32], strides = [1, 1]} : vector<4x128xf32> to vector<4x32xf32>
    %572 = vector.extract_strided_slice %570 {offsets = [0, 32], sizes = [4, 32], strides = [1, 1]} : vector<4x128xf32> to vector<4x32xf32>
    %573 = vector.extract_strided_slice %570 {offsets = [0, 64], sizes = [4, 32], strides = [1, 1]} : vector<4x128xf32> to vector<4x32xf32>
    %cst_183 = arith.constant 2.000000e+00 : f32
    %574 = vector.broadcast %cst_183 : f32 to vector<4x32xf32>
    %575 = arith.mulf %574, %573 : vector<4x32xf32>
    %cst_184 = arith.constant 1.000000e+00 : f32
    %576 = vector.broadcast %cst_184 : f32 to vector<4x32xf32>
    %577 = arith.subf %575, %576 : vector<4x32xf32>
    %578 = vector.extract_strided_slice %570 {offsets = [0, 96], sizes = [4, 32], strides = [1, 1]} : vector<4x128xf32> to vector<4x32xf32>
    %579 = arith.mulf %572, %558 : vector<4x32xf32>
    %580 = arith.mulf %571, %577 : vector<4x32xf32>
    %581 = arith.addf %579, %580 : vector<4x32xf32>
    %582 = math.tanh %581 : vector<4x32xf32>
    %583 = arith.mulf %578, %582 : vector<4x32xf32>
    %c96_185 = arith.constant 96 : index
    %c0_186 = arith.constant 0 : index
    %584 = vector.load %arg15[%c96_185, %c0_186] : memref<128x32xf32, #tpu.memory_space<vmem>>, vector<4x32xf32>
    tpu.vector_store %arg15[%c96_185, %c0_186], %583 {strides = array<i32>} : memref<128x32xf32, #tpu.memory_space<vmem>>, vector<4x32xf32>,
    %c100 = arith.constant 100 : index
    %c0_187 = arith.constant 0 : index
    %585 = vector.load %arg14[%c100, %c0_187] : memref<128x128xf32, #tpu.memory_space<vmem>>, vector<4x128xf32>
    %586 = arith.truncf %583 : vector<4x32xf32> to vector<4x32xbf16>
    %cst_188 = arith.constant dense<0.000000e+00> : vector<4x128xf32>
    %587 = tpu.matmul %586, %7, %cst_188 {dimension_numbers = #tpu.dot_dimension_numbers<[1], [0], [0], [1], [0, 0, 1, 1], [], []>} : vector<4x32xbf16>, vector<32x128xbf16>, vector<4x128xf32> -> vector<4x128xf32>
    %588 = arith.addf %585, %587 : vector<4x128xf32>
    %589 = arith.negf %588 : vector<4x128xf32>
    %590 = math.exp %589 : vector<4x128xf32>
    %cst_189 = arith.constant 1.000000e+00 : f32
    %591 = vector.broadcast %cst_189 : f32 to vector<4x128xf32>
    %592 = arith.addf %591, %590 : vector<4x128xf32>
    %593 = arith.divf %591, %592 : vector<4x128xf32>
    %594 = vector.extract_strided_slice %593 {offsets = [0, 0], sizes = [4, 32], strides = [1, 1]} : vector<4x128xf32> to vector<4x32xf32>
    %595 = vector.extract_strided_slice %593 {offsets = [0, 32], sizes = [4, 32], strides = [1, 1]} : vector<4x128xf32> to vector<4x32xf32>
    %596 = vector.extract_strided_slice %593 {offsets = [0, 64], sizes = [4, 32], strides = [1, 1]} : vector<4x128xf32> to vector<4x32xf32>
    %cst_190 = arith.constant 2.000000e+00 : f32
    %597 = vector.broadcast %cst_190 : f32 to vector<4x32xf32>
    %598 = arith.mulf %597, %596 : vector<4x32xf32>
    %cst_191 = arith.constant 1.000000e+00 : f32
    %599 = vector.broadcast %cst_191 : f32 to vector<4x32xf32>
    %600 = arith.subf %598, %599 : vector<4x32xf32>
    %601 = vector.extract_strided_slice %593 {offsets = [0, 96], sizes = [4, 32], strides = [1, 1]} : vector<4x128xf32> to vector<4x32xf32>
    %602 = arith.mulf %595, %581 : vector<4x32xf32>
    %603 = arith.mulf %594, %600 : vector<4x32xf32>
    %604 = arith.addf %602, %603 : vector<4x32xf32>
    %605 = math.tanh %604 : vector<4x32xf32>
    %606 = arith.mulf %601, %605 : vector<4x32xf32>
    %c100_192 = arith.constant 100 : index
    %c0_193 = arith.constant 0 : index
    %607 = vector.load %arg15[%c100_192, %c0_193] : memref<128x32xf32, #tpu.memory_space<vmem>>, vector<4x32xf32>
    tpu.vector_store %arg15[%c100_192, %c0_193], %606 {strides = array<i32>} : memref<128x32xf32, #tpu.memory_space<vmem>>, vector<4x32xf32>,
    %c104 = arith.constant 104 : index
    %c0_194 = arith.constant 0 : index
    %608 = vector.load %arg14[%c104, %c0_194] : memref<128x128xf32, #tpu.memory_space<vmem>>, vector<4x128xf32>
    %609 = arith.truncf %606 : vector<4x32xf32> to vector<4x32xbf16>
    %cst_195 = arith.constant dense<0.000000e+00> : vector<4x128xf32>
    %610 = tpu.matmul %609, %7, %cst_195 {dimension_numbers = #tpu.dot_dimension_numbers<[1], [0], [0], [1], [0, 0, 1, 1], [], []>} : vector<4x32xbf16>, vector<32x128xbf16>, vector<4x128xf32> -> vector<4x128xf32>
    %611 = arith.addf %608, %610 : vector<4x128xf32>
    %612 = arith.negf %611 : vector<4x128xf32>
    %613 = math.exp %612 : vector<4x128xf32>
    %cst_196 = arith.constant 1.000000e+00 : f32
    %614 = vector.broadcast %cst_196 : f32 to vector<4x128xf32>
    %615 = arith.addf %614, %613 : vector<4x128xf32>
    %616 = arith.divf %614, %615 : vector<4x128xf32>
    %617 = vector.extract_strided_slice %616 {offsets = [0, 0], sizes = [4, 32], strides = [1, 1]} : vector<4x128xf32> to vector<4x32xf32>
    %618 = vector.extract_strided_slice %616 {offsets = [0, 32], sizes = [4, 32], strides = [1, 1]} : vector<4x128xf32> to vector<4x32xf32>
    %619 = vector.extract_strided_slice %616 {offsets = [0, 64], sizes = [4, 32], strides = [1, 1]} : vector<4x128xf32> to vector<4x32xf32>
    %cst_197 = arith.constant 2.000000e+00 : f32
    %620 = vector.broadcast %cst_197 : f32 to vector<4x32xf32>
    %621 = arith.mulf %620, %619 : vector<4x32xf32>
    %cst_198 = arith.constant 1.000000e+00 : f32
    %622 = vector.broadcast %cst_198 : f32 to vector<4x32xf32>
    %623 = arith.subf %621, %622 : vector<4x32xf32>
    %624 = vector.extract_strided_slice %616 {offsets = [0, 96], sizes = [4, 32], strides = [1, 1]} : vector<4x128xf32> to vector<4x32xf32>
    %625 = arith.mulf %618, %604 : vector<4x32xf32>
    %626 = arith.mulf %617, %623 : vector<4x32xf32>
    %627 = arith.addf %625, %626 : vector<4x32xf32>
    %628 = math.tanh %627 : vector<4x32xf32>
    %629 = arith.mulf %624, %628 : vector<4x32xf32>
    %c104_199 = arith.constant 104 : index
    %c0_200 = arith.constant 0 : index
    %630 = vector.load %arg15[%c104_199, %c0_200] : memref<128x32xf32, #tpu.memory_space<vmem>>, vector<4x32xf32>
    tpu.vector_store %arg15[%c104_199, %c0_200], %629 {strides = array<i32>} : memref<128x32xf32, #tpu.memory_space<vmem>>, vector<4x32xf32>,
    %c108 = arith.constant 108 : index
    %c0_201 = arith.constant 0 : index
    %631 = vector.load %arg14[%c108, %c0_201] : memref<128x128xf32, #tpu.memory_space<vmem>>, vector<4x128xf32>
    %632 = arith.truncf %629 : vector<4x32xf32> to vector<4x32xbf16>
    %cst_202 = arith.constant dense<0.000000e+00> : vector<4x128xf32>
    %633 = tpu.matmul %632, %7, %cst_202 {dimension_numbers = #tpu.dot_dimension_numbers<[1], [0], [0], [1], [0, 0, 1, 1], [], []>} : vector<4x32xbf16>, vector<32x128xbf16>, vector<4x128xf32> -> vector<4x128xf32>
    %634 = arith.addf %631, %633 : vector<4x128xf32>
    %635 = arith.negf %634 : vector<4x128xf32>
    %636 = math.exp %635 : vector<4x128xf32>
    %cst_203 = arith.constant 1.000000e+00 : f32
    %637 = vector.broadcast %cst_203 : f32 to vector<4x128xf32>
    %638 = arith.addf %637, %636 : vector<4x128xf32>
    %639 = arith.divf %637, %638 : vector<4x128xf32>
    %640 = vector.extract_strided_slice %639 {offsets = [0, 0], sizes = [4, 32], strides = [1, 1]} : vector<4x128xf32> to vector<4x32xf32>
    %641 = vector.extract_strided_slice %639 {offsets = [0, 32], sizes = [4, 32], strides = [1, 1]} : vector<4x128xf32> to vector<4x32xf32>
    %642 = vector.extract_strided_slice %639 {offsets = [0, 64], sizes = [4, 32], strides = [1, 1]} : vector<4x128xf32> to vector<4x32xf32>
    %cst_204 = arith.constant 2.000000e+00 : f32
    %643 = vector.broadcast %cst_204 : f32 to vector<4x32xf32>
    %644 = arith.mulf %643, %642 : vector<4x32xf32>
    %cst_205 = arith.constant 1.000000e+00 : f32
    %645 = vector.broadcast %cst_205 : f32 to vector<4x32xf32>
    %646 = arith.subf %644, %645 : vector<4x32xf32>
    %647 = vector.extract_strided_slice %639 {offsets = [0, 96], sizes = [4, 32], strides = [1, 1]} : vector<4x128xf32> to vector<4x32xf32>
    %648 = arith.mulf %641, %627 : vector<4x32xf32>
    %649 = arith.mulf %640, %646 : vector<4x32xf32>
    %650 = arith.addf %648, %649 : vector<4x32xf32>
    %651 = math.tanh %650 : vector<4x32xf32>
    %652 = arith.mulf %647, %651 : vector<4x32xf32>
    %c108_206 = arith.constant 108 : index
    %c0_207 = arith.constant 0 : index
    %653 = vector.load %arg15[%c108_206, %c0_207] : memref<128x32xf32, #tpu.memory_space<vmem>>, vector<4x32xf32>
    tpu.vector_store %arg15[%c108_206, %c0_207], %652 {strides = array<i32>} : memref<128x32xf32, #tpu.memory_space<vmem>>, vector<4x32xf32>,
    %c112 = arith.constant 112 : index
    %c0_208 = arith.constant 0 : index
    %654 = vector.load %arg14[%c112, %c0_208] : memref<128x128xf32, #tpu.memory_space<vmem>>, vector<4x128xf32>
    %655 = arith.truncf %652 : vector<4x32xf32> to vector<4x32xbf16>
    %cst_209 = arith.constant dense<0.000000e+00> : vector<4x128xf32>
    %656 = tpu.matmul %655, %7, %cst_209 {dimension_numbers = #tpu.dot_dimension_numbers<[1], [0], [0], [1], [0, 0, 1, 1], [], []>} : vector<4x32xbf16>, vector<32x128xbf16>, vector<4x128xf32> -> vector<4x128xf32>
    %657 = arith.addf %654, %656 : vector<4x128xf32>
    %658 = arith.negf %657 : vector<4x128xf32>
    %659 = math.exp %658 : vector<4x128xf32>
    %cst_210 = arith.constant 1.000000e+00 : f32
    %660 = vector.broadcast %cst_210 : f32 to vector<4x128xf32>
    %661 = arith.addf %660, %659 : vector<4x128xf32>
    %662 = arith.divf %660, %661 : vector<4x128xf32>
    %663 = vector.extract_strided_slice %662 {offsets = [0, 0], sizes = [4, 32], strides = [1, 1]} : vector<4x128xf32> to vector<4x32xf32>
    %664 = vector.extract_strided_slice %662 {offsets = [0, 32], sizes = [4, 32], strides = [1, 1]} : vector<4x128xf32> to vector<4x32xf32>
    %665 = vector.extract_strided_slice %662 {offsets = [0, 64], sizes = [4, 32], strides = [1, 1]} : vector<4x128xf32> to vector<4x32xf32>
    %cst_211 = arith.constant 2.000000e+00 : f32
    %666 = vector.broadcast %cst_211 : f32 to vector<4x32xf32>
    %667 = arith.mulf %666, %665 : vector<4x32xf32>
    %cst_212 = arith.constant 1.000000e+00 : f32
    %668 = vector.broadcast %cst_212 : f32 to vector<4x32xf32>
    %669 = arith.subf %667, %668 : vector<4x32xf32>
    %670 = vector.extract_strided_slice %662 {offsets = [0, 96], sizes = [4, 32], strides = [1, 1]} : vector<4x128xf32> to vector<4x32xf32>
    %671 = arith.mulf %664, %650 : vector<4x32xf32>
    %672 = arith.mulf %663, %669 : vector<4x32xf32>
    %673 = arith.addf %671, %672 : vector<4x32xf32>
    %674 = math.tanh %673 : vector<4x32xf32>
    %675 = arith.mulf %670, %674 : vector<4x32xf32>
    %c112_213 = arith.constant 112 : index
    %c0_214 = arith.constant 0 : index
    %676 = vector.load %arg15[%c112_213, %c0_214] : memref<128x32xf32, #tpu.memory_space<vmem>>, vector<4x32xf32>
    tpu.vector_store %arg15[%c112_213, %c0_214], %675 {strides = array<i32>} : memref<128x32xf32, #tpu.memory_space<vmem>>, vector<4x32xf32>,
    %c116 = arith.constant 116 : index
    %c0_215 = arith.constant 0 : index
    %677 = vector.load %arg14[%c116, %c0_215] : memref<128x128xf32, #tpu.memory_space<vmem>>, vector<4x128xf32>
    %678 = arith.truncf %675 : vector<4x32xf32> to vector<4x32xbf16>
    %cst_216 = arith.constant dense<0.000000e+00> : vector<4x128xf32>
    %679 = tpu.matmul %678, %7, %cst_216 {dimension_numbers = #tpu.dot_dimension_numbers<[1], [0], [0], [1], [0, 0, 1, 1], [], []>} : vector<4x32xbf16>, vector<32x128xbf16>, vector<4x128xf32> -> vector<4x128xf32>
    %680 = arith.addf %677, %679 : vector<4x128xf32>
    %681 = arith.negf %680 : vector<4x128xf32>
    %682 = math.exp %681 : vector<4x128xf32>
    %cst_217 = arith.constant 1.000000e+00 : f32
    %683 = vector.broadcast %cst_217 : f32 to vector<4x128xf32>
    %684 = arith.addf %683, %682 : vector<4x128xf32>
    %685 = arith.divf %683, %684 : vector<4x128xf32>
    %686 = vector.extract_strided_slice %685 {offsets = [0, 0], sizes = [4, 32], strides = [1, 1]} : vector<4x128xf32> to vector<4x32xf32>
    %687 = vector.extract_strided_slice %685 {offsets = [0, 32], sizes = [4, 32], strides = [1, 1]} : vector<4x128xf32> to vector<4x32xf32>
    %688 = vector.extract_strided_slice %685 {offsets = [0, 64], sizes = [4, 32], strides = [1, 1]} : vector<4x128xf32> to vector<4x32xf32>
    %cst_218 = arith.constant 2.000000e+00 : f32
    %689 = vector.broadcast %cst_218 : f32 to vector<4x32xf32>
    %690 = arith.mulf %689, %688 : vector<4x32xf32>
    %cst_219 = arith.constant 1.000000e+00 : f32
    %691 = vector.broadcast %cst_219 : f32 to vector<4x32xf32>
    %692 = arith.subf %690, %691 : vector<4x32xf32>
    %693 = vector.extract_strided_slice %685 {offsets = [0, 96], sizes = [4, 32], strides = [1, 1]} : vector<4x128xf32> to vector<4x32xf32>
    %694 = arith.mulf %687, %673 : vector<4x32xf32>
    %695 = arith.mulf %686, %692 : vector<4x32xf32>
    %696 = arith.addf %694, %695 : vector<4x32xf32>
    %697 = math.tanh %696 : vector<4x32xf32>
    %698 = arith.mulf %693, %697 : vector<4x32xf32>
    %c116_220 = arith.constant 116 : index
    %c0_221 = arith.constant 0 : index
    %699 = vector.load %arg15[%c116_220, %c0_221] : memref<128x32xf32, #tpu.memory_space<vmem>>, vector<4x32xf32>
    tpu.vector_store %arg15[%c116_220, %c0_221], %698 {strides = array<i32>} : memref<128x32xf32, #tpu.memory_space<vmem>>, vector<4x32xf32>,
    %c120 = arith.constant 120 : index
    %c0_222 = arith.constant 0 : index
    %700 = vector.load %arg14[%c120, %c0_222] : memref<128x128xf32, #tpu.memory_space<vmem>>, vector<4x128xf32>
    %701 = arith.truncf %698 : vector<4x32xf32> to vector<4x32xbf16>
    %cst_223 = arith.constant dense<0.000000e+00> : vector<4x128xf32>
    %702 = tpu.matmul %701, %7, %cst_223 {dimension_numbers = #tpu.dot_dimension_numbers<[1], [0], [0], [1], [0, 0, 1, 1], [], []>} : vector<4x32xbf16>, vector<32x128xbf16>, vector<4x128xf32> -> vector<4x128xf32>
    %703 = arith.addf %700, %702 : vector<4x128xf32>
    %704 = arith.negf %703 : vector<4x128xf32>
    %705 = math.exp %704 : vector<4x128xf32>
    %cst_224 = arith.constant 1.000000e+00 : f32
    %706 = vector.broadcast %cst_224 : f32 to vector<4x128xf32>
    %707 = arith.addf %706, %705 : vector<4x128xf32>
    %708 = arith.divf %706, %707 : vector<4x128xf32>
    %709 = vector.extract_strided_slice %708 {offsets = [0, 0], sizes = [4, 32], strides = [1, 1]} : vector<4x128xf32> to vector<4x32xf32>
    %710 = vector.extract_strided_slice %708 {offsets = [0, 32], sizes = [4, 32], strides = [1, 1]} : vector<4x128xf32> to vector<4x32xf32>
    %711 = vector.extract_strided_slice %708 {offsets = [0, 64], sizes = [4, 32], strides = [1, 1]} : vector<4x128xf32> to vector<4x32xf32>
    %cst_225 = arith.constant 2.000000e+00 : f32
    %712 = vector.broadcast %cst_225 : f32 to vector<4x32xf32>
    %713 = arith.mulf %712, %711 : vector<4x32xf32>
    %cst_226 = arith.constant 1.000000e+00 : f32
    %714 = vector.broadcast %cst_226 : f32 to vector<4x32xf32>
    %715 = arith.subf %713, %714 : vector<4x32xf32>
    %716 = vector.extract_strided_slice %708 {offsets = [0, 96], sizes = [4, 32], strides = [1, 1]} : vector<4x128xf32> to vector<4x32xf32>
    %717 = arith.mulf %710, %696 : vector<4x32xf32>
    %718 = arith.mulf %709, %715 : vector<4x32xf32>
    %719 = arith.addf %717, %718 : vector<4x32xf32>
    %720 = math.tanh %719 : vector<4x32xf32>
    %721 = arith.mulf %716, %720 : vector<4x32xf32>
    %c120_227 = arith.constant 120 : index
    %c0_228 = arith.constant 0 : index
    %722 = vector.load %arg15[%c120_227, %c0_228] : memref<128x32xf32, #tpu.memory_space<vmem>>, vector<4x32xf32>
    tpu.vector_store %arg15[%c120_227, %c0_228], %721 {strides = array<i32>} : memref<128x32xf32, #tpu.memory_space<vmem>>, vector<4x32xf32>,
    %c124 = arith.constant 124 : index
    %c0_229 = arith.constant 0 : index
    %723 = vector.load %arg14[%c124, %c0_229] : memref<128x128xf32, #tpu.memory_space<vmem>>, vector<4x128xf32>
    %724 = arith.truncf %721 : vector<4x32xf32> to vector<4x32xbf16>
    %cst_230 = arith.constant dense<0.000000e+00> : vector<4x128xf32>
    %725 = tpu.matmul %724, %7, %cst_230 {dimension_numbers = #tpu.dot_dimension_numbers<[1], [0], [0], [1], [0, 0, 1, 1], [], []>} : vector<4x32xbf16>, vector<32x128xbf16>, vector<4x128xf32> -> vector<4x128xf32>
    %726 = arith.addf %723, %725 : vector<4x128xf32>
    %727 = arith.negf %726 : vector<4x128xf32>
    %728 = math.exp %727 : vector<4x128xf32>
    %cst_231 = arith.constant 1.000000e+00 : f32
    %729 = vector.broadcast %cst_231 : f32 to vector<4x128xf32>
    %730 = arith.addf %729, %728 : vector<4x128xf32>
    %731 = arith.divf %729, %730 : vector<4x128xf32>
    %732 = vector.extract_strided_slice %731 {offsets = [0, 0], sizes = [4, 32], strides = [1, 1]} : vector<4x128xf32> to vector<4x32xf32>
    %733 = vector.extract_strided_slice %731 {offsets = [0, 32], sizes = [4, 32], strides = [1, 1]} : vector<4x128xf32> to vector<4x32xf32>
    %734 = vector.extract_strided_slice %731 {offsets = [0, 64], sizes = [4, 32], strides = [1, 1]} : vector<4x128xf32> to vector<4x32xf32>
    %cst_232 = arith.constant 2.000000e+00 : f32
    %735 = vector.broadcast %cst_232 : f32 to vector<4x32xf32>
    %736 = arith.mulf %735, %734 : vector<4x32xf32>
    %cst_233 = arith.constant 1.000000e+00 : f32
    %737 = vector.broadcast %cst_233 : f32 to vector<4x32xf32>
    %738 = arith.subf %736, %737 : vector<4x32xf32>
    %739 = vector.extract_strided_slice %731 {offsets = [0, 96], sizes = [4, 32], strides = [1, 1]} : vector<4x128xf32> to vector<4x32xf32>
    %740 = arith.mulf %733, %719 : vector<4x32xf32>
    %741 = arith.mulf %732, %738 : vector<4x32xf32>
    %742 = arith.addf %740, %741 : vector<4x32xf32>
    %743 = math.tanh %742 : vector<4x32xf32>
    %744 = arith.mulf %739, %743 : vector<4x32xf32>
    %c124_234 = arith.constant 124 : index
    %c0_235 = arith.constant 0 : index
    %745 = vector.load %arg15[%c124_234, %c0_235] : memref<128x32xf32, #tpu.memory_space<vmem>>, vector<4x32xf32>
    tpu.vector_store %arg15[%c124_234, %c0_235], %744 {strides = array<i32>} : memref<128x32xf32, #tpu.memory_space<vmem>>, vector<4x32xf32>,
    %c0_236 = arith.constant 0 : index
    %c0_237 = arith.constant 0 : index
    %746 = vector.load %arg15[%c0_236, %c0_237] : memref<128x32xf32, #tpu.memory_space<vmem>>, vector<128x32xf32>
    %c0_238 = arith.constant 0 : index
    %c0_239 = arith.constant 0 : index
    %747 = vector.load %arg7[%c0_238, %c0_239] : memref<32x128xf32, #tpu.memory_space<vmem>>, vector<32x128xf32>
    %cst_240 = arith.constant dense<0.000000e+00> : vector<32x32xf32>
    %748 = tpu.matmul %747, %746, %cst_240 {dimension_numbers = #tpu.dot_dimension_numbers<[1], [0], [0], [1], [0, 0, 1, 1], [], []>} : vector<32x128xf32>, vector<128x32xf32>, vector<32x32xf32> -> vector<32x32xf32>
    %749 = arith.mulf %746, %746 : vector<128x32xf32>
    %cst_241 = arith.constant dense<0.000000e+00> : vector<32x32xf32>
    %750 = tpu.matmul %747, %749, %cst_241 {dimension_numbers = #tpu.dot_dimension_numbers<[1], [0], [0], [1], [0, 0, 1, 1], [], []>} : vector<32x128xf32>, vector<128x32xf32>, vector<32x32xf32> -> vector<32x32xf32>
    %cst_242 = arith.constant dense<0.000000e+00> : vector<32xf32>
    %751 = vector.multi_reduction <add>, %748, %cst_242 [1] : vector<32x32xf32> to vector<32xf32>
    %752 = vector.shape_cast %751 : vector<32xf32> to vector<32x1xf32>
    %cst_243 = arith.constant 1.280000e+02 : f32
    %753 = vector.broadcast %cst_243 : f32 to vector<32x1xf32>
    %754 = arith.divf %752, %753 : vector<32x1xf32>
    %cst_244 = arith.constant dense<0.000000e+00> : vector<32xf32>
    %755 = vector.multi_reduction <add>, %750, %cst_244 [1] : vector<32x32xf32> to vector<32xf32>
    %756 = vector.shape_cast %755 : vector<32xf32> to vector<32x1xf32>
    %cst_245 = arith.constant 1.280000e+02 : f32
    %757 = vector.broadcast %cst_245 : f32 to vector<32x1xf32>
    %758 = arith.divf %756, %757 : vector<32x1xf32>
    %759 = arith.mulf %754, %754 : vector<32x1xf32>
    %760 = arith.subf %758, %759 : vector<32x1xf32>
    %cst_246 = arith.constant 0.000000e+00 : f32
    %761 = vector.broadcast %cst_246 : f32 to vector<32x1xf32>
    %762 = arith.maximumf %760, %761 : vector<32x1xf32>
    %c0_247 = arith.constant 0 : index
    %c0_248 = arith.constant 0 : index
    %763 = vector.load %arg9[%c0_247, %c0_248] : memref<32x1xf32, #tpu.memory_space<vmem>>, vector<32x1xf32>
    %cst_249 = arith.constant 9.99999974E-6 : f32
    %764 = vector.broadcast %cst_249 : f32 to vector<32x1xf32>
    %765 = arith.addf %762, %764 : vector<32x1xf32>
    %766 = math.rsqrt %765 : vector<32x1xf32>
    %767 = arith.mulf %763, %766 : vector<32x1xf32>
    %c0_250 = arith.constant 0 : index
    %c0_251 = arith.constant 0 : index
    %768 = vector.load %arg10[%c0_250, %c0_251] : memref<32x1xf32, #tpu.memory_space<vmem>>, vector<32x1xf32>
    %769 = arith.mulf %767, %754 : vector<32x1xf32>
    %770 = arith.subf %768, %769 : vector<32x1xf32>
    %c0_252 = arith.constant 0 : index
    %c0_253 = arith.constant 0 : index
    %771 = vector.load %arg8[%c0_252, %c0_253] : memref<128x32xf32, #tpu.memory_space<vmem>>, vector<128x32xf32>
    %cst_254 = arith.constant dense<0.000000e+00> : vector<128x1xf32>
    %772 = tpu.matmul %771, %767, %cst_254 {dimension_numbers = #tpu.dot_dimension_numbers<[1], [0], [0], [1], [0, 0, 1, 1], [], []>} : vector<128x32xf32>, vector<32x1xf32>, vector<128x1xf32> -> vector<128x1xf32>
    %cst_255 = arith.constant dense<0.000000e+00> : vector<128x1xf32>
    %773 = tpu.matmul %771, %770, %cst_255 {dimension_numbers = #tpu.dot_dimension_numbers<[1], [0], [0], [1], [0, 0, 1, 1], [], []>} : vector<128x32xf32>, vector<32x1xf32>, vector<128x1xf32> -> vector<128x1xf32>
    %774 = vector.broadcast %772 : vector<128x1xf32> to vector<128x32xf32>
    %775 = arith.mulf %746, %774 : vector<128x32xf32>
    %776 = vector.broadcast %773 : vector<128x1xf32> to vector<128x32xf32>
    %777 = arith.addf %775, %776 : vector<128x32xf32>
    %778 = arith.truncf %777 : vector<128x32xf32> to vector<128x32xbf16>
    %c0_256 = arith.constant 0 : index
    %c0_257 = arith.constant 0 : index
    %779 = vector.load %arg4[%c0_256, %c0_257] : memref<32x128xbf16, #tpu.memory_space<vmem>>, vector<32x128xbf16>
    %cst_258 = arith.constant dense<0.000000e+00> : vector<128x128xf32>
    %780 = tpu.matmul %778, %779, %cst_258 {dimension_numbers = #tpu.dot_dimension_numbers<[1], [0], [0], [1], [0, 0, 1, 1], [], []>} : vector<128x32xbf16>, vector<32x128xbf16>, vector<128x128xf32> -> vector<128x128xf32>
    %c0_259 = arith.constant 0 : index
    %c0_260 = arith.constant 0 : index
    %781 = vector.load %arg6[%c0_259, %c0_260] : memref<1x128xf32, #tpu.memory_space<vmem>>, vector<1x128xf32>
    %782 = vector.broadcast %781 : vector<1x128xf32> to vector<128x128xf32>
    %783 = arith.addf %780, %782 : vector<128x128xf32>
    %c0_261 = arith.constant 0 : index
    %c0_262 = arith.constant 0 : index
    %784 = vector.load %arg14[%c0_261, %c0_262] : memref<128x128xf32, #tpu.memory_space<vmem>>, vector<128x128xf32>
    tpu.vector_store %arg14[%c0_261, %c0_262], %783 {strides = array<i32>} : memref<128x128xf32, #tpu.memory_space<vmem>>, vector<128x128xf32>,
    %c0_263 = arith.constant 0 : index
    %c0_264 = arith.constant 0 : index
    %785 = vector.load %arg5[%c0_263, %c0_264] : memref<32x128xbf16, #tpu.memory_space<vmem>>, vector<32x128xbf16>
    %cst_265 = arith.constant 0.000000e+00 : f32
    %786 = vector.broadcast %cst_265 : f32 to vector<4x32xf32>
    %cst_266 = arith.constant 0.000000e+00 : f32
    %787 = vector.broadcast %cst_266 : f32 to vector<4x32xf32>
    %c0_267 = arith.constant 0 : index
    %c0_268 = arith.constant 0 : index
    %788 = vector.load %arg14[%c0_267, %c0_268] : memref<128x128xf32, #tpu.memory_space<vmem>>, vector<4x128xf32>
    %789 = arith.truncf %786 : vector<4x32xf32> to vector<4x32xbf16>
    %cst_269 = arith.constant dense<0.000000e+00> : vector<4x128xf32>
    %790 = tpu.matmul %789, %785, %cst_269 {dimension_numbers = #tpu.dot_dimension_numbers<[1], [0], [0], [1], [0, 0, 1, 1], [], []>} : vector<4x32xbf16>, vector<32x128xbf16>, vector<4x128xf32> -> vector<4x128xf32>
    %791 = arith.addf %788, %790 : vector<4x128xf32>
    %792 = arith.negf %791 : vector<4x128xf32>
    %793 = math.exp %792 : vector<4x128xf32>
    %cst_270 = arith.constant 1.000000e+00 : f32
    %794 = vector.broadcast %cst_270 : f32 to vector<4x128xf32>
    %795 = arith.addf %794, %793 : vector<4x128xf32>
    %796 = arith.divf %794, %795 : vector<4x128xf32>
    %797 = vector.extract_strided_slice %796 {offsets = [0, 0], sizes = [4, 32], strides = [1, 1]} : vector<4x128xf32> to vector<4x32xf32>
    %798 = vector.extract_strided_slice %796 {offsets = [0, 32], sizes = [4, 32], strides = [1, 1]} : vector<4x128xf32> to vector<4x32xf32>
    %799 = vector.extract_strided_slice %796 {offsets = [0, 64], sizes = [4, 32], strides = [1, 1]} : vector<4x128xf32> to vector<4x32xf32>
    %cst_271 = arith.constant 2.000000e+00 : f32
    %800 = vector.broadcast %cst_271 : f32 to vector<4x32xf32>
    %801 = arith.mulf %800, %799 : vector<4x32xf32>
    %cst_272 = arith.constant 1.000000e+00 : f32
    %802 = vector.broadcast %cst_272 : f32 to vector<4x32xf32>
    %803 = arith.subf %801, %802 : vector<4x32xf32>
    %804 = vector.extract_strided_slice %796 {offsets = [0, 96], sizes = [4, 32], strides = [1, 1]} : vector<4x128xf32> to vector<4x32xf32>
    %805 = arith.mulf %798, %787 : vector<4x32xf32>
    %806 = arith.mulf %797, %803 : vector<4x32xf32>
    %807 = arith.addf %805, %806 : vector<4x32xf32>
    %808 = math.tanh %807 : vector<4x32xf32>
    %809 = arith.mulf %804, %808 : vector<4x32xf32>
    %c0_273 = arith.constant 0 : index
    %c0_274 = arith.constant 0 : index
    %810 = vector.load %arg15[%c0_273, %c0_274] : memref<128x32xf32, #tpu.memory_space<vmem>>, vector<4x32xf32>
    tpu.vector_store %arg15[%c0_273, %c0_274], %809 {strides = array<i32>} : memref<128x32xf32, #tpu.memory_space<vmem>>, vector<4x32xf32>,
    %c4_275 = arith.constant 4 : index
    %c0_276 = arith.constant 0 : index
    %811 = vector.load %arg14[%c4_275, %c0_276] : memref<128x128xf32, #tpu.memory_space<vmem>>, vector<4x128xf32>
    %812 = arith.truncf %809 : vector<4x32xf32> to vector<4x32xbf16>
    %cst_277 = arith.constant dense<0.000000e+00> : vector<4x128xf32>
    %813 = tpu.matmul %812, %785, %cst_277 {dimension_numbers = #tpu.dot_dimension_numbers<[1], [0], [0], [1], [0, 0, 1, 1], [], []>} : vector<4x32xbf16>, vector<32x128xbf16>, vector<4x128xf32> -> vector<4x128xf32>
    %814 = arith.addf %811, %813 : vector<4x128xf32>
    %815 = arith.negf %814 : vector<4x128xf32>
    %816 = math.exp %815 : vector<4x128xf32>
    %cst_278 = arith.constant 1.000000e+00 : f32
    %817 = vector.broadcast %cst_278 : f32 to vector<4x128xf32>
    %818 = arith.addf %817, %816 : vector<4x128xf32>
    %819 = arith.divf %817, %818 : vector<4x128xf32>
    %820 = vector.extract_strided_slice %819 {offsets = [0, 0], sizes = [4, 32], strides = [1, 1]} : vector<4x128xf32> to vector<4x32xf32>
    %821 = vector.extract_strided_slice %819 {offsets = [0, 32], sizes = [4, 32], strides = [1, 1]} : vector<4x128xf32> to vector<4x32xf32>
    %822 = vector.extract_strided_slice %819 {offsets = [0, 64], sizes = [4, 32], strides = [1, 1]} : vector<4x128xf32> to vector<4x32xf32>
    %cst_279 = arith.constant 2.000000e+00 : f32
    %823 = vector.broadcast %cst_279 : f32 to vector<4x32xf32>
    %824 = arith.mulf %823, %822 : vector<4x32xf32>
    %cst_280 = arith.constant 1.000000e+00 : f32
    %825 = vector.broadcast %cst_280 : f32 to vector<4x32xf32>
    %826 = arith.subf %824, %825 : vector<4x32xf32>
    %827 = vector.extract_strided_slice %819 {offsets = [0, 96], sizes = [4, 32], strides = [1, 1]} : vector<4x128xf32> to vector<4x32xf32>
    %828 = arith.mulf %821, %807 : vector<4x32xf32>
    %829 = arith.mulf %820, %826 : vector<4x32xf32>
    %830 = arith.addf %828, %829 : vector<4x32xf32>
    %831 = math.tanh %830 : vector<4x32xf32>
    %832 = arith.mulf %827, %831 : vector<4x32xf32>
    %c4_281 = arith.constant 4 : index
    %c0_282 = arith.constant 0 : index
    %833 = vector.load %arg15[%c4_281, %c0_282] : memref<128x32xf32, #tpu.memory_space<vmem>>, vector<4x32xf32>
    tpu.vector_store %arg15[%c4_281, %c0_282], %832 {strides = array<i32>} : memref<128x32xf32, #tpu.memory_space<vmem>>, vector<4x32xf32>,
    %c8_283 = arith.constant 8 : index
    %c0_284 = arith.constant 0 : index
    %834 = vector.load %arg14[%c8_283, %c0_284] : memref<128x128xf32, #tpu.memory_space<vmem>>, vector<4x128xf32>
    %835 = arith.truncf %832 : vector<4x32xf32> to vector<4x32xbf16>
    %cst_285 = arith.constant dense<0.000000e+00> : vector<4x128xf32>
    %836 = tpu.matmul %835, %785, %cst_285 {dimension_numbers = #tpu.dot_dimension_numbers<[1], [0], [0], [1], [0, 0, 1, 1], [], []>} : vector<4x32xbf16>, vector<32x128xbf16>, vector<4x128xf32> -> vector<4x128xf32>
    %837 = arith.addf %834, %836 : vector<4x128xf32>
    %838 = arith.negf %837 : vector<4x128xf32>
    %839 = math.exp %838 : vector<4x128xf32>
    %cst_286 = arith.constant 1.000000e+00 : f32
    %840 = vector.broadcast %cst_286 : f32 to vector<4x128xf32>
    %841 = arith.addf %840, %839 : vector<4x128xf32>
    %842 = arith.divf %840, %841 : vector<4x128xf32>
    %843 = vector.extract_strided_slice %842 {offsets = [0, 0], sizes = [4, 32], strides = [1, 1]} : vector<4x128xf32> to vector<4x32xf32>
    %844 = vector.extract_strided_slice %842 {offsets = [0, 32], sizes = [4, 32], strides = [1, 1]} : vector<4x128xf32> to vector<4x32xf32>
    %845 = vector.extract_strided_slice %842 {offsets = [0, 64], sizes = [4, 32], strides = [1, 1]} : vector<4x128xf32> to vector<4x32xf32>
    %cst_287 = arith.constant 2.000000e+00 : f32
    %846 = vector.broadcast %cst_287 : f32 to vector<4x32xf32>
    %847 = arith.mulf %846, %845 : vector<4x32xf32>
    %cst_288 = arith.constant 1.000000e+00 : f32
    %848 = vector.broadcast %cst_288 : f32 to vector<4x32xf32>
    %849 = arith.subf %847, %848 : vector<4x32xf32>
    %850 = vector.extract_strided_slice %842 {offsets = [0, 96], sizes = [4, 32], strides = [1, 1]} : vector<4x128xf32> to vector<4x32xf32>
    %851 = arith.mulf %844, %830 : vector<4x32xf32>
    %852 = arith.mulf %843, %849 : vector<4x32xf32>
    %853 = arith.addf %851, %852 : vector<4x32xf32>
    %854 = math.tanh %853 : vector<4x32xf32>
    %855 = arith.mulf %850, %854 : vector<4x32xf32>
    %c8_289 = arith.constant 8 : index
    %c0_290 = arith.constant 0 : index
    %856 = vector.load %arg15[%c8_289, %c0_290] : memref<128x32xf32, #tpu.memory_space<vmem>>, vector<4x32xf32>
    tpu.vector_store %arg15[%c8_289, %c0_290], %855 {strides = array<i32>} : memref<128x32xf32, #tpu.memory_space<vmem>>, vector<4x32xf32>,
    %c12_291 = arith.constant 12 : index
    %c0_292 = arith.constant 0 : index
    %857 = vector.load %arg14[%c12_291, %c0_292] : memref<128x128xf32, #tpu.memory_space<vmem>>, vector<4x128xf32>
    %858 = arith.truncf %855 : vector<4x32xf32> to vector<4x32xbf16>
    %cst_293 = arith.constant dense<0.000000e+00> : vector<4x128xf32>
    %859 = tpu.matmul %858, %785, %cst_293 {dimension_numbers = #tpu.dot_dimension_numbers<[1], [0], [0], [1], [0, 0, 1, 1], [], []>} : vector<4x32xbf16>, vector<32x128xbf16>, vector<4x128xf32> -> vector<4x128xf32>
    %860 = arith.addf %857, %859 : vector<4x128xf32>
    %861 = arith.negf %860 : vector<4x128xf32>
    %862 = math.exp %861 : vector<4x128xf32>
    %cst_294 = arith.constant 1.000000e+00 : f32
    %863 = vector.broadcast %cst_294 : f32 to vector<4x128xf32>
    %864 = arith.addf %863, %862 : vector<4x128xf32>
    %865 = arith.divf %863, %864 : vector<4x128xf32>
    %866 = vector.extract_strided_slice %865 {offsets = [0, 0], sizes = [4, 32], strides = [1, 1]} : vector<4x128xf32> to vector<4x32xf32>
    %867 = vector.extract_strided_slice %865 {offsets = [0, 32], sizes = [4, 32], strides = [1, 1]} : vector<4x128xf32> to vector<4x32xf32>
    %868 = vector.extract_strided_slice %865 {offsets = [0, 64], sizes = [4, 32], strides = [1, 1]} : vector<4x128xf32> to vector<4x32xf32>
    %cst_295 = arith.constant 2.000000e+00 : f32
    %869 = vector.broadcast %cst_295 : f32 to vector<4x32xf32>
    %870 = arith.mulf %869, %868 : vector<4x32xf32>
    %cst_296 = arith.constant 1.000000e+00 : f32
    %871 = vector.broadcast %cst_296 : f32 to vector<4x32xf32>
    %872 = arith.subf %870, %871 : vector<4x32xf32>
    %873 = vector.extract_strided_slice %865 {offsets = [0, 96], sizes = [4, 32], strides = [1, 1]} : vector<4x128xf32> to vector<4x32xf32>
    %874 = arith.mulf %867, %853 : vector<4x32xf32>
    %875 = arith.mulf %866, %872 : vector<4x32xf32>
    %876 = arith.addf %874, %875 : vector<4x32xf32>
    %877 = math.tanh %876 : vector<4x32xf32>
    %878 = arith.mulf %873, %877 : vector<4x32xf32>
    %c12_297 = arith.constant 12 : index
    %c0_298 = arith.constant 0 : index
    %879 = vector.load %arg15[%c12_297, %c0_298] : memref<128x32xf32, #tpu.memory_space<vmem>>, vector<4x32xf32>
    tpu.vector_store %arg15[%c12_297, %c0_298], %878 {strides = array<i32>} : memref<128x32xf32, #tpu.memory_space<vmem>>, vector<4x32xf32>,
    %c16_299 = arith.constant 16 : index
    %c0_300 = arith.constant 0 : index
    %880 = vector.load %arg14[%c16_299, %c0_300] : memref<128x128xf32, #tpu.memory_space<vmem>>, vector<4x128xf32>
    %881 = arith.truncf %878 : vector<4x32xf32> to vector<4x32xbf16>
    %cst_301 = arith.constant dense<0.000000e+00> : vector<4x128xf32>
    %882 = tpu.matmul %881, %785, %cst_301 {dimension_numbers = #tpu.dot_dimension_numbers<[1], [0], [0], [1], [0, 0, 1, 1], [], []>} : vector<4x32xbf16>, vector<32x128xbf16>, vector<4x128xf32> -> vector<4x128xf32>
    %883 = arith.addf %880, %882 : vector<4x128xf32>
    %884 = arith.negf %883 : vector<4x128xf32>
    %885 = math.exp %884 : vector<4x128xf32>
    %cst_302 = arith.constant 1.000000e+00 : f32
    %886 = vector.broadcast %cst_302 : f32 to vector<4x128xf32>
    %887 = arith.addf %886, %885 : vector<4x128xf32>
    %888 = arith.divf %886, %887 : vector<4x128xf32>
    %889 = vector.extract_strided_slice %888 {offsets = [0, 0], sizes = [4, 32], strides = [1, 1]} : vector<4x128xf32> to vector<4x32xf32>
    %890 = vector.extract_strided_slice %888 {offsets = [0, 32], sizes = [4, 32], strides = [1, 1]} : vector<4x128xf32> to vector<4x32xf32>
    %891 = vector.extract_strided_slice %888 {offsets = [0, 64], sizes = [4, 32], strides = [1, 1]} : vector<4x128xf32> to vector<4x32xf32>
    %cst_303 = arith.constant 2.000000e+00 : f32
    %892 = vector.broadcast %cst_303 : f32 to vector<4x32xf32>
    %893 = arith.mulf %892, %891 : vector<4x32xf32>
    %cst_304 = arith.constant 1.000000e+00 : f32
    %894 = vector.broadcast %cst_304 : f32 to vector<4x32xf32>
    %895 = arith.subf %893, %894 : vector<4x32xf32>
    %896 = vector.extract_strided_slice %888 {offsets = [0, 96], sizes = [4, 32], strides = [1, 1]} : vector<4x128xf32> to vector<4x32xf32>
    %897 = arith.mulf %890, %876 : vector<4x32xf32>
    %898 = arith.mulf %889, %895 : vector<4x32xf32>
    %899 = arith.addf %897, %898 : vector<4x32xf32>
    %900 = math.tanh %899 : vector<4x32xf32>
    %901 = arith.mulf %896, %900 : vector<4x32xf32>
    %c16_305 = arith.constant 16 : index
    %c0_306 = arith.constant 0 : index
    %902 = vector.load %arg15[%c16_305, %c0_306] : memref<128x32xf32, #tpu.memory_space<vmem>>, vector<4x32xf32>
    tpu.vector_store %arg15[%c16_305, %c0_306], %901 {strides = array<i32>} : memref<128x32xf32, #tpu.memory_space<vmem>>, vector<4x32xf32>,
    %c20_307 = arith.constant 20 : index
    %c0_308 = arith.constant 0 : index
    %903 = vector.load %arg14[%c20_307, %c0_308] : memref<128x128xf32, #tpu.memory_space<vmem>>, vector<4x128xf32>
    %904 = arith.truncf %901 : vector<4x32xf32> to vector<4x32xbf16>
    %cst_309 = arith.constant dense<0.000000e+00> : vector<4x128xf32>
    %905 = tpu.matmul %904, %785, %cst_309 {dimension_numbers = #tpu.dot_dimension_numbers<[1], [0], [0], [1], [0, 0, 1, 1], [], []>} : vector<4x32xbf16>, vector<32x128xbf16>, vector<4x128xf32> -> vector<4x128xf32>
    %906 = arith.addf %903, %905 : vector<4x128xf32>
    %907 = arith.negf %906 : vector<4x128xf32>
    %908 = math.exp %907 : vector<4x128xf32>
    %cst_310 = arith.constant 1.000000e+00 : f32
    %909 = vector.broadcast %cst_310 : f32 to vector<4x128xf32>
    %910 = arith.addf %909, %908 : vector<4x128xf32>
    %911 = arith.divf %909, %910 : vector<4x128xf32>
    %912 = vector.extract_strided_slice %911 {offsets = [0, 0], sizes = [4, 32], strides = [1, 1]} : vector<4x128xf32> to vector<4x32xf32>
    %913 = vector.extract_strided_slice %911 {offsets = [0, 32], sizes = [4, 32], strides = [1, 1]} : vector<4x128xf32> to vector<4x32xf32>
    %914 = vector.extract_strided_slice %911 {offsets = [0, 64], sizes = [4, 32], strides = [1, 1]} : vector<4x128xf32> to vector<4x32xf32>
    %cst_311 = arith.constant 2.000000e+00 : f32
    %915 = vector.broadcast %cst_311 : f32 to vector<4x32xf32>
    %916 = arith.mulf %915, %914 : vector<4x32xf32>
    %cst_312 = arith.constant 1.000000e+00 : f32
    %917 = vector.broadcast %cst_312 : f32 to vector<4x32xf32>
    %918 = arith.subf %916, %917 : vector<4x32xf32>
    %919 = vector.extract_strided_slice %911 {offsets = [0, 96], sizes = [4, 32], strides = [1, 1]} : vector<4x128xf32> to vector<4x32xf32>
    %920 = arith.mulf %913, %899 : vector<4x32xf32>
    %921 = arith.mulf %912, %918 : vector<4x32xf32>
    %922 = arith.addf %920, %921 : vector<4x32xf32>
    %923 = math.tanh %922 : vector<4x32xf32>
    %924 = arith.mulf %919, %923 : vector<4x32xf32>
    %c20_313 = arith.constant 20 : index
    %c0_314 = arith.constant 0 : index
    %925 = vector.load %arg15[%c20_313, %c0_314] : memref<128x32xf32, #tpu.memory_space<vmem>>, vector<4x32xf32>
    tpu.vector_store %arg15[%c20_313, %c0_314], %924 {strides = array<i32>} : memref<128x32xf32, #tpu.memory_space<vmem>>, vector<4x32xf32>,
    %c24_315 = arith.constant 24 : index
    %c0_316 = arith.constant 0 : index
    %926 = vector.load %arg14[%c24_315, %c0_316] : memref<128x128xf32, #tpu.memory_space<vmem>>, vector<4x128xf32>
    %927 = arith.truncf %924 : vector<4x32xf32> to vector<4x32xbf16>
    %cst_317 = arith.constant dense<0.000000e+00> : vector<4x128xf32>
    %928 = tpu.matmul %927, %785, %cst_317 {dimension_numbers = #tpu.dot_dimension_numbers<[1], [0], [0], [1], [0, 0, 1, 1], [], []>} : vector<4x32xbf16>, vector<32x128xbf16>, vector<4x128xf32> -> vector<4x128xf32>
    %929 = arith.addf %926, %928 : vector<4x128xf32>
    %930 = arith.negf %929 : vector<4x128xf32>
    %931 = math.exp %930 : vector<4x128xf32>
    %cst_318 = arith.constant 1.000000e+00 : f32
    %932 = vector.broadcast %cst_318 : f32 to vector<4x128xf32>
    %933 = arith.addf %932, %931 : vector<4x128xf32>
    %934 = arith.divf %932, %933 : vector<4x128xf32>
    %935 = vector.extract_strided_slice %934 {offsets = [0, 0], sizes = [4, 32], strides = [1, 1]} : vector<4x128xf32> to vector<4x32xf32>
    %936 = vector.extract_strided_slice %934 {offsets = [0, 32], sizes = [4, 32], strides = [1, 1]} : vector<4x128xf32> to vector<4x32xf32>
    %937 = vector.extract_strided_slice %934 {offsets = [0, 64], sizes = [4, 32], strides = [1, 1]} : vector<4x128xf32> to vector<4x32xf32>
    %cst_319 = arith.constant 2.000000e+00 : f32
    %938 = vector.broadcast %cst_319 : f32 to vector<4x32xf32>
    %939 = arith.mulf %938, %937 : vector<4x32xf32>
    %cst_320 = arith.constant 1.000000e+00 : f32
    %940 = vector.broadcast %cst_320 : f32 to vector<4x32xf32>
    %941 = arith.subf %939, %940 : vector<4x32xf32>
    %942 = vector.extract_strided_slice %934 {offsets = [0, 96], sizes = [4, 32], strides = [1, 1]} : vector<4x128xf32> to vector<4x32xf32>
    %943 = arith.mulf %936, %922 : vector<4x32xf32>
    %944 = arith.mulf %935, %941 : vector<4x32xf32>
    %945 = arith.addf %943, %944 : vector<4x32xf32>
    %946 = math.tanh %945 : vector<4x32xf32>
    %947 = arith.mulf %942, %946 : vector<4x32xf32>
    %c24_321 = arith.constant 24 : index
    %c0_322 = arith.constant 0 : index
    %948 = vector.load %arg15[%c24_321, %c0_322] : memref<128x32xf32, #tpu.memory_space<vmem>>, vector<4x32xf32>
    tpu.vector_store %arg15[%c24_321, %c0_322], %947 {strides = array<i32>} : memref<128x32xf32, #tpu.memory_space<vmem>>, vector<4x32xf32>,
    %c28_323 = arith.constant 28 : index
    %c0_324 = arith.constant 0 : index
    %949 = vector.load %arg14[%c28_323, %c0_324] : memref<128x128xf32, #tpu.memory_space<vmem>>, vector<4x128xf32>
    %950 = arith.truncf %947 : vector<4x32xf32> to vector<4x32xbf16>
    %cst_325 = arith.constant dense<0.000000e+00> : vector<4x128xf32>
    %951 = tpu.matmul %950, %785, %cst_325 {dimension_numbers = #tpu.dot_dimension_numbers<[1], [0], [0], [1], [0, 0, 1, 1], [], []>} : vector<4x32xbf16>, vector<32x128xbf16>, vector<4x128xf32> -> vector<4x128xf32>
    %952 = arith.addf %949, %951 : vector<4x128xf32>
    %953 = arith.negf %952 : vector<4x128xf32>
    %954 = math.exp %953 : vector<4x128xf32>
    %cst_326 = arith.constant 1.000000e+00 : f32
    %955 = vector.broadcast %cst_326 : f32 to vector<4x128xf32>
    %956 = arith.addf %955, %954 : vector<4x128xf32>
    %957 = arith.divf %955, %956 : vector<4x128xf32>
    %958 = vector.extract_strided_slice %957 {offsets = [0, 0], sizes = [4, 32], strides = [1, 1]} : vector<4x128xf32> to vector<4x32xf32>
    %959 = vector.extract_strided_slice %957 {offsets = [0, 32], sizes = [4, 32], strides = [1, 1]} : vector<4x128xf32> to vector<4x32xf32>
    %960 = vector.extract_strided_slice %957 {offsets = [0, 64], sizes = [4, 32], strides = [1, 1]} : vector<4x128xf32> to vector<4x32xf32>
    %cst_327 = arith.constant 2.000000e+00 : f32
    %961 = vector.broadcast %cst_327 : f32 to vector<4x32xf32>
    %962 = arith.mulf %961, %960 : vector<4x32xf32>
    %cst_328 = arith.constant 1.000000e+00 : f32
    %963 = vector.broadcast %cst_328 : f32 to vector<4x32xf32>
    %964 = arith.subf %962, %963 : vector<4x32xf32>
    %965 = vector.extract_strided_slice %957 {offsets = [0, 96], sizes = [4, 32], strides = [1, 1]} : vector<4x128xf32> to vector<4x32xf32>
    %966 = arith.mulf %959, %945 : vector<4x32xf32>
    %967 = arith.mulf %958, %964 : vector<4x32xf32>
    %968 = arith.addf %966, %967 : vector<4x32xf32>
    %969 = math.tanh %968 : vector<4x32xf32>
    %970 = arith.mulf %965, %969 : vector<4x32xf32>
    %c28_329 = arith.constant 28 : index
    %c0_330 = arith.constant 0 : index
    %971 = vector.load %arg15[%c28_329, %c0_330] : memref<128x32xf32, #tpu.memory_space<vmem>>, vector<4x32xf32>
    tpu.vector_store %arg15[%c28_329, %c0_330], %970 {strides = array<i32>} : memref<128x32xf32, #tpu.memory_space<vmem>>, vector<4x32xf32>,
    %c32_331 = arith.constant 32 : index
    %c0_332 = arith.constant 0 : index
    %972 = vector.load %arg14[%c32_331, %c0_332] : memref<128x128xf32, #tpu.memory_space<vmem>>, vector<4x128xf32>
    %973 = arith.truncf %970 : vector<4x32xf32> to vector<4x32xbf16>
    %cst_333 = arith.constant dense<0.000000e+00> : vector<4x128xf32>
    %974 = tpu.matmul %973, %785, %cst_333 {dimension_numbers = #tpu.dot_dimension_numbers<[1], [0], [0], [1], [0, 0, 1, 1], [], []>} : vector<4x32xbf16>, vector<32x128xbf16>, vector<4x128xf32> -> vector<4x128xf32>
    %975 = arith.addf %972, %974 : vector<4x128xf32>
    %976 = arith.negf %975 : vector<4x128xf32>
    %977 = math.exp %976 : vector<4x128xf32>
    %cst_334 = arith.constant 1.000000e+00 : f32
    %978 = vector.broadcast %cst_334 : f32 to vector<4x128xf32>
    %979 = arith.addf %978, %977 : vector<4x128xf32>
    %980 = arith.divf %978, %979 : vector<4x128xf32>
    %981 = vector.extract_strided_slice %980 {offsets = [0, 0], sizes = [4, 32], strides = [1, 1]} : vector<4x128xf32> to vector<4x32xf32>
    %982 = vector.extract_strided_slice %980 {offsets = [0, 32], sizes = [4, 32], strides = [1, 1]} : vector<4x128xf32> to vector<4x32xf32>
    %983 = vector.extract_strided_slice %980 {offsets = [0, 64], sizes = [4, 32], strides = [1, 1]} : vector<4x128xf32> to vector<4x32xf32>
    %cst_335 = arith.constant 2.000000e+00 : f32
    %984 = vector.broadcast %cst_335 : f32 to vector<4x32xf32>
    %985 = arith.mulf %984, %983 : vector<4x32xf32>
    %cst_336 = arith.constant 1.000000e+00 : f32
    %986 = vector.broadcast %cst_336 : f32 to vector<4x32xf32>
    %987 = arith.subf %985, %986 : vector<4x32xf32>
    %988 = vector.extract_strided_slice %980 {offsets = [0, 96], sizes = [4, 32], strides = [1, 1]} : vector<4x128xf32> to vector<4x32xf32>
    %989 = arith.mulf %982, %968 : vector<4x32xf32>
    %990 = arith.mulf %981, %987 : vector<4x32xf32>
    %991 = arith.addf %989, %990 : vector<4x32xf32>
    %992 = math.tanh %991 : vector<4x32xf32>
    %993 = arith.mulf %988, %992 : vector<4x32xf32>
    %c32_337 = arith.constant 32 : index
    %c0_338 = arith.constant 0 : index
    %994 = vector.load %arg15[%c32_337, %c0_338] : memref<128x32xf32, #tpu.memory_space<vmem>>, vector<4x32xf32>
    tpu.vector_store %arg15[%c32_337, %c0_338], %993 {strides = array<i32>} : memref<128x32xf32, #tpu.memory_space<vmem>>, vector<4x32xf32>,
    %c36_339 = arith.constant 36 : index
    %c0_340 = arith.constant 0 : index
    %995 = vector.load %arg14[%c36_339, %c0_340] : memref<128x128xf32, #tpu.memory_space<vmem>>, vector<4x128xf32>
    %996 = arith.truncf %993 : vector<4x32xf32> to vector<4x32xbf16>
    %cst_341 = arith.constant dense<0.000000e+00> : vector<4x128xf32>
    %997 = tpu.matmul %996, %785, %cst_341 {dimension_numbers = #tpu.dot_dimension_numbers<[1], [0], [0], [1], [0, 0, 1, 1], [], []>} : vector<4x32xbf16>, vector<32x128xbf16>, vector<4x128xf32> -> vector<4x128xf32>
    %998 = arith.addf %995, %997 : vector<4x128xf32>
    %999 = arith.negf %998 : vector<4x128xf32>
    %1000 = math.exp %999 : vector<4x128xf32>
    %cst_342 = arith.constant 1.000000e+00 : f32
    %1001 = vector.broadcast %cst_342 : f32 to vector<4x128xf32>
    %1002 = arith.addf %1001, %1000 : vector<4x128xf32>
    %1003 = arith.divf %1001, %1002 : vector<4x128xf32>
    %1004 = vector.extract_strided_slice %1003 {offsets = [0, 0], sizes = [4, 32], strides = [1, 1]} : vector<4x128xf32> to vector<4x32xf32>
    %1005 = vector.extract_strided_slice %1003 {offsets = [0, 32], sizes = [4, 32], strides = [1, 1]} : vector<4x128xf32> to vector<4x32xf32>
    %1006 = vector.extract_strided_slice %1003 {offsets = [0, 64], sizes = [4, 32], strides = [1, 1]} : vector<4x128xf32> to vector<4x32xf32>
    %cst_343 = arith.constant 2.000000e+00 : f32
    %1007 = vector.broadcast %cst_343 : f32 to vector<4x32xf32>
    %1008 = arith.mulf %1007, %1006 : vector<4x32xf32>
    %cst_344 = arith.constant 1.000000e+00 : f32
    %1009 = vector.broadcast %cst_344 : f32 to vector<4x32xf32>
    %1010 = arith.subf %1008, %1009 : vector<4x32xf32>
    %1011 = vector.extract_strided_slice %1003 {offsets = [0, 96], sizes = [4, 32], strides = [1, 1]} : vector<4x128xf32> to vector<4x32xf32>
    %1012 = arith.mulf %1005, %991 : vector<4x32xf32>
    %1013 = arith.mulf %1004, %1010 : vector<4x32xf32>
    %1014 = arith.addf %1012, %1013 : vector<4x32xf32>
    %1015 = math.tanh %1014 : vector<4x32xf32>
    %1016 = arith.mulf %1011, %1015 : vector<4x32xf32>
    %c36_345 = arith.constant 36 : index
    %c0_346 = arith.constant 0 : index
    %1017 = vector.load %arg15[%c36_345, %c0_346] : memref<128x32xf32, #tpu.memory_space<vmem>>, vector<4x32xf32>
    tpu.vector_store %arg15[%c36_345, %c0_346], %1016 {strides = array<i32>} : memref<128x32xf32, #tpu.memory_space<vmem>>, vector<4x32xf32>,
    %c40_347 = arith.constant 40 : index
    %c0_348 = arith.constant 0 : index
    %1018 = vector.load %arg14[%c40_347, %c0_348] : memref<128x128xf32, #tpu.memory_space<vmem>>, vector<4x128xf32>
    %1019 = arith.truncf %1016 : vector<4x32xf32> to vector<4x32xbf16>
    %cst_349 = arith.constant dense<0.000000e+00> : vector<4x128xf32>
    %1020 = tpu.matmul %1019, %785, %cst_349 {dimension_numbers = #tpu.dot_dimension_numbers<[1], [0], [0], [1], [0, 0, 1, 1], [], []>} : vector<4x32xbf16>, vector<32x128xbf16>, vector<4x128xf32> -> vector<4x128xf32>
    %1021 = arith.addf %1018, %1020 : vector<4x128xf32>
    %1022 = arith.negf %1021 : vector<4x128xf32>
    %1023 = math.exp %1022 : vector<4x128xf32>
    %cst_350 = arith.constant 1.000000e+00 : f32
    %1024 = vector.broadcast %cst_350 : f32 to vector<4x128xf32>
    %1025 = arith.addf %1024, %1023 : vector<4x128xf32>
    %1026 = arith.divf %1024, %1025 : vector<4x128xf32>
    %1027 = vector.extract_strided_slice %1026 {offsets = [0, 0], sizes = [4, 32], strides = [1, 1]} : vector<4x128xf32> to vector<4x32xf32>
    %1028 = vector.extract_strided_slice %1026 {offsets = [0, 32], sizes = [4, 32], strides = [1, 1]} : vector<4x128xf32> to vector<4x32xf32>
    %1029 = vector.extract_strided_slice %1026 {offsets = [0, 64], sizes = [4, 32], strides = [1, 1]} : vector<4x128xf32> to vector<4x32xf32>
    %cst_351 = arith.constant 2.000000e+00 : f32
    %1030 = vector.broadcast %cst_351 : f32 to vector<4x32xf32>
    %1031 = arith.mulf %1030, %1029 : vector<4x32xf32>
    %cst_352 = arith.constant 1.000000e+00 : f32
    %1032 = vector.broadcast %cst_352 : f32 to vector<4x32xf32>
    %1033 = arith.subf %1031, %1032 : vector<4x32xf32>
    %1034 = vector.extract_strided_slice %1026 {offsets = [0, 96], sizes = [4, 32], strides = [1, 1]} : vector<4x128xf32> to vector<4x32xf32>
    %1035 = arith.mulf %1028, %1014 : vector<4x32xf32>
    %1036 = arith.mulf %1027, %1033 : vector<4x32xf32>
    %1037 = arith.addf %1035, %1036 : vector<4x32xf32>
    %1038 = math.tanh %1037 : vector<4x32xf32>
    %1039 = arith.mulf %1034, %1038 : vector<4x32xf32>
    %c40_353 = arith.constant 40 : index
    %c0_354 = arith.constant 0 : index
    %1040 = vector.load %arg15[%c40_353, %c0_354] : memref<128x32xf32, #tpu.memory_space<vmem>>, vector<4x32xf32>
    tpu.vector_store %arg15[%c40_353, %c0_354], %1039 {strides = array<i32>} : memref<128x32xf32, #tpu.memory_space<vmem>>, vector<4x32xf32>,
    %c44_355 = arith.constant 44 : index
    %c0_356 = arith.constant 0 : index
    %1041 = vector.load %arg14[%c44_355, %c0_356] : memref<128x128xf32, #tpu.memory_space<vmem>>, vector<4x128xf32>
    %1042 = arith.truncf %1039 : vector<4x32xf32> to vector<4x32xbf16>
    %cst_357 = arith.constant dense<0.000000e+00> : vector<4x128xf32>
    %1043 = tpu.matmul %1042, %785, %cst_357 {dimension_numbers = #tpu.dot_dimension_numbers<[1], [0], [0], [1], [0, 0, 1, 1], [], []>} : vector<4x32xbf16>, vector<32x128xbf16>, vector<4x128xf32> -> vector<4x128xf32>
    %1044 = arith.addf %1041, %1043 : vector<4x128xf32>
    %1045 = arith.negf %1044 : vector<4x128xf32>
    %1046 = math.exp %1045 : vector<4x128xf32>
    %cst_358 = arith.constant 1.000000e+00 : f32
    %1047 = vector.broadcast %cst_358 : f32 to vector<4x128xf32>
    %1048 = arith.addf %1047, %1046 : vector<4x128xf32>
    %1049 = arith.divf %1047, %1048 : vector<4x128xf32>
    %1050 = vector.extract_strided_slice %1049 {offsets = [0, 0], sizes = [4, 32], strides = [1, 1]} : vector<4x128xf32> to vector<4x32xf32>
    %1051 = vector.extract_strided_slice %1049 {offsets = [0, 32], sizes = [4, 32], strides = [1, 1]} : vector<4x128xf32> to vector<4x32xf32>
    %1052 = vector.extract_strided_slice %1049 {offsets = [0, 64], sizes = [4, 32], strides = [1, 1]} : vector<4x128xf32> to vector<4x32xf32>
    %cst_359 = arith.constant 2.000000e+00 : f32
    %1053 = vector.broadcast %cst_359 : f32 to vector<4x32xf32>
    %1054 = arith.mulf %1053, %1052 : vector<4x32xf32>
    %cst_360 = arith.constant 1.000000e+00 : f32
    %1055 = vector.broadcast %cst_360 : f32 to vector<4x32xf32>
    %1056 = arith.subf %1054, %1055 : vector<4x32xf32>
    %1057 = vector.extract_strided_slice %1049 {offsets = [0, 96], sizes = [4, 32], strides = [1, 1]} : vector<4x128xf32> to vector<4x32xf32>
    %1058 = arith.mulf %1051, %1037 : vector<4x32xf32>
    %1059 = arith.mulf %1050, %1056 : vector<4x32xf32>
    %1060 = arith.addf %1058, %1059 : vector<4x32xf32>
    %1061 = math.tanh %1060 : vector<4x32xf32>
    %1062 = arith.mulf %1057, %1061 : vector<4x32xf32>
    %c44_361 = arith.constant 44 : index
    %c0_362 = arith.constant 0 : index
    %1063 = vector.load %arg15[%c44_361, %c0_362] : memref<128x32xf32, #tpu.memory_space<vmem>>, vector<4x32xf32>
    tpu.vector_store %arg15[%c44_361, %c0_362], %1062 {strides = array<i32>} : memref<128x32xf32, #tpu.memory_space<vmem>>, vector<4x32xf32>,
    %c48_363 = arith.constant 48 : index
    %c0_364 = arith.constant 0 : index
    %1064 = vector.load %arg14[%c48_363, %c0_364] : memref<128x128xf32, #tpu.memory_space<vmem>>, vector<4x128xf32>
    %1065 = arith.truncf %1062 : vector<4x32xf32> to vector<4x32xbf16>
    %cst_365 = arith.constant dense<0.000000e+00> : vector<4x128xf32>
    %1066 = tpu.matmul %1065, %785, %cst_365 {dimension_numbers = #tpu.dot_dimension_numbers<[1], [0], [0], [1], [0, 0, 1, 1], [], []>} : vector<4x32xbf16>, vector<32x128xbf16>, vector<4x128xf32> -> vector<4x128xf32>
    %1067 = arith.addf %1064, %1066 : vector<4x128xf32>
    %1068 = arith.negf %1067 : vector<4x128xf32>
    %1069 = math.exp %1068 : vector<4x128xf32>
    %cst_366 = arith.constant 1.000000e+00 : f32
    %1070 = vector.broadcast %cst_366 : f32 to vector<4x128xf32>
    %1071 = arith.addf %1070, %1069 : vector<4x128xf32>
    %1072 = arith.divf %1070, %1071 : vector<4x128xf32>
    %1073 = vector.extract_strided_slice %1072 {offsets = [0, 0], sizes = [4, 32], strides = [1, 1]} : vector<4x128xf32> to vector<4x32xf32>
    %1074 = vector.extract_strided_slice %1072 {offsets = [0, 32], sizes = [4, 32], strides = [1, 1]} : vector<4x128xf32> to vector<4x32xf32>
    %1075 = vector.extract_strided_slice %1072 {offsets = [0, 64], sizes = [4, 32], strides = [1, 1]} : vector<4x128xf32> to vector<4x32xf32>
    %cst_367 = arith.constant 2.000000e+00 : f32
    %1076 = vector.broadcast %cst_367 : f32 to vector<4x32xf32>
    %1077 = arith.mulf %1076, %1075 : vector<4x32xf32>
    %cst_368 = arith.constant 1.000000e+00 : f32
    %1078 = vector.broadcast %cst_368 : f32 to vector<4x32xf32>
    %1079 = arith.subf %1077, %1078 : vector<4x32xf32>
    %1080 = vector.extract_strided_slice %1072 {offsets = [0, 96], sizes = [4, 32], strides = [1, 1]} : vector<4x128xf32> to vector<4x32xf32>
    %1081 = arith.mulf %1074, %1060 : vector<4x32xf32>
    %1082 = arith.mulf %1073, %1079 : vector<4x32xf32>
    %1083 = arith.addf %1081, %1082 : vector<4x32xf32>
    %1084 = math.tanh %1083 : vector<4x32xf32>
    %1085 = arith.mulf %1080, %1084 : vector<4x32xf32>
    %c48_369 = arith.constant 48 : index
    %c0_370 = arith.constant 0 : index
    %1086 = vector.load %arg15[%c48_369, %c0_370] : memref<128x32xf32, #tpu.memory_space<vmem>>, vector<4x32xf32>
    tpu.vector_store %arg15[%c48_369, %c0_370], %1085 {strides = array<i32>} : memref<128x32xf32, #tpu.memory_space<vmem>>, vector<4x32xf32>,
    %c52_371 = arith.constant 52 : index
    %c0_372 = arith.constant 0 : index
    %1087 = vector.load %arg14[%c52_371, %c0_372] : memref<128x128xf32, #tpu.memory_space<vmem>>, vector<4x128xf32>
    %1088 = arith.truncf %1085 : vector<4x32xf32> to vector<4x32xbf16>
    %cst_373 = arith.constant dense<0.000000e+00> : vector<4x128xf32>
    %1089 = tpu.matmul %1088, %785, %cst_373 {dimension_numbers = #tpu.dot_dimension_numbers<[1], [0], [0], [1], [0, 0, 1, 1], [], []>} : vector<4x32xbf16>, vector<32x128xbf16>, vector<4x128xf32> -> vector<4x128xf32>
    %1090 = arith.addf %1087, %1089 : vector<4x128xf32>
    %1091 = arith.negf %1090 : vector<4x128xf32>
    %1092 = math.exp %1091 : vector<4x128xf32>
    %cst_374 = arith.constant 1.000000e+00 : f32
    %1093 = vector.broadcast %cst_374 : f32 to vector<4x128xf32>
    %1094 = arith.addf %1093, %1092 : vector<4x128xf32>
    %1095 = arith.divf %1093, %1094 : vector<4x128xf32>
    %1096 = vector.extract_strided_slice %1095 {offsets = [0, 0], sizes = [4, 32], strides = [1, 1]} : vector<4x128xf32> to vector<4x32xf32>
    %1097 = vector.extract_strided_slice %1095 {offsets = [0, 32], sizes = [4, 32], strides = [1, 1]} : vector<4x128xf32> to vector<4x32xf32>
    %1098 = vector.extract_strided_slice %1095 {offsets = [0, 64], sizes = [4, 32], strides = [1, 1]} : vector<4x128xf32> to vector<4x32xf32>
    %cst_375 = arith.constant 2.000000e+00 : f32
    %1099 = vector.broadcast %cst_375 : f32 to vector<4x32xf32>
    %1100 = arith.mulf %1099, %1098 : vector<4x32xf32>
    %cst_376 = arith.constant 1.000000e+00 : f32
    %1101 = vector.broadcast %cst_376 : f32 to vector<4x32xf32>
    %1102 = arith.subf %1100, %1101 : vector<4x32xf32>
    %1103 = vector.extract_strided_slice %1095 {offsets = [0, 96], sizes = [4, 32], strides = [1, 1]} : vector<4x128xf32> to vector<4x32xf32>
    %1104 = arith.mulf %1097, %1083 : vector<4x32xf32>
    %1105 = arith.mulf %1096, %1102 : vector<4x32xf32>
    %1106 = arith.addf %1104, %1105 : vector<4x32xf32>
    %1107 = math.tanh %1106 : vector<4x32xf32>
    %1108 = arith.mulf %1103, %1107 : vector<4x32xf32>
    %c52_377 = arith.constant 52 : index
    %c0_378 = arith.constant 0 : index
    %1109 = vector.load %arg15[%c52_377, %c0_378] : memref<128x32xf32, #tpu.memory_space<vmem>>, vector<4x32xf32>
    tpu.vector_store %arg15[%c52_377, %c0_378], %1108 {strides = array<i32>} : memref<128x32xf32, #tpu.memory_space<vmem>>, vector<4x32xf32>,
    %c56_379 = arith.constant 56 : index
    %c0_380 = arith.constant 0 : index
    %1110 = vector.load %arg14[%c56_379, %c0_380] : memref<128x128xf32, #tpu.memory_space<vmem>>, vector<4x128xf32>
    %1111 = arith.truncf %1108 : vector<4x32xf32> to vector<4x32xbf16>
    %cst_381 = arith.constant dense<0.000000e+00> : vector<4x128xf32>
    %1112 = tpu.matmul %1111, %785, %cst_381 {dimension_numbers = #tpu.dot_dimension_numbers<[1], [0], [0], [1], [0, 0, 1, 1], [], []>} : vector<4x32xbf16>, vector<32x128xbf16>, vector<4x128xf32> -> vector<4x128xf32>
    %1113 = arith.addf %1110, %1112 : vector<4x128xf32>
    %1114 = arith.negf %1113 : vector<4x128xf32>
    %1115 = math.exp %1114 : vector<4x128xf32>
    %cst_382 = arith.constant 1.000000e+00 : f32
    %1116 = vector.broadcast %cst_382 : f32 to vector<4x128xf32>
    %1117 = arith.addf %1116, %1115 : vector<4x128xf32>
    %1118 = arith.divf %1116, %1117 : vector<4x128xf32>
    %1119 = vector.extract_strided_slice %1118 {offsets = [0, 0], sizes = [4, 32], strides = [1, 1]} : vector<4x128xf32> to vector<4x32xf32>
    %1120 = vector.extract_strided_slice %1118 {offsets = [0, 32], sizes = [4, 32], strides = [1, 1]} : vector<4x128xf32> to vector<4x32xf32>
    %1121 = vector.extract_strided_slice %1118 {offsets = [0, 64], sizes = [4, 32], strides = [1, 1]} : vector<4x128xf32> to vector<4x32xf32>
    %cst_383 = arith.constant 2.000000e+00 : f32
    %1122 = vector.broadcast %cst_383 : f32 to vector<4x32xf32>
    %1123 = arith.mulf %1122, %1121 : vector<4x32xf32>
    %cst_384 = arith.constant 1.000000e+00 : f32
    %1124 = vector.broadcast %cst_384 : f32 to vector<4x32xf32>
    %1125 = arith.subf %1123, %1124 : vector<4x32xf32>
    %1126 = vector.extract_strided_slice %1118 {offsets = [0, 96], sizes = [4, 32], strides = [1, 1]} : vector<4x128xf32> to vector<4x32xf32>
    %1127 = arith.mulf %1120, %1106 : vector<4x32xf32>
    %1128 = arith.mulf %1119, %1125 : vector<4x32xf32>
    %1129 = arith.addf %1127, %1128 : vector<4x32xf32>
    %1130 = math.tanh %1129 : vector<4x32xf32>
    %1131 = arith.mulf %1126, %1130 : vector<4x32xf32>
    %c56_385 = arith.constant 56 : index
    %c0_386 = arith.constant 0 : index
    %1132 = vector.load %arg15[%c56_385, %c0_386] : memref<128x32xf32, #tpu.memory_space<vmem>>, vector<4x32xf32>
    tpu.vector_store %arg15[%c56_385, %c0_386], %1131 {strides = array<i32>} : memref<128x32xf32, #tpu.memory_space<vmem>>, vector<4x32xf32>,
    %c60_387 = arith.constant 60 : index
    %c0_388 = arith.constant 0 : index
    %1133 = vector.load %arg14[%c60_387, %c0_388] : memref<128x128xf32, #tpu.memory_space<vmem>>, vector<4x128xf32>
    %1134 = arith.truncf %1131 : vector<4x32xf32> to vector<4x32xbf16>
    %cst_389 = arith.constant dense<0.000000e+00> : vector<4x128xf32>
    %1135 = tpu.matmul %1134, %785, %cst_389 {dimension_numbers = #tpu.dot_dimension_numbers<[1], [0], [0], [1], [0, 0, 1, 1], [], []>} : vector<4x32xbf16>, vector<32x128xbf16>, vector<4x128xf32> -> vector<4x128xf32>
    %1136 = arith.addf %1133, %1135 : vector<4x128xf32>
    %1137 = arith.negf %1136 : vector<4x128xf32>
    %1138 = math.exp %1137 : vector<4x128xf32>
    %cst_390 = arith.constant 1.000000e+00 : f32
    %1139 = vector.broadcast %cst_390 : f32 to vector<4x128xf32>
    %1140 = arith.addf %1139, %1138 : vector<4x128xf32>
    %1141 = arith.divf %1139, %1140 : vector<4x128xf32>
    %1142 = vector.extract_strided_slice %1141 {offsets = [0, 0], sizes = [4, 32], strides = [1, 1]} : vector<4x128xf32> to vector<4x32xf32>
    %1143 = vector.extract_strided_slice %1141 {offsets = [0, 32], sizes = [4, 32], strides = [1, 1]} : vector<4x128xf32> to vector<4x32xf32>
    %1144 = vector.extract_strided_slice %1141 {offsets = [0, 64], sizes = [4, 32], strides = [1, 1]} : vector<4x128xf32> to vector<4x32xf32>
    %cst_391 = arith.constant 2.000000e+00 : f32
    %1145 = vector.broadcast %cst_391 : f32 to vector<4x32xf32>
    %1146 = arith.mulf %1145, %1144 : vector<4x32xf32>
    %cst_392 = arith.constant 1.000000e+00 : f32
    %1147 = vector.broadcast %cst_392 : f32 to vector<4x32xf32>
    %1148 = arith.subf %1146, %1147 : vector<4x32xf32>
    %1149 = vector.extract_strided_slice %1141 {offsets = [0, 96], sizes = [4, 32], strides = [1, 1]} : vector<4x128xf32> to vector<4x32xf32>
    %1150 = arith.mulf %1143, %1129 : vector<4x32xf32>
    %1151 = arith.mulf %1142, %1148 : vector<4x32xf32>
    %1152 = arith.addf %1150, %1151 : vector<4x32xf32>
    %1153 = math.tanh %1152 : vector<4x32xf32>
    %1154 = arith.mulf %1149, %1153 : vector<4x32xf32>
    %c60_393 = arith.constant 60 : index
    %c0_394 = arith.constant 0 : index
    %1155 = vector.load %arg15[%c60_393, %c0_394] : memref<128x32xf32, #tpu.memory_space<vmem>>, vector<4x32xf32>
    tpu.vector_store %arg15[%c60_393, %c0_394], %1154 {strides = array<i32>} : memref<128x32xf32, #tpu.memory_space<vmem>>, vector<4x32xf32>,
    %c64_395 = arith.constant 64 : index
    %c0_396 = arith.constant 0 : index
    %1156 = vector.load %arg14[%c64_395, %c0_396] : memref<128x128xf32, #tpu.memory_space<vmem>>, vector<4x128xf32>
    %1157 = arith.truncf %1154 : vector<4x32xf32> to vector<4x32xbf16>
    %cst_397 = arith.constant dense<0.000000e+00> : vector<4x128xf32>
    %1158 = tpu.matmul %1157, %785, %cst_397 {dimension_numbers = #tpu.dot_dimension_numbers<[1], [0], [0], [1], [0, 0, 1, 1], [], []>} : vector<4x32xbf16>, vector<32x128xbf16>, vector<4x128xf32> -> vector<4x128xf32>
    %1159 = arith.addf %1156, %1158 : vector<4x128xf32>
    %1160 = arith.negf %1159 : vector<4x128xf32>
    %1161 = math.exp %1160 : vector<4x128xf32>
    %cst_398 = arith.constant 1.000000e+00 : f32
    %1162 = vector.broadcast %cst_398 : f32 to vector<4x128xf32>
    %1163 = arith.addf %1162, %1161 : vector<4x128xf32>
    %1164 = arith.divf %1162, %1163 : vector<4x128xf32>
    %1165 = vector.extract_strided_slice %1164 {offsets = [0, 0], sizes = [4, 32], strides = [1, 1]} : vector<4x128xf32> to vector<4x32xf32>
    %1166 = vector.extract_strided_slice %1164 {offsets = [0, 32], sizes = [4, 32], strides = [1, 1]} : vector<4x128xf32> to vector<4x32xf32>
    %1167 = vector.extract_strided_slice %1164 {offsets = [0, 64], sizes = [4, 32], strides = [1, 1]} : vector<4x128xf32> to vector<4x32xf32>
    %cst_399 = arith.constant 2.000000e+00 : f32
    %1168 = vector.broadcast %cst_399 : f32 to vector<4x32xf32>
    %1169 = arith.mulf %1168, %1167 : vector<4x32xf32>
    %cst_400 = arith.constant 1.000000e+00 : f32
    %1170 = vector.broadcast %cst_400 : f32 to vector<4x32xf32>
    %1171 = arith.subf %1169, %1170 : vector<4x32xf32>
    %1172 = vector.extract_strided_slice %1164 {offsets = [0, 96], sizes = [4, 32], strides = [1, 1]} : vector<4x128xf32> to vector<4x32xf32>
    %1173 = arith.mulf %1166, %1152 : vector<4x32xf32>
    %1174 = arith.mulf %1165, %1171 : vector<4x32xf32>
    %1175 = arith.addf %1173, %1174 : vector<4x32xf32>
    %1176 = math.tanh %1175 : vector<4x32xf32>
    %1177 = arith.mulf %1172, %1176 : vector<4x32xf32>
    %c64_401 = arith.constant 64 : index
    %c0_402 = arith.constant 0 : index
    %1178 = vector.load %arg15[%c64_401, %c0_402] : memref<128x32xf32, #tpu.memory_space<vmem>>, vector<4x32xf32>
    tpu.vector_store %arg15[%c64_401, %c0_402], %1177 {strides = array<i32>} : memref<128x32xf32, #tpu.memory_space<vmem>>, vector<4x32xf32>,
    %c68_403 = arith.constant 68 : index
    %c0_404 = arith.constant 0 : index
    %1179 = vector.load %arg14[%c68_403, %c0_404] : memref<128x128xf32, #tpu.memory_space<vmem>>, vector<4x128xf32>
    %1180 = arith.truncf %1177 : vector<4x32xf32> to vector<4x32xbf16>
    %cst_405 = arith.constant dense<0.000000e+00> : vector<4x128xf32>
    %1181 = tpu.matmul %1180, %785, %cst_405 {dimension_numbers = #tpu.dot_dimension_numbers<[1], [0], [0], [1], [0, 0, 1, 1], [], []>} : vector<4x32xbf16>, vector<32x128xbf16>, vector<4x128xf32> -> vector<4x128xf32>
    %1182 = arith.addf %1179, %1181 : vector<4x128xf32>
    %1183 = arith.negf %1182 : vector<4x128xf32>
    %1184 = math.exp %1183 : vector<4x128xf32>
    %cst_406 = arith.constant 1.000000e+00 : f32
    %1185 = vector.broadcast %cst_406 : f32 to vector<4x128xf32>
    %1186 = arith.addf %1185, %1184 : vector<4x128xf32>
    %1187 = arith.divf %1185, %1186 : vector<4x128xf32>
    %1188 = vector.extract_strided_slice %1187 {offsets = [0, 0], sizes = [4, 32], strides = [1, 1]} : vector<4x128xf32> to vector<4x32xf32>
    %1189 = vector.extract_strided_slice %1187 {offsets = [0, 32], sizes = [4, 32], strides = [1, 1]} : vector<4x128xf32> to vector<4x32xf32>
    %1190 = vector.extract_strided_slice %1187 {offsets = [0, 64], sizes = [4, 32], strides = [1, 1]} : vector<4x128xf32> to vector<4x32xf32>
    %cst_407 = arith.constant 2.000000e+00 : f32
    %1191 = vector.broadcast %cst_407 : f32 to vector<4x32xf32>
    %1192 = arith.mulf %1191, %1190 : vector<4x32xf32>
    %cst_408 = arith.constant 1.000000e+00 : f32
    %1193 = vector.broadcast %cst_408 : f32 to vector<4x32xf32>
    %1194 = arith.subf %1192, %1193 : vector<4x32xf32>
    %1195 = vector.extract_strided_slice %1187 {offsets = [0, 96], sizes = [4, 32], strides = [1, 1]} : vector<4x128xf32> to vector<4x32xf32>
    %1196 = arith.mulf %1189, %1175 : vector<4x32xf32>
    %1197 = arith.mulf %1188, %1194 : vector<4x32xf32>
    %1198 = arith.addf %1196, %1197 : vector<4x32xf32>
    %1199 = math.tanh %1198 : vector<4x32xf32>
    %1200 = arith.mulf %1195, %1199 : vector<4x32xf32>
    %c68_409 = arith.constant 68 : index
    %c0_410 = arith.constant 0 : index
    %1201 = vector.load %arg15[%c68_409, %c0_410] : memref<128x32xf32, #tpu.memory_space<vmem>>, vector<4x32xf32>
    tpu.vector_store %arg15[%c68_409, %c0_410], %1200 {strides = array<i32>} : memref<128x32xf32, #tpu.memory_space<vmem>>, vector<4x32xf32>,
    %c72_411 = arith.constant 72 : index
    %c0_412 = arith.constant 0 : index
    %1202 = vector.load %arg14[%c72_411, %c0_412] : memref<128x128xf32, #tpu.memory_space<vmem>>, vector<4x128xf32>
    %1203 = arith.truncf %1200 : vector<4x32xf32> to vector<4x32xbf16>
    %cst_413 = arith.constant dense<0.000000e+00> : vector<4x128xf32>
    %1204 = tpu.matmul %1203, %785, %cst_413 {dimension_numbers = #tpu.dot_dimension_numbers<[1], [0], [0], [1], [0, 0, 1, 1], [], []>} : vector<4x32xbf16>, vector<32x128xbf16>, vector<4x128xf32> -> vector<4x128xf32>
    %1205 = arith.addf %1202, %1204 : vector<4x128xf32>
    %1206 = arith.negf %1205 : vector<4x128xf32>
    %1207 = math.exp %1206 : vector<4x128xf32>
    %cst_414 = arith.constant 1.000000e+00 : f32
    %1208 = vector.broadcast %cst_414 : f32 to vector<4x128xf32>
    %1209 = arith.addf %1208, %1207 : vector<4x128xf32>
    %1210 = arith.divf %1208, %1209 : vector<4x128xf32>
    %1211 = vector.extract_strided_slice %1210 {offsets = [0, 0], sizes = [4, 32], strides = [1, 1]} : vector<4x128xf32> to vector<4x32xf32>
    %1212 = vector.extract_strided_slice %1210 {offsets = [0, 32], sizes = [4, 32], strides = [1, 1]} : vector<4x128xf32> to vector<4x32xf32>
    %1213 = vector.extract_strided_slice %1210 {offsets = [0, 64], sizes = [4, 32], strides = [1, 1]} : vector<4x128xf32> to vector<4x32xf32>
    %cst_415 = arith.constant 2.000000e+00 : f32
    %1214 = vector.broadcast %cst_415 : f32 to vector<4x32xf32>
    %1215 = arith.mulf %1214, %1213 : vector<4x32xf32>
    %cst_416 = arith.constant 1.000000e+00 : f32
    %1216 = vector.broadcast %cst_416 : f32 to vector<4x32xf32>
    %1217 = arith.subf %1215, %1216 : vector<4x32xf32>
    %1218 = vector.extract_strided_slice %1210 {offsets = [0, 96], sizes = [4, 32], strides = [1, 1]} : vector<4x128xf32> to vector<4x32xf32>
    %1219 = arith.mulf %1212, %1198 : vector<4x32xf32>
    %1220 = arith.mulf %1211, %1217 : vector<4x32xf32>
    %1221 = arith.addf %1219, %1220 : vector<4x32xf32>
    %1222 = math.tanh %1221 : vector<4x32xf32>
    %1223 = arith.mulf %1218, %1222 : vector<4x32xf32>
    %c72_417 = arith.constant 72 : index
    %c0_418 = arith.constant 0 : index
    %1224 = vector.load %arg15[%c72_417, %c0_418] : memref<128x32xf32, #tpu.memory_space<vmem>>, vector<4x32xf32>
    tpu.vector_store %arg15[%c72_417, %c0_418], %1223 {strides = array<i32>} : memref<128x32xf32, #tpu.memory_space<vmem>>, vector<4x32xf32>,
    %c76_419 = arith.constant 76 : index
    %c0_420 = arith.constant 0 : index
    %1225 = vector.load %arg14[%c76_419, %c0_420] : memref<128x128xf32, #tpu.memory_space<vmem>>, vector<4x128xf32>
    %1226 = arith.truncf %1223 : vector<4x32xf32> to vector<4x32xbf16>
    %cst_421 = arith.constant dense<0.000000e+00> : vector<4x128xf32>
    %1227 = tpu.matmul %1226, %785, %cst_421 {dimension_numbers = #tpu.dot_dimension_numbers<[1], [0], [0], [1], [0, 0, 1, 1], [], []>} : vector<4x32xbf16>, vector<32x128xbf16>, vector<4x128xf32> -> vector<4x128xf32>
    %1228 = arith.addf %1225, %1227 : vector<4x128xf32>
    %1229 = arith.negf %1228 : vector<4x128xf32>
    %1230 = math.exp %1229 : vector<4x128xf32>
    %cst_422 = arith.constant 1.000000e+00 : f32
    %1231 = vector.broadcast %cst_422 : f32 to vector<4x128xf32>
    %1232 = arith.addf %1231, %1230 : vector<4x128xf32>
    %1233 = arith.divf %1231, %1232 : vector<4x128xf32>
    %1234 = vector.extract_strided_slice %1233 {offsets = [0, 0], sizes = [4, 32], strides = [1, 1]} : vector<4x128xf32> to vector<4x32xf32>
    %1235 = vector.extract_strided_slice %1233 {offsets = [0, 32], sizes = [4, 32], strides = [1, 1]} : vector<4x128xf32> to vector<4x32xf32>
    %1236 = vector.extract_strided_slice %1233 {offsets = [0, 64], sizes = [4, 32], strides = [1, 1]} : vector<4x128xf32> to vector<4x32xf32>
    %cst_423 = arith.constant 2.000000e+00 : f32
    %1237 = vector.broadcast %cst_423 : f32 to vector<4x32xf32>
    %1238 = arith.mulf %1237, %1236 : vector<4x32xf32>
    %cst_424 = arith.constant 1.000000e+00 : f32
    %1239 = vector.broadcast %cst_424 : f32 to vector<4x32xf32>
    %1240 = arith.subf %1238, %1239 : vector<4x32xf32>
    %1241 = vector.extract_strided_slice %1233 {offsets = [0, 96], sizes = [4, 32], strides = [1, 1]} : vector<4x128xf32> to vector<4x32xf32>
    %1242 = arith.mulf %1235, %1221 : vector<4x32xf32>
    %1243 = arith.mulf %1234, %1240 : vector<4x32xf32>
    %1244 = arith.addf %1242, %1243 : vector<4x32xf32>
    %1245 = math.tanh %1244 : vector<4x32xf32>
    %1246 = arith.mulf %1241, %1245 : vector<4x32xf32>
    %c76_425 = arith.constant 76 : index
    %c0_426 = arith.constant 0 : index
    %1247 = vector.load %arg15[%c76_425, %c0_426] : memref<128x32xf32, #tpu.memory_space<vmem>>, vector<4x32xf32>
    tpu.vector_store %arg15[%c76_425, %c0_426], %1246 {strides = array<i32>} : memref<128x32xf32, #tpu.memory_space<vmem>>, vector<4x32xf32>,
    %c80_427 = arith.constant 80 : index
    %c0_428 = arith.constant 0 : index
    %1248 = vector.load %arg14[%c80_427, %c0_428] : memref<128x128xf32, #tpu.memory_space<vmem>>, vector<4x128xf32>
    %1249 = arith.truncf %1246 : vector<4x32xf32> to vector<4x32xbf16>
    %cst_429 = arith.constant dense<0.000000e+00> : vector<4x128xf32>
    %1250 = tpu.matmul %1249, %785, %cst_429 {dimension_numbers = #tpu.dot_dimension_numbers<[1], [0], [0], [1], [0, 0, 1, 1], [], []>} : vector<4x32xbf16>, vector<32x128xbf16>, vector<4x128xf32> -> vector<4x128xf32>
    %1251 = arith.addf %1248, %1250 : vector<4x128xf32>
    %1252 = arith.negf %1251 : vector<4x128xf32>
    %1253 = math.exp %1252 : vector<4x128xf32>
    %cst_430 = arith.constant 1.000000e+00 : f32
    %1254 = vector.broadcast %cst_430 : f32 to vector<4x128xf32>
    %1255 = arith.addf %1254, %1253 : vector<4x128xf32>
    %1256 = arith.divf %1254, %1255 : vector<4x128xf32>
    %1257 = vector.extract_strided_slice %1256 {offsets = [0, 0], sizes = [4, 32], strides = [1, 1]} : vector<4x128xf32> to vector<4x32xf32>
    %1258 = vector.extract_strided_slice %1256 {offsets = [0, 32], sizes = [4, 32], strides = [1, 1]} : vector<4x128xf32> to vector<4x32xf32>
    %1259 = vector.extract_strided_slice %1256 {offsets = [0, 64], sizes = [4, 32], strides = [1, 1]} : vector<4x128xf32> to vector<4x32xf32>
    %cst_431 = arith.constant 2.000000e+00 : f32
    %1260 = vector.broadcast %cst_431 : f32 to vector<4x32xf32>
    %1261 = arith.mulf %1260, %1259 : vector<4x32xf32>
    %cst_432 = arith.constant 1.000000e+00 : f32
    %1262 = vector.broadcast %cst_432 : f32 to vector<4x32xf32>
    %1263 = arith.subf %1261, %1262 : vector<4x32xf32>
    %1264 = vector.extract_strided_slice %1256 {offsets = [0, 96], sizes = [4, 32], strides = [1, 1]} : vector<4x128xf32> to vector<4x32xf32>
    %1265 = arith.mulf %1258, %1244 : vector<4x32xf32>
    %1266 = arith.mulf %1257, %1263 : vector<4x32xf32>
    %1267 = arith.addf %1265, %1266 : vector<4x32xf32>
    %1268 = math.tanh %1267 : vector<4x32xf32>
    %1269 = arith.mulf %1264, %1268 : vector<4x32xf32>
    %c80_433 = arith.constant 80 : index
    %c0_434 = arith.constant 0 : index
    %1270 = vector.load %arg15[%c80_433, %c0_434] : memref<128x32xf32, #tpu.memory_space<vmem>>, vector<4x32xf32>
    tpu.vector_store %arg15[%c80_433, %c0_434], %1269 {strides = array<i32>} : memref<128x32xf32, #tpu.memory_space<vmem>>, vector<4x32xf32>,
    %c84_435 = arith.constant 84 : index
    %c0_436 = arith.constant 0 : index
    %1271 = vector.load %arg14[%c84_435, %c0_436] : memref<128x128xf32, #tpu.memory_space<vmem>>, vector<4x128xf32>
    %1272 = arith.truncf %1269 : vector<4x32xf32> to vector<4x32xbf16>
    %cst_437 = arith.constant dense<0.000000e+00> : vector<4x128xf32>
    %1273 = tpu.matmul %1272, %785, %cst_437 {dimension_numbers = #tpu.dot_dimension_numbers<[1], [0], [0], [1], [0, 0, 1, 1], [], []>} : vector<4x32xbf16>, vector<32x128xbf16>, vector<4x128xf32> -> vector<4x128xf32>
    %1274 = arith.addf %1271, %1273 : vector<4x128xf32>
    %1275 = arith.negf %1274 : vector<4x128xf32>
    %1276 = math.exp %1275 : vector<4x128xf32>
    %cst_438 = arith.constant 1.000000e+00 : f32
    %1277 = vector.broadcast %cst_438 : f32 to vector<4x128xf32>
    %1278 = arith.addf %1277, %1276 : vector<4x128xf32>
    %1279 = arith.divf %1277, %1278 : vector<4x128xf32>
    %1280 = vector.extract_strided_slice %1279 {offsets = [0, 0], sizes = [4, 32], strides = [1, 1]} : vector<4x128xf32> to vector<4x32xf32>
    %1281 = vector.extract_strided_slice %1279 {offsets = [0, 32], sizes = [4, 32], strides = [1, 1]} : vector<4x128xf32> to vector<4x32xf32>
    %1282 = vector.extract_strided_slice %1279 {offsets = [0, 64], sizes = [4, 32], strides = [1, 1]} : vector<4x128xf32> to vector<4x32xf32>
    %cst_439 = arith.constant 2.000000e+00 : f32
    %1283 = vector.broadcast %cst_439 : f32 to vector<4x32xf32>
    %1284 = arith.mulf %1283, %1282 : vector<4x32xf32>
    %cst_440 = arith.constant 1.000000e+00 : f32
    %1285 = vector.broadcast %cst_440 : f32 to vector<4x32xf32>
    %1286 = arith.subf %1284, %1285 : vector<4x32xf32>
    %1287 = vector.extract_strided_slice %1279 {offsets = [0, 96], sizes = [4, 32], strides = [1, 1]} : vector<4x128xf32> to vector<4x32xf32>
    %1288 = arith.mulf %1281, %1267 : vector<4x32xf32>
    %1289 = arith.mulf %1280, %1286 : vector<4x32xf32>
    %1290 = arith.addf %1288, %1289 : vector<4x32xf32>
    %1291 = math.tanh %1290 : vector<4x32xf32>
    %1292 = arith.mulf %1287, %1291 : vector<4x32xf32>
    %c84_441 = arith.constant 84 : index
    %c0_442 = arith.constant 0 : index
    %1293 = vector.load %arg15[%c84_441, %c0_442] : memref<128x32xf32, #tpu.memory_space<vmem>>, vector<4x32xf32>
    tpu.vector_store %arg15[%c84_441, %c0_442], %1292 {strides = array<i32>} : memref<128x32xf32, #tpu.memory_space<vmem>>, vector<4x32xf32>,
    %c88_443 = arith.constant 88 : index
    %c0_444 = arith.constant 0 : index
    %1294 = vector.load %arg14[%c88_443, %c0_444] : memref<128x128xf32, #tpu.memory_space<vmem>>, vector<4x128xf32>
    %1295 = arith.truncf %1292 : vector<4x32xf32> to vector<4x32xbf16>
    %cst_445 = arith.constant dense<0.000000e+00> : vector<4x128xf32>
    %1296 = tpu.matmul %1295, %785, %cst_445 {dimension_numbers = #tpu.dot_dimension_numbers<[1], [0], [0], [1], [0, 0, 1, 1], [], []>} : vector<4x32xbf16>, vector<32x128xbf16>, vector<4x128xf32> -> vector<4x128xf32>
    %1297 = arith.addf %1294, %1296 : vector<4x128xf32>
    %1298 = arith.negf %1297 : vector<4x128xf32>
    %1299 = math.exp %1298 : vector<4x128xf32>
    %cst_446 = arith.constant 1.000000e+00 : f32
    %1300 = vector.broadcast %cst_446 : f32 to vector<4x128xf32>
    %1301 = arith.addf %1300, %1299 : vector<4x128xf32>
    %1302 = arith.divf %1300, %1301 : vector<4x128xf32>
    %1303 = vector.extract_strided_slice %1302 {offsets = [0, 0], sizes = [4, 32], strides = [1, 1]} : vector<4x128xf32> to vector<4x32xf32>
    %1304 = vector.extract_strided_slice %1302 {offsets = [0, 32], sizes = [4, 32], strides = [1, 1]} : vector<4x128xf32> to vector<4x32xf32>
    %1305 = vector.extract_strided_slice %1302 {offsets = [0, 64], sizes = [4, 32], strides = [1, 1]} : vector<4x128xf32> to vector<4x32xf32>
    %cst_447 = arith.constant 2.000000e+00 : f32
    %1306 = vector.broadcast %cst_447 : f32 to vector<4x32xf32>
    %1307 = arith.mulf %1306, %1305 : vector<4x32xf32>
    %cst_448 = arith.constant 1.000000e+00 : f32
    %1308 = vector.broadcast %cst_448 : f32 to vector<4x32xf32>
    %1309 = arith.subf %1307, %1308 : vector<4x32xf32>
    %1310 = vector.extract_strided_slice %1302 {offsets = [0, 96], sizes = [4, 32], strides = [1, 1]} : vector<4x128xf32> to vector<4x32xf32>
    %1311 = arith.mulf %1304, %1290 : vector<4x32xf32>
    %1312 = arith.mulf %1303, %1309 : vector<4x32xf32>
    %1313 = arith.addf %1311, %1312 : vector<4x32xf32>
    %1314 = math.tanh %1313 : vector<4x32xf32>
    %1315 = arith.mulf %1310, %1314 : vector<4x32xf32>
    %c88_449 = arith.constant 88 : index
    %c0_450 = arith.constant 0 : index
    %1316 = vector.load %arg15[%c88_449, %c0_450] : memref<128x32xf32, #tpu.memory_space<vmem>>, vector<4x32xf32>
    tpu.vector_store %arg15[%c88_449, %c0_450], %1315 {strides = array<i32>} : memref<128x32xf32, #tpu.memory_space<vmem>>, vector<4x32xf32>,
    %c92_451 = arith.constant 92 : index
    %c0_452 = arith.constant 0 : index
    %1317 = vector.load %arg14[%c92_451, %c0_452] : memref<128x128xf32, #tpu.memory_space<vmem>>, vector<4x128xf32>
    %1318 = arith.truncf %1315 : vector<4x32xf32> to vector<4x32xbf16>
    %cst_453 = arith.constant dense<0.000000e+00> : vector<4x128xf32>
    %1319 = tpu.matmul %1318, %785, %cst_453 {dimension_numbers = #tpu.dot_dimension_numbers<[1], [0], [0], [1], [0, 0, 1, 1], [], []>} : vector<4x32xbf16>, vector<32x128xbf16>, vector<4x128xf32> -> vector<4x128xf32>
    %1320 = arith.addf %1317, %1319 : vector<4x128xf32>
    %1321 = arith.negf %1320 : vector<4x128xf32>
    %1322 = math.exp %1321 : vector<4x128xf32>
    %cst_454 = arith.constant 1.000000e+00 : f32
    %1323 = vector.broadcast %cst_454 : f32 to vector<4x128xf32>
    %1324 = arith.addf %1323, %1322 : vector<4x128xf32>
    %1325 = arith.divf %1323, %1324 : vector<4x128xf32>
    %1326 = vector.extract_strided_slice %1325 {offsets = [0, 0], sizes = [4, 32], strides = [1, 1]} : vector<4x128xf32> to vector<4x32xf32>
    %1327 = vector.extract_strided_slice %1325 {offsets = [0, 32], sizes = [4, 32], strides = [1, 1]} : vector<4x128xf32> to vector<4x32xf32>
    %1328 = vector.extract_strided_slice %1325 {offsets = [0, 64], sizes = [4, 32], strides = [1, 1]} : vector<4x128xf32> to vector<4x32xf32>
    %cst_455 = arith.constant 2.000000e+00 : f32
    %1329 = vector.broadcast %cst_455 : f32 to vector<4x32xf32>
    %1330 = arith.mulf %1329, %1328 : vector<4x32xf32>
    %cst_456 = arith.constant 1.000000e+00 : f32
    %1331 = vector.broadcast %cst_456 : f32 to vector<4x32xf32>
    %1332 = arith.subf %1330, %1331 : vector<4x32xf32>
    %1333 = vector.extract_strided_slice %1325 {offsets = [0, 96], sizes = [4, 32], strides = [1, 1]} : vector<4x128xf32> to vector<4x32xf32>
    %1334 = arith.mulf %1327, %1313 : vector<4x32xf32>
    %1335 = arith.mulf %1326, %1332 : vector<4x32xf32>
    %1336 = arith.addf %1334, %1335 : vector<4x32xf32>
    %1337 = math.tanh %1336 : vector<4x32xf32>
    %1338 = arith.mulf %1333, %1337 : vector<4x32xf32>
    %c92_457 = arith.constant 92 : index
    %c0_458 = arith.constant 0 : index
    %1339 = vector.load %arg15[%c92_457, %c0_458] : memref<128x32xf32, #tpu.memory_space<vmem>>, vector<4x32xf32>
    tpu.vector_store %arg15[%c92_457, %c0_458], %1338 {strides = array<i32>} : memref<128x32xf32, #tpu.memory_space<vmem>>, vector<4x32xf32>,
    %c96_459 = arith.constant 96 : index
    %c0_460 = arith.constant 0 : index
    %1340 = vector.load %arg14[%c96_459, %c0_460] : memref<128x128xf32, #tpu.memory_space<vmem>>, vector<4x128xf32>
    %1341 = arith.truncf %1338 : vector<4x32xf32> to vector<4x32xbf16>
    %cst_461 = arith.constant dense<0.000000e+00> : vector<4x128xf32>
    %1342 = tpu.matmul %1341, %785, %cst_461 {dimension_numbers = #tpu.dot_dimension_numbers<[1], [0], [0], [1], [0, 0, 1, 1], [], []>} : vector<4x32xbf16>, vector<32x128xbf16>, vector<4x128xf32> -> vector<4x128xf32>
    %1343 = arith.addf %1340, %1342 : vector<4x128xf32>
    %1344 = arith.negf %1343 : vector<4x128xf32>
    %1345 = math.exp %1344 : vector<4x128xf32>
    %cst_462 = arith.constant 1.000000e+00 : f32
    %1346 = vector.broadcast %cst_462 : f32 to vector<4x128xf32>
    %1347 = arith.addf %1346, %1345 : vector<4x128xf32>
    %1348 = arith.divf %1346, %1347 : vector<4x128xf32>
    %1349 = vector.extract_strided_slice %1348 {offsets = [0, 0], sizes = [4, 32], strides = [1, 1]} : vector<4x128xf32> to vector<4x32xf32>
    %1350 = vector.extract_strided_slice %1348 {offsets = [0, 32], sizes = [4, 32], strides = [1, 1]} : vector<4x128xf32> to vector<4x32xf32>
    %1351 = vector.extract_strided_slice %1348 {offsets = [0, 64], sizes = [4, 32], strides = [1, 1]} : vector<4x128xf32> to vector<4x32xf32>
    %cst_463 = arith.constant 2.000000e+00 : f32
    %1352 = vector.broadcast %cst_463 : f32 to vector<4x32xf32>
    %1353 = arith.mulf %1352, %1351 : vector<4x32xf32>
    %cst_464 = arith.constant 1.000000e+00 : f32
    %1354 = vector.broadcast %cst_464 : f32 to vector<4x32xf32>
    %1355 = arith.subf %1353, %1354 : vector<4x32xf32>
    %1356 = vector.extract_strided_slice %1348 {offsets = [0, 96], sizes = [4, 32], strides = [1, 1]} : vector<4x128xf32> to vector<4x32xf32>
    %1357 = arith.mulf %1350, %1336 : vector<4x32xf32>
    %1358 = arith.mulf %1349, %1355 : vector<4x32xf32>
    %1359 = arith.addf %1357, %1358 : vector<4x32xf32>
    %1360 = math.tanh %1359 : vector<4x32xf32>
    %1361 = arith.mulf %1356, %1360 : vector<4x32xf32>
    %c96_465 = arith.constant 96 : index
    %c0_466 = arith.constant 0 : index
    %1362 = vector.load %arg15[%c96_465, %c0_466] : memref<128x32xf32, #tpu.memory_space<vmem>>, vector<4x32xf32>
    tpu.vector_store %arg15[%c96_465, %c0_466], %1361 {strides = array<i32>} : memref<128x32xf32, #tpu.memory_space<vmem>>, vector<4x32xf32>,
    %c100_467 = arith.constant 100 : index
    %c0_468 = arith.constant 0 : index
    %1363 = vector.load %arg14[%c100_467, %c0_468] : memref<128x128xf32, #tpu.memory_space<vmem>>, vector<4x128xf32>
    %1364 = arith.truncf %1361 : vector<4x32xf32> to vector<4x32xbf16>
    %cst_469 = arith.constant dense<0.000000e+00> : vector<4x128xf32>
    %1365 = tpu.matmul %1364, %785, %cst_469 {dimension_numbers = #tpu.dot_dimension_numbers<[1], [0], [0], [1], [0, 0, 1, 1], [], []>} : vector<4x32xbf16>, vector<32x128xbf16>, vector<4x128xf32> -> vector<4x128xf32>
    %1366 = arith.addf %1363, %1365 : vector<4x128xf32>
    %1367 = arith.negf %1366 : vector<4x128xf32>
    %1368 = math.exp %1367 : vector<4x128xf32>
    %cst_470 = arith.constant 1.000000e+00 : f32
    %1369 = vector.broadcast %cst_470 : f32 to vector<4x128xf32>
    %1370 = arith.addf %1369, %1368 : vector<4x128xf32>
    %1371 = arith.divf %1369, %1370 : vector<4x128xf32>
    %1372 = vector.extract_strided_slice %1371 {offsets = [0, 0], sizes = [4, 32], strides = [1, 1]} : vector<4x128xf32> to vector<4x32xf32>
    %1373 = vector.extract_strided_slice %1371 {offsets = [0, 32], sizes = [4, 32], strides = [1, 1]} : vector<4x128xf32> to vector<4x32xf32>
    %1374 = vector.extract_strided_slice %1371 {offsets = [0, 64], sizes = [4, 32], strides = [1, 1]} : vector<4x128xf32> to vector<4x32xf32>
    %cst_471 = arith.constant 2.000000e+00 : f32
    %1375 = vector.broadcast %cst_471 : f32 to vector<4x32xf32>
    %1376 = arith.mulf %1375, %1374 : vector<4x32xf32>
    %cst_472 = arith.constant 1.000000e+00 : f32
    %1377 = vector.broadcast %cst_472 : f32 to vector<4x32xf32>
    %1378 = arith.subf %1376, %1377 : vector<4x32xf32>
    %1379 = vector.extract_strided_slice %1371 {offsets = [0, 96], sizes = [4, 32], strides = [1, 1]} : vector<4x128xf32> to vector<4x32xf32>
    %1380 = arith.mulf %1373, %1359 : vector<4x32xf32>
    %1381 = arith.mulf %1372, %1378 : vector<4x32xf32>
    %1382 = arith.addf %1380, %1381 : vector<4x32xf32>
    %1383 = math.tanh %1382 : vector<4x32xf32>
    %1384 = arith.mulf %1379, %1383 : vector<4x32xf32>
    %c100_473 = arith.constant 100 : index
    %c0_474 = arith.constant 0 : index
    %1385 = vector.load %arg15[%c100_473, %c0_474] : memref<128x32xf32, #tpu.memory_space<vmem>>, vector<4x32xf32>
    tpu.vector_store %arg15[%c100_473, %c0_474], %1384 {strides = array<i32>} : memref<128x32xf32, #tpu.memory_space<vmem>>, vector<4x32xf32>,
    %c104_475 = arith.constant 104 : index
    %c0_476 = arith.constant 0 : index
    %1386 = vector.load %arg14[%c104_475, %c0_476] : memref<128x128xf32, #tpu.memory_space<vmem>>, vector<4x128xf32>
    %1387 = arith.truncf %1384 : vector<4x32xf32> to vector<4x32xbf16>
    %cst_477 = arith.constant dense<0.000000e+00> : vector<4x128xf32>
    %1388 = tpu.matmul %1387, %785, %cst_477 {dimension_numbers = #tpu.dot_dimension_numbers<[1], [0], [0], [1], [0, 0, 1, 1], [], []>} : vector<4x32xbf16>, vector<32x128xbf16>, vector<4x128xf32> -> vector<4x128xf32>
    %1389 = arith.addf %1386, %1388 : vector<4x128xf32>
    %1390 = arith.negf %1389 : vector<4x128xf32>
    %1391 = math.exp %1390 : vector<4x128xf32>
    %cst_478 = arith.constant 1.000000e+00 : f32
    %1392 = vector.broadcast %cst_478 : f32 to vector<4x128xf32>
    %1393 = arith.addf %1392, %1391 : vector<4x128xf32>
    %1394 = arith.divf %1392, %1393 : vector<4x128xf32>
    %1395 = vector.extract_strided_slice %1394 {offsets = [0, 0], sizes = [4, 32], strides = [1, 1]} : vector<4x128xf32> to vector<4x32xf32>
    %1396 = vector.extract_strided_slice %1394 {offsets = [0, 32], sizes = [4, 32], strides = [1, 1]} : vector<4x128xf32> to vector<4x32xf32>
    %1397 = vector.extract_strided_slice %1394 {offsets = [0, 64], sizes = [4, 32], strides = [1, 1]} : vector<4x128xf32> to vector<4x32xf32>
    %cst_479 = arith.constant 2.000000e+00 : f32
    %1398 = vector.broadcast %cst_479 : f32 to vector<4x32xf32>
    %1399 = arith.mulf %1398, %1397 : vector<4x32xf32>
    %cst_480 = arith.constant 1.000000e+00 : f32
    %1400 = vector.broadcast %cst_480 : f32 to vector<4x32xf32>
    %1401 = arith.subf %1399, %1400 : vector<4x32xf32>
    %1402 = vector.extract_strided_slice %1394 {offsets = [0, 96], sizes = [4, 32], strides = [1, 1]} : vector<4x128xf32> to vector<4x32xf32>
    %1403 = arith.mulf %1396, %1382 : vector<4x32xf32>
    %1404 = arith.mulf %1395, %1401 : vector<4x32xf32>
    %1405 = arith.addf %1403, %1404 : vector<4x32xf32>
    %1406 = math.tanh %1405 : vector<4x32xf32>
    %1407 = arith.mulf %1402, %1406 : vector<4x32xf32>
    %c104_481 = arith.constant 104 : index
    %c0_482 = arith.constant 0 : index
    %1408 = vector.load %arg15[%c104_481, %c0_482] : memref<128x32xf32, #tpu.memory_space<vmem>>, vector<4x32xf32>
    tpu.vector_store %arg15[%c104_481, %c0_482], %1407 {strides = array<i32>} : memref<128x32xf32, #tpu.memory_space<vmem>>, vector<4x32xf32>,
    %c108_483 = arith.constant 108 : index
    %c0_484 = arith.constant 0 : index
    %1409 = vector.load %arg14[%c108_483, %c0_484] : memref<128x128xf32, #tpu.memory_space<vmem>>, vector<4x128xf32>
    %1410 = arith.truncf %1407 : vector<4x32xf32> to vector<4x32xbf16>
    %cst_485 = arith.constant dense<0.000000e+00> : vector<4x128xf32>
    %1411 = tpu.matmul %1410, %785, %cst_485 {dimension_numbers = #tpu.dot_dimension_numbers<[1], [0], [0], [1], [0, 0, 1, 1], [], []>} : vector<4x32xbf16>, vector<32x128xbf16>, vector<4x128xf32> -> vector<4x128xf32>
    %1412 = arith.addf %1409, %1411 : vector<4x128xf32>
    %1413 = arith.negf %1412 : vector<4x128xf32>
    %1414 = math.exp %1413 : vector<4x128xf32>
    %cst_486 = arith.constant 1.000000e+00 : f32
    %1415 = vector.broadcast %cst_486 : f32 to vector<4x128xf32>
    %1416 = arith.addf %1415, %1414 : vector<4x128xf32>
    %1417 = arith.divf %1415, %1416 : vector<4x128xf32>
    %1418 = vector.extract_strided_slice %1417 {offsets = [0, 0], sizes = [4, 32], strides = [1, 1]} : vector<4x128xf32> to vector<4x32xf32>
    %1419 = vector.extract_strided_slice %1417 {offsets = [0, 32], sizes = [4, 32], strides = [1, 1]} : vector<4x128xf32> to vector<4x32xf32>
    %1420 = vector.extract_strided_slice %1417 {offsets = [0, 64], sizes = [4, 32], strides = [1, 1]} : vector<4x128xf32> to vector<4x32xf32>
    %cst_487 = arith.constant 2.000000e+00 : f32
    %1421 = vector.broadcast %cst_487 : f32 to vector<4x32xf32>
    %1422 = arith.mulf %1421, %1420 : vector<4x32xf32>
    %cst_488 = arith.constant 1.000000e+00 : f32
    %1423 = vector.broadcast %cst_488 : f32 to vector<4x32xf32>
    %1424 = arith.subf %1422, %1423 : vector<4x32xf32>
    %1425 = vector.extract_strided_slice %1417 {offsets = [0, 96], sizes = [4, 32], strides = [1, 1]} : vector<4x128xf32> to vector<4x32xf32>
    %1426 = arith.mulf %1419, %1405 : vector<4x32xf32>
    %1427 = arith.mulf %1418, %1424 : vector<4x32xf32>
    %1428 = arith.addf %1426, %1427 : vector<4x32xf32>
    %1429 = math.tanh %1428 : vector<4x32xf32>
    %1430 = arith.mulf %1425, %1429 : vector<4x32xf32>
    %c108_489 = arith.constant 108 : index
    %c0_490 = arith.constant 0 : index
    %1431 = vector.load %arg15[%c108_489, %c0_490] : memref<128x32xf32, #tpu.memory_space<vmem>>, vector<4x32xf32>
    tpu.vector_store %arg15[%c108_489, %c0_490], %1430 {strides = array<i32>} : memref<128x32xf32, #tpu.memory_space<vmem>>, vector<4x32xf32>,
    %c112_491 = arith.constant 112 : index
    %c0_492 = arith.constant 0 : index
    %1432 = vector.load %arg14[%c112_491, %c0_492] : memref<128x128xf32, #tpu.memory_space<vmem>>, vector<4x128xf32>
    %1433 = arith.truncf %1430 : vector<4x32xf32> to vector<4x32xbf16>
    %cst_493 = arith.constant dense<0.000000e+00> : vector<4x128xf32>
    %1434 = tpu.matmul %1433, %785, %cst_493 {dimension_numbers = #tpu.dot_dimension_numbers<[1], [0], [0], [1], [0, 0, 1, 1], [], []>} : vector<4x32xbf16>, vector<32x128xbf16>, vector<4x128xf32> -> vector<4x128xf32>
    %1435 = arith.addf %1432, %1434 : vector<4x128xf32>
    %1436 = arith.negf %1435 : vector<4x128xf32>
    %1437 = math.exp %1436 : vector<4x128xf32>
    %cst_494 = arith.constant 1.000000e+00 : f32
    %1438 = vector.broadcast %cst_494 : f32 to vector<4x128xf32>
    %1439 = arith.addf %1438, %1437 : vector<4x128xf32>
    %1440 = arith.divf %1438, %1439 : vector<4x128xf32>
    %1441 = vector.extract_strided_slice %1440 {offsets = [0, 0], sizes = [4, 32], strides = [1, 1]} : vector<4x128xf32> to vector<4x32xf32>
    %1442 = vector.extract_strided_slice %1440 {offsets = [0, 32], sizes = [4, 32], strides = [1, 1]} : vector<4x128xf32> to vector<4x32xf32>
    %1443 = vector.extract_strided_slice %1440 {offsets = [0, 64], sizes = [4, 32], strides = [1, 1]} : vector<4x128xf32> to vector<4x32xf32>
    %cst_495 = arith.constant 2.000000e+00 : f32
    %1444 = vector.broadcast %cst_495 : f32 to vector<4x32xf32>
    %1445 = arith.mulf %1444, %1443 : vector<4x32xf32>
    %cst_496 = arith.constant 1.000000e+00 : f32
    %1446 = vector.broadcast %cst_496 : f32 to vector<4x32xf32>
    %1447 = arith.subf %1445, %1446 : vector<4x32xf32>
    %1448 = vector.extract_strided_slice %1440 {offsets = [0, 96], sizes = [4, 32], strides = [1, 1]} : vector<4x128xf32> to vector<4x32xf32>
    %1449 = arith.mulf %1442, %1428 : vector<4x32xf32>
    %1450 = arith.mulf %1441, %1447 : vector<4x32xf32>
    %1451 = arith.addf %1449, %1450 : vector<4x32xf32>
    %1452 = math.tanh %1451 : vector<4x32xf32>
    %1453 = arith.mulf %1448, %1452 : vector<4x32xf32>
    %c112_497 = arith.constant 112 : index
    %c0_498 = arith.constant 0 : index
    %1454 = vector.load %arg15[%c112_497, %c0_498] : memref<128x32xf32, #tpu.memory_space<vmem>>, vector<4x32xf32>
    tpu.vector_store %arg15[%c112_497, %c0_498], %1453 {strides = array<i32>} : memref<128x32xf32, #tpu.memory_space<vmem>>, vector<4x32xf32>,
    %c116_499 = arith.constant 116 : index
    %c0_500 = arith.constant 0 : index
    %1455 = vector.load %arg14[%c116_499, %c0_500] : memref<128x128xf32, #tpu.memory_space<vmem>>, vector<4x128xf32>
    %1456 = arith.truncf %1453 : vector<4x32xf32> to vector<4x32xbf16>
    %cst_501 = arith.constant dense<0.000000e+00> : vector<4x128xf32>
    %1457 = tpu.matmul %1456, %785, %cst_501 {dimension_numbers = #tpu.dot_dimension_numbers<[1], [0], [0], [1], [0, 0, 1, 1], [], []>} : vector<4x32xbf16>, vector<32x128xbf16>, vector<4x128xf32> -> vector<4x128xf32>
    %1458 = arith.addf %1455, %1457 : vector<4x128xf32>
    %1459 = arith.negf %1458 : vector<4x128xf32>
    %1460 = math.exp %1459 : vector<4x128xf32>
    %cst_502 = arith.constant 1.000000e+00 : f32
    %1461 = vector.broadcast %cst_502 : f32 to vector<4x128xf32>
    %1462 = arith.addf %1461, %1460 : vector<4x128xf32>
    %1463 = arith.divf %1461, %1462 : vector<4x128xf32>
    %1464 = vector.extract_strided_slice %1463 {offsets = [0, 0], sizes = [4, 32], strides = [1, 1]} : vector<4x128xf32> to vector<4x32xf32>
    %1465 = vector.extract_strided_slice %1463 {offsets = [0, 32], sizes = [4, 32], strides = [1, 1]} : vector<4x128xf32> to vector<4x32xf32>
    %1466 = vector.extract_strided_slice %1463 {offsets = [0, 64], sizes = [4, 32], strides = [1, 1]} : vector<4x128xf32> to vector<4x32xf32>
    %cst_503 = arith.constant 2.000000e+00 : f32
    %1467 = vector.broadcast %cst_503 : f32 to vector<4x32xf32>
    %1468 = arith.mulf %1467, %1466 : vector<4x32xf32>
    %cst_504 = arith.constant 1.000000e+00 : f32
    %1469 = vector.broadcast %cst_504 : f32 to vector<4x32xf32>
    %1470 = arith.subf %1468, %1469 : vector<4x32xf32>
    %1471 = vector.extract_strided_slice %1463 {offsets = [0, 96], sizes = [4, 32], strides = [1, 1]} : vector<4x128xf32> to vector<4x32xf32>
    %1472 = arith.mulf %1465, %1451 : vector<4x32xf32>
    %1473 = arith.mulf %1464, %1470 : vector<4x32xf32>
    %1474 = arith.addf %1472, %1473 : vector<4x32xf32>
    %1475 = math.tanh %1474 : vector<4x32xf32>
    %1476 = arith.mulf %1471, %1475 : vector<4x32xf32>
    %c116_505 = arith.constant 116 : index
    %c0_506 = arith.constant 0 : index
    %1477 = vector.load %arg15[%c116_505, %c0_506] : memref<128x32xf32, #tpu.memory_space<vmem>>, vector<4x32xf32>
    tpu.vector_store %arg15[%c116_505, %c0_506], %1476 {strides = array<i32>} : memref<128x32xf32, #tpu.memory_space<vmem>>, vector<4x32xf32>,
    %c120_507 = arith.constant 120 : index
    %c0_508 = arith.constant 0 : index
    %1478 = vector.load %arg14[%c120_507, %c0_508] : memref<128x128xf32, #tpu.memory_space<vmem>>, vector<4x128xf32>
    %1479 = arith.truncf %1476 : vector<4x32xf32> to vector<4x32xbf16>
    %cst_509 = arith.constant dense<0.000000e+00> : vector<4x128xf32>
    %1480 = tpu.matmul %1479, %785, %cst_509 {dimension_numbers = #tpu.dot_dimension_numbers<[1], [0], [0], [1], [0, 0, 1, 1], [], []>} : vector<4x32xbf16>, vector<32x128xbf16>, vector<4x128xf32> -> vector<4x128xf32>
    %1481 = arith.addf %1478, %1480 : vector<4x128xf32>
    %1482 = arith.negf %1481 : vector<4x128xf32>
    %1483 = math.exp %1482 : vector<4x128xf32>
    %cst_510 = arith.constant 1.000000e+00 : f32
    %1484 = vector.broadcast %cst_510 : f32 to vector<4x128xf32>
    %1485 = arith.addf %1484, %1483 : vector<4x128xf32>
    %1486 = arith.divf %1484, %1485 : vector<4x128xf32>
    %1487 = vector.extract_strided_slice %1486 {offsets = [0, 0], sizes = [4, 32], strides = [1, 1]} : vector<4x128xf32> to vector<4x32xf32>
    %1488 = vector.extract_strided_slice %1486 {offsets = [0, 32], sizes = [4, 32], strides = [1, 1]} : vector<4x128xf32> to vector<4x32xf32>
    %1489 = vector.extract_strided_slice %1486 {offsets = [0, 64], sizes = [4, 32], strides = [1, 1]} : vector<4x128xf32> to vector<4x32xf32>
    %cst_511 = arith.constant 2.000000e+00 : f32
    %1490 = vector.broadcast %cst_511 : f32 to vector<4x32xf32>
    %1491 = arith.mulf %1490, %1489 : vector<4x32xf32>
    %cst_512 = arith.constant 1.000000e+00 : f32
    %1492 = vector.broadcast %cst_512 : f32 to vector<4x32xf32>
    %1493 = arith.subf %1491, %1492 : vector<4x32xf32>
    %1494 = vector.extract_strided_slice %1486 {offsets = [0, 96], sizes = [4, 32], strides = [1, 1]} : vector<4x128xf32> to vector<4x32xf32>
    %1495 = arith.mulf %1488, %1474 : vector<4x32xf32>
    %1496 = arith.mulf %1487, %1493 : vector<4x32xf32>
    %1497 = arith.addf %1495, %1496 : vector<4x32xf32>
    %1498 = math.tanh %1497 : vector<4x32xf32>
    %1499 = arith.mulf %1494, %1498 : vector<4x32xf32>
    %c120_513 = arith.constant 120 : index
    %c0_514 = arith.constant 0 : index
    %1500 = vector.load %arg15[%c120_513, %c0_514] : memref<128x32xf32, #tpu.memory_space<vmem>>, vector<4x32xf32>
    tpu.vector_store %arg15[%c120_513, %c0_514], %1499 {strides = array<i32>} : memref<128x32xf32, #tpu.memory_space<vmem>>, vector<4x32xf32>,
    %c124_515 = arith.constant 124 : index
    %c0_516 = arith.constant 0 : index
    %1501 = vector.load %arg14[%c124_515, %c0_516] : memref<128x128xf32, #tpu.memory_space<vmem>>, vector<4x128xf32>
    %1502 = arith.truncf %1499 : vector<4x32xf32> to vector<4x32xbf16>
    %cst_517 = arith.constant dense<0.000000e+00> : vector<4x128xf32>
    %1503 = tpu.matmul %1502, %785, %cst_517 {dimension_numbers = #tpu.dot_dimension_numbers<[1], [0], [0], [1], [0, 0, 1, 1], [], []>} : vector<4x32xbf16>, vector<32x128xbf16>, vector<4x128xf32> -> vector<4x128xf32>
    %1504 = arith.addf %1501, %1503 : vector<4x128xf32>
    %1505 = arith.negf %1504 : vector<4x128xf32>
    %1506 = math.exp %1505 : vector<4x128xf32>
    %cst_518 = arith.constant 1.000000e+00 : f32
    %1507 = vector.broadcast %cst_518 : f32 to vector<4x128xf32>
    %1508 = arith.addf %1507, %1506 : vector<4x128xf32>
    %1509 = arith.divf %1507, %1508 : vector<4x128xf32>
    %1510 = vector.extract_strided_slice %1509 {offsets = [0, 0], sizes = [4, 32], strides = [1, 1]} : vector<4x128xf32> to vector<4x32xf32>
    %1511 = vector.extract_strided_slice %1509 {offsets = [0, 32], sizes = [4, 32], strides = [1, 1]} : vector<4x128xf32> to vector<4x32xf32>
    %1512 = vector.extract_strided_slice %1509 {offsets = [0, 64], sizes = [4, 32], strides = [1, 1]} : vector<4x128xf32> to vector<4x32xf32>
    %cst_519 = arith.constant 2.000000e+00 : f32
    %1513 = vector.broadcast %cst_519 : f32 to vector<4x32xf32>
    %1514 = arith.mulf %1513, %1512 : vector<4x32xf32>
    %cst_520 = arith.constant 1.000000e+00 : f32
    %1515 = vector.broadcast %cst_520 : f32 to vector<4x32xf32>
    %1516 = arith.subf %1514, %1515 : vector<4x32xf32>
    %1517 = vector.extract_strided_slice %1509 {offsets = [0, 96], sizes = [4, 32], strides = [1, 1]} : vector<4x128xf32> to vector<4x32xf32>
    %1518 = arith.mulf %1511, %1497 : vector<4x32xf32>
    %1519 = arith.mulf %1510, %1516 : vector<4x32xf32>
    %1520 = arith.addf %1518, %1519 : vector<4x32xf32>
    %1521 = math.tanh %1520 : vector<4x32xf32>
    %1522 = arith.mulf %1517, %1521 : vector<4x32xf32>
    %c124_521 = arith.constant 124 : index
    %c0_522 = arith.constant 0 : index
    %1523 = vector.load %arg15[%c124_521, %c0_522] : memref<128x32xf32, #tpu.memory_space<vmem>>, vector<4x32xf32>
    tpu.vector_store %arg15[%c124_521, %c0_522], %1522 {strides = array<i32>} : memref<128x32xf32, #tpu.memory_space<vmem>>, vector<4x32xf32>,
    %c0_523 = arith.constant 0 : index
    %c0_524 = arith.constant 0 : index
    %1524 = vector.load %arg15[%c0_523, %c0_524] : memref<128x32xf32, #tpu.memory_space<vmem>>, vector<128x32xf32>
    %c0_525 = arith.constant 0 : index
    %c0_526 = arith.constant 0 : index
    %1525 = vector.load %arg7[%c0_525, %c0_526] : memref<32x128xf32, #tpu.memory_space<vmem>>, vector<32x128xf32>
    %cst_527 = arith.constant dense<0.000000e+00> : vector<32x32xf32>
    %1526 = tpu.matmul %1525, %1524, %cst_527 {dimension_numbers = #tpu.dot_dimension_numbers<[1], [0], [0], [1], [0, 0, 1, 1], [], []>} : vector<32x128xf32>, vector<128x32xf32>, vector<32x32xf32> -> vector<32x32xf32>
    %1527 = arith.mulf %1524, %1524 : vector<128x32xf32>
    %cst_528 = arith.constant dense<0.000000e+00> : vector<32x32xf32>
    %1528 = tpu.matmul %1525, %1527, %cst_528 {dimension_numbers = #tpu.dot_dimension_numbers<[1], [0], [0], [1], [0, 0, 1, 1], [], []>} : vector<32x128xf32>, vector<128x32xf32>, vector<32x32xf32> -> vector<32x32xf32>
    %cst_529 = arith.constant dense<0.000000e+00> : vector<32xf32>
    %1529 = vector.multi_reduction <add>, %1526, %cst_529 [1] : vector<32x32xf32> to vector<32xf32>
    %1530 = vector.shape_cast %1529 : vector<32xf32> to vector<32x1xf32>
    %cst_530 = arith.constant 1.280000e+02 : f32
    %1531 = vector.broadcast %cst_530 : f32 to vector<32x1xf32>
    %1532 = arith.divf %1530, %1531 : vector<32x1xf32>
    %cst_531 = arith.constant dense<0.000000e+00> : vector<32xf32>
    %1533 = vector.multi_reduction <add>, %1528, %cst_531 [1] : vector<32x32xf32> to vector<32xf32>
    %1534 = vector.shape_cast %1533 : vector<32xf32> to vector<32x1xf32>
    %cst_532 = arith.constant 1.280000e+02 : f32
    %1535 = vector.broadcast %cst_532 : f32 to vector<32x1xf32>
    %1536 = arith.divf %1534, %1535 : vector<32x1xf32>
    %1537 = arith.mulf %1532, %1532 : vector<32x1xf32>
    %1538 = arith.subf %1536, %1537 : vector<32x1xf32>
    %cst_533 = arith.constant 0.000000e+00 : f32
    %1539 = vector.broadcast %cst_533 : f32 to vector<32x1xf32>
    %1540 = arith.maximumf %1538, %1539 : vector<32x1xf32>
    %c0_534 = arith.constant 0 : index
    %c0_535 = arith.constant 0 : index
    %1541 = vector.load %arg9[%c0_534, %c0_535] : memref<32x1xf32, #tpu.memory_space<vmem>>, vector<32x1xf32>
    %cst_536 = arith.constant 9.99999974E-6 : f32
    %1542 = vector.broadcast %cst_536 : f32 to vector<32x1xf32>
    %1543 = arith.addf %1540, %1542 : vector<32x1xf32>
    %1544 = math.rsqrt %1543 : vector<32x1xf32>
    %1545 = arith.mulf %1541, %1544 : vector<32x1xf32>
    %c0_537 = arith.constant 0 : index
    %c0_538 = arith.constant 0 : index
    %1546 = vector.load %arg10[%c0_537, %c0_538] : memref<32x1xf32, #tpu.memory_space<vmem>>, vector<32x1xf32>
    %1547 = arith.mulf %1545, %1532 : vector<32x1xf32>
    %1548 = arith.subf %1546, %1547 : vector<32x1xf32>
    %c0_539 = arith.constant 0 : index
    %c0_540 = arith.constant 0 : index
    %1549 = vector.load %arg8[%c0_539, %c0_540] : memref<128x32xf32, #tpu.memory_space<vmem>>, vector<128x32xf32>
    %cst_541 = arith.constant dense<0.000000e+00> : vector<128x1xf32>
    %1550 = tpu.matmul %1549, %1545, %cst_541 {dimension_numbers = #tpu.dot_dimension_numbers<[1], [0], [0], [1], [0, 0, 1, 1], [], []>} : vector<128x32xf32>, vector<32x1xf32>, vector<128x1xf32> -> vector<128x1xf32>
    %cst_542 = arith.constant dense<0.000000e+00> : vector<128x1xf32>
    %1551 = tpu.matmul %1549, %1548, %cst_542 {dimension_numbers = #tpu.dot_dimension_numbers<[1], [0], [0], [1], [0, 0, 1, 1], [], []>} : vector<128x32xf32>, vector<32x1xf32>, vector<128x1xf32> -> vector<128x1xf32>
    %1552 = vector.broadcast %1550 : vector<128x1xf32> to vector<128x32xf32>
    %1553 = arith.mulf %1524, %1552 : vector<128x32xf32>
    %1554 = vector.broadcast %1551 : vector<128x1xf32> to vector<128x32xf32>
    %1555 = arith.addf %1553, %1554 : vector<128x32xf32>
    %c0_543 = arith.constant 0 : index
    %c0_544 = arith.constant 0 : index
    %1556 = vector.load %arg11[%c0_543, %c0_544] : memref<1x32xf32, #tpu.memory_space<vmem>>, vector<1x32xf32>
    %1557 = vector.broadcast %1556 : vector<1x32xf32> to vector<128x32xf32>
    %1558 = arith.mulf %1555, %1557 : vector<128x32xf32>
    %cst_545 = arith.constant dense<0.000000e+00> : vector<128xf32>
    %1559 = vector.multi_reduction <add>, %1558, %cst_545 [1] : vector<128x32xf32> to vector<128xf32>
    %1560 = vector.shape_cast %1559 : vector<128xf32> to vector<128x1xf32>
    %c0_546 = arith.constant 0 : index
    %c0_547 = arith.constant 0 : index
    %1561 = vector.load %arg12[%c0_546, %c0_547] : memref<1x1xf32, #tpu.memory_space<vmem>>, vector<1x1xf32>
    %1562 = vector.broadcast %1561 : vector<1x1xf32> to vector<128x1xf32>
    %1563 = arith.addf %1560, %1562 : vector<128x1xf32>
    %1564 = arith.negf %1563 : vector<128x1xf32>
    %1565 = math.exp %1564 : vector<128x1xf32>
    %cst_548 = arith.constant 1.000000e+00 : f32
    %1566 = vector.broadcast %cst_548 : f32 to vector<128x1xf32>
    %1567 = arith.addf %1566, %1565 : vector<128x1xf32>
    %1568 = arith.divf %1566, %1567 : vector<128x1xf32>
    %c0_549 = arith.constant 0 : index
    %c0_550 = arith.constant 0 : index
    %1569 = vector.load %arg13[%c0_549, %c0_550] : memref<128x1xf32, #tpu.memory_space<vmem>>, vector<128x1xf32>
    tpu.vector_store %arg13[%c0_549, %c0_550], %1568 {strides = array<i32>} : memref<128x1xf32, #tpu.memory_space<vmem>>, vector<128x1xf32>,
    return
  }
}

</mosaic_0001>

<llo_original>
// kernel: tpu_custom_call.1
$region0: #{tpu_custom_call.1}
  #allocation0 [shape = 'u32[]', space=smem, size = 0x4, offset = 0x4, fixed_abs, tag = 'smem constant byte address 0x4 - core index']
  #allocation1 [shape = 'u32[144,128]{1,0:T(1,128)}', space=vmem, size = 0x12000, scoped, tag = 'internal scratch']
  #allocation2 [shape = 'f32[128,128]{1,0:T(8,128)}', space=vmem, size = 0x10000, scoped, tag = 'scratch operand']
  #allocation3 [shape = 'f32[128,32]{1,0:T(8,128)}', space=vmem, size = 0x10000, scoped, tag = 'scratch operand']
  #allocation4 [shape = 'f32[1,1]{1,0:T(1,128)S(1)}', space=vmem, size = 0x200, scoped, tag = 'scoped memory for tpu_custom_call.1']
  %s0 = inlined_call_operand.vmem [shape: bf16[128,8], index: 0, kind: input, shape index: {}]
  %s1 = inlined_call_operand.vmem [shape: bf16[8,128], index: 1, kind: input, shape index: {}]
  %s2 = inlined_call_operand.vmem [shape: bf16[32,128], index: 2, kind: input, shape index: {}]
  %s3 = inlined_call_operand.vmem [shape: f32[1,128], index: 3, kind: input, shape index: {}]
  %s4 = inlined_call_operand.vmem [shape: bf16[32,128], index: 4, kind: input, shape index: {}]
  %s5 = inlined_call_operand.vmem [shape: bf16[32,128], index: 5, kind: input, shape index: {}]
  %s6 = inlined_call_operand.vmem [shape: f32[1,128], index: 6, kind: input, shape index: {}]
  %s7 = inlined_call_operand.vmem [shape: f32[32,128], index: 7, kind: input, shape index: {}]
  %s8 = inlined_call_operand.vmem [shape: f32[128,32], index: 8, kind: input, shape index: {}]
  %s9 = inlined_call_operand.vmem [shape: f32[32,1], index: 9, kind: input, shape index: {}]
  %s10 = inlined_call_operand.vmem [shape: f32[32,1], index: 10, kind: input, shape index: {}]
  %s11 = inlined_call_operand.vmem [shape: f32[1,32], index: 11, kind: input, shape index: {}]
  %s12 = inlined_call_operand.<no memory space> [shape: f32[1,1], index: 12, kind: input, shape index: {}]
  %s13 = inlined_call_operand.vmem [shape: f32[128,1], index: 13, kind: output, shape index: {}]
  %s14 = sld [smem:[#allocation0]]
  $region62: #{tpu_custom_call.1} parent=0
    _
  %s16 = ssub.s32 1, %s14
  %s17 = scalar_select 0, %s16, %s14
  %v18 = vstv %s12
  %19 = vst [vmem:[#allocation4] sm:$0x1] %v18
  // Predicated region
  $region2: #{tpu_custom_call.1} parent=0 // pred_check
    _
  $region3: #{tpu_custom_call.1} parent=0 // pred_check_branch
    %21 = sbr.rel (0) target = $region5
  $region4: #{tpu_custom_call.1} parent=0 // pred_region
    _
  $region5: #{tpu_custom_call.1} parent=0 // pred_fallthru
    _
  // Predicated region
  $region6: #{tpu_custom_call.1} parent=0 // pred_check
    _
  $region7: #{tpu_custom_call.1} parent=0 // pred_check_branch
    %23 = sbr.rel (0) target = $region9
  $region8: #{tpu_custom_call.1} parent=0 // pred_region
    _
  $region9: #{tpu_custom_call.1} parent=0 // pred_fallthru
    _
  // Predicated region
  $region10: #{tpu_custom_call.1} parent=0 // pred_check
    _
  $region11: #{tpu_custom_call.1} parent=0 // pred_check_branch
    %25 = sbr.rel (0) target = $region13
  $region12: #{tpu_custom_call.1} parent=0 // pred_region
    _
  $region13: #{tpu_custom_call.1} parent=0 // pred_fallthru
    _
  // Predicated region
  $region14: #{tpu_custom_call.1} parent=0 // pred_check
    _
  $region15: #{tpu_custom_call.1} parent=0 // pred_check_branch
    %27 = sbr.rel (0) target = $region17
  $region16: #{tpu_custom_call.1} parent=0 // pred_region
    _
  $region17: #{tpu_custom_call.1} parent=0 // pred_fallthru
    _
  // Predicated region
  $region18: #{tpu_custom_call.1} parent=0 // pred_check
    _
  $region19: #{tpu_custom_call.1} parent=0 // pred_check_branch
    %29 = sbr.rel (0) target = $region21
  $region20: #{tpu_custom_call.1} parent=0 // pred_region
    _
  $region21: #{tpu_custom_call.1} parent=0 // pred_fallthru
    _
  // Predicated region
  $region22: #{tpu_custom_call.1} parent=0 // pred_check
    _
  $region23: #{tpu_custom_call.1} parent=0 // pred_check_branch
    %31 = sbr.rel (0) target = $region25
  $region24: #{tpu_custom_call.1} parent=0 // pred_region
    _
  $region25: #{tpu_custom_call.1} parent=0 // pred_fallthru
    _
  // Predicated region
  $region26: #{tpu_custom_call.1} parent=0 // pred_check
    _
  $region27: #{tpu_custom_call.1} parent=0 // pred_check_branch
    %33 = sbr.rel (0) target = $region29
  $region28: #{tpu_custom_call.1} parent=0 // pred_region
    _
  $region29: #{tpu_custom_call.1} parent=0 // pred_fallthru
    _
  // Predicated region
  $region30: #{tpu_custom_call.1} parent=0 // pred_check
    _
  $region31: #{tpu_custom_call.1} parent=0 // pred_check_branch
    %35 = sbr.rel (0) target = $region33
  $region32: #{tpu_custom_call.1} parent=0 // pred_region
    _
  $region33: #{tpu_custom_call.1} parent=0 // pred_fallthru
    _
  // Predicated region
  $region34: #{tpu_custom_call.1} parent=0 // pred_check
    _
  $region35: #{tpu_custom_call.1} parent=0 // pred_check_branch
    %37 = sbr.rel (0) target = $region37
  $region36: #{tpu_custom_call.1} parent=0 // pred_region
    _
  $region37: #{tpu_custom_call.1} parent=0 // pred_fallthru
    _
  // Predicated region
  $region38: #{tpu_custom_call.1} parent=0 // pred_check
    _
  $region39: #{tpu_custom_call.1} parent=0 // pred_check_branch
    %39 = sbr.rel (0) target = $region41
  $region40: #{tpu_custom_call.1} parent=0 // pred_region
    _
  $region41: #{tpu_custom_call.1} parent=0 // pred_fallthru
    _
  // Predicated region
  $region42: #{tpu_custom_call.1} parent=0 // pred_check
    _
  $region43: #{tpu_custom_call.1} parent=0 // pred_check_branch
    %41 = sbr.rel (0) target = $region45
  $region44: #{tpu_custom_call.1} parent=0 // pred_region
    _
  $region45: #{tpu_custom_call.1} parent=0 // pred_fallthru
    _
  // Predicated region
  $region46: #{tpu_custom_call.1} parent=0 // pred_check
    _
  $region47: #{tpu_custom_call.1} parent=0 // pred_check_branch
    %43 = sbr.rel (0) target = $region49
  $region48: #{tpu_custom_call.1} parent=0 // pred_region
    _
  $region49: #{tpu_custom_call.1} parent=0 // pred_fallthru
    _
  // Predicated region
  $region50: #{tpu_custom_call.1} parent=0 // pred_check
    _
  $region51: #{tpu_custom_call.1} parent=0 // pred_check_branch
    %45 = sbr.rel (0) target = $region53
  $region52: #{tpu_custom_call.1} parent=0 // pred_region
    _
  $region53: #{tpu_custom_call.1} parent=0 // pred_fallthru
    _
  %v47 = vld [vmem:[%s0] sm:$0xf]
  %v48 = vld [vmem:[%s0 + $0x4] sm:$0xf]
  %v49 = vld [vmem:[%s0 + $0x8] sm:$0xf]
  %v50 = vld [vmem:[%s0 + $0xc] sm:$0xf]
  %v51 = vld [vmem:[%s0 + $0x10] sm:$0xf]
  %v52 = vld [vmem:[%s0 + $0x14] sm:$0xf]
  %v53 = vld [vmem:[%s0 + $0x18] sm:$0xf]
  %v54 = vld [vmem:[%s0 + $0x1c] sm:$0xf]
  %v55 = vld [vmem:[%s0 + $0x20] sm:$0xf]
  %v56 = vld [vmem:[%s0 + $0x24] sm:$0xf]
  %v57 = vld [vmem:[%s0 + $0x28] sm:$0xf]
  %v58 = vld [vmem:[%s0 + $0x2c] sm:$0xf]
  %v59 = vld [vmem:[%s0 + $0x30] sm:$0xf]
  %v60 = vld [vmem:[%s0 + $0x34] sm:$0xf]
  %v61 = vld [vmem:[%s0 + $0x38] sm:$0xf]
  %v62 = vld [vmem:[%s0 + $0x3c] sm:$0xf]
  %v63 = vld [vmem:[%s1] sm:$0xf]
  %v64 = vld [vmem:[%s3] sm:$0x1]
  %v66 = vlaneseq
  %v67 = vshrl.u32 %v66, 7
  %v68 = vsub.s32 0, %v67
  %v69 = vrot.slane %v64, %v68
  %v87 = vunpack.c.l.b16 %v47
  %v88 = vunpack.c.l.b16 %v48
  %v89 = vunpack.c.l.b16 %v49
  %v90 = vunpack.c.l.b16 %v50
  %v91 = vunpack.c.l.b16 %v51
  %v92 = vunpack.c.l.b16 %v52
  %v93 = vunpack.c.l.b16 %v53
  %v94 = vunpack.c.l.b16 %v54
  %v95 = vunpack.c.l.b16 %v55
  %v96 = vunpack.c.l.b16 %v56
  %v97 = vunpack.c.l.b16 %v57
  %v98 = vunpack.c.l.b16 %v58
  %v99 = vunpack.c.l.b16 %v59
  %v100 = vunpack.c.l.b16 %v60
  %v101 = vunpack.c.l.b16 %v61
  %v102 = vunpack.c.l.b16 %v62
  %v103 = vpack.c.b16 %v88, %v87
  %v104 = vpack.c.b16 %v90, %v89
  %v105 = vpack.c.b16 %v92, %v91
  %v106 = vpack.c.b16 %v94, %v93
  %v107 = vpack.c.b16 %v96, %v95
  %v108 = vpack.c.b16 %v98, %v97
  %v109 = vpack.c.b16 %v100, %v99
  %v110 = vpack.c.b16 %v102, %v101
  %vm111 = vcmask 64512
  %v113 = vsel %vm111, %v103, 0
  %v116 = vsel %vm111, %v104, 0
  %v119 = vsel %vm111, %v105, 0
  %v122 = vsel %vm111, %v106, 0
  %v125 = vsel %vm111, %v107, 0
  %v128 = vsel %vm111, %v108, 0
  %v131 = vsel %vm111, %v109, 0
  %v134 = vsel %vm111, %v110, 0
  %vm136 = vcmask 1043456
  %v138 = vsel %vm136, %v63, 0
  %140 = vmatprep.subr.bf16.mxu0 0
  %141 = vmatpush1.bf16.msra.mxu0 0
  %142 = vmatprep.subr.bf16.mxu0 0
  %143 = vmatpush1.bf16.msra.mxu0 0
  %144 = vmatprep.subr.bf16.mxu0 0
  %145 = vmatpush1.bf16.msra.mxu0 0
  %146 = vmatprep.subr.bf16.mxu0 0
  %147 = vmatpush1.bf16.msra.mxu0 0
  %148 = vmatprep.subr.bf16.mxu0 0
  %149 = vmatpush1.bf16.msra.mxu0 0
  %150 = vmatprep.subr.bf16.mxu0 0
  %151 = vmatpush1.bf16.msra.mxu0 0
  %152 = vmatprep.subr.bf16.mxu0 0
  %153 = vmatpush1.bf16.msra.mxu0 0
  %154 = vmatprep.subr.bf16.mxu0 0
  %155 = vmatpush1.bf16.msra.mxu0 %v138
  %156 = vmatprep.subr.bf16.mxu0 0
  %157 = vmatpush2.bf16.msra.mxu0 0
  %158 = vmatprep.subr.bf16.mxu0 0
  %159 = vmatpush2.bf16.msra.mxu0 0
  %160 = vmatprep.subr.bf16.mxu0 0
  %161 = vmatpush2.bf16.msra.mxu0 0
  %162 = vmatprep.subr.bf16.mxu0 0
  %163 = vmatpush2.bf16.msra.mxu0 0
  %164 = vmatprep.subr.bf16.mxu0 0
  %165 = vmatpush2.bf16.msra.mxu0 0
  %166 = vmatprep.subr.bf16.mxu0 0
  %167 = vmatpush2.bf16.msra.mxu0 0
  %168 = vmatprep.subr.bf16.mxu0 0
  %169 = vmatpush2.bf16.msra.mxu0 0
  %170 = vmatprep.subr.bf16.mxu0 0
  %171 = vmatpush2.bf16.msra.mxu0 0
  %172 = vmatprep.mubr.bf16.mxu0 0
  %173 = vmatmul.mubr.bf16.gmra.mxu0 %v113
  %v174 = vpop.f32.mrf.mxu0
  %v175 = vadd.f32 %v69, %v174
  %v176 = vpop.f32.mrf.mxu0
  %v177 = vpop.f32.mrf.mxu0
  %v178 = vadd.f32 %v69, %v177
  %v179 = vpop.f32.mrf.mxu0
  %180 = vmatprep.mubr.bf16.mxu0 0
  %181 = vmatmul.mubr.bf16.gmra.mxu0 %v116
  %v182 = vpop.f32.mrf.mxu0
  %v183 = vadd.f32 %v69, %v182
  %v184 = vpop.f32.mrf.mxu0
  %v185 = vpop.f32.mrf.mxu0
  %v186 = vadd.f32 %v69, %v185
  %v187 = vpop.f32.mrf.mxu0
  %188 = vmatprep.mubr.bf16.mxu0 0
  %189 = vmatmul.mubr.bf16.gmra.mxu0 %v119
  %v190 = vpop.f32.mrf.mxu0
  %v191 = vadd.f32 %v69, %v190
  %v192 = vpop.f32.mrf.mxu0
  %v193 = vpop.f32.mrf.mxu0
  %v194 = vadd.f32 %v69, %v193
  %v195 = vpop.f32.mrf.mxu0
  %196 = vmatprep.mubr.bf16.mxu0 0
  %197 = vmatmul.mubr.bf16.gmra.mxu0 %v122
  %v198 = vpop.f32.mrf.mxu0
  %v199 = vadd.f32 %v69, %v198
  %v200 = vpop.f32.mrf.mxu0
  %v201 = vpop.f32.mrf.mxu0
  %v202 = vadd.f32 %v69, %v201
  %v203 = vpop.f32.mrf.mxu0
  %204 = vmatprep.mubr.bf16.mxu0 0
  %205 = vmatmul.mubr.bf16.gmra.mxu0 %v125
  %v206 = vpop.f32.mrf.mxu0
  %v207 = vadd.f32 %v69, %v206
  %v208 = vpop.f32.mrf.mxu0
  %v209 = vpop.f32.mrf.mxu0
  %v210 = vadd.f32 %v69, %v209
  %v211 = vpop.f32.mrf.mxu0
  %212 = vmatprep.mubr.bf16.mxu0 0
  %213 = vmatmul.mubr.bf16.gmra.mxu0 %v128
  %v214 = vpop.f32.mrf.mxu0
  %v215 = vadd.f32 %v69, %v214
  %v216 = vpop.f32.mrf.mxu0
  %v217 = vpop.f32.mrf.mxu0
  %v218 = vadd.f32 %v69, %v217
  %v219 = vpop.f32.mrf.mxu0
  %220 = vmatprep.mubr.bf16.mxu0 0
  %221 = vmatmul.mubr.bf16.gmra.mxu0 %v131
  %v222 = vpop.f32.mrf.mxu0
  %v223 = vadd.f32 %v69, %v222
  %v224 = vpop.f32.mrf.mxu0
  %v225 = vpop.f32.mrf.mxu0
  %v226 = vadd.f32 %v69, %v225
  %v227 = vpop.f32.mrf.mxu0
  %228 = vmatprep.mubr.bf16.mxu0 0
  %229 = vmatmul.mubr.bf16.gmra.mxu0 %v134
  %v230 = vpop.f32.mrf.mxu0
  %v231 = vadd.f32 %v69, %v230
  %v232 = vpop.f32.mrf.mxu0
  %v233 = vpop.f32.mrf.mxu0
  %v234 = vadd.f32 %v69, %v233
  %v235 = vpop.f32.mrf.mxu0
  %236 = vdwg.mxu0
  %237 = vst [vmem:[#allocation2] sm:$0xff] %v175
  %238 = vst [vmem:[#allocation2 + $0x8] sm:$0xff] %v178
  %239 = vst [vmem:[#allocation2 + $0x10] sm:$0xff] %v183
  %240 = vst [vmem:[#allocation2 + $0x18] sm:$0xff] %v186
  %241 = vst [vmem:[#allocation2 + $0x20] sm:$0xff] %v191
  %242 = vst [vmem:[#allocation2 + $0x28] sm:$0xff] %v194
  %243 = vst [vmem:[#allocation2 + $0x30] sm:$0xff] %v199
  %244 = vst [vmem:[#allocation2 + $0x38] sm:$0xff] %v202
  %245 = vst [vmem:[#allocation2 + $0x40] sm:$0xff] %v207
  %246 = vst [vmem:[#allocation2 + $0x48] sm:$0xff] %v210
  %247 = vst [vmem:[#allocation2 + $0x50] sm:$0xff] %v215
  %248 = vst [vmem:[#allocation2 + $0x58] sm:$0xff] %v218
  %249 = vst [vmem:[#allocation2 + $0x60] sm:$0xff] %v223
  %250 = vst [vmem:[#allocation2 + $0x68] sm:$0xff] %v226
  %251 = vst [vmem:[#allocation2 + $0x70] sm:$0xff] %v231
  %252 = vst [vmem:[#allocation2 + $0x78] sm:$0xff] %v234
  %v253 = vld [vmem:[%s2] sm:$0xf]
  %v254 = vld [vmem:[%s2 + $0x4] sm:$0xf]
  %v255 = vld [vmem:[%s2 + $0x8] sm:$0xf]
  %v256 = vld [vmem:[%s2 + $0xc] sm:$0xf]
  %v257 = vld [vmem:[#allocation2] sm:$0xf]
  %v262 = vunpack.c.l.b16 %v253
  %v263 = vunpack.c.l.b16 %v254
  %v264 = vunpack.c.l.b16 %v255
  %v265 = vunpack.c.l.b16 %v256
  %v266 = vpack.c.b16 %v263, %v262
  %v267 = vpack.c.b16 %v265, %v264
  %vm270 = vcmask 261120
  %v272 = vsel %vm270, 0, 0
  %274 = vmatprep.subr.bf16.mxu0 0
  %275 = vmatpush1.bf16.msra.mxu0 0
  %276 = vmatprep.subr.bf16.mxu0 0
  %277 = vmatpush1.bf16.msra.mxu0 0
  %278 = vmatprep.subr.bf16.mxu0 0
  %279 = vmatpush1.bf16.msra.mxu0 0
  %280 = vmatprep.subr.bf16.mxu0 0
  %281 = vmatpush1.bf16.msra.mxu0 0
  %282 = vmatprep.subr.bf16.mxu0 0
  %283 = vmatpush1.bf16.msra.mxu0 0
  %284 = vmatprep.subr.bf16.mxu0 0
  %285 = vmatpush1.bf16.msra.mxu0 0
  %286 = vmatprep.subr.bf16.mxu0 0
  %287 = vmatpush1.bf16.msra.mxu0 %v267
  %288 = vmatprep.subr.bf16.mxu0 0
  %289 = vmatpush1.bf16.msra.mxu0 %v266
  %290 = vmatprep.subr.bf16.mxu0 0
  %291 = vmatpush2.bf16.msra.mxu0 0
  %292 = vmatprep.subr.bf16.mxu0 0
  %293 = vmatpush2.bf16.msra.mxu0 0
  %294 = vmatprep.subr.bf16.mxu0 0
  %295 = vmatpush2.bf16.msra.mxu0 0
  %296 = vmatprep.subr.bf16.mxu0 0
  %297 = vmatpush2.bf16.msra.mxu0 0
  %298 = vmatprep.subr.bf16.mxu0 0
  %299 = vmatpush2.bf16.msra.mxu0 0
  %300 = vmatprep.subr.bf16.mxu0 0
  %301 = vmatpush2.bf16.msra.mxu0 0
  %302 = vmatprep.subr.bf16.mxu0 0
  %303 = vmatpush2.bf16.msra.mxu0 0
  %304 = vmatprep.subr.bf16.mxu0 0
  %305 = vmatpush2.bf16.msra.mxu0 0
  %306 = vmatprep.mubr.bf16.mxu0 0
  %307 = vmatmul.mubr.bf16.gmra.mxu0 %v272
  %v308 = vpop.f32.mrf.mxu0
  %v309 = vadd.f32 0.0, %v308
  %v310 = vpop.f32.mrf.mxu0
  %v311 = vpop.f32.mrf.mxu0
  %v312 = vpop.f32.mrf.mxu0
  %313 = vdwg.mxu0
  %v314 = vadd.f32 %v257, %v309
  %v315 = vxor.u32 %v314, 2147483648
  %v316 = vmul.f32 %v315, 1.442695
  %v317 = vpow.pop %v316
  %v318 = vadd.f32 %v317, 1.0
  %v319 = vrcp.pop %v318
  %v320 = vmul.f32 1.0, %v319
  %v321 = vmul.f32 %v320, 2.0
  %v322 = vsub.f32 %v321, 1.0
  %v323 = vmul.f32 %v320, 0.0
  %325 = vrot.lane.b32.xlu0 %v322, 64
  %v326 = vpop.permute.xlu0 %325
  %v328 = vmul.f32 %v320, %v326
  %330 = vrot.lane.b32.xlu0 %v328, 32
  %v331 = vpop.permute.xlu0 %330
  %v333 = vadd.f32 %v323, %v331
  %v334 = vtanh.pop %v333
  %336 = vrot.lane.b32.xlu0 %v334, 64
  %v337 = vpop.permute.xlu0 %336
  %v339 = vmul.f32 %v320, %v337
  %341 = vrot.lane.b32.xlu0 %v339, 32
  %v342 = vpop.permute.xlu0 %341
  %vm344 = vcmask 257024
  %345 = vst.msk [vmem:[#allocation3] sm:$0xf] %vm344, %v342
  %v346 = vld [vmem:[#allocation2 + $0x4] sm:$0xf]
  %v347 = vpack.c.bf16 %v339, %v339
  %349 = vrot.lane.b32.xlu0 %v347, 32
  %v350 = vpop.permute.xlu0 %349
  %v352 = vsel %vm270, %v350, 0
  %354 = vmatprep.subr.bf16.mxu0 0
  %355 = vmatpush1.bf16.msra.mxu0 0
  %356 = vmatprep.subr.bf16.mxu0 0
  %357 = vmatpush1.bf16.msra.mxu0 0
  %358 = vmatprep.subr.bf16.mxu0 0
  %359 = vmatpush1.bf16.msra.mxu0 0
  %360 = vmatprep.subr.bf16.mxu0 0
  %361 = vmatpush1.bf16.msra.mxu0 0
  %362 = vmatprep.subr.bf16.mxu0 0
  %363 = vmatpush1.bf16.msra.mxu0 0
  %364 = vmatprep.subr.bf16.mxu0 0
  %365 = vmatpush1.bf16.msra.mxu0 0
  %366 = vmatprep.subr.bf16.mxu0 0
  %367 = vmatpush1.bf16.msra.mxu0 %v267
  %368 = vmatprep.subr.bf16.mxu0 0
  %369 = vmatpush1.bf16.msra.mxu0 %v266
  %370 = vmatprep.subr.bf16.mxu0 0
  %371 = vmatpush2.bf16.msra.mxu0 0
  %372 = vmatprep.subr.bf16.mxu0 0
  %373 = vmatpush2.bf16.msra.mxu0 0
  %374 = vmatprep.subr.bf16.mxu0 0
  %375 = vmatpush2.bf16.msra.mxu0 0
  %376 = vmatprep.subr.bf16.mxu0 0
  %377 = vmatpush2.bf16.msra.mxu0 0
  %378 = vmatprep.subr.bf16.mxu0 0
  %379 = vmatpush2.bf16.msra.mxu0 0
  %380 = vmatprep.subr.bf16.mxu0 0
  %381 = vmatpush2.bf16.msra.mxu0 0
  %382 = vmatprep.subr.bf16.mxu0 0
  %383 = vmatpush2.bf16.msra.mxu0 0
  %384 = vmatprep.subr.bf16.mxu0 0
  %385 = vmatpush2.bf16.msra.mxu0 0
  %386 = vmatprep.mubr.bf16.mxu0 0
  %387 = vmatmul.mubr.bf16.gmra.mxu0 %v352
  %v388 = vpop.f32.mrf.mxu0
  %v389 = vadd.f32 0.0, %v388
  %v390 = vpop.f32.mrf.mxu0
  %v391 = vpop.f32.mrf.mxu0
  %v392 = vpop.f32.mrf.mxu0
  %393 = vdwg.mxu0
  %v394 = vadd.f32 %v346, %v389
  %v395 = vxor.u32 %v394, 2147483648
  %v396 = vmul.f32 %v395, 1.442695
  %v397 = vpow.pop %v396
  %v398 = vadd.f32 %v397, 1.0
  %v399 = vrcp.pop %v398
  %v400 = vmul.f32 1.0, %v399
  %v401 = vmul.f32 %v400, 2.0
  %v402 = vsub.f32 %v401, 1.0
  %v403 = vmul.f32 %v400, %v333
  %405 = vrot.lane.b32.xlu0 %v402, 64
  %v406 = vpop.permute.xlu0 %405
  %v408 = vmul.f32 %v400, %v406
  %410 = vrot.lane.b32.xlu0 %v408, 32
  %v411 = vpop.permute.xlu0 %410
  %v413 = vadd.f32 %v403, %v411
  %v414 = vtanh.pop %v413
  %416 = vrot.lane.b32.xlu0 %v414, 64
  %v417 = vpop.permute.xlu0 %416
  %v419 = vmul.f32 %v400, %v417
  %421 = vrot.lane.b32.xlu0 %v419, 32
  %v422 = vpop.permute.xlu0 %421
  %424 = vst.msk [vmem:[#allocation3 + $0x4] sm:$0xf] %vm344, %v422
  %v425 = vld [vmem:[#allocation2 + $0x8] sm:$0xf]
  %v426 = vpack.c.bf16 %v419, %v419
  %428 = vrot.lane.b32.xlu0 %v426, 32
  %v429 = vpop.permute.xlu0 %428
  %v431 = vsel %vm270, %v429, 0
  %433 = vmatprep.subr.bf16.mxu0 0
  %434 = vmatpush1.bf16.msra.mxu0 0
  %435 = vmatprep.subr.bf16.mxu0 0
  %436 = vmatpush1.bf16.msra.mxu0 0
  %437 = vmatprep.subr.bf16.mxu0 0
  %438 = vmatpush1.bf16.msra.mxu0 0
  %439 = vmatprep.subr.bf16.mxu0 0
  %440 = vmatpush1.bf16.msra.mxu0 0
  %441 = vmatprep.subr.bf16.mxu0 0
  %442 = vmatpush1.bf16.msra.mxu0 0
  %443 = vmatprep.subr.bf16.mxu0 0
  %444 = vmatpush1.bf16.msra.mxu0 0
  %445 = vmatprep.subr.bf16.mxu0 0
  %446 = vmatpush1.bf16.msra.mxu0 %v267
  %447 = vmatprep.subr.bf16.mxu0 0
  %448 = vmatpush1.bf16.msra.mxu0 %v266
  %449 = vmatprep.subr.bf16.mxu0 0
  %450 = vmatpush2.bf16.msra.mxu0 0
  %451 = vmatprep.subr.bf16.mxu0 0
  %452 = vmatpush2.bf16.msra.mxu0 0
  %453 = vmatprep.subr.bf16.mxu0 0
  %454 = vmatpush2.bf16.msra.mxu0 0
  %455 = vmatprep.subr.bf16.mxu0 0
  %456 = vmatpush2.bf16.msra.mxu0 0
  %457 = vmatprep.subr.bf16.mxu0 0
  %458 = vmatpush2.bf16.msra.mxu0 0
  %459 = vmatprep.subr.bf16.mxu0 0
  %460 = vmatpush2.bf16.msra.mxu0 0
  %461 = vmatprep.subr.bf16.mxu0 0
  %462 = vmatpush2.bf16.msra.mxu0 0
  %463 = vmatprep.subr.bf16.mxu0 0
  %464 = vmatpush2.bf16.msra.mxu0 0
  %465 = vmatprep.mubr.bf16.mxu0 0
  %466 = vmatmul.mubr.bf16.gmra.mxu0 %v431
  %v467 = vpop.f32.mrf.mxu0
  %v468 = vadd.f32 0.0, %v467
  %v469 = vpop.f32.mrf.mxu0
  %v470 = vpop.f32.mrf.mxu0
  %v471 = vpop.f32.mrf.mxu0
  %472 = vdwg.mxu0
  %v473 = vadd.f32 %v425, %v468
  %v474 = vxor.u32 %v473, 2147483648
  %v475 = vmul.f32 %v474, 1.442695
  %v476 = vpow.pop %v475
  %v477 = vadd.f32 %v476, 1.0
  %v478 = vrcp.pop %v477
  %v479 = vmul.f32 1.0, %v478
  %v480 = vmul.f32 %v479, 2.0
  %v481 = vsub.f32 %v480, 1.0
  %v482 = vmul.f32 %v479, %v413
  %484 = vrot.lane.b32.xlu0 %v481, 64
  %v485 = vpop.permute.xlu0 %484
  %v487 = vmul.f32 %v479, %v485
  %489 = vrot.lane.b32.xlu0 %v487, 32
  %v490 = vpop.permute.xlu0 %489
  %v492 = vadd.f32 %v482, %v490
  %v493 = vtanh.pop %v492
  %495 = vrot.lane.b32.xlu0 %v493, 64
  %v496 = vpop.permute.xlu0 %495
  %v498 = vmul.f32 %v479, %v496
  %500 = vrot.lane.b32.xlu0 %v498, 32
  %v501 = vpop.permute.xlu0 %500
  %503 = vst.msk [vmem:[#allocation3 + $0x8] sm:$0xf] %vm344, %v501
  %v504 = vld [vmem:[#allocation2 + $0xc] sm:$0xf]
  %v505 = vpack.c.bf16 %v498, %v498
  %507 = vrot.lane.b32.xlu0 %v505, 32
  %v508 = vpop.permute.xlu0 %507
  %v510 = vsel %vm270, %v508, 0
  %512 = vmatprep.subr.bf16.mxu0 0
  %513 = vmatpush1.bf16.msra.mxu0 0
  %514 = vmatprep.subr.bf16.mxu0 0
  %515 = vmatpush1.bf16.msra.mxu0 0
  %516 = vmatprep.subr.bf16.mxu0 0
  %517 = vmatpush1.bf16.msra.mxu0 0
  %518 = vmatprep.subr.bf16.mxu0 0
  %519 = vmatpush1.bf16.msra.mxu0 0
  %520 = vmatprep.subr.bf16.mxu0 0
  %521 = vmatpush1.bf16.msra.mxu0 0
  %522 = vmatprep.subr.bf16.mxu0 0
  %523 = vmatpush1.bf16.msra.mxu0 0
  %524 = vmatprep.subr.bf16.mxu0 0
  %525 = vmatpush1.bf16.msra.mxu0 %v267
  %526 = vmatprep.subr.bf16.mxu0 0
  %527 = vmatpush1.bf16.msra.mxu0 %v266
  %528 = vmatprep.subr.bf16.mxu0 0
  %529 = vmatpush2.bf16.msra.mxu0 0
  %530 = vmatprep.subr.bf16.mxu0 0
  %531 = vmatpush2.bf16.msra.mxu0 0
  %532 = vmatprep.subr.bf16.mxu0 0
  %533 = vmatpush2.bf16.msra.mxu0 0
  %534 = vmatprep.subr.bf16.mxu0 0
  %535 = vmatpush2.bf16.msra.mxu0 0
  %536 = vmatprep.subr.bf16.mxu0 0
  %537 = vmatpush2.bf16.msra.mxu0 0
  %538 = vmatprep.subr.bf16.mxu0 0
  %539 = vmatpush2.bf16.msra.mxu0 0
  %540 = vmatprep.subr.bf16.mxu0 0
  %541 = vmatpush2.bf16.msra.mxu0 0
  %542 = vmatprep.subr.bf16.mxu0 0
  %543 = vmatpush2.bf16.msra.mxu0 0
  %544 = vmatprep.mubr.bf16.mxu0 0
  %545 = vmatmul.mubr.bf16.gmra.mxu0 %v510
  %v546 = vpop.f32.mrf.mxu0
  %v547 = vadd.f32 0.0, %v546
  %v548 = vpop.f32.mrf.mxu0
  %v549 = vpop.f32.mrf.mxu0
  %v550 = vpop.f32.mrf.mxu0
  %551 = vdwg.mxu0
  %v552 = vadd.f32 %v504, %v547
  %v553 = vxor.u32 %v552, 2147483648
  %v554 = vmul.f32 %v553, 1.442695
  %v555 = vpow.pop %v554
  %v556 = vadd.f32 %v555, 1.0
  %v557 = vrcp.pop %v556
  %v558 = vmul.f32 1.0, %v557
  %v559 = vmul.f32 %v558, 2.0
  %v560 = vsub.f32 %v559, 1.0
  %v561 = vmul.f32 %v558, %v492
  %563 = vrot.lane.b32.xlu0 %v560, 64
  %v564 = vpop.permute.xlu0 %563
  %v566 = vmul.f32 %v558, %v564
  %568 = vrot.lane.b32.xlu0 %v566, 32
  %v569 = vpop.permute.xlu0 %568
  %v571 = vadd.f32 %v561, %v569
  %v572 = vtanh.pop %v571
  %574 = vrot.lane.b32.xlu0 %v572, 64
  %v575 = vpop.permute.xlu0 %574
  %v577 = vmul.f32 %v558, %v575
  %579 = vrot.lane.b32.xlu0 %v577, 32
  %v580 = vpop.permute.xlu0 %579
  %582 = vst.msk [vmem:[#allocation3 + $0xc] sm:$0xf] %vm344, %v580
  %v583 = vld [vmem:[#allocation2 + $0x10] sm:$0xf]
  %v584 = vpack.c.bf16 %v577, %v577
  %586 = vrot.lane.b32.xlu0 %v584, 32
  %v587 = vpop.permute.xlu0 %586
  %v589 = vsel %vm270, %v587, 0
  %591 = vmatprep.subr.bf16.mxu0 0
  %592 = vmatpush1.bf16.msra.mxu0 0
  %593 = vmatprep.subr.bf16.mxu0 0
  %594 = vmatpush1.bf16.msra.mxu0 0
  %595 = vmatprep.subr.bf16.mxu0 0
  %596 = vmatpush1.bf16.msra.mxu0 0
  %597 = vmatprep.subr.bf16.mxu0 0
  %598 = vmatpush1.bf16.msra.mxu0 0
  %599 = vmatprep.subr.bf16.mxu0 0
  %600 = vmatpush1.bf16.msra.mxu0 0
  %601 = vmatprep.subr.bf16.mxu0 0
  %602 = vmatpush1.bf16.msra.mxu0 0
  %603 = vmatprep.subr.bf16.mxu0 0
  %604 = vmatpush1.bf16.msra.mxu0 %v267
  %605 = vmatprep.subr.bf16.mxu0 0
  %606 = vmatpush1.bf16.msra.mxu0 %v266
  %607 = vmatprep.subr.bf16.mxu0 0
  %608 = vmatpush2.bf16.msra.mxu0 0
  %609 = vmatprep.subr.bf16.mxu0 0
  %610 = vmatpush2.bf16.msra.mxu0 0
  %611 = vmatprep.subr.bf16.mxu0 0
  %612 = vmatpush2.bf16.msra.mxu0 0
  %613 = vmatprep.subr.bf16.mxu0 0
  %614 = vmatpush2.bf16.msra.mxu0 0
  %615 = vmatprep.subr.bf16.mxu0 0
  %616 = vmatpush2.bf16.msra.mxu0 0
  %617 = vmatprep.subr.bf16.mxu0 0
  %618 = vmatpush2.bf16.msra.mxu0 0
  %619 = vmatprep.subr.bf16.mxu0 0
  %620 = vmatpush2.bf16.msra.mxu0 0
  %621 = vmatprep.subr.bf16.mxu0 0
  %622 = vmatpush2.bf16.msra.mxu0 0
  %623 = vmatprep.mubr.bf16.mxu0 0
  %624 = vmatmul.mubr.bf16.gmra.mxu0 %v589
  %v625 = vpop.f32.mrf.mxu0
  %v626 = vadd.f32 0.0, %v625
  %v627 = vpop.f32.mrf.mxu0
  %v628 = vpop.f32.mrf.mxu0
  %v629 = vpop.f32.mrf.mxu0
  %630 = vdwg.mxu0
  %v631 = vadd.f32 %v583, %v626
  %v632 = vxor.u32 %v631, 2147483648
  %v633 = vmul.f32 %v632, 1.442695
  %v634 = vpow.pop %v633
  %v635 = vadd.f32 %v634, 1.0
  %v636 = vrcp.pop %v635
  %v637 = vmul.f32 1.0, %v636
  %v638 = vmul.f32 %v637, 2.0
  %v639 = vsub.f32 %v638, 1.0
  %v640 = vmul.f32 %v637, %v571
  %642 = vrot.lane.b32.xlu0 %v639, 64
  %v643 = vpop.permute.xlu0 %642
  %v645 = vmul.f32 %v637, %v643
  %647 = vrot.lane.b32.xlu0 %v645, 32
  %v648 = vpop.permute.xlu0 %647
  %v650 = vadd.f32 %v640, %v648
  %v651 = vtanh.pop %v650
  %653 = vrot.lane.b32.xlu0 %v651, 64
  %v654 = vpop.permute.xlu0 %653
  %v656 = vmul.f32 %v637, %v654
  %658 = vrot.lane.b32.xlu0 %v656, 32
  %v659 = vpop.permute.xlu0 %658
  %661 = vst.msk [vmem:[#allocation3 + $0x10] sm:$0xf] %vm344, %v659
  %v662 = vld [vmem:[#allocation2 + $0x14] sm:$0xf]
  %v663 = vpack.c.bf16 %v656, %v656
  %665 = vrot.lane.b32.xlu0 %v663, 32
  %v666 = vpop.permute.xlu0 %665
  %v668 = vsel %vm270, %v666, 0
  %670 = vmatprep.subr.bf16.mxu0 0
  %671 = vmatpush1.bf16.msra.mxu0 0
  %672 = vmatprep.subr.bf16.mxu0 0
  %673 = vmatpush1.bf16.msra.mxu0 0
  %674 = vmatprep.subr.bf16.mxu0 0
  %675 = vmatpush1.bf16.msra.mxu0 0
  %676 = vmatprep.subr.bf16.mxu0 0
  %677 = vmatpush1.bf16.msra.mxu0 0
  %678 = vmatprep.subr.bf16.mxu0 0
  %679 = vmatpush1.bf16.msra.mxu0 0
  %680 = vmatprep.subr.bf16.mxu0 0
  %681 = vmatpush1.bf16.msra.mxu0 0
  %682 = vmatprep.subr.bf16.mxu0 0
  %683 = vmatpush1.bf16.msra.mxu0 %v267
  %684 = vmatprep.subr.bf16.mxu0 0
  %685 = vmatpush1.bf16.msra.mxu0 %v266
  %686 = vmatprep.subr.bf16.mxu0 0
  %687 = vmatpush2.bf16.msra.mxu0 0
  %688 = vmatprep.subr.bf16.mxu0 0
  %689 = vmatpush2.bf16.msra.mxu0 0
  %690 = vmatprep.subr.bf16.mxu0 0
  %691 = vmatpush2.bf16.msra.mxu0 0
  %692 = vmatprep.subr.bf16.mxu0 0
  %693 = vmatpush2.bf16.msra.mxu0 0
  %694 = vmatprep.subr.bf16.mxu0 0
  %695 = vmatpush2.bf16.msra.mxu0 0
  %696 = vmatprep.subr.bf16.mxu0 0
  %697 = vmatpush2.bf16.msra.mxu0 0
  %698 = vmatprep.subr.bf16.mxu0 0
  %699 = vmatpush2.bf16.msra.mxu0 0
  %700 = vmatprep.subr.bf16.mxu0 0
  %701 = vmatpush2.bf16.msra.mxu0 0
  %702 = vmatprep.mubr.bf16.mxu0 0
  %703 = vmatmul.mubr.bf16.gmra.mxu0 %v668
  %v704 = vpop.f32.mrf.mxu0
  %v705 = vadd.f32 0.0, %v704
  %v706 = vpop.f32.mrf.mxu0
  %v707 = vpop.f32.mrf.mxu0
  %v708 = vpop.f32.mrf.mxu0
  %709 = vdwg.mxu0
  %v710 = vadd.f32 %v662, %v705
  %v711 = vxor.u32 %v710, 2147483648
  %v712 = vmul.f32 %v711, 1.442695
  %v713 = vpow.pop %v712
  %v714 = vadd.f32 %v713, 1.0
  %v715 = vrcp.pop %v714
  %v716 = vmul.f32 1.0, %v715
  %v717 = vmul.f32 %v716, 2.0
  %v718 = vsub.f32 %v717, 1.0
  %v719 = vmul.f32 %v716, %v650
  %721 = vrot.lane.b32.xlu0 %v718, 64
  %v722 = vpop.permute.xlu0 %721
  %v724 = vmul.f32 %v716, %v722
  %726 = vrot.lane.b32.xlu0 %v724, 32
  %v727 = vpop.permute.xlu0 %726
  %v729 = vadd.f32 %v719, %v727
  %v730 = vtanh.pop %v729
  %732 = vrot.lane.b32.xlu0 %v730, 64
  %v733 = vpop.permute.xlu0 %732
  %v735 = vmul.f32 %v716, %v733
  %737 = vrot.lane.b32.xlu0 %v735, 32
  %v738 = vpop.permute.xlu0 %737
  %740 = vst.msk [vmem:[#allocation3 + $0x14] sm:$0xf] %vm344, %v738
  %v741 = vld [vmem:[#allocation2 + $0x18] sm:$0xf]
  %v742 = vpack.c.bf16 %v735, %v735
  %744 = vrot.lane.b32.xlu0 %v742, 32
  %v745 = vpop.permute.xlu0 %744
  %v747 = vsel %vm270, %v745, 0
  %749 = vmatprep.subr.bf16.mxu0 0
  %750 = vmatpush1.bf16.msra.mxu0 0
  %751 = vmatprep.subr.bf16.mxu0 0
  %752 = vmatpush1.bf16.msra.mxu0 0
  %753 = vmatprep.subr.bf16.mxu0 0
  %754 = vmatpush1.bf16.msra.mxu0 0
  %755 = vmatprep.subr.bf16.mxu0 0
  %756 = vmatpush1.bf16.msra.mxu0 0
  %757 = vmatprep.subr.bf16.mxu0 0
  %758 = vmatpush1.bf16.msra.mxu0 0
  %759 = vmatprep.subr.bf16.mxu0 0
  %760 = vmatpush1.bf16.msra.mxu0 0
  %761 = vmatprep.subr.bf16.mxu0 0
  %762 = vmatpush1.bf16.msra.mxu0 %v267
  %763 = vmatprep.subr.bf16.mxu0 0
  %764 = vmatpush1.bf16.msra.mxu0 %v266
  %765 = vmatprep.subr.bf16.mxu0 0
  %766 = vmatpush2.bf16.msra.mxu0 0
  %767 = vmatprep.subr.bf16.mxu0 0
  %768 = vmatpush2.bf16.msra.mxu0 0
  %769 = vmatprep.subr.bf16.mxu0 0
  %770 = vmatpush2.bf16.msra.mxu0 0
  %771 = vmatprep.subr.bf16.mxu0 0
  %772 = vmatpush2.bf16.msra.mxu0 0
  %773 = vmatprep.subr.bf16.mxu0 0
  %774 = vmatpush2.bf16.msra.mxu0 0
  %775 = vmatprep.subr.bf16.mxu0 0
  %776 = vmatpush2.bf16.msra.mxu0 0
  %777 = vmatprep.subr.bf16.mxu0 0
  %778 = vmatpush2.bf16.msra.mxu0 0
  %779 = vmatprep.subr.bf16.mxu0 0
  %780 = vmatpush2.bf16.msra.mxu0 0
  %781 = vmatprep.mubr.bf16.mxu0 0
  %782 = vmatmul.mubr.bf16.gmra.mxu0 %v747
  %v783 = vpop.f32.mrf.mxu0
  %v784 = vadd.f32 0.0, %v783
  %v785 = vpop.f32.mrf.mxu0
  %v786 = vpop.f32.mrf.mxu0
  %v787 = vpop.f32.mrf.mxu0
  %788 = vdwg.mxu0
  %v789 = vadd.f32 %v741, %v784
  %v790 = vxor.u32 %v789, 2147483648
  %v791 = vmul.f32 %v790, 1.442695
  %v792 = vpow.pop %v791
  %v793 = vadd.f32 %v792, 1.0
  %v794 = vrcp.pop %v793
  %v795 = vmul.f32 1.0, %v794
  %v796 = vmul.f32 %v795, 2.0
  %v797 = vsub.f32 %v796, 1.0
  %v798 = vmul.f32 %v795, %v729
  %800 = vrot.lane.b32.xlu0 %v797, 64
  %v801 = vpop.permute.xlu0 %800
  %v803 = vmul.f32 %v795, %v801
  %805 = vrot.lane.b32.xlu0 %v803, 32
  %v806 = vpop.permute.xlu0 %805
  %v808 = vadd.f32 %v798, %v806
  %v809 = vtanh.pop %v808
  %811 = vrot.lane.b32.xlu0 %v809, 64
  %v812 = vpop.permute.xlu0 %811
  %v814 = vmul.f32 %v795, %v812
  %816 = vrot.lane.b32.xlu0 %v814, 32
  %v817 = vpop.permute.xlu0 %816
  %819 = vst.msk [vmem:[#allocation3 + $0x18] sm:$0xf] %vm344, %v817
  %v820 = vld [vmem:[#allocation2 + $0x1c] sm:$0xf]
  %v821 = vpack.c.bf16 %v814, %v814
  %823 = vrot.lane.b32.xlu0 %v821, 32
  %v824 = vpop.permute.xlu0 %823
  %v826 = vsel %vm270, %v824, 0
  %828 = vmatprep.subr.bf16.mxu0 0
  %829 = vmatpush1.bf16.msra.mxu0 0
  %830 = vmatprep.subr.bf16.mxu0 0
  %831 = vmatpush1.bf16.msra.mxu0 0
  %832 = vmatprep.subr.bf16.mxu0 0
  %833 = vmatpush1.bf16.msra.mxu0 0
  %834 = vmatprep.subr.bf16.mxu0 0
  %835 = vmatpush1.bf16.msra.mxu0 0
  %836 = vmatprep.subr.bf16.mxu0 0
  %837 = vmatpush1.bf16.msra.mxu0 0
  %838 = vmatprep.subr.bf16.mxu0 0
  %839 = vmatpush1.bf16.msra.mxu0 0
  %840 = vmatprep.subr.bf16.mxu0 0
  %841 = vmatpush1.bf16.msra.mxu0 %v267
  %842 = vmatprep.subr.bf16.mxu0 0
  %843 = vmatpush1.bf16.msra.mxu0 %v266
  %844 = vmatprep.subr.bf16.mxu0 0
  %845 = vmatpush2.bf16.msra.mxu0 0
  %846 = vmatprep.subr.bf16.mxu0 0
  %847 = vmatpush2.bf16.msra.mxu0 0
  %848 = vmatprep.subr.bf16.mxu0 0
  %849 = vmatpush2.bf16.msra.mxu0 0
  %850 = vmatprep.subr.bf16.mxu0 0
  %851 = vmatpush2.bf16.msra.mxu0 0
  %852 = vmatprep.subr.bf16.mxu0 0
  %853 = vmatpush2.bf16.msra.mxu0 0
  %854 = vmatprep.subr.bf16.mxu0 0
  %855 = vmatpush2.bf16.msra.mxu0 0
  %856 = vmatprep.subr.bf16.mxu0 0
  %857 = vmatpush2.bf16.msra.mxu0 0
  %858 = vmatprep.subr.bf16.mxu0 0
  %859 = vmatpush2.bf16.msra.mxu0 0
  %860 = vmatprep.mubr.bf16.mxu0 0
  %861 = vmatmul.mubr.bf16.gmra.mxu0 %v826
  %v862 = vpop.f32.mrf.mxu0
  %v863 = vadd.f32 0.0, %v862
  %v864 = vpop.f32.mrf.mxu0
  %v865 = vpop.f32.mrf.mxu0
  %v866 = vpop.f32.mrf.mxu0
  %867 = vdwg.mxu0
  %v868 = vadd.f32 %v820, %v863
  %v869 = vxor.u32 %v868, 2147483648
  %v870 = vmul.f32 %v869, 1.442695
  %v871 = vpow.pop %v870
  %v872 = vadd.f32 %v871, 1.0
  %v873 = vrcp.pop %v872
  %v874 = vmul.f32 1.0, %v873
  %v875 = vmul.f32 %v874, 2.0
  %v876 = vsub.f32 %v875, 1.0
  %v877 = vmul.f32 %v874, %v808
  %879 = vrot.lane.b32.xlu0 %v876, 64
  %v880 = vpop.permute.xlu0 %879
  %v882 = vmul.f32 %v874, %v880
  %884 = vrot.lane.b32.xlu0 %v882, 32
  %v885 = vpop.permute.xlu0 %884
  %v887 = vadd.f32 %v877, %v885
  %v888 = vtanh.pop %v887
  %890 = vrot.lane.b32.xlu0 %v888, 64
  %v891 = vpop.permute.xlu0 %890
  %v893 = vmul.f32 %v874, %v891
  %895 = vrot.lane.b32.xlu0 %v893, 32
  %v896 = vpop.permute.xlu0 %895
  %898 = vst.msk [vmem:[#allocation3 + $0x1c] sm:$0xf] %vm344, %v896
  %v899 = vld [vmem:[#allocation2 + $0x20] sm:$0xf]
  %v900 = vpack.c.bf16 %v893, %v893
  %902 = vrot.lane.b32.xlu0 %v900, 32
  %v903 = vpop.permute.xlu0 %902
  %v905 = vsel %vm270, %v903, 0
  %907 = vmatprep.subr.bf16.mxu0 0
  %908 = vmatpush1.bf16.msra.mxu0 0
  %909 = vmatprep.subr.bf16.mxu0 0
  %910 = vmatpush1.bf16.msra.mxu0 0
  %911 = vmatprep.subr.bf16.mxu0 0
  %912 = vmatpush1.bf16.msra.mxu0 0
  %913 = vmatprep.subr.bf16.mxu0 0
  %914 = vmatpush1.bf16.msra.mxu0 0
  %915 = vmatprep.subr.bf16.mxu0 0
  %916 = vmatpush1.bf16.msra.mxu0 0
  %917 = vmatprep.subr.bf16.mxu0 0
  %918 = vmatpush1.bf16.msra.mxu0 0
  %919 = vmatprep.subr.bf16.mxu0 0
  %920 = vmatpush1.bf16.msra.mxu0 %v267
  %921 = vmatprep.subr.bf16.mxu0 0
  %922 = vmatpush1.bf16.msra.mxu0 %v266
  %923 = vmatprep.subr.bf16.mxu0 0
  %924 = vmatpush2.bf16.msra.mxu0 0
  %925 = vmatprep.subr.bf16.mxu0 0
  %926 = vmatpush2.bf16.msra.mxu0 0
  %927 = vmatprep.subr.bf16.mxu0 0
  %928 = vmatpush2.bf16.msra.mxu0 0
  %929 = vmatprep.subr.bf16.mxu0 0
  %930 = vmatpush2.bf16.msra.mxu0 0
  %931 = vmatprep.subr.bf16.mxu0 0
  %932 = vmatpush2.bf16.msra.mxu0 0
  %933 = vmatprep.subr.bf16.mxu0 0
  %934 = vmatpush2.bf16.msra.mxu0 0
  %935 = vmatprep.subr.bf16.mxu0 0
  %936 = vmatpush2.bf16.msra.mxu0 0
  %937 = vmatprep.subr.bf16.mxu0 0
  %938 = vmatpush2.bf16.msra.mxu0 0
  %939 = vmatprep.mubr.bf16.mxu0 0
  %940 = vmatmul.mubr.bf16.gmra.mxu0 %v905
  %v941 = vpop.f32.mrf.mxu0
  %v942 = vadd.f32 0.0, %v941
  %v943 = vpop.f32.mrf.mxu0
  %v944 = vpop.f32.mrf.mxu0
  %v945 = vpop.f32.mrf.mxu0
  %946 = vdwg.mxu0
  %v947 = vadd.f32 %v899, %v942
  %v948 = vxor.u32 %v947, 2147483648
  %v949 = vmul.f32 %v948, 1.442695
  %v950 = vpow.pop %v949
  %v951 = vadd.f32 %v950, 1.0
  %v952 = vrcp.pop %v951
  %v953 = vmul.f32 1.0, %v952
  %v954 = vmul.f32 %v953, 2.0
  %v955 = vsub.f32 %v954, 1.0
  %v956 = vmul.f32 %v953, %v887
  %958 = vrot.lane.b32.xlu0 %v955, 64
  %v959 = vpop.permute.xlu0 %958
  %v961 = vmul.f32 %v953, %v959
  %963 = vrot.lane.b32.xlu0 %v961, 32
  %v964 = vpop.permute.xlu0 %963
  %v966 = vadd.f32 %v956, %v964
  %v967 = vtanh.pop %v966
  %969 = vrot.lane.b32.xlu0 %v967, 64
  %v970 = vpop.permute.xlu0 %969
  %v972 = vmul.f32 %v953, %v970
  %974 = vrot.lane.b32.xlu0 %v972, 32
  %v975 = vpop.permute.xlu0 %974
  %977 = vst.msk [vmem:[#allocation3 + $0x20] sm:$0xf] %vm344, %v975
  %v978 = vld [vmem:[#allocation2 + $0x24] sm:$0xf]
  %v979 = vpack.c.bf16 %v972, %v972
  %981 = vrot.lane.b32.xlu0 %v979, 32
  %v982 = vpop.permute.xlu0 %981
  %v984 = vsel %vm270, %v982, 0
  %986 = vmatprep.subr.bf16.mxu0 0
  %987 = vmatpush1.bf16.msra.mxu0 0
  %988 = vmatprep.subr.bf16.mxu0 0
  %989 = vmatpush1.bf16.msra.mxu0 0
  %990 = vmatprep.subr.bf16.mxu0 0
  %991 = vmatpush1.bf16.msra.mxu0 0
  %992 = vmatprep.subr.bf16.mxu0 0
  %993 = vmatpush1.bf16.msra.mxu0 0
  %994 = vmatprep.subr.bf16.mxu0 0
  %995 = vmatpush1.bf16.msra.mxu0 0
  %996 = vmatprep.subr.bf16.mxu0 0
  %997 = vmatpush1.bf16.msra.mxu0 0
  %998 = vmatprep.subr.bf16.mxu0 0
  %999 = vmatpush1.bf16.msra.mxu0 %v267
  %1000 = vmatprep.subr.bf16.mxu0 0
  %1001 = vmatpush1.bf16.msra.mxu0 %v266
  %1002 = vmatprep.subr.bf16.mxu0 0
  %1003 = vmatpush2.bf16.msra.mxu0 0
  %1004 = vmatprep.subr.bf16.mxu0 0
  %1005 = vmatpush2.bf16.msra.mxu0 0
  %1006 = vmatprep.subr.bf16.mxu0 0
  %1007 = vmatpush2.bf16.msra.mxu0 0
  %1008 = vmatprep.subr.bf16.mxu0 0
  %1009 = vmatpush2.bf16.msra.mxu0 0
  %1010 = vmatprep.subr.bf16.mxu0 0
  %1011 = vmatpush2.bf16.msra.mxu0 0
  %1012 = vmatprep.subr.bf16.mxu0 0
  %1013 = vmatpush2.bf16.msra.mxu0 0
  %1014 = vmatprep.subr.bf16.mxu0 0
  %1015 = vmatpush2.bf16.msra.mxu0 0
  %1016 = vmatprep.subr.bf16.mxu0 0
  %1017 = vmatpush2.bf16.msra.mxu0 0
  %1018 = vmatprep.mubr.bf16.mxu0 0
  %1019 = vmatmul.mubr.bf16.gmra.mxu0 %v984
  %v1020 = vpop.f32.mrf.mxu0
  %v1021 = vadd.f32 0.0, %v1020
  %v1022 = vpop.f32.mrf.mxu0
  %v1023 = vpop.f32.mrf.mxu0
  %v1024 = vpop.f32.mrf.mxu0
  %1025 = vdwg.mxu0
  %v1026 = vadd.f32 %v978, %v1021
  %v1027 = vxor.u32 %v1026, 2147483648
  %v1028 = vmul.f32 %v1027, 1.442695
  %v1029 = vpow.pop %v1028
  %v1030 = vadd.f32 %v1029, 1.0
  %v1031 = vrcp.pop %v1030
  %v1032 = vmul.f32 1.0, %v1031
  %v1033 = vmul.f32 %v1032, 2.0
  %v1034 = vsub.f32 %v1033, 1.0
  %v1035 = vmul.f32 %v1032, %v966
  %1037 = vrot.lane.b32.xlu0 %v1034, 64
  %v1038 = vpop.permute.xlu0 %1037
  %v1040 = vmul.f32 %v1032, %v1038
  %1042 = vrot.lane.b32.xlu0 %v1040, 32
  %v1043 = vpop.permute.xlu0 %1042
  %v1045 = vadd.f32 %v1035, %v1043
  %v1046 = vtanh.pop %v1045
  %1048 = vrot.lane.b32.xlu0 %v1046, 64
  %v1049 = vpop.permute.xlu0 %1048
  %v1051 = vmul.f32 %v1032, %v1049
  %1053 = vrot.lane.b32.xlu0 %v1051, 32
  %v1054 = vpop.permute.xlu0 %1053
  %1056 = vst.msk [vmem:[#allocation3 + $0x24] sm:$0xf] %vm344, %v1054
  %v1057 = vld [vmem:[#allocation2 + $0x28] sm:$0xf]
  %v1058 = vpack.c.bf16 %v1051, %v1051
  %1060 = vrot.lane.b32.xlu0 %v1058, 32
  %v1061 = vpop.permute.xlu0 %1060
  %v1063 = vsel %vm270, %v1061, 0
  %1065 = vmatprep.subr.bf16.mxu0 0
  %1066 = vmatpush1.bf16.msra.mxu0 0
  %1067 = vmatprep.subr.bf16.mxu0 0
  %1068 = vmatpush1.bf16.msra.mxu0 0
  %1069 = vmatprep.subr.bf16.mxu0 0
  %1070 = vmatpush1.bf16.msra.mxu0 0
  %1071 = vmatprep.subr.bf16.mxu0 0
  %1072 = vmatpush1.bf16.msra.mxu0 0
  %1073 = vmatprep.subr.bf16.mxu0 0
  %1074 = vmatpush1.bf16.msra.mxu0 0
  %1075 = vmatprep.subr.bf16.mxu0 0
  %1076 = vmatpush1.bf16.msra.mxu0 0
  %1077 = vmatprep.subr.bf16.mxu0 0
  %1078 = vmatpush1.bf16.msra.mxu0 %v267
  %1079 = vmatprep.subr.bf16.mxu0 0
  %1080 = vmatpush1.bf16.msra.mxu0 %v266
  %1081 = vmatprep.subr.bf16.mxu0 0
  %1082 = vmatpush2.bf16.msra.mxu0 0
  %1083 = vmatprep.subr.bf16.mxu0 0
  %1084 = vmatpush2.bf16.msra.mxu0 0
  %1085 = vmatprep.subr.bf16.mxu0 0
  %1086 = vmatpush2.bf16.msra.mxu0 0
  %1087 = vmatprep.subr.bf16.mxu0 0
  %1088 = vmatpush2.bf16.msra.mxu0 0
  %1089 = vmatprep.subr.bf16.mxu0 0
  %1090 = vmatpush2.bf16.msra.mxu0 0
  %1091 = vmatprep.subr.bf16.mxu0 0
  %1092 = vmatpush2.bf16.msra.mxu0 0
  %1093 = vmatprep.subr.bf16.mxu0 0
  %1094 = vmatpush2.bf16.msra.mxu0 0
  %1095 = vmatprep.subr.bf16.mxu0 0
  %1096 = vmatpush2.bf16.msra.mxu0 0
  %1097 = vmatprep.mubr.bf16.mxu0 0
  %1098 = vmatmul.mubr.bf16.gmra.mxu0 %v1063
  %v1099 = vpop.f32.mrf.mxu0
  %v1100 = vadd.f32 0.0, %v1099
  %v1101 = vpop.f32.mrf.mxu0
  %v1102 = vpop.f32.mrf.mxu0
  %v1103 = vpop.f32.mrf.mxu0
  %1104 = vdwg.mxu0
  %v1105 = vadd.f32 %v1057, %v1100
  %v1106 = vxor.u32 %v1105, 2147483648
  %v1107 = vmul.f32 %v1106, 1.442695
  %v1108 = vpow.pop %v1107
  %v1109 = vadd.f32 %v1108, 1.0
  %v1110 = vrcp.pop %v1109
  %v1111 = vmul.f32 1.0, %v1110
  %v1112 = vmul.f32 %v1111, 2.0
  %v1113 = vsub.f32 %v1112, 1.0
  %v1114 = vmul.f32 %v1111, %v1045
  %1116 = vrot.lane.b32.xlu0 %v1113, 64
  %v1117 = vpop.permute.xlu0 %1116
  %v1119 = vmul.f32 %v1111, %v1117
  %1121 = vrot.lane.b32.xlu0 %v1119, 32
  %v1122 = vpop.permute.xlu0 %1121
  %v1124 = vadd.f32 %v1114, %v1122
  %v1125 = vtanh.pop %v1124
  %1127 = vrot.lane.b32.xlu0 %v1125, 64
  %v1128 = vpop.permute.xlu0 %1127
  %v1130 = vmul.f32 %v1111, %v1128
  %1132 = vrot.lane.b32.xlu0 %v1130, 32
  %v1133 = vpop.permute.xlu0 %1132
  %1135 = vst.msk [vmem:[#allocation3 + $0x28] sm:$0xf] %vm344, %v1133
  %v1136 = vld [vmem:[#allocation2 + $0x2c] sm:$0xf]
  %v1137 = vpack.c.bf16 %v1130, %v1130
  %1139 = vrot.lane.b32.xlu0 %v1137, 32
  %v1140 = vpop.permute.xlu0 %1139
  %v1142 = vsel %vm270, %v1140, 0
  %1144 = vmatprep.subr.bf16.mxu0 0
  %1145 = vmatpush1.bf16.msra.mxu0 0
  %1146 = vmatprep.subr.bf16.mxu0 0
  %1147 = vmatpush1.bf16.msra.mxu0 0
  %1148 = vmatprep.subr.bf16.mxu0 0
  %1149 = vmatpush1.bf16.msra.mxu0 0
  %1150 = vmatprep.subr.bf16.mxu0 0
  %1151 = vmatpush1.bf16.msra.mxu0 0
  %1152 = vmatprep.subr.bf16.mxu0 0
  %1153 = vmatpush1.bf16.msra.mxu0 0
  %1154 = vmatprep.subr.bf16.mxu0 0
  %1155 = vmatpush1.bf16.msra.mxu0 0
  %1156 = vmatprep.subr.bf16.mxu0 0
  %1157 = vmatpush1.bf16.msra.mxu0 %v267
  %1158 = vmatprep.subr.bf16.mxu0 0
  %1159 = vmatpush1.bf16.msra.mxu0 %v266
  %1160 = vmatprep.subr.bf16.mxu0 0
  %1161 = vmatpush2.bf16.msra.mxu0 0
  %1162 = vmatprep.subr.bf16.mxu0 0
  %1163 = vmatpush2.bf16.msra.mxu0 0
  %1164 = vmatprep.subr.bf16.mxu0 0
  %1165 = vmatpush2.bf16.msra.mxu0 0
  %1166 = vmatprep.subr.bf16.mxu0 0
  %1167 = vmatpush2.bf16.msra.mxu0 0
  %1168 = vmatprep.subr.bf16.mxu0 0
  %1169 = vmatpush2.bf16.msra.mxu0 0
  %1170 = vmatprep.subr.bf16.mxu0 0
  %1171 = vmatpush2.bf16.msra.mxu0 0
  %1172 = vmatprep.subr.bf16.mxu0 0
  %1173 = vmatpush2.bf16.msra.mxu0 0
  %1174 = vmatprep.subr.bf16.mxu0 0
  %1175 = vmatpush2.bf16.msra.mxu0 0
  %1176 = vmatprep.mubr.bf16.mxu0 0
  %1177 = vmatmul.mubr.bf16.gmra.mxu0 %v1142
  %v1178 = vpop.f32.mrf.mxu0
  %v1179 = vadd.f32 0.0, %v1178
  %v1180 = vpop.f32.mrf.mxu0
  %v1181 = vpop.f32.mrf.mxu0
  %v1182 = vpop.f32.mrf.mxu0
  %1183 = vdwg.mxu0
  %v1184 = vadd.f32 %v1136, %v1179
  %v1185 = vxor.u32 %v1184, 2147483648
  %v1186 = vmul.f32 %v1185, 1.442695
  %v1187 = vpow.pop %v1186
  %v1188 = vadd.f32 %v1187, 1.0
  %v1189 = vrcp.pop %v1188
  %v1190 = vmul.f32 1.0, %v1189
  %v1191 = vmul.f32 %v1190, 2.0
  %v1192 = vsub.f32 %v1191, 1.0
  %v1193 = vmul.f32 %v1190, %v1124
  %1195 = vrot.lane.b32.xlu0 %v1192, 64
  %v1196 = vpop.permute.xlu0 %1195
  %v1198 = vmul.f32 %v1190, %v1196
  %1200 = vrot.lane.b32.xlu0 %v1198, 32
  %v1201 = vpop.permute.xlu0 %1200
  %v1203 = vadd.f32 %v1193, %v1201
  %v1204 = vtanh.pop %v1203
  %1206 = vrot.lane.b32.xlu0 %v1204, 64
  %v1207 = vpop.permute.xlu0 %1206
  %v1209 = vmul.f32 %v1190, %v1207
  %1211 = vrot.lane.b32.xlu0 %v1209, 32
  %v1212 = vpop.permute.xlu0 %1211
  %1214 = vst.msk [vmem:[#allocation3 + $0x2c] sm:$0xf] %vm344, %v1212
  %v1215 = vld [vmem:[#allocation2 + $0x30] sm:$0xf]
  %v1216 = vpack.c.bf16 %v1209, %v1209
  %1218 = vrot.lane.b32.xlu0 %v1216, 32
  %v1219 = vpop.permute.xlu0 %1218
  %v1221 = vsel %vm270, %v1219, 0
  %1223 = vmatprep.subr.bf16.mxu0 0
  %1224 = vmatpush1.bf16.msra.mxu0 0
  %1225 = vmatprep.subr.bf16.mxu0 0
  %1226 = vmatpush1.bf16.msra.mxu0 0
  %1227 = vmatprep.subr.bf16.mxu0 0
  %1228 = vmatpush1.bf16.msra.mxu0 0
  %1229 = vmatprep.subr.bf16.mxu0 0
  %1230 = vmatpush1.bf16.msra.mxu0 0
  %1231 = vmatprep.subr.bf16.mxu0 0
  %1232 = vmatpush1.bf16.msra.mxu0 0
  %1233 = vmatprep.subr.bf16.mxu0 0
  %1234 = vmatpush1.bf16.msra.mxu0 0
  %1235 = vmatprep.subr.bf16.mxu0 0
  %1236 = vmatpush1.bf16.msra.mxu0 %v267
  %1237 = vmatprep.subr.bf16.mxu0 0
  %1238 = vmatpush1.bf16.msra.mxu0 %v266
  %1239 = vmatprep.subr.bf16.mxu0 0
  %1240 = vmatpush2.bf16.msra.mxu0 0
  %1241 = vmatprep.subr.bf16.mxu0 0
  %1242 = vmatpush2.bf16.msra.mxu0 0
  %1243 = vmatprep.subr.bf16.mxu0 0
  %1244 = vmatpush2.bf16.msra.mxu0 0
  %1245 = vmatprep.subr.bf16.mxu0 0
  %1246 = vmatpush2.bf16.msra.mxu0 0
  %1247 = vmatprep.subr.bf16.mxu0 0
  %1248 = vmatpush2.bf16.msra.mxu0 0
  %1249 = vmatprep.subr.bf16.mxu0 0
  %1250 = vmatpush2.bf16.msra.mxu0 0
  %1251 = vmatprep.subr.bf16.mxu0 0
  %1252 = vmatpush2.bf16.msra.mxu0 0
  %1253 = vmatprep.subr.bf16.mxu0 0
  %1254 = vmatpush2.bf16.msra.mxu0 0
  %1255 = vmatprep.mubr.bf16.mxu0 0
  %1256 = vmatmul.mubr.bf16.gmra.mxu0 %v1221
  %v1257 = vpop.f32.mrf.mxu0
  %v1258 = vadd.f32 0.0, %v1257
  %v1259 = vpop.f32.mrf.mxu0
  %v1260 = vpop.f32.mrf.mxu0
  %v1261 = vpop.f32.mrf.mxu0
  %1262 = vdwg.mxu0
  %v1263 = vadd.f32 %v1215, %v1258
  %v1264 = vxor.u32 %v1263, 2147483648
  %v1265 = vmul.f32 %v1264, 1.442695
  %v1266 = vpow.pop %v1265
  %v1267 = vadd.f32 %v1266, 1.0
  %v1268 = vrcp.pop %v1267
  %v1269 = vmul.f32 1.0, %v1268
  %v1270 = vmul.f32 %v1269, 2.0
  %v1271 = vsub.f32 %v1270, 1.0
  %v1272 = vmul.f32 %v1269, %v1203
  %1274 = vrot.lane.b32.xlu0 %v1271, 64
  %v1275 = vpop.permute.xlu0 %1274
  %v1277 = vmul.f32 %v1269, %v1275
  %1279 = vrot.lane.b32.xlu0 %v1277, 32
  %v1280 = vpop.permute.xlu0 %1279
  %v1282 = vadd.f32 %v1272, %v1280
  %v1283 = vtanh.pop %v1282
  %1285 = vrot.lane.b32.xlu0 %v1283, 64
  %v1286 = vpop.permute.xlu0 %1285
  %v1288 = vmul.f32 %v1269, %v1286
  %1290 = vrot.lane.b32.xlu0 %v1288, 32
  %v1291 = vpop.permute.xlu0 %1290
  %1293 = vst.msk [vmem:[#allocation3 + $0x30] sm:$0xf] %vm344, %v1291
  %v1294 = vld [vmem:[#allocation2 + $0x34] sm:$0xf]
  %v1295 = vpack.c.bf16 %v1288, %v1288
  %1297 = vrot.lane.b32.xlu0 %v1295, 32
  %v1298 = vpop.permute.xlu0 %1297
  %v1300 = vsel %vm270, %v1298, 0
  %1302 = vmatprep.subr.bf16.mxu0 0
  %1303 = vmatpush1.bf16.msra.mxu0 0
  %1304 = vmatprep.subr.bf16.mxu0 0
  %1305 = vmatpush1.bf16.msra.mxu0 0
  %1306 = vmatprep.subr.bf16.mxu0 0
  %1307 = vmatpush1.bf16.msra.mxu0 0
  %1308 = vmatprep.subr.bf16.mxu0 0
  %1309 = vmatpush1.bf16.msra.mxu0 0
  %1310 = vmatprep.subr.bf16.mxu0 0
  %1311 = vmatpush1.bf16.msra.mxu0 0
  %1312 = vmatprep.subr.bf16.mxu0 0
  %1313 = vmatpush1.bf16.msra.mxu0 0
  %1314 = vmatprep.subr.bf16.mxu0 0
  %1315 = vmatpush1.bf16.msra.mxu0 %v267
  %1316 = vmatprep.subr.bf16.mxu0 0
  %1317 = vmatpush1.bf16.msra.mxu0 %v266
  %1318 = vmatprep.subr.bf16.mxu0 0
  %1319 = vmatpush2.bf16.msra.mxu0 0
  %1320 = vmatprep.subr.bf16.mxu0 0
  %1321 = vmatpush2.bf16.msra.mxu0 0
  %1322 = vmatprep.subr.bf16.mxu0 0
  %1323 = vmatpush2.bf16.msra.mxu0 0
  %1324 = vmatprep.subr.bf16.mxu0 0
  %1325 = vmatpush2.bf16.msra.mxu0 0
  %1326 = vmatprep.subr.bf16.mxu0 0
  %1327 = vmatpush2.bf16.msra.mxu0 0
  %1328 = vmatprep.subr.bf16.mxu0 0
  %1329 = vmatpush2.bf16.msra.mxu0 0
  %1330 = vmatprep.subr.bf16.mxu0 0
  %1331 = vmatpush2.bf16.msra.mxu0 0
  %1332 = vmatprep.subr.bf16.mxu0 0
  %1333 = vmatpush2.bf16.msra.mxu0 0
  %1334 = vmatprep.mubr.bf16.mxu0 0
  %1335 = vmatmul.mubr.bf16.gmra.mxu0 %v1300
  %v1336 = vpop.f32.mrf.mxu0
  %v1337 = vadd.f32 0.0, %v1336
  %v1338 = vpop.f32.mrf.mxu0
  %v1339 = vpop.f32.mrf.mxu0
  %v1340 = vpop.f32.mrf.mxu0
  %1341 = vdwg.mxu0
  %v1342 = vadd.f32 %v1294, %v1337
  %v1343 = vxor.u32 %v1342, 2147483648
  %v1344 = vmul.f32 %v1343, 1.442695
  %v1345 = vpow.pop %v1344
  %v1346 = vadd.f32 %v1345, 1.0
  %v1347 = vrcp.pop %v1346
  %v1348 = vmul.f32 1.0, %v1347
  %v1349 = vmul.f32 %v1348, 2.0
  %v1350 = vsub.f32 %v1349, 1.0
  %v1351 = vmul.f32 %v1348, %v1282
  %1353 = vrot.lane.b32.xlu0 %v1350, 64
  %v1354 = vpop.permute.xlu0 %1353
  %v1356 = vmul.f32 %v1348, %v1354
  %1358 = vrot.lane.b32.xlu0 %v1356, 32
  %v1359 = vpop.permute.xlu0 %1358
  %v1361 = vadd.f32 %v1351, %v1359
  %v1362 = vtanh.pop %v1361
  %1364 = vrot.lane.b32.xlu0 %v1362, 64
  %v1365 = vpop.permute.xlu0 %1364
  %v1367 = vmul.f32 %v1348, %v1365
  %1369 = vrot.lane.b32.xlu0 %v1367, 32
  %v1370 = vpop.permute.xlu0 %1369
  %1372 = vst.msk [vmem:[#allocation3 + $0x34] sm:$0xf] %vm344, %v1370
  %v1373 = vld [vmem:[#allocation2 + $0x38] sm:$0xf]
  %v1374 = vpack.c.bf16 %v1367, %v1367
  %1376 = vrot.lane.b32.xlu0 %v1374, 32
  %v1377 = vpop.permute.xlu0 %1376
  %v1379 = vsel %vm270, %v1377, 0
  %1381 = vmatprep.subr.bf16.mxu0 0
  %1382 = vmatpush1.bf16.msra.mxu0 0
  %1383 = vmatprep.subr.bf16.mxu0 0
  %1384 = vmatpush1.bf16.msra.mxu0 0
  %1385 = vmatprep.subr.bf16.mxu0 0
  %1386 = vmatpush1.bf16.msra.mxu0 0
  %1387 = vmatprep.subr.bf16.mxu0 0
  %1388 = vmatpush1.bf16.msra.mxu0 0
  %1389 = vmatprep.subr.bf16.mxu0 0
  %1390 = vmatpush1.bf16.msra.mxu0 0
  %1391 = vmatprep.subr.bf16.mxu0 0
  %1392 = vmatpush1.bf16.msra.mxu0 0
  %1393 = vmatprep.subr.bf16.mxu0 0
  %1394 = vmatpush1.bf16.msra.mxu0 %v267
  %1395 = vmatprep.subr.bf16.mxu0 0
  %1396 = vmatpush1.bf16.msra.mxu0 %v266
  %1397 = vmatprep.subr.bf16.mxu0 0
  %1398 = vmatpush2.bf16.msra.mxu0 0
  %1399 = vmatprep.subr.bf16.mxu0 0
  %1400 = vmatpush2.bf16.msra.mxu0 0
  %1401 = vmatprep.subr.bf16.mxu0 0
  %1402 = vmatpush2.bf16.msra.mxu0 0
  %1403 = vmatprep.subr.bf16.mxu0 0
  %1404 = vmatpush2.bf16.msra.mxu0 0
  %1405 = vmatprep.subr.bf16.mxu0 0
  %1406 = vmatpush2.bf16.msra.mxu0 0
  %1407 = vmatprep.subr.bf16.mxu0 0
  %1408 = vmatpush2.bf16.msra.mxu0 0
  %1409 = vmatprep.subr.bf16.mxu0 0
  %1410 = vmatpush2.bf16.msra.mxu0 0
  %1411 = vmatprep.subr.bf16.mxu0 0
  %1412 = vmatpush2.bf16.msra.mxu0 0
  %1413 = vmatprep.mubr.bf16.mxu0 0
  %1414 = vmatmul.mubr.bf16.gmra.mxu0 %v1379
  %v1415 = vpop.f32.mrf.mxu0
  %v1416 = vadd.f32 0.0, %v1415
  %v1417 = vpop.f32.mrf.mxu0
  %v1418 = vpop.f32.mrf.mxu0
  %v1419 = vpop.f32.mrf.mxu0
  %1420 = vdwg.mxu0
  %v1421 = vadd.f32 %v1373, %v1416
  %v1422 = vxor.u32 %v1421, 2147483648
  %v1423 = vmul.f32 %v1422, 1.442695
  %v1424 = vpow.pop %v1423
  %v1425 = vadd.f32 %v1424, 1.0
  %v1426 = vrcp.pop %v1425
  %v1427 = vmul.f32 1.0, %v1426
  %v1428 = vmul.f32 %v1427, 2.0
  %v1429 = vsub.f32 %v1428, 1.0
  %v1430 = vmul.f32 %v1427, %v1361
  %1432 = vrot.lane.b32.xlu0 %v1429, 64
  %v1433 = vpop.permute.xlu0 %1432
  %v1435 = vmul.f32 %v1427, %v1433
  %1437 = vrot.lane.b32.xlu0 %v1435, 32
  %v1438 = vpop.permute.xlu0 %1437
  %v1440 = vadd.f32 %v1430, %v1438
  %v1441 = vtanh.pop %v1440
  %1443 = vrot.lane.b32.xlu0 %v1441, 64
  %v1444 = vpop.permute.xlu0 %1443
  %v1446 = vmul.f32 %v1427, %v1444
  %1448 = vrot.lane.b32.xlu0 %v1446, 32
  %v1449 = vpop.permute.xlu0 %1448
  %1451 = vst.msk [vmem:[#allocation3 + $0x38] sm:$0xf] %vm344, %v1449
  %v1452 = vld [vmem:[#allocation2 + $0x3c] sm:$0xf]
  %v1453 = vpack.c.bf16 %v1446, %v1446
  %1455 = vrot.lane.b32.xlu0 %v1453, 32
  %v1456 = vpop.permute.xlu0 %1455
  %v1458 = vsel %vm270, %v1456, 0
  %1460 = vmatprep.subr.bf16.mxu0 0
  %1461 = vmatpush1.bf16.msra.mxu0 0
  %1462 = vmatprep.subr.bf16.mxu0 0
  %1463 = vmatpush1.bf16.msra.mxu0 0
  %1464 = vmatprep.subr.bf16.mxu0 0
  %1465 = vmatpush1.bf16.msra.mxu0 0
  %1466 = vmatprep.subr.bf16.mxu0 0
  %1467 = vmatpush1.bf16.msra.mxu0 0
  %1468 = vmatprep.subr.bf16.mxu0 0
  %1469 = vmatpush1.bf16.msra.mxu0 0
  %1470 = vmatprep.subr.bf16.mxu0 0
  %1471 = vmatpush1.bf16.msra.mxu0 0
  %1472 = vmatprep.subr.bf16.mxu0 0
  %1473 = vmatpush1.bf16.msra.mxu0 %v267
  %1474 = vmatprep.subr.bf16.mxu0 0
  %1475 = vmatpush1.bf16.msra.mxu0 %v266
  %1476 = vmatprep.subr.bf16.mxu0 0
  %1477 = vmatpush2.bf16.msra.mxu0 0
  %1478 = vmatprep.subr.bf16.mxu0 0
  %1479 = vmatpush2.bf16.msra.mxu0 0
  %1480 = vmatprep.subr.bf16.mxu0 0
  %1481 = vmatpush2.bf16.msra.mxu0 0
  %1482 = vmatprep.subr.bf16.mxu0 0
  %1483 = vmatpush2.bf16.msra.mxu0 0
  %1484 = vmatprep.subr.bf16.mxu0 0
  %1485 = vmatpush2.bf16.msra.mxu0 0
  %1486 = vmatprep.subr.bf16.mxu0 0
  %1487 = vmatpush2.bf16.msra.mxu0 0
  %1488 = vmatprep.subr.bf16.mxu0 0
  %1489 = vmatpush2.bf16.msra.mxu0 0
  %1490 = vmatprep.subr.bf16.mxu0 0
  %1491 = vmatpush2.bf16.msra.mxu0 0
  %1492 = vmatprep.mubr.bf16.mxu0 0
  %1493 = vmatmul.mubr.bf16.gmra.mxu0 %v1458
  %v1494 = vpop.f32.mrf.mxu0
  %v1495 = vadd.f32 0.0, %v1494
  %v1496 = vpop.f32.mrf.mxu0
  %v1497 = vpop.f32.mrf.mxu0
  %v1498 = vpop.f32.mrf.mxu0
  %1499 = vdwg.mxu0
  %v1500 = vadd.f32 %v1452, %v1495
  %v1501 = vxor.u32 %v1500, 2147483648
  %v1502 = vmul.f32 %v1501, 1.442695
  %v1503 = vpow.pop %v1502
  %v1504 = vadd.f32 %v1503, 1.0
  %v1505 = vrcp.pop %v1504
  %v1506 = vmul.f32 1.0, %v1505
  %v1507 = vmul.f32 %v1506, 2.0
  %v1508 = vsub.f32 %v1507, 1.0
  %v1509 = vmul.f32 %v1506, %v1440
  %1511 = vrot.lane.b32.xlu0 %v1508, 64
  %v1512 = vpop.permute.xlu0 %1511
  %v1514 = vmul.f32 %v1506, %v1512
  %1516 = vrot.lane.b32.xlu0 %v1514, 32
  %v1517 = vpop.permute.xlu0 %1516
  %v1519 = vadd.f32 %v1509, %v1517
  %v1520 = vtanh.pop %v1519
  %1522 = vrot.lane.b32.xlu0 %v1520, 64
  %v1523 = vpop.permute.xlu0 %1522
  %v1525 = vmul.f32 %v1506, %v1523
  %1527 = vrot.lane.b32.xlu0 %v1525, 32
  %v1528 = vpop.permute.xlu0 %1527
  %1530 = vst.msk [vmem:[#allocation3 + $0x3c] sm:$0xf] %vm344, %v1528
  %v1531 = vld [vmem:[#allocation2 + $0x40] sm:$0xf]
  %v1532 = vpack.c.bf16 %v1525, %v1525
  %1534 = vrot.lane.b32.xlu0 %v1532, 32
  %v1535 = vpop.permute.xlu0 %1534
  %v1537 = vsel %vm270, %v1535, 0
  %1539 = vmatprep.subr.bf16.mxu0 0
  %1540 = vmatpush1.bf16.msra.mxu0 0
  %1541 = vmatprep.subr.bf16.mxu0 0
  %1542 = vmatpush1.bf16.msra.mxu0 0
  %1543 = vmatprep.subr.bf16.mxu0 0
  %1544 = vmatpush1.bf16.msra.mxu0 0
  %1545 = vmatprep.subr.bf16.mxu0 0
  %1546 = vmatpush1.bf16.msra.mxu0 0
  %1547 = vmatprep.subr.bf16.mxu0 0
  %1548 = vmatpush1.bf16.msra.mxu0 0
  %1549 = vmatprep.subr.bf16.mxu0 0
  %1550 = vmatpush1.bf16.msra.mxu0 0
  %1551 = vmatprep.subr.bf16.mxu0 0
  %1552 = vmatpush1.bf16.msra.mxu0 %v267
  %1553 = vmatprep.subr.bf16.mxu0 0
  %1554 = vmatpush1.bf16.msra.mxu0 %v266
  %1555 = vmatprep.subr.bf16.mxu0 0
  %1556 = vmatpush2.bf16.msra.mxu0 0
  %1557 = vmatprep.subr.bf16.mxu0 0
  %1558 = vmatpush2.bf16.msra.mxu0 0
  %1559 = vmatprep.subr.bf16.mxu0 0
  %1560 = vmatpush2.bf16.msra.mxu0 0
  %1561 = vmatprep.subr.bf16.mxu0 0
  %1562 = vmatpush2.bf16.msra.mxu0 0
  %1563 = vmatprep.subr.bf16.mxu0 0
  %1564 = vmatpush2.bf16.msra.mxu0 0
  %1565 = vmatprep.subr.bf16.mxu0 0
  %1566 = vmatpush2.bf16.msra.mxu0 0
  %1567 = vmatprep.subr.bf16.mxu0 0
  %1568 = vmatpush2.bf16.msra.mxu0 0
  %1569 = vmatprep.subr.bf16.mxu0 0
  %1570 = vmatpush2.bf16.msra.mxu0 0
  %1571 = vmatprep.mubr.bf16.mxu0 0
  %1572 = vmatmul.mubr.bf16.gmra.mxu0 %v1537
  %v1573 = vpop.f32.mrf.mxu0
  %v1574 = vadd.f32 0.0, %v1573
  %v1575 = vpop.f32.mrf.mxu0
  %v1576 = vpop.f32.mrf.mxu0
  %v1577 = vpop.f32.mrf.mxu0
  %1578 = vdwg.mxu0
  %v1579 = vadd.f32 %v1531, %v1574
  %v1580 = vxor.u32 %v1579, 2147483648
  %v1581 = vmul.f32 %v1580, 1.442695
  %v1582 = vpow.pop %v1581
  %v1583 = vadd.f32 %v1582, 1.0
  %v1584 = vrcp.pop %v1583
  %v1585 = vmul.f32 1.0, %v1584
  %v1586 = vmul.f32 %v1585, 2.0
  %v1587 = vsub.f32 %v1586, 1.0
  %v1588 = vmul.f32 %v1585, %v1519
  %1590 = vrot.lane.b32.xlu0 %v1587, 64
  %v1591 = vpop.permute.xlu0 %1590
  %v1593 = vmul.f32 %v1585, %v1591
  %1595 = vrot.lane.b32.xlu0 %v1593, 32
  %v1596 = vpop.permute.xlu0 %1595
  %v1598 = vadd.f32 %v1588, %v1596
  %v1599 = vtanh.pop %v1598
  %1601 = vrot.lane.b32.xlu0 %v1599, 64
  %v1602 = vpop.permute.xlu0 %1601
  %v1604 = vmul.f32 %v1585, %v1602
  %1606 = vrot.lane.b32.xlu0 %v1604, 32
  %v1607 = vpop.permute.xlu0 %1606
  %1609 = vst.msk [vmem:[#allocation3 + $0x40] sm:$0xf] %vm344, %v1607
  %v1610 = vld [vmem:[#allocation2 + $0x44] sm:$0xf]
  %v1611 = vpack.c.bf16 %v1604, %v1604
  %1613 = vrot.lane.b32.xlu0 %v1611, 32
  %v1614 = vpop.permute.xlu0 %1613
  %v1616 = vsel %vm270, %v1614, 0
  %1618 = vmatprep.subr.bf16.mxu0 0
  %1619 = vmatpush1.bf16.msra.mxu0 0
  %1620 = vmatprep.subr.bf16.mxu0 0
  %1621 = vmatpush1.bf16.msra.mxu0 0
  %1622 = vmatprep.subr.bf16.mxu0 0
  %1623 = vmatpush1.bf16.msra.mxu0 0
  %1624 = vmatprep.subr.bf16.mxu0 0
  %1625 = vmatpush1.bf16.msra.mxu0 0
  %1626 = vmatprep.subr.bf16.mxu0 0
  %1627 = vmatpush1.bf16.msra.mxu0 0
  %1628 = vmatprep.subr.bf16.mxu0 0
  %1629 = vmatpush1.bf16.msra.mxu0 0
  %1630 = vmatprep.subr.bf16.mxu0 0
  %1631 = vmatpush1.bf16.msra.mxu0 %v267
  %1632 = vmatprep.subr.bf16.mxu0 0
  %1633 = vmatpush1.bf16.msra.mxu0 %v266
  %1634 = vmatprep.subr.bf16.mxu0 0
  %1635 = vmatpush2.bf16.msra.mxu0 0
  %1636 = vmatprep.subr.bf16.mxu0 0
  %1637 = vmatpush2.bf16.msra.mxu0 0
  %1638 = vmatprep.subr.bf16.mxu0 0
  %1639 = vmatpush2.bf16.msra.mxu0 0
  %1640 = vmatprep.subr.bf16.mxu0 0
  %1641 = vmatpush2.bf16.msra.mxu0 0
  %1642 = vmatprep.subr.bf16.mxu0 0
  %1643 = vmatpush2.bf16.msra.mxu0 0
  %1644 = vmatprep.subr.bf16.mxu0 0
  %1645 = vmatpush2.bf16.msra.mxu0 0
  %1646 = vmatprep.subr.bf16.mxu0 0
  %1647 = vmatpush2.bf16.msra.mxu0 0
  %1648 = vmatprep.subr.bf16.mxu0 0
  %1649 = vmatpush2.bf16.msra.mxu0 0
  %1650 = vmatprep.mubr.bf16.mxu0 0
  %1651 = vmatmul.mubr.bf16.gmra.mxu0 %v1616
  %v1652 = vpop.f32.mrf.mxu0
  %v1653 = vadd.f32 0.0, %v1652
  %v1654 = vpop.f32.mrf.mxu0
  %v1655 = vpop.f32.mrf.mxu0
  %v1656 = vpop.f32.mrf.mxu0
  %1657 = vdwg.mxu0
  %v1658 = vadd.f32 %v1610, %v1653
  %v1659 = vxor.u32 %v1658, 2147483648
  %v1660 = vmul.f32 %v1659, 1.442695
  %v1661 = vpow.pop %v1660
  %v1662 = vadd.f32 %v1661, 1.0
  %v1663 = vrcp.pop %v1662
  %v1664 = vmul.f32 1.0, %v1663
  %v1665 = vmul.f32 %v1664, 2.0
  %v1666 = vsub.f32 %v1665, 1.0
  %v1667 = vmul.f32 %v1664, %v1598
  %1669 = vrot.lane.b32.xlu0 %v1666, 64
  %v1670 = vpop.permute.xlu0 %1669
  %v1672 = vmul.f32 %v1664, %v1670
  %1674 = vrot.lane.b32.xlu0 %v1672, 32
  %v1675 = vpop.permute.xlu0 %1674
  %v1677 = vadd.f32 %v1667, %v1675
  %v1678 = vtanh.pop %v1677
  %1680 = vrot.lane.b32.xlu0 %v1678, 64
  %v1681 = vpop.permute.xlu0 %1680
  %v1683 = vmul.f32 %v1664, %v1681
  %1685 = vrot.lane.b32.xlu0 %v1683, 32
  %v1686 = vpop.permute.xlu0 %1685
  %1688 = vst.msk [vmem:[#allocation3 + $0x44] sm:$0xf] %vm344, %v1686
  %v1689 = vld [vmem:[#allocation2 + $0x48] sm:$0xf]
  %v1690 = vpack.c.bf16 %v1683, %v1683
  %1692 = vrot.lane.b32.xlu0 %v1690, 32
  %v1693 = vpop.permute.xlu0 %1692
  %v1695 = vsel %vm270, %v1693, 0
  %1697 = vmatprep.subr.bf16.mxu0 0
  %1698 = vmatpush1.bf16.msra.mxu0 0
  %1699 = vmatprep.subr.bf16.mxu0 0
  %1700 = vmatpush1.bf16.msra.mxu0 0
  %1701 = vmatprep.subr.bf16.mxu0 0
  %1702 = vmatpush1.bf16.msra.mxu0 0
  %1703 = vmatprep.subr.bf16.mxu0 0
  %1704 = vmatpush1.bf16.msra.mxu0 0
  %1705 = vmatprep.subr.bf16.mxu0 0
  %1706 = vmatpush1.bf16.msra.mxu0 0
  %1707 = vmatprep.subr.bf16.mxu0 0
  %1708 = vmatpush1.bf16.msra.mxu0 0
  %1709 = vmatprep.subr.bf16.mxu0 0
  %1710 = vmatpush1.bf16.msra.mxu0 %v267
  %1711 = vmatprep.subr.bf16.mxu0 0
  %1712 = vmatpush1.bf16.msra.mxu0 %v266
  %1713 = vmatprep.subr.bf16.mxu0 0
  %1714 = vmatpush2.bf16.msra.mxu0 0
  %1715 = vmatprep.subr.bf16.mxu0 0
  %1716 = vmatpush2.bf16.msra.mxu0 0
  %1717 = vmatprep.subr.bf16.mxu0 0
  %1718 = vmatpush2.bf16.msra.mxu0 0
  %1719 = vmatprep.subr.bf16.mxu0 0
  %1720 = vmatpush2.bf16.msra.mxu0 0
  %1721 = vmatprep.subr.bf16.mxu0 0
  %1722 = vmatpush2.bf16.msra.mxu0 0
  %1723 = vmatprep.subr.bf16.mxu0 0
  %1724 = vmatpush2.bf16.msra.mxu0 0
  %1725 = vmatprep.subr.bf16.mxu0 0
  %1726 = vmatpush2.bf16.msra.mxu0 0
  %1727 = vmatprep.subr.bf16.mxu0 0
  %1728 = vmatpush2.bf16.msra.mxu0 0
  %1729 = vmatprep.mubr.bf16.mxu0 0
  %1730 = vmatmul.mubr.bf16.gmra.mxu0 %v1695
  %v1731 = vpop.f32.mrf.mxu0
  %v1732 = vadd.f32 0.0, %v1731
  %v1733 = vpop.f32.mrf.mxu0
  %v1734 = vpop.f32.mrf.mxu0
  %v1735 = vpop.f32.mrf.mxu0
  %1736 = vdwg.mxu0
  %v1737 = vadd.f32 %v1689, %v1732
  %v1738 = vxor.u32 %v1737, 2147483648
  %v1739 = vmul.f32 %v1738, 1.442695
  %v1740 = vpow.pop %v1739
  %v1741 = vadd.f32 %v1740, 1.0
  %v1742 = vrcp.pop %v1741
  %v1743 = vmul.f32 1.0, %v1742
  %v1744 = vmul.f32 %v1743, 2.0
  %v1745 = vsub.f32 %v1744, 1.0
  %v1746 = vmul.f32 %v1743, %v1677
  %1748 = vrot.lane.b32.xlu0 %v1745, 64
  %v1749 = vpop.permute.xlu0 %1748
  %v1751 = vmul.f32 %v1743, %v1749
  %1753 = vrot.lane.b32.xlu0 %v1751, 32
  %v1754 = vpop.permute.xlu0 %1753
  %v1756 = vadd.f32 %v1746, %v1754
  %v1757 = vtanh.pop %v1756
  %1759 = vrot.lane.b32.xlu0 %v1757, 64
  %v1760 = vpop.permute.xlu0 %1759
  %v1762 = vmul.f32 %v1743, %v1760
  %1764 = vrot.lane.b32.xlu0 %v1762, 32
  %v1765 = vpop.permute.xlu0 %1764
  %1767 = vst.msk [vmem:[#allocation3 + $0x48] sm:$0xf] %vm344, %v1765
  %v1768 = vld [vmem:[#allocation2 + $0x4c] sm:$0xf]
  %v1769 = vpack.c.bf16 %v1762, %v1762
  %1771 = vrot.lane.b32.xlu0 %v1769, 32
  %v1772 = vpop.permute.xlu0 %1771
  %v1774 = vsel %vm270, %v1772, 0
  %1776 = vmatprep.subr.bf16.mxu0 0
  %1777 = vmatpush1.bf16.msra.mxu0 0
  %1778 = vmatprep.subr.bf16.mxu0 0
  %1779 = vmatpush1.bf16.msra.mxu0 0
  %1780 = vmatprep.subr.bf16.mxu0 0
  %1781 = vmatpush1.bf16.msra.mxu0 0
  %1782 = vmatprep.subr.bf16.mxu0 0
  %1783 = vmatpush1.bf16.msra.mxu0 0
  %1784 = vmatprep.subr.bf16.mxu0 0
  %1785 = vmatpush1.bf16.msra.mxu0 0
  %1786 = vmatprep.subr.bf16.mxu0 0
  %1787 = vmatpush1.bf16.msra.mxu0 0
  %1788 = vmatprep.subr.bf16.mxu0 0
  %1789 = vmatpush1.bf16.msra.mxu0 %v267
  %1790 = vmatprep.subr.bf16.mxu0 0
  %1791 = vmatpush1.bf16.msra.mxu0 %v266
  %1792 = vmatprep.subr.bf16.mxu0 0
  %1793 = vmatpush2.bf16.msra.mxu0 0
  %1794 = vmatprep.subr.bf16.mxu0 0
  %1795 = vmatpush2.bf16.msra.mxu0 0
  %1796 = vmatprep.subr.bf16.mxu0 0
  %1797 = vmatpush2.bf16.msra.mxu0 0
  %1798 = vmatprep.subr.bf16.mxu0 0
  %1799 = vmatpush2.bf16.msra.mxu0 0
  %1800 = vmatprep.subr.bf16.mxu0 0
  %1801 = vmatpush2.bf16.msra.mxu0 0
  %1802 = vmatprep.subr.bf16.mxu0 0
  %1803 = vmatpush2.bf16.msra.mxu0 0
  %1804 = vmatprep.subr.bf16.mxu0 0
  %1805 = vmatpush2.bf16.msra.mxu0 0
  %1806 = vmatprep.subr.bf16.mxu0 0
  %1807 = vmatpush2.bf16.msra.mxu0 0
  %1808 = vmatprep.mubr.bf16.mxu0 0
  %1809 = vmatmul.mubr.bf16.gmra.mxu0 %v1774
  %v1810 = vpop.f32.mrf.mxu0
  %v1811 = vadd.f32 0.0, %v1810
  %v1812 = vpop.f32.mrf.mxu0
  %v1813 = vpop.f32.mrf.mxu0
  %v1814 = vpop.f32.mrf.mxu0
  %1815 = vdwg.mxu0
  %v1816 = vadd.f32 %v1768, %v1811
  %v1817 = vxor.u32 %v1816, 2147483648
  %v1818 = vmul.f32 %v1817, 1.442695
  %v1819 = vpow.pop %v1818
  %v1820 = vadd.f32 %v1819, 1.0
  %v1821 = vrcp.pop %v1820
  %v1822 = vmul.f32 1.0, %v1821
  %v1823 = vmul.f32 %v1822, 2.0
  %v1824 = vsub.f32 %v1823, 1.0
  %v1825 = vmul.f32 %v1822, %v1756
  %1827 = vrot.lane.b32.xlu0 %v1824, 64
  %v1828 = vpop.permute.xlu0 %1827
  %v1830 = vmul.f32 %v1822, %v1828
  %1832 = vrot.lane.b32.xlu0 %v1830, 32
  %v1833 = vpop.permute.xlu0 %1832
  %v1835 = vadd.f32 %v1825, %v1833
  %v1836 = vtanh.pop %v1835
  %1838 = vrot.lane.b32.xlu0 %v1836, 64
  %v1839 = vpop.permute.xlu0 %1838
  %v1841 = vmul.f32 %v1822, %v1839
  %1843 = vrot.lane.b32.xlu0 %v1841, 32
  %v1844 = vpop.permute.xlu0 %1843
  %1846 = vst.msk [vmem:[#allocation3 + $0x4c] sm:$0xf] %vm344, %v1844
  %v1847 = vld [vmem:[#allocation2 + $0x50] sm:$0xf]
  %v1848 = vpack.c.bf16 %v1841, %v1841
  %1850 = vrot.lane.b32.xlu0 %v1848, 32
  %v1851 = vpop.permute.xlu0 %1850
  %v1853 = vsel %vm270, %v1851, 0
  %1855 = vmatprep.subr.bf16.mxu0 0
  %1856 = vmatpush1.bf16.msra.mxu0 0
  %1857 = vmatprep.subr.bf16.mxu0 0
  %1858 = vmatpush1.bf16.msra.mxu0 0
  %1859 = vmatprep.subr.bf16.mxu0 0
  %1860 = vmatpush1.bf16.msra.mxu0 0
  %1861 = vmatprep.subr.bf16.mxu0 0
  %1862 = vmatpush1.bf16.msra.mxu0 0
  %1863 = vmatprep.subr.bf16.mxu0 0
  %1864 = vmatpush1.bf16.msra.mxu0 0
  %1865 = vmatprep.subr.bf16.mxu0 0
  %1866 = vmatpush1.bf16.msra.mxu0 0
  %1867 = vmatprep.subr.bf16.mxu0 0
  %1868 = vmatpush1.bf16.msra.mxu0 %v267
  %1869 = vmatprep.subr.bf16.mxu0 0
  %1870 = vmatpush1.bf16.msra.mxu0 %v266
  %1871 = vmatprep.subr.bf16.mxu0 0
  %1872 = vmatpush2.bf16.msra.mxu0 0
  %1873 = vmatprep.subr.bf16.mxu0 0
  %1874 = vmatpush2.bf16.msra.mxu0 0
  %1875 = vmatprep.subr.bf16.mxu0 0
  %1876 = vmatpush2.bf16.msra.mxu0 0
  %1877 = vmatprep.subr.bf16.mxu0 0
  %1878 = vmatpush2.bf16.msra.mxu0 0
  %1879 = vmatprep.subr.bf16.mxu0 0
  %1880 = vmatpush2.bf16.msra.mxu0 0
  %1881 = vmatprep.subr.bf16.mxu0 0
  %1882 = vmatpush2.bf16.msra.mxu0 0
  %1883 = vmatprep.subr.bf16.mxu0 0
  %1884 = vmatpush2.bf16.msra.mxu0 0
  %1885 = vmatprep.subr.bf16.mxu0 0
  %1886 = vmatpush2.bf16.msra.mxu0 0
  %1887 = vmatprep.mubr.bf16.mxu0 0
  %1888 = vmatmul.mubr.bf16.gmra.mxu0 %v1853
  %v1889 = vpop.f32.mrf.mxu0
  %v1890 = vadd.f32 0.0, %v1889
  %v1891 = vpop.f32.mrf.mxu0
  %v1892 = vpop.f32.mrf.mxu0
  %v1893 = vpop.f32.mrf.mxu0
  %1894 = vdwg.mxu0
  %v1895 = vadd.f32 %v1847, %v1890
  %v1896 = vxor.u32 %v1895, 2147483648
  %v1897 = vmul.f32 %v1896, 1.442695
  %v1898 = vpow.pop %v1897
  %v1899 = vadd.f32 %v1898, 1.0
  %v1900 = vrcp.pop %v1899
  %v1901 = vmul.f32 1.0, %v1900
  %v1902 = vmul.f32 %v1901, 2.0
  %v1903 = vsub.f32 %v1902, 1.0
  %v1904 = vmul.f32 %v1901, %v1835
  %1906 = vrot.lane.b32.xlu0 %v1903, 64
  %v1907 = vpop.permute.xlu0 %1906
  %v1909 = vmul.f32 %v1901, %v1907
  %1911 = vrot.lane.b32.xlu0 %v1909, 32
  %v1912 = vpop.permute.xlu0 %1911
  %v1914 = vadd.f32 %v1904, %v1912
  %v1915 = vtanh.pop %v1914
  %1917 = vrot.lane.b32.xlu0 %v1915, 64
  %v1918 = vpop.permute.xlu0 %1917
  %v1920 = vmul.f32 %v1901, %v1918
  %1922 = vrot.lane.b32.xlu0 %v1920, 32
  %v1923 = vpop.permute.xlu0 %1922
  %1925 = vst.msk [vmem:[#allocation3 + $0x50] sm:$0xf] %vm344, %v1923
  %v1926 = vld [vmem:[#allocation2 + $0x54] sm:$0xf]
  %v1927 = vpack.c.bf16 %v1920, %v1920
  %1929 = vrot.lane.b32.xlu0 %v1927, 32
  %v1930 = vpop.permute.xlu0 %1929
  %v1932 = vsel %vm270, %v1930, 0
  %1934 = vmatprep.subr.bf16.mxu0 0
  %1935 = vmatpush1.bf16.msra.mxu0 0
  %1936 = vmatprep.subr.bf16.mxu0 0
  %1937 = vmatpush1.bf16.msra.mxu0 0
  %1938 = vmatprep.subr.bf16.mxu0 0
  %1939 = vmatpush1.bf16.msra.mxu0 0
  %1940 = vmatprep.subr.bf16.mxu0 0
  %1941 = vmatpush1.bf16.msra.mxu0 0
  %1942 = vmatprep.subr.bf16.mxu0 0
  %1943 = vmatpush1.bf16.msra.mxu0 0
  %1944 = vmatprep.subr.bf16.mxu0 0
  %1945 = vmatpush1.bf16.msra.mxu0 0
  %1946 = vmatprep.subr.bf16.mxu0 0
  %1947 = vmatpush1.bf16.msra.mxu0 %v267
  %1948 = vmatprep.subr.bf16.mxu0 0
  %1949 = vmatpush1.bf16.msra.mxu0 %v266
  %1950 = vmatprep.subr.bf16.mxu0 0
  %1951 = vmatpush2.bf16.msra.mxu0 0
  %1952 = vmatprep.subr.bf16.mxu0 0
  %1953 = vmatpush2.bf16.msra.mxu0 0
  %1954 = vmatprep.subr.bf16.mxu0 0
  %1955 = vmatpush2.bf16.msra.mxu0 0
  %1956 = vmatprep.subr.bf16.mxu0 0
  %1957 = vmatpush2.bf16.msra.mxu0 0
  %1958 = vmatprep.subr.bf16.mxu0 0
  %1959 = vmatpush2.bf16.msra.mxu0 0
  %1960 = vmatprep.subr.bf16.mxu0 0
  %1961 = vmatpush2.bf16.msra.mxu0 0
  %1962 = vmatprep.subr.bf16.mxu0 0
  %1963 = vmatpush2.bf16.msra.mxu0 0
  %1964 = vmatprep.subr.bf16.mxu0 0
  %1965 = vmatpush2.bf16.msra.mxu0 0
  %1966 = vmatprep.mubr.bf16.mxu0 0
  %1967 = vmatmul.mubr.bf16.gmra.mxu0 %v1932
  %v1968 = vpop.f32.mrf.mxu0
  %v1969 = vadd.f32 0.0, %v1968
  %v1970 = vpop.f32.mrf.mxu0
  %v1971 = vpop.f32.mrf.mxu0
  %v1972 = vpop.f32.mrf.mxu0
  %1973 = vdwg.mxu0
  %v1974 = vadd.f32 %v1926, %v1969
  %v1975 = vxor.u32 %v1974, 2147483648
  %v1976 = vmul.f32 %v1975, 1.442695
  %v1977 = vpow.pop %v1976
  %v1978 = vadd.f32 %v1977, 1.0
  %v1979 = vrcp.pop %v1978
  %v1980 = vmul.f32 1.0, %v1979
  %v1981 = vmul.f32 %v1980, 2.0
  %v1982 = vsub.f32 %v1981, 1.0
  %v1983 = vmul.f32 %v1980, %v1914
  %1985 = vrot.lane.b32.xlu0 %v1982, 64
  %v1986 = vpop.permute.xlu0 %1985
  %v1988 = vmul.f32 %v1980, %v1986
  %1990 = vrot.lane.b32.xlu0 %v1988, 32
  %v1991 = vpop.permute.xlu0 %1990
  %v1993 = vadd.f32 %v1983, %v1991
  %v1994 = vtanh.pop %v1993
  %1996 = vrot.lane.b32.xlu0 %v1994, 64
  %v1997 = vpop.permute.xlu0 %1996
  %v1999 = vmul.f32 %v1980, %v1997
  %2001 = vrot.lane.b32.xlu0 %v1999, 32
  %v2002 = vpop.permute.xlu0 %2001
  %2004 = vst.msk [vmem:[#allocation3 + $0x54] sm:$0xf] %vm344, %v2002
  %v2005 = vld [vmem:[#allocation2 + $0x58] sm:$0xf]
  %v2006 = vpack.c.bf16 %v1999, %v1999
  %2008 = vrot.lane.b32.xlu0 %v2006, 32
  %v2009 = vpop.permute.xlu0 %2008
  %v2011 = vsel %vm270, %v2009, 0
  %2013 = vmatprep.subr.bf16.mxu0 0
  %2014 = vmatpush1.bf16.msra.mxu0 0
  %2015 = vmatprep.subr.bf16.mxu0 0
  %2016 = vmatpush1.bf16.msra.mxu0 0
  %2017 = vmatprep.subr.bf16.mxu0 0
  %2018 = vmatpush1.bf16.msra.mxu0 0
  %2019 = vmatprep.subr.bf16.mxu0 0
  %2020 = vmatpush1.bf16.msra.mxu0 0
  %2021 = vmatprep.subr.bf16.mxu0 0
  %2022 = vmatpush1.bf16.msra.mxu0 0
  %2023 = vmatprep.subr.bf16.mxu0 0
  %2024 = vmatpush1.bf16.msra.mxu0 0
  %2025 = vmatprep.subr.bf16.mxu0 0
  %2026 = vmatpush1.bf16.msra.mxu0 %v267
  %2027 = vmatprep.subr.bf16.mxu0 0
  %2028 = vmatpush1.bf16.msra.mxu0 %v266
  %2029 = vmatprep.subr.bf16.mxu0 0
  %2030 = vmatpush2.bf16.msra.mxu0 0
  %2031 = vmatprep.subr.bf16.mxu0 0
  %2032 = vmatpush2.bf16.msra.mxu0 0
  %2033 = vmatprep.subr.bf16.mxu0 0
  %2034 = vmatpush2.bf16.msra.mxu0 0
  %2035 = vmatprep.subr.bf16.mxu0 0
  %2036 = vmatpush2.bf16.msra.mxu0 0
  %2037 = vmatprep.subr.bf16.mxu0 0
  %2038 = vmatpush2.bf16.msra.mxu0 0
  %2039 = vmatprep.subr.bf16.mxu0 0
  %2040 = vmatpush2.bf16.msra.mxu0 0
  %2041 = vmatprep.subr.bf16.mxu0 0
  %2042 = vmatpush2.bf16.msra.mxu0 0
  %2043 = vmatprep.subr.bf16.mxu0 0
  %2044 = vmatpush2.bf16.msra.mxu0 0
  %2045 = vmatprep.mubr.bf16.mxu0 0
  %2046 = vmatmul.mubr.bf16.gmra.mxu0 %v2011
  %v2047 = vpop.f32.mrf.mxu0
  %v2048 = vadd.f32 0.0, %v2047
  %v2049 = vpop.f32.mrf.mxu0
  %v2050 = vpop.f32.mrf.mxu0
  %v2051 = vpop.f32.mrf.mxu0
  %2052 = vdwg.mxu0
  %v2053 = vadd.f32 %v2005, %v2048
  %v2054 = vxor.u32 %v2053, 2147483648
  %v2055 = vmul.f32 %v2054, 1.442695
  %v2056 = vpow.pop %v2055
  %v2057 = vadd.f32 %v2056, 1.0
  %v2058 = vrcp.pop %v2057
  %v2059 = vmul.f32 1.0, %v2058
  %v2060 = vmul.f32 %v2059, 2.0
  %v2061 = vsub.f32 %v2060, 1.0
  %v2062 = vmul.f32 %v2059, %v1993
  %2064 = vrot.lane.b32.xlu0 %v2061, 64
  %v2065 = vpop.permute.xlu0 %2064
  %v2067 = vmul.f32 %v2059, %v2065
  %2069 = vrot.lane.b32.xlu0 %v2067, 32
  %v2070 = vpop.permute.xlu0 %2069
  %v2072 = vadd.f32 %v2062, %v2070
  %v2073 = vtanh.pop %v2072
  %2075 = vrot.lane.b32.xlu0 %v2073, 64
  %v2076 = vpop.permute.xlu0 %2075
  %v2078 = vmul.f32 %v2059, %v2076
  %2080 = vrot.lane.b32.xlu0 %v2078, 32
  %v2081 = vpop.permute.xlu0 %2080
  %2083 = vst.msk [vmem:[#allocation3 + $0x58] sm:$0xf] %vm344, %v2081
  %v2084 = vld [vmem:[#allocation2 + $0x5c] sm:$0xf]
  %v2085 = vpack.c.bf16 %v2078, %v2078
  %2087 = vrot.lane.b32.xlu0 %v2085, 32
  %v2088 = vpop.permute.xlu0 %2087
  %v2090 = vsel %vm270, %v2088, 0
  %2092 = vmatprep.subr.bf16.mxu0 0
  %2093 = vmatpush1.bf16.msra.mxu0 0
  %2094 = vmatprep.subr.bf16.mxu0 0
  %2095 = vmatpush1.bf16.msra.mxu0 0
  %2096 = vmatprep.subr.bf16.mxu0 0
  %2097 = vmatpush1.bf16.msra.mxu0 0
  %2098 = vmatprep.subr.bf16.mxu0 0
  %2099 = vmatpush1.bf16.msra.mxu0 0
  %2100 = vmatprep.subr.bf16.mxu0 0
  %2101 = vmatpush1.bf16.msra.mxu0 0
  %2102 = vmatprep.subr.bf16.mxu0 0
  %2103 = vmatpush1.bf16.msra.mxu0 0
  %2104 = vmatprep.subr.bf16.mxu0 0
  %2105 = vmatpush1.bf16.msra.mxu0 %v267
  %2106 = vmatprep.subr.bf16.mxu0 0
  %2107 = vmatpush1.bf16.msra.mxu0 %v266
  %2108 = vmatprep.subr.bf16.mxu0 0
  %2109 = vmatpush2.bf16.msra.mxu0 0
  %2110 = vmatprep.subr.bf16.mxu0 0
  %2111 = vmatpush2.bf16.msra.mxu0 0
  %2112 = vmatprep.subr.bf16.mxu0 0
  %2113 = vmatpush2.bf16.msra.mxu0 0
  %2114 = vmatprep.subr.bf16.mxu0 0
  %2115 = vmatpush2.bf16.msra.mxu0 0
  %2116 = vmatprep.subr.bf16.mxu0 0
  %2117 = vmatpush2.bf16.msra.mxu0 0
  %2118 = vmatprep.subr.bf16.mxu0 0
  %2119 = vmatpush2.bf16.msra.mxu0 0
  %2120 = vmatprep.subr.bf16.mxu0 0
  %2121 = vmatpush2.bf16.msra.mxu0 0
  %2122 = vmatprep.subr.bf16.mxu0 0
  %2123 = vmatpush2.bf16.msra.mxu0 0
  %2124 = vmatprep.mubr.bf16.mxu0 0
  %2125 = vmatmul.mubr.bf16.gmra.mxu0 %v2090
  %v2126 = vpop.f32.mrf.mxu0
  %v2127 = vadd.f32 0.0, %v2126
  %v2128 = vpop.f32.mrf.mxu0
  %v2129 = vpop.f32.mrf.mxu0
  %v2130 = vpop.f32.mrf.mxu0
  %2131 = vdwg.mxu0
  %v2132 = vadd.f32 %v2084, %v2127
  %v2133 = vxor.u32 %v2132, 2147483648
  %v2134 = vmul.f32 %v2133, 1.442695
  %v2135 = vpow.pop %v2134
  %v2136 = vadd.f32 %v2135, 1.0
  %v2137 = vrcp.pop %v2136
  %v2138 = vmul.f32 1.0, %v2137
  %v2139 = vmul.f32 %v2138, 2.0
  %v2140 = vsub.f32 %v2139, 1.0
  %v2141 = vmul.f32 %v2138, %v2072
  %2143 = vrot.lane.b32.xlu0 %v2140, 64
  %v2144 = vpop.permute.xlu0 %2143
  %v2146 = vmul.f32 %v2138, %v2144
  %2148 = vrot.lane.b32.xlu0 %v2146, 32
  %v2149 = vpop.permute.xlu0 %2148
  %v2151 = vadd.f32 %v2141, %v2149
  %v2152 = vtanh.pop %v2151
  %2154 = vrot.lane.b32.xlu0 %v2152, 64
  %v2155 = vpop.permute.xlu0 %2154
  %v2157 = vmul.f32 %v2138, %v2155
  %2159 = vrot.lane.b32.xlu0 %v2157, 32
  %v2160 = vpop.permute.xlu0 %2159
  %2162 = vst.msk [vmem:[#allocation3 + $0x5c] sm:$0xf] %vm344, %v2160
  %v2163 = vld [vmem:[#allocation2 + $0x60] sm:$0xf]
  %v2164 = vpack.c.bf16 %v2157, %v2157
  %2166 = vrot.lane.b32.xlu0 %v2164, 32
  %v2167 = vpop.permute.xlu0 %2166
  %v2169 = vsel %vm270, %v2167, 0
  %2171 = vmatprep.subr.bf16.mxu0 0
  %2172 = vmatpush1.bf16.msra.mxu0 0
  %2173 = vmatprep.subr.bf16.mxu0 0
  %2174 = vmatpush1.bf16.msra.mxu0 0
  %2175 = vmatprep.subr.bf16.mxu0 0
  %2176 = vmatpush1.bf16.msra.mxu0 0
  %2177 = vmatprep.subr.bf16.mxu0 0
  %2178 = vmatpush1.bf16.msra.mxu0 0
  %2179 = vmatprep.subr.bf16.mxu0 0
  %2180 = vmatpush1.bf16.msra.mxu0 0
  %2181 = vmatprep.subr.bf16.mxu0 0
  %2182 = vmatpush1.bf16.msra.mxu0 0
  %2183 = vmatprep.subr.bf16.mxu0 0
  %2184 = vmatpush1.bf16.msra.mxu0 %v267
  %2185 = vmatprep.subr.bf16.mxu0 0
  %2186 = vmatpush1.bf16.msra.mxu0 %v266
  %2187 = vmatprep.subr.bf16.mxu0 0
  %2188 = vmatpush2.bf16.msra.mxu0 0
  %2189 = vmatprep.subr.bf16.mxu0 0
  %2190 = vmatpush2.bf16.msra.mxu0 0
  %2191 = vmatprep.subr.bf16.mxu0 0
  %2192 = vmatpush2.bf16.msra.mxu0 0
  %2193 = vmatprep.subr.bf16.mxu0 0
  %2194 = vmatpush2.bf16.msra.mxu0 0
  %2195 = vmatprep.subr.bf16.mxu0 0
  %2196 = vmatpush2.bf16.msra.mxu0 0
  %2197 = vmatprep.subr.bf16.mxu0 0
  %2198 = vmatpush2.bf16.msra.mxu0 0
  %2199 = vmatprep.subr.bf16.mxu0 0
  %2200 = vmatpush2.bf16.msra.mxu0 0
  %2201 = vmatprep.subr.bf16.mxu0 0
  %2202 = vmatpush2.bf16.msra.mxu0 0
  %2203 = vmatprep.mubr.bf16.mxu0 0
  %2204 = vmatmul.mubr.bf16.gmra.mxu0 %v2169
  %v2205 = vpop.f32.mrf.mxu0
  %v2206 = vadd.f32 0.0, %v2205
  %v2207 = vpop.f32.mrf.mxu0
  %v2208 = vpop.f32.mrf.mxu0
  %v2209 = vpop.f32.mrf.mxu0
  %2210 = vdwg.mxu0
  %v2211 = vadd.f32 %v2163, %v2206
  %v2212 = vxor.u32 %v2211, 2147483648
  %v2213 = vmul.f32 %v2212, 1.442695
  %v2214 = vpow.pop %v2213
  %v2215 = vadd.f32 %v2214, 1.0
  %v2216 = vrcp.pop %v2215
  %v2217 = vmul.f32 1.0, %v2216
  %v2218 = vmul.f32 %v2217, 2.0
  %v2219 = vsub.f32 %v2218, 1.0
  %v2220 = vmul.f32 %v2217, %v2151
  %2222 = vrot.lane.b32.xlu0 %v2219, 64
  %v2223 = vpop.permute.xlu0 %2222
  %v2225 = vmul.f32 %v2217, %v2223
  %2227 = vrot.lane.b32.xlu0 %v2225, 32
  %v2228 = vpop.permute.xlu0 %2227
  %v2230 = vadd.f32 %v2220, %v2228
  %v2231 = vtanh.pop %v2230
  %2233 = vrot.lane.b32.xlu0 %v2231, 64
  %v2234 = vpop.permute.xlu0 %2233
  %v2236 = vmul.f32 %v2217, %v2234
  %2238 = vrot.lane.b32.xlu0 %v2236, 32
  %v2239 = vpop.permute.xlu0 %2238
  %2241 = vst.msk [vmem:[#allocation3 + $0x60] sm:$0xf] %vm344, %v2239
  %v2242 = vld [vmem:[#allocation2 + $0x64] sm:$0xf]
  %v2243 = vpack.c.bf16 %v2236, %v2236
  %2245 = vrot.lane.b32.xlu0 %v2243, 32
  %v2246 = vpop.permute.xlu0 %2245
  %v2248 = vsel %vm270, %v2246, 0
  %2250 = vmatprep.subr.bf16.mxu0 0
  %2251 = vmatpush1.bf16.msra.mxu0 0
  %2252 = vmatprep.subr.bf16.mxu0 0
  %2253 = vmatpush1.bf16.msra.mxu0 0
  %2254 = vmatprep.subr.bf16.mxu0 0
  %2255 = vmatpush1.bf16.msra.mxu0 0
  %2256 = vmatprep.subr.bf16.mxu0 0
  %2257 = vmatpush1.bf16.msra.mxu0 0
  %2258 = vmatprep.subr.bf16.mxu0 0
  %2259 = vmatpush1.bf16.msra.mxu0 0
  %2260 = vmatprep.subr.bf16.mxu0 0
  %2261 = vmatpush1.bf16.msra.mxu0 0
  %2262 = vmatprep.subr.bf16.mxu0 0
  %2263 = vmatpush1.bf16.msra.mxu0 %v267
  %2264 = vmatprep.subr.bf16.mxu0 0
  %2265 = vmatpush1.bf16.msra.mxu0 %v266
  %2266 = vmatprep.subr.bf16.mxu0 0
  %2267 = vmatpush2.bf16.msra.mxu0 0
  %2268 = vmatprep.subr.bf16.mxu0 0
  %2269 = vmatpush2.bf16.msra.mxu0 0
  %2270 = vmatprep.subr.bf16.mxu0 0
  %2271 = vmatpush2.bf16.msra.mxu0 0
  %2272 = vmatprep.subr.bf16.mxu0 0
  %2273 = vmatpush2.bf16.msra.mxu0 0
  %2274 = vmatprep.subr.bf16.mxu0 0
  %2275 = vmatpush2.bf16.msra.mxu0 0
  %2276 = vmatprep.subr.bf16.mxu0 0
  %2277 = vmatpush2.bf16.msra.mxu0 0
  %2278 = vmatprep.subr.bf16.mxu0 0
  %2279 = vmatpush2.bf16.msra.mxu0 0
  %2280 = vmatprep.subr.bf16.mxu0 0
  %2281 = vmatpush2.bf16.msra.mxu0 0
  %2282 = vmatprep.mubr.bf16.mxu0 0
  %2283 = vmatmul.mubr.bf16.gmra.mxu0 %v2248
  %v2284 = vpop.f32.mrf.mxu0
  %v2285 = vadd.f32 0.0, %v2284
  %v2286 = vpop.f32.mrf.mxu0
  %v2287 = vpop.f32.mrf.mxu0
  %v2288 = vpop.f32.mrf.mxu0
  %2289 = vdwg.mxu0
  %v2290 = vadd.f32 %v2242, %v2285
  %v2291 = vxor.u32 %v2290, 2147483648
  %v2292 = vmul.f32 %v2291, 1.442695
  %v2293 = vpow.pop %v2292
  %v2294 = vadd.f32 %v2293, 1.0
  %v2295 = vrcp.pop %v2294
  %v2296 = vmul.f32 1.0, %v2295
  %v2297 = vmul.f32 %v2296, 2.0
  %v2298 = vsub.f32 %v2297, 1.0
  %v2299 = vmul.f32 %v2296, %v2230
  %2301 = vrot.lane.b32.xlu0 %v2298, 64
  %v2302 = vpop.permute.xlu0 %2301
  %v2304 = vmul.f32 %v2296, %v2302
  %2306 = vrot.lane.b32.xlu0 %v2304, 32
  %v2307 = vpop.permute.xlu0 %2306
  %v2309 = vadd.f32 %v2299, %v2307
  %v2310 = vtanh.pop %v2309
  %2312 = vrot.lane.b32.xlu0 %v2310, 64
  %v2313 = vpop.permute.xlu0 %2312
  %v2315 = vmul.f32 %v2296, %v2313
  %2317 = vrot.lane.b32.xlu0 %v2315, 32
  %v2318 = vpop.permute.xlu0 %2317
  %2320 = vst.msk [vmem:[#allocation3 + $0x64] sm:$0xf] %vm344, %v2318
  %v2321 = vld [vmem:[#allocation2 + $0x68] sm:$0xf]
  %v2322 = vpack.c.bf16 %v2315, %v2315
  %2324 = vrot.lane.b32.xlu0 %v2322, 32
  %v2325 = vpop.permute.xlu0 %2324
  %v2327 = vsel %vm270, %v2325, 0
  %2329 = vmatprep.subr.bf16.mxu0 0
  %2330 = vmatpush1.bf16.msra.mxu0 0
  %2331 = vmatprep.subr.bf16.mxu0 0
  %2332 = vmatpush1.bf16.msra.mxu0 0
  %2333 = vmatprep.subr.bf16.mxu0 0
  %2334 = vmatpush1.bf16.msra.mxu0 0
  %2335 = vmatprep.subr.bf16.mxu0 0
  %2336 = vmatpush1.bf16.msra.mxu0 0
  %2337 = vmatprep.subr.bf16.mxu0 0
  %2338 = vmatpush1.bf16.msra.mxu0 0
  %2339 = vmatprep.subr.bf16.mxu0 0
  %2340 = vmatpush1.bf16.msra.mxu0 0
  %2341 = vmatprep.subr.bf16.mxu0 0
  %2342 = vmatpush1.bf16.msra.mxu0 %v267
  %2343 = vmatprep.subr.bf16.mxu0 0
  %2344 = vmatpush1.bf16.msra.mxu0 %v266
  %2345 = vmatprep.subr.bf16.mxu0 0
  %2346 = vmatpush2.bf16.msra.mxu0 0
  %2347 = vmatprep.subr.bf16.mxu0 0
  %2348 = vmatpush2.bf16.msra.mxu0 0
  %2349 = vmatprep.subr.bf16.mxu0 0
  %2350 = vmatpush2.bf16.msra.mxu0 0
  %2351 = vmatprep.subr.bf16.mxu0 0
  %2352 = vmatpush2.bf16.msra.mxu0 0
  %2353 = vmatprep.subr.bf16.mxu0 0
  %2354 = vmatpush2.bf16.msra.mxu0 0
  %2355 = vmatprep.subr.bf16.mxu0 0
  %2356 = vmatpush2.bf16.msra.mxu0 0
  %2357 = vmatprep.subr.bf16.mxu0 0
  %2358 = vmatpush2.bf16.msra.mxu0 0
  %2359 = vmatprep.subr.bf16.mxu0 0
  %2360 = vmatpush2.bf16.msra.mxu0 0
  %2361 = vmatprep.mubr.bf16.mxu0 0
  %2362 = vmatmul.mubr.bf16.gmra.mxu0 %v2327
  %v2363 = vpop.f32.mrf.mxu0
  %v2364 = vadd.f32 0.0, %v2363
  %v2365 = vpop.f32.mrf.mxu0
  %v2366 = vpop.f32.mrf.mxu0
  %v2367 = vpop.f32.mrf.mxu0
  %2368 = vdwg.mxu0
  %v2369 = vadd.f32 %v2321, %v2364
  %v2370 = vxor.u32 %v2369, 2147483648
  %v2371 = vmul.f32 %v2370, 1.442695
  %v2372 = vpow.pop %v2371
  %v2373 = vadd.f32 %v2372, 1.0
  %v2374 = vrcp.pop %v2373
  %v2375 = vmul.f32 1.0, %v2374
  %v2376 = vmul.f32 %v2375, 2.0
  %v2377 = vsub.f32 %v2376, 1.0
  %v2378 = vmul.f32 %v2375, %v2309
  %2380 = vrot.lane.b32.xlu0 %v2377, 64
  %v2381 = vpop.permute.xlu0 %2380
  %v2383 = vmul.f32 %v2375, %v2381
  %2385 = vrot.lane.b32.xlu0 %v2383, 32
  %v2386 = vpop.permute.xlu0 %2385
  %v2388 = vadd.f32 %v2378, %v2386
  %v2389 = vtanh.pop %v2388
  %2391 = vrot.lane.b32.xlu0 %v2389, 64
  %v2392 = vpop.permute.xlu0 %2391
  %v2394 = vmul.f32 %v2375, %v2392
  %2396 = vrot.lane.b32.xlu0 %v2394, 32
  %v2397 = vpop.permute.xlu0 %2396
  %2399 = vst.msk [vmem:[#allocation3 + $0x68] sm:$0xf] %vm344, %v2397
  %v2400 = vld [vmem:[#allocation2 + $0x6c] sm:$0xf]
  %v2401 = vpack.c.bf16 %v2394, %v2394
  %2403 = vrot.lane.b32.xlu0 %v2401, 32
  %v2404 = vpop.permute.xlu0 %2403
  %v2406 = vsel %vm270, %v2404, 0
  %2408 = vmatprep.subr.bf16.mxu0 0
  %2409 = vmatpush1.bf16.msra.mxu0 0
  %2410 = vmatprep.subr.bf16.mxu0 0
  %2411 = vmatpush1.bf16.msra.mxu0 0
  %2412 = vmatprep.subr.bf16.mxu0 0
  %2413 = vmatpush1.bf16.msra.mxu0 0
  %2414 = vmatprep.subr.bf16.mxu0 0
  %2415 = vmatpush1.bf16.msra.mxu0 0
  %2416 = vmatprep.subr.bf16.mxu0 0
  %2417 = vmatpush1.bf16.msra.mxu0 0
  %2418 = vmatprep.subr.bf16.mxu0 0
  %2419 = vmatpush1.bf16.msra.mxu0 0
  %2420 = vmatprep.subr.bf16.mxu0 0
  %2421 = vmatpush1.bf16.msra.mxu0 %v267
  %2422 = vmatprep.subr.bf16.mxu0 0
  %2423 = vmatpush1.bf16.msra.mxu0 %v266
  %2424 = vmatprep.subr.bf16.mxu0 0
  %2425 = vmatpush2.bf16.msra.mxu0 0
  %2426 = vmatprep.subr.bf16.mxu0 0
  %2427 = vmatpush2.bf16.msra.mxu0 0
  %2428 = vmatprep.subr.bf16.mxu0 0
  %2429 = vmatpush2.bf16.msra.mxu0 0
  %2430 = vmatprep.subr.bf16.mxu0 0
  %2431 = vmatpush2.bf16.msra.mxu0 0
  %2432 = vmatprep.subr.bf16.mxu0 0
  %2433 = vmatpush2.bf16.msra.mxu0 0
  %2434 = vmatprep.subr.bf16.mxu0 0
  %2435 = vmatpush2.bf16.msra.mxu0 0
  %2436 = vmatprep.subr.bf16.mxu0 0
  %2437 = vmatpush2.bf16.msra.mxu0 0
  %2438 = vmatprep.subr.bf16.mxu0 0
  %2439 = vmatpush2.bf16.msra.mxu0 0
  %2440 = vmatprep.mubr.bf16.mxu0 0
  %2441 = vmatmul.mubr.bf16.gmra.mxu0 %v2406
  %v2442 = vpop.f32.mrf.mxu0
  %v2443 = vadd.f32 0.0, %v2442
  %v2444 = vpop.f32.mrf.mxu0
  %v2445 = vpop.f32.mrf.mxu0
  %v2446 = vpop.f32.mrf.mxu0
  %2447 = vdwg.mxu0
  %v2448 = vadd.f32 %v2400, %v2443
  %v2449 = vxor.u32 %v2448, 2147483648
  %v2450 = vmul.f32 %v2449, 1.442695
  %v2451 = vpow.pop %v2450
  %v2452 = vadd.f32 %v2451, 1.0
  %v2453 = vrcp.pop %v2452
  %v2454 = vmul.f32 1.0, %v2453
  %v2455 = vmul.f32 %v2454, 2.0
  %v2456 = vsub.f32 %v2455, 1.0
  %v2457 = vmul.f32 %v2454, %v2388
  %2459 = vrot.lane.b32.xlu0 %v2456, 64
  %v2460 = vpop.permute.xlu0 %2459
  %v2462 = vmul.f32 %v2454, %v2460
  %2464 = vrot.lane.b32.xlu0 %v2462, 32
  %v2465 = vpop.permute.xlu0 %2464
  %v2467 = vadd.f32 %v2457, %v2465
  %v2468 = vtanh.pop %v2467
  %2470 = vrot.lane.b32.xlu0 %v2468, 64
  %v2471 = vpop.permute.xlu0 %2470
  %v2473 = vmul.f32 %v2454, %v2471
  %2475 = vrot.lane.b32.xlu0 %v2473, 32
  %v2476 = vpop.permute.xlu0 %2475
  %2478 = vst.msk [vmem:[#allocation3 + $0x6c] sm:$0xf] %vm344, %v2476
  %v2479 = vld [vmem:[#allocation2 + $0x70] sm:$0xf]
  %v2480 = vpack.c.bf16 %v2473, %v2473
  %2482 = vrot.lane.b32.xlu0 %v2480, 32
  %v2483 = vpop.permute.xlu0 %2482
  %v2485 = vsel %vm270, %v2483, 0
  %2487 = vmatprep.subr.bf16.mxu0 0
  %2488 = vmatpush1.bf16.msra.mxu0 0
  %2489 = vmatprep.subr.bf16.mxu0 0
  %2490 = vmatpush1.bf16.msra.mxu0 0
  %2491 = vmatprep.subr.bf16.mxu0 0
  %2492 = vmatpush1.bf16.msra.mxu0 0
  %2493 = vmatprep.subr.bf16.mxu0 0
  %2494 = vmatpush1.bf16.msra.mxu0 0
  %2495 = vmatprep.subr.bf16.mxu0 0
  %2496 = vmatpush1.bf16.msra.mxu0 0
  %2497 = vmatprep.subr.bf16.mxu0 0
  %2498 = vmatpush1.bf16.msra.mxu0 0
  %2499 = vmatprep.subr.bf16.mxu0 0
  %2500 = vmatpush1.bf16.msra.mxu0 %v267
  %2501 = vmatprep.subr.bf16.mxu0 0
  %2502 = vmatpush1.bf16.msra.mxu0 %v266
  %2503 = vmatprep.subr.bf16.mxu0 0
  %2504 = vmatpush2.bf16.msra.mxu0 0
  %2505 = vmatprep.subr.bf16.mxu0 0
  %2506 = vmatpush2.bf16.msra.mxu0 0
  %2507 = vmatprep.subr.bf16.mxu0 0
  %2508 = vmatpush2.bf16.msra.mxu0 0
  %2509 = vmatprep.subr.bf16.mxu0 0
  %2510 = vmatpush2.bf16.msra.mxu0 0
  %2511 = vmatprep.subr.bf16.mxu0 0
  %2512 = vmatpush2.bf16.msra.mxu0 0
  %2513 = vmatprep.subr.bf16.mxu0 0
  %2514 = vmatpush2.bf16.msra.mxu0 0
  %2515 = vmatprep.subr.bf16.mxu0 0
  %2516 = vmatpush2.bf16.msra.mxu0 0
  %2517 = vmatprep.subr.bf16.mxu0 0
  %2518 = vmatpush2.bf16.msra.mxu0 0
  %2519 = vmatprep.mubr.bf16.mxu0 0
  %2520 = vmatmul.mubr.bf16.gmra.mxu0 %v2485
  %v2521 = vpop.f32.mrf.mxu0
  %v2522 = vadd.f32 0.0, %v2521
  %v2523 = vpop.f32.mrf.mxu0
  %v2524 = vpop.f32.mrf.mxu0
  %v2525 = vpop.f32.mrf.mxu0
  %2526 = vdwg.mxu0
  %v2527 = vadd.f32 %v2479, %v2522
  %v2528 = vxor.u32 %v2527, 2147483648
  %v2529 = vmul.f32 %v2528, 1.442695
  %v2530 = vpow.pop %v2529
  %v2531 = vadd.f32 %v2530, 1.0
  %v2532 = vrcp.pop %v2531
  %v2533 = vmul.f32 1.0, %v2532
  %v2534 = vmul.f32 %v2533, 2.0
  %v2535 = vsub.f32 %v2534, 1.0
  %v2536 = vmul.f32 %v2533, %v2467
  %2538 = vrot.lane.b32.xlu0 %v2535, 64
  %v2539 = vpop.permute.xlu0 %2538
  %v2541 = vmul.f32 %v2533, %v2539
  %2543 = vrot.lane.b32.xlu0 %v2541, 32
  %v2544 = vpop.permute.xlu0 %2543
  %v2546 = vadd.f32 %v2536, %v2544
  %v2547 = vtanh.pop %v2546
  %2549 = vrot.lane.b32.xlu0 %v2547, 64
  %v2550 = vpop.permute.xlu0 %2549
  %v2552 = vmul.f32 %v2533, %v2550
  %2554 = vrot.lane.b32.xlu0 %v2552, 32
  %v2555 = vpop.permute.xlu0 %2554
  %2557 = vst.msk [vmem:[#allocation3 + $0x70] sm:$0xf] %vm344, %v2555
  %v2558 = vld [vmem:[#allocation2 + $0x74] sm:$0xf]
  %v2559 = vpack.c.bf16 %v2552, %v2552
  %2561 = vrot.lane.b32.xlu0 %v2559, 32
  %v2562 = vpop.permute.xlu0 %2561
  %v2564 = vsel %vm270, %v2562, 0
  %2566 = vmatprep.subr.bf16.mxu0 0
  %2567 = vmatpush1.bf16.msra.mxu0 0
  %2568 = vmatprep.subr.bf16.mxu0 0
  %2569 = vmatpush1.bf16.msra.mxu0 0
  %2570 = vmatprep.subr.bf16.mxu0 0
  %2571 = vmatpush1.bf16.msra.mxu0 0
  %2572 = vmatprep.subr.bf16.mxu0 0
  %2573 = vmatpush1.bf16.msra.mxu0 0
  %2574 = vmatprep.subr.bf16.mxu0 0
  %2575 = vmatpush1.bf16.msra.mxu0 0
  %2576 = vmatprep.subr.bf16.mxu0 0
  %2577 = vmatpush1.bf16.msra.mxu0 0
  %2578 = vmatprep.subr.bf16.mxu0 0
  %2579 = vmatpush1.bf16.msra.mxu0 %v267
  %2580 = vmatprep.subr.bf16.mxu0 0
  %2581 = vmatpush1.bf16.msra.mxu0 %v266
  %2582 = vmatprep.subr.bf16.mxu0 0
  %2583 = vmatpush2.bf16.msra.mxu0 0
  %2584 = vmatprep.subr.bf16.mxu0 0
  %2585 = vmatpush2.bf16.msra.mxu0 0
  %2586 = vmatprep.subr.bf16.mxu0 0
  %2587 = vmatpush2.bf16.msra.mxu0 0
  %2588 = vmatprep.subr.bf16.mxu0 0
  %2589 = vmatpush2.bf16.msra.mxu0 0
  %2590 = vmatprep.subr.bf16.mxu0 0
  %2591 = vmatpush2.bf16.msra.mxu0 0
  %2592 = vmatprep.subr.bf16.mxu0 0
  %2593 = vmatpush2.bf16.msra.mxu0 0
  %2594 = vmatprep.subr.bf16.mxu0 0
  %2595 = vmatpush2.bf16.msra.mxu0 0
  %2596 = vmatprep.subr.bf16.mxu0 0
  %2597 = vmatpush2.bf16.msra.mxu0 0
  %2598 = vmatprep.mubr.bf16.mxu0 0
  %2599 = vmatmul.mubr.bf16.gmra.mxu0 %v2564
  %v2600 = vpop.f32.mrf.mxu0
  %v2601 = vadd.f32 0.0, %v2600
  %v2602 = vpop.f32.mrf.mxu0
  %v2603 = vpop.f32.mrf.mxu0
  %v2604 = vpop.f32.mrf.mxu0
  %2605 = vdwg.mxu0
  %v2606 = vadd.f32 %v2558, %v2601
  %v2607 = vxor.u32 %v2606, 2147483648
  %v2608 = vmul.f32 %v2607, 1.442695
  %v2609 = vpow.pop %v2608
  %v2610 = vadd.f32 %v2609, 1.0
  %v2611 = vrcp.pop %v2610
  %v2612 = vmul.f32 1.0, %v2611
  %v2613 = vmul.f32 %v2612, 2.0
  %v2614 = vsub.f32 %v2613, 1.0
  %v2615 = vmul.f32 %v2612, %v2546
  %2617 = vrot.lane.b32.xlu0 %v2614, 64
  %v2618 = vpop.permute.xlu0 %2617
  %v2620 = vmul.f32 %v2612, %v2618
  %2622 = vrot.lane.b32.xlu0 %v2620, 32
  %v2623 = vpop.permute.xlu0 %2622
  %v2625 = vadd.f32 %v2615, %v2623
  %v2626 = vtanh.pop %v2625
  %2628 = vrot.lane.b32.xlu0 %v2626, 64
  %v2629 = vpop.permute.xlu0 %2628
  %v2631 = vmul.f32 %v2612, %v2629
  %2633 = vrot.lane.b32.xlu0 %v2631, 32
  %v2634 = vpop.permute.xlu0 %2633
  %2636 = vst.msk [vmem:[#allocation3 + $0x74] sm:$0xf] %vm344, %v2634
  %v2637 = vld [vmem:[#allocation2 + $0x78] sm:$0xf]
  %v2638 = vpack.c.bf16 %v2631, %v2631
  %2640 = vrot.lane.b32.xlu0 %v2638, 32
  %v2641 = vpop.permute.xlu0 %2640
  %v2643 = vsel %vm270, %v2641, 0
  %2645 = vmatprep.subr.bf16.mxu0 0
  %2646 = vmatpush1.bf16.msra.mxu0 0
  %2647 = vmatprep.subr.bf16.mxu0 0
  %2648 = vmatpush1.bf16.msra.mxu0 0
  %2649 = vmatprep.subr.bf16.mxu0 0
  %2650 = vmatpush1.bf16.msra.mxu0 0
  %2651 = vmatprep.subr.bf16.mxu0 0
  %2652 = vmatpush1.bf16.msra.mxu0 0
  %2653 = vmatprep.subr.bf16.mxu0 0
  %2654 = vmatpush1.bf16.msra.mxu0 0
  %2655 = vmatprep.subr.bf16.mxu0 0
  %2656 = vmatpush1.bf16.msra.mxu0 0
  %2657 = vmatprep.subr.bf16.mxu0 0
  %2658 = vmatpush1.bf16.msra.mxu0 %v267
  %2659 = vmatprep.subr.bf16.mxu0 0
  %2660 = vmatpush1.bf16.msra.mxu0 %v266
  %2661 = vmatprep.subr.bf16.mxu0 0
  %2662 = vmatpush2.bf16.msra.mxu0 0
  %2663 = vmatprep.subr.bf16.mxu0 0
  %2664 = vmatpush2.bf16.msra.mxu0 0
  %2665 = vmatprep.subr.bf16.mxu0 0
  %2666 = vmatpush2.bf16.msra.mxu0 0
  %2667 = vmatprep.subr.bf16.mxu0 0
  %2668 = vmatpush2.bf16.msra.mxu0 0
  %2669 = vmatprep.subr.bf16.mxu0 0
  %2670 = vmatpush2.bf16.msra.mxu0 0
  %2671 = vmatprep.subr.bf16.mxu0 0
  %2672 = vmatpush2.bf16.msra.mxu0 0
  %2673 = vmatprep.subr.bf16.mxu0 0
  %2674 = vmatpush2.bf16.msra.mxu0 0
  %2675 = vmatprep.subr.bf16.mxu0 0
  %2676 = vmatpush2.bf16.msra.mxu0 0
  %2677 = vmatprep.mubr.bf16.mxu0 0
  %2678 = vmatmul.mubr.bf16.gmra.mxu0 %v2643
  %v2679 = vpop.f32.mrf.mxu0
  %v2680 = vadd.f32 0.0, %v2679
  %v2681 = vpop.f32.mrf.mxu0
  %v2682 = vpop.f32.mrf.mxu0
  %v2683 = vpop.f32.mrf.mxu0
  %2684 = vdwg.mxu0
  %v2685 = vadd.f32 %v2637, %v2680
  %v2686 = vxor.u32 %v2685, 2147483648
  %v2687 = vmul.f32 %v2686, 1.442695
  %v2688 = vpow.pop %v2687
  %v2689 = vadd.f32 %v2688, 1.0
  %v2690 = vrcp.pop %v2689
  %v2691 = vmul.f32 1.0, %v2690
  %v2692 = vmul.f32 %v2691, 2.0
  %v2693 = vsub.f32 %v2692, 1.0
  %v2694 = vmul.f32 %v2691, %v2625
  %2696 = vrot.lane.b32.xlu0 %v2693, 64
  %v2697 = vpop.permute.xlu0 %2696
  %v2699 = vmul.f32 %v2691, %v2697
  %2701 = vrot.lane.b32.xlu0 %v2699, 32
  %v2702 = vpop.permute.xlu0 %2701
  %v2704 = vadd.f32 %v2694, %v2702
  %v2705 = vtanh.pop %v2704
  %2707 = vrot.lane.b32.xlu0 %v2705, 64
  %v2708 = vpop.permute.xlu0 %2707
  %v2710 = vmul.f32 %v2691, %v2708
  %2712 = vrot.lane.b32.xlu0 %v2710, 32
  %v2713 = vpop.permute.xlu0 %2712
  %2715 = vst.msk [vmem:[#allocation3 + $0x78] sm:$0xf] %vm344, %v2713
  %v2716 = vld [vmem:[#allocation2 + $0x7c] sm:$0xf]
  %v2717 = vpack.c.bf16 %v2710, %v2710
  %2719 = vrot.lane.b32.xlu0 %v2717, 32
  %v2720 = vpop.permute.xlu0 %2719
  %v2722 = vsel %vm270, %v2720, 0
  %2724 = vmatprep.subr.bf16.mxu0 0
  %2725 = vmatpush1.bf16.msra.mxu0 0
  %2726 = vmatprep.subr.bf16.mxu0 0
  %2727 = vmatpush1.bf16.msra.mxu0 0
  %2728 = vmatprep.subr.bf16.mxu0 0
  %2729 = vmatpush1.bf16.msra.mxu0 0
  %2730 = vmatprep.subr.bf16.mxu0 0
  %2731 = vmatpush1.bf16.msra.mxu0 0
  %2732 = vmatprep.subr.bf16.mxu0 0
  %2733 = vmatpush1.bf16.msra.mxu0 0
  %2734 = vmatprep.subr.bf16.mxu0 0
  %2735 = vmatpush1.bf16.msra.mxu0 0
  %2736 = vmatprep.subr.bf16.mxu0 0
  %2737 = vmatpush1.bf16.msra.mxu0 %v267
  %2738 = vmatprep.subr.bf16.mxu0 0
  %2739 = vmatpush1.bf16.msra.mxu0 %v266
  %2740 = vmatprep.subr.bf16.mxu0 0
  %2741 = vmatpush2.bf16.msra.mxu0 0
  %2742 = vmatprep.subr.bf16.mxu0 0
  %2743 = vmatpush2.bf16.msra.mxu0 0
  %2744 = vmatprep.subr.bf16.mxu0 0
  %2745 = vmatpush2.bf16.msra.mxu0 0
  %2746 = vmatprep.subr.bf16.mxu0 0
  %2747 = vmatpush2.bf16.msra.mxu0 0
  %2748 = vmatprep.subr.bf16.mxu0 0
  %2749 = vmatpush2.bf16.msra.mxu0 0
  %2750 = vmatprep.subr.bf16.mxu0 0
  %2751 = vmatpush2.bf16.msra.mxu0 0
  %2752 = vmatprep.subr.bf16.mxu0 0
  %2753 = vmatpush2.bf16.msra.mxu0 0
  %2754 = vmatprep.subr.bf16.mxu0 0
  %2755 = vmatpush2.bf16.msra.mxu0 0
  %2756 = vmatprep.mubr.bf16.mxu0 0
  %2757 = vmatmul.mubr.bf16.gmra.mxu0 %v2722
  %v2758 = vpop.f32.mrf.mxu0
  %v2759 = vadd.f32 0.0, %v2758
  %v2760 = vpop.f32.mrf.mxu0
  %v2761 = vpop.f32.mrf.mxu0
  %v2762 = vpop.f32.mrf.mxu0
  %2763 = vdwg.mxu0
  %v2764 = vadd.f32 %v2716, %v2759
  %v2765 = vxor.u32 %v2764, 2147483648
  %v2766 = vmul.f32 %v2765, 1.442695
  %v2767 = vpow.pop %v2766
  %v2768 = vadd.f32 %v2767, 1.0
  %v2769 = vrcp.pop %v2768
  %v2770 = vmul.f32 1.0, %v2769
  %v2771 = vmul.f32 %v2770, 2.0
  %v2772 = vsub.f32 %v2771, 1.0
  %v2773 = vmul.f32 %v2770, %v2704
  %2775 = vrot.lane.b32.xlu0 %v2772, 64
  %v2776 = vpop.permute.xlu0 %2775
  %v2778 = vmul.f32 %v2770, %v2776
  %2780 = vrot.lane.b32.xlu0 %v2778, 32
  %v2781 = vpop.permute.xlu0 %2780
  %v2783 = vadd.f32 %v2773, %v2781
  %v2784 = vtanh.pop %v2783
  %2786 = vrot.lane.b32.xlu0 %v2784, 64
  %v2787 = vpop.permute.xlu0 %2786
  %v2789 = vmul.f32 %v2770, %v2787
  %2791 = vrot.lane.b32.xlu0 %v2789, 32
  %v2792 = vpop.permute.xlu0 %2791
  %2794 = vst.msk [vmem:[#allocation3 + $0x7c] sm:$0xf] %vm344, %v2792
  %v2795 = vld [vmem:[#allocation3] sm:$0xff]
  %v2796 = vld [vmem:[#allocation3 + $0x8] sm:$0xff]
  %v2797 = vld [vmem:[#allocation3 + $0x10] sm:$0xff]
  %v2798 = vld [vmem:[#allocation3 + $0x18] sm:$0xff]
  %v2799 = vld [vmem:[#allocation3 + $0x20] sm:$0xff]
  %v2800 = vld [vmem:[#allocation3 + $0x28] sm:$0xff]
  %v2801 = vld [vmem:[#allocation3 + $0x30] sm:$0xff]
  %v2802 = vld [vmem:[#allocation3 + $0x38] sm:$0xff]
  %v2803 = vld [vmem:[#allocation3 + $0x40] sm:$0xff]
  %v2804 = vld [vmem:[#allocation3 + $0x48] sm:$0xff]
  %v2805 = vld [vmem:[#allocation3 + $0x50] sm:$0xff]
  %v2806 = vld [vmem:[#allocation3 + $0x58] sm:$0xff]
  %v2807 = vld [vmem:[#allocation3 + $0x60] sm:$0xff]
  %v2808 = vld [vmem:[#allocation3 + $0x68] sm:$0xff]
  %v2809 = vld [vmem:[#allocation3 + $0x70] sm:$0xff]
  %v2810 = vld [vmem:[#allocation3 + $0x78] sm:$0xff]
  %v2811 = vld [vmem:[%s7] sm:$0xff]
  %v2812 = vld [vmem:[%s7 + $0x8] sm:$0xff]
  %v2813 = vld [vmem:[%s7 + $0x10] sm:$0xff]
  %v2814 = vld [vmem:[%s7 + $0x18] sm:$0xff]
  %2815 = vmatprep.subr.mxu0 0.0
  %2816 = vmatpush1.msra.mxu0 %v2810
  %2817 = vmatprep.subr.mxu0 0.0
  %2818 = vmatpush1.msra.mxu0 %v2809
  %2819 = vmatprep.subr.mxu0 0.0
  %2820 = vmatpush1.msra.mxu0 %v2808
  %2821 = vmatprep.subr.mxu0 0.0
  %2822 = vmatpush1.msra.mxu0 %v2807
  %2823 = vmatprep.subr.mxu0 0.0
  %2824 = vmatpush1.msra.mxu0 %v2806
  %2825 = vmatprep.subr.mxu0 0.0
  %2826 = vmatpush1.msra.mxu0 %v2805
  %2827 = vmatprep.subr.mxu0 0.0
  %2828 = vmatpush1.msra.mxu0 %v2804
  %2829 = vmatprep.subr.mxu0 0.0
  %2830 = vmatpush1.msra.mxu0 %v2803
  %2831 = vmatprep.subr.mxu0 0.0
  %2832 = vmatpush1.msra.mxu0 %v2802
  %2833 = vmatprep.subr.mxu0 0.0
  %2834 = vmatpush1.msra.mxu0 %v2801
  %2835 = vmatprep.subr.mxu0 0.0
  %2836 = vmatpush1.msra.mxu0 %v2800
  %2837 = vmatprep.subr.mxu0 0.0
  %2838 = vmatpush1.msra.mxu0 %v2799
  %2839 = vmatprep.subr.mxu0 0.0
  %2840 = vmatpush1.msra.mxu0 %v2798
  %2841 = vmatprep.subr.mxu0 0.0
  %2842 = vmatpush1.msra.mxu0 %v2797
  %2843 = vmatprep.subr.mxu0 0.0
  %2844 = vmatpush1.msra.mxu0 %v2796
  %2845 = vmatprep.subr.mxu0 0.0
  %2846 = vmatpush1.msra.mxu0 %v2795
  %2847 = vmatprep.subr.mxu0 0.0
  %2848 = vmatpush2.msra.mxu0 0.0
  %2849 = vmatprep.subr.mxu0 0.0
  %2850 = vmatpush2.msra.mxu0 0.0
  %2851 = vmatprep.subr.mxu0 0.0
  %2852 = vmatpush2.msra.mxu0 0.0
  %2853 = vmatprep.subr.mxu0 0.0
  %2854 = vmatpush2.msra.mxu0 0.0
  %2855 = vmatprep.subr.mxu0 0.0
  %2856 = vmatpush2.msra.mxu0 0.0
  %2857 = vmatprep.subr.mxu0 0.0
  %2858 = vmatpush2.msra.mxu0 0.0
  %2859 = vmatprep.subr.mxu0 0.0
  %2860 = vmatpush2.msra.mxu0 0.0
  %2861 = vmatprep.subr.mxu0 0.0
  %2862 = vmatpush2.msra.mxu0 0.0
  %2863 = vmatprep.subr.mxu0 0.0
  %2864 = vmatpush2.msra.mxu0 0.0
  %2865 = vmatprep.subr.mxu0 0.0
  %2866 = vmatpush2.msra.mxu0 0.0
  %2867 = vmatprep.subr.mxu0 0.0
  %2868 = vmatpush2.msra.mxu0 0.0
  %2869 = vmatprep.subr.mxu0 0.0
  %2870 = vmatpush2.msra.mxu0 0.0
  %2871 = vmatprep.subr.mxu0 0.0
  %2872 = vmatpush2.msra.mxu0 0.0
  %2873 = vmatprep.subr.mxu0 0.0
  %2874 = vmatpush2.msra.mxu0 0.0
  %2875 = vmatprep.subr.mxu0 0.0
  %2876 = vmatpush2.msra.mxu0 0.0
  %2877 = vmatprep.subr.mxu0 0.0
  %2878 = vmatpush2.msra.mxu0 0.0
  %2879 = vmatprep.mubr.f32.mxu0 0.0
  %2880 = vmatmul.mubr.f32.gmra.mxu0 %v2811
  %v2881 = vpop.f32.mrf.mxu0
  %v2882 = vadd.f32 0.0, %v2881
  %v2883 = vpop.f32.mrf.mxu0
  %2884 = vmatprep.mubr.f32.mxu0 0.0
  %2885 = vmatmul.mubr.f32.gmra.mxu0 %v2812
  %v2886 = vpop.f32.mrf.mxu0
  %v2887 = vadd.f32 0.0, %v2886
  %v2888 = vpop.f32.mrf.mxu0
  %2889 = vmatprep.mubr.f32.mxu0 0.0
  %2890 = vmatmul.mubr.f32.gmra.mxu0 %v2813
  %v2891 = vpop.f32.mrf.mxu0
  %v2892 = vadd.f32 0.0, %v2891
  %v2893 = vpop.f32.mrf.mxu0
  %2894 = vmatprep.mubr.f32.mxu0 0.0
  %2895 = vmatmul.mubr.f32.gmra.mxu0 %v2814
  %v2896 = vpop.f32.mrf.mxu0
  %v2897 = vadd.f32 0.0, %v2896
  %v2898 = vpop.f32.mrf.mxu0
  %2899 = vdwg.mxu0
  %v2900 = vmul.f32 %v2795, %v2795
  %v2901 = vmul.f32 %v2796, %v2796
  %v2902 = vmul.f32 %v2797, %v2797
  %v2903 = vmul.f32 %v2798, %v2798
  %v2904 = vmul.f32 %v2799, %v2799
  %v2905 = vmul.f32 %v2800, %v2800
  %v2906 = vmul.f32 %v2801, %v2801
  %v2907 = vmul.f32 %v2802, %v2802
  %v2908 = vmul.f32 %v2803, %v2803
  %v2909 = vmul.f32 %v2804, %v2804
  %v2910 = vmul.f32 %v2805, %v2805
  %v2911 = vmul.f32 %v2806, %v2806
  %v2912 = vmul.f32 %v2807, %v2807
  %v2913 = vmul.f32 %v2808, %v2808
  %v2914 = vmul.f32 %v2809, %v2809
  %v2915 = vmul.f32 %v2810, %v2810
  %2916 = vmatprep.subr.mxu0 0.0
  %2917 = vmatpush1.msra.mxu0 %v2915
  %2918 = vmatprep.subr.mxu0 0.0
  %2919 = vmatpush1.msra.mxu0 %v2914
  %2920 = vmatprep.subr.mxu0 0.0
  %2921 = vmatpush1.msra.mxu0 %v2913
  %2922 = vmatprep.subr.mxu0 0.0
  %2923 = vmatpush1.msra.mxu0 %v2912
  %2924 = vmatprep.subr.mxu0 0.0
  %2925 = vmatpush1.msra.mxu0 %v2911
  %2926 = vmatprep.subr.mxu0 0.0
  %2927 = vmatpush1.msra.mxu0 %v2910
  %2928 = vmatprep.subr.mxu0 0.0
  %2929 = vmatpush1.msra.mxu0 %v2909
  %2930 = vmatprep.subr.mxu0 0.0
  %2931 = vmatpush1.msra.mxu0 %v2908
  %2932 = vmatprep.subr.mxu0 0.0
  %2933 = vmatpush1.msra.mxu0 %v2907
  %2934 = vmatprep.subr.mxu0 0.0
  %2935 = vmatpush1.msra.mxu0 %v2906
  %2936 = vmatprep.subr.mxu0 0.0
  %2937 = vmatpush1.msra.mxu0 %v2905
  %2938 = vmatprep.subr.mxu0 0.0
  %2939 = vmatpush1.msra.mxu0 %v2904
  %2940 = vmatprep.subr.mxu0 0.0
  %2941 = vmatpush1.msra.mxu0 %v2903
  %2942 = vmatprep.subr.mxu0 0.0
  %2943 = vmatpush1.msra.mxu0 %v2902
  %2944 = vmatprep.subr.mxu0 0.0
  %2945 = vmatpush1.msra.mxu0 %v2901
  %2946 = vmatprep.subr.mxu0 0.0
  %2947 = vmatpush1.msra.mxu0 %v2900
  %2948 = vmatprep.subr.mxu0 0.0
  %2949 = vmatpush2.msra.mxu0 0.0
  %2950 = vmatprep.subr.mxu0 0.0
  %2951 = vmatpush2.msra.mxu0 0.0
  %2952 = vmatprep.subr.mxu0 0.0
  %2953 = vmatpush2.msra.mxu0 0.0
  %2954 = vmatprep.subr.mxu0 0.0
  %2955 = vmatpush2.msra.mxu0 0.0
  %2956 = vmatprep.subr.mxu0 0.0
  %2957 = vmatpush2.msra.mxu0 0.0
  %2958 = vmatprep.subr.mxu0 0.0
  %2959 = vmatpush2.msra.mxu0 0.0
  %2960 = vmatprep.subr.mxu0 0.0
  %2961 = vmatpush2.msra.mxu0 0.0
  %2962 = vmatprep.subr.mxu0 0.0
  %2963 = vmatpush2.msra.mxu0 0.0
  %2964 = vmatprep.subr.mxu0 0.0
  %2965 = vmatpush2.msra.mxu0 0.0
  %2966 = vmatprep.subr.mxu0 0.0
  %2967 = vmatpush2.msra.mxu0 0.0
  %2968 = vmatprep.subr.mxu0 0.0
  %2969 = vmatpush2.msra.mxu0 0.0
  %2970 = vmatprep.subr.mxu0 0.0
  %2971 = vmatpush2.msra.mxu0 0.0
  %2972 = vmatprep.subr.mxu0 0.0
  %2973 = vmatpush2.msra.mxu0 0.0
  %2974 = vmatprep.subr.mxu0 0.0
  %2975 = vmatpush2.msra.mxu0 0.0
  %2976 = vmatprep.subr.mxu0 0.0
  %2977 = vmatpush2.msra.mxu0 0.0
  %2978 = vmatprep.subr.mxu0 0.0
  %2979 = vmatpush2.msra.mxu0 0.0
  %2980 = vmatprep.mubr.f32.mxu0 0.0
  %2981 = vmatmul.mubr.f32.gmra.mxu0 %v2811
  %v2982 = vpop.f32.mrf.mxu0
  %v2983 = vadd.f32 0.0, %v2982
  %v2984 = vpop.f32.mrf.mxu0
  %2985 = vmatprep.mubr.f32.mxu0 0.0
  %2986 = vmatmul.mubr.f32.gmra.mxu0 %v2812
  %v2987 = vpop.f32.mrf.mxu0
  %v2988 = vadd.f32 0.0, %v2987
  %v2989 = vpop.f32.mrf.mxu0
  %2990 = vmatprep.mubr.f32.mxu0 0.0
  %2991 = vmatmul.mubr.f32.gmra.mxu0 %v2813
  %v2992 = vpop.f32.mrf.mxu0
  %v2993 = vadd.f32 0.0, %v2992
  %v2994 = vpop.f32.mrf.mxu0
  %2995 = vmatprep.mubr.f32.mxu0 0.0
  %2996 = vmatmul.mubr.f32.gmra.mxu0 %v2814
  %v2997 = vpop.f32.mrf.mxu0
  %v2998 = vadd.f32 0.0, %v2997
  %v2999 = vpop.f32.mrf.mxu0
  %3000 = vdwg.mxu0
  %v3001 = vsel %vm270, %v2882, 0.0
  %3002 = vadd.xlane.f32.xlu0 %v3001
  %v3003 = vpop.xlane.xlu0 %3002
  %v3004 = vsel %vm270, %v2887, 0.0
  %3005 = vadd.xlane.f32.xlu0 %v3004
  %v3006 = vpop.xlane.xlu0 %3005
  %v3007 = vsel %vm270, %v2892, 0.0
  %3008 = vadd.xlane.f32.xlu0 %v3007
  %v3009 = vpop.xlane.xlu0 %3008
  %v3010 = vsel %vm270, %v2897, 0.0
  %3011 = vadd.xlane.f32.xlu0 %v3010
  %v3012 = vpop.xlane.xlu0 %3011
  %v3013 = vrcp.pop 128.0
  %v3014 = vmul.f32 %v3003, %v3013
  %v3015 = vmul.f32 %v3006, %v3013
  %v3016 = vmul.f32 %v3009, %v3013
  %v3017 = vmul.f32 %v3012, %v3013
  %v3018 = vsel %vm270, %v2983, 0.0
  %3019 = vadd.xlane.f32.xlu0 %v3018
  %v3020 = vpop.xlane.xlu0 %3019
  %v3021 = vsel %vm270, %v2988, 0.0
  %3022 = vadd.xlane.f32.xlu0 %v3021
  %v3023 = vpop.xlane.xlu0 %3022
  %v3024 = vsel %vm270, %v2993, 0.0
  %3025 = vadd.xlane.f32.xlu0 %v3024
  %v3026 = vpop.xlane.xlu0 %3025
  %v3027 = vsel %vm270, %v2998, 0.0
  %3028 = vadd.xlane.f32.xlu0 %v3027
  %v3029 = vpop.xlane.xlu0 %3028
  %v3030 = vmul.f32 %v3020, %v3013
  %v3031 = vmul.f32 %v3023, %v3013
  %v3032 = vmul.f32 %v3026, %v3013
  %v3033 = vmul.f32 %v3029, %v3013
  %v3034 = vmul.f32 %v3014, %v3014
  %v3035 = vmul.f32 %v3015, %v3015
  %v3036 = vmul.f32 %v3016, %v3016
  %v3037 = vmul.f32 %v3017, %v3017
  %v3038 = vsub.f32 %v3030, %v3034
  %v3039 = vsub.f32 %v3031, %v3035
  %v3040 = vsub.f32 %v3032, %v3036
  %v3041 = vsub.f32 %v3033, %v3037
  %v3042 = vmax.f32 %v3038, 0.0
  %v3043 = vmax.f32 %v3039, 0.0
  %v3044 = vmax.f32 %v3040, 0.0
  %v3045 = vmax.f32 %v3041, 0.0
  %v3046 = vld [vmem:[%s9] sm:$0xff]
  %v3047 = vld [vmem:[%s9 + $0x8] sm:$0xff]
  %v3048 = vld [vmem:[%s9 + $0x10] sm:$0xff]
  %v3049 = vld [vmem:[%s9 + $0x18] sm:$0xff]
  %v3050 = vadd.f32 %v3042, 1e-05
  %v3051 = vadd.f32 %v3043, 1e-05
  %v3052 = vadd.f32 %v3044, 1e-05
  %v3053 = vadd.f32 %v3045, 1e-05
  %v3054 = vrsqrt.pop %v3050
  %v3055 = vrsqrt.pop %v3051
  %v3056 = vrsqrt.pop %v3052
  %v3057 = vrsqrt.pop %v3053
  %v3058 = vmul.f32 %v3046, %v3054
  %v3059 = vmul.f32 %v3047, %v3055
  %v3060 = vmul.f32 %v3048, %v3056
  %v3061 = vmul.f32 %v3049, %v3057
  %v3062 = vld [vmem:[%s10] sm:$0xff]
  %v3063 = vld [vmem:[%s10 + $0x8] sm:$0xff]
  %v3064 = vld [vmem:[%s10 + $0x10] sm:$0xff]
  %v3065 = vld [vmem:[%s10 + $0x18] sm:$0xff]
  %v3066 = vmul.f32 %v3058, %v3014
  %v3067 = vmul.f32 %v3059, %v3015
  %v3068 = vmul.f32 %v3060, %v3016
  %v3069 = vmul.f32 %v3061, %v3017
  %v3070 = vsub.f32 %v3062, %v3066
  %v3071 = vsub.f32 %v3063, %v3067
  %v3072 = vsub.f32 %v3064, %v3068
  %v3073 = vsub.f32 %v3065, %v3069
  %v3074 = vld [vmem:[%s8] sm:$0xff]
  %v3075 = vld [vmem:[%s8 + $0x8] sm:$0xff]
  %v3076 = vld [vmem:[%s8 + $0x10] sm:$0xff]
  %v3077 = vld [vmem:[%s8 + $0x18] sm:$0xff]
  %v3078 = vld [vmem:[%s8 + $0x20] sm:$0xff]
  %v3079 = vld [vmem:[%s8 + $0x28] sm:$0xff]
  %v3080 = vld [vmem:[%s8 + $0x30] sm:$0xff]
  %v3081 = vld [vmem:[%s8 + $0x38] sm:$0xff]
  %v3082 = vld [vmem:[%s8 + $0x40] sm:$0xff]
  %v3083 = vld [vmem:[%s8 + $0x48] sm:$0xff]
  %v3084 = vld [vmem:[%s8 + $0x50] sm:$0xff]
  %v3085 = vld [vmem:[%s8 + $0x58] sm:$0xff]
  %v3086 = vld [vmem:[%s8 + $0x60] sm:$0xff]
  %v3087 = vld [vmem:[%s8 + $0x68] sm:$0xff]
  %v3088 = vld [vmem:[%s8 + $0x70] sm:$0xff]
  %v3089 = vld [vmem:[%s8 + $0x78] sm:$0xff]
  %v3091 = vsel %vm270, %v3074, 0
  %v3094 = vsel %vm270, %v3075, 0
  %v3097 = vsel %vm270, %v3076, 0
  %v3100 = vsel %vm270, %v3077, 0
  %v3103 = vsel %vm270, %v3078, 0
  %v3106 = vsel %vm270, %v3079, 0
  %v3109 = vsel %vm270, %v3080, 0
  %v3112 = vsel %vm270, %v3081, 0
  %v3115 = vsel %vm270, %v3082, 0
  %v3118 = vsel %vm270, %v3083, 0
  %v3121 = vsel %vm270, %v3084, 0
  %v3124 = vsel %vm270, %v3085, 0
  %v3127 = vsel %vm270, %v3086, 0
  %v3130 = vsel %vm270, %v3087, 0
  %v3133 = vsel %vm270, %v3088, 0
  %v3136 = vsel %vm270, %v3089, 0
  %3138 = vmatprep.subr.mxu0 0.0
  %3139 = vmatpush1.msra.mxu0 0.0
  %3140 = vmatprep.subr.mxu0 0.0
  %3141 = vmatpush1.msra.mxu0 0.0
  %3142 = vmatprep.subr.mxu0 0.0
  %3143 = vmatpush1.msra.mxu0 0.0
  %3144 = vmatprep.subr.mxu0 0.0
  %3145 = vmatpush1.msra.mxu0 0.0
  %3146 = vmatprep.subr.mxu0 0.0
  %3147 = vmatpush1.msra.mxu0 0.0
  %3148 = vmatprep.subr.mxu0 0.0
  %3149 = vmatpush1.msra.mxu0 0.0
  %3150 = vmatprep.subr.mxu0 0.0
  %3151 = vmatpush1.msra.mxu0 0.0
  %3152 = vmatprep.subr.mxu0 0.0
  %3153 = vmatpush1.msra.mxu0 0.0
  %3154 = vmatprep.subr.mxu0 0.0
  %3155 = vmatpush1.msra.mxu0 0.0
  %3156 = vmatprep.subr.mxu0 0.0
  %3157 = vmatpush1.msra.mxu0 0.0
  %3158 = vmatprep.subr.mxu0 0.0
  %3159 = vmatpush1.msra.mxu0 0.0
  %3160 = vmatprep.subr.mxu0 0.0
  %3161 = vmatpush1.msra.mxu0 0.0
  %3162 = vmatprep.subr.mxu0 0.0
  %3163 = vmatpush1.msra.mxu0 %v3061
  %3164 = vmatprep.subr.mxu0 0.0
  %3165 = vmatpush1.msra.mxu0 %v3060
  %3166 = vmatprep.subr.mxu0 0.0
  %3167 = vmatpush1.msra.mxu0 %v3059
  %3168 = vmatprep.subr.mxu0 0.0
  %3169 = vmatpush1.msra.mxu0 %v3058
  %3170 = vmatprep.subr.mxu0 0.0
  %3171 = vmatpush2.msra.mxu0 0.0
  %3172 = vmatprep.subr.mxu0 0.0
  %3173 = vmatpush2.msra.mxu0 0.0
  %3174 = vmatprep.subr.mxu0 0.0
  %3175 = vmatpush2.msra.mxu0 0.0
  %3176 = vmatprep.subr.mxu0 0.0
  %3177 = vmatpush2.msra.mxu0 0.0
  %3178 = vmatprep.subr.mxu0 0.0
  %3179 = vmatpush2.msra.mxu0 0.0
  %3180 = vmatprep.subr.mxu0 0.0
  %3181 = vmatpush2.msra.mxu0 0.0
  %3182 = vmatprep.subr.mxu0 0.0
  %3183 = vmatpush2.msra.mxu0 0.0
  %3184 = vmatprep.subr.mxu0 0.0
  %3185 = vmatpush2.msra.mxu0 0.0
  %3186 = vmatprep.subr.mxu0 0.0
  %3187 = vmatpush2.msra.mxu0 0.0
  %3188 = vmatprep.subr.mxu0 0.0
  %3189 = vmatpush2.msra.mxu0 0.0
  %3190 = vmatprep.subr.mxu0 0.0
  %3191 = vmatpush2.msra.mxu0 0.0
  %3192 = vmatprep.subr.mxu0 0.0
  %3193 = vmatpush2.msra.mxu0 0.0
  %3194 = vmatprep.subr.mxu0 0.0
  %3195 = vmatpush2.msra.mxu0 0.0
  %3196 = vmatprep.subr.mxu0 0.0
  %3197 = vmatpush2.msra.mxu0 0.0
  %3198 = vmatprep.subr.mxu0 0.0
  %3199 = vmatpush2.msra.mxu0 0.0
  %3200 = vmatprep.subr.mxu0 0.0
  %3201 = vmatpush2.msra.mxu0 0.0
  %3202 = vmatprep.mubr.f32.mxu0 0.0
  %3203 = vmatmul.mubr.f32.gmra.mxu0 %v3091
  %v3204 = vpop.f32.mrf.mxu0
  %v3205 = vadd.f32 0.0, %v3204
  %v3206 = vpop.f32.mrf.mxu0
  %3207 = vmatprep.mubr.f32.mxu0 0.0
  %3208 = vmatmul.mubr.f32.gmra.mxu0 %v3094
  %v3209 = vpop.f32.mrf.mxu0
  %v3210 = vadd.f32 0.0, %v3209
  %v3211 = vpop.f32.mrf.mxu0
  %3212 = vmatprep.mubr.f32.mxu0 0.0
  %3213 = vmatmul.mubr.f32.gmra.mxu0 %v3097
  %v3214 = vpop.f32.mrf.mxu0
  %v3215 = vadd.f32 0.0, %v3214
  %v3216 = vpop.f32.mrf.mxu0
  %3217 = vmatprep.mubr.f32.mxu0 0.0
  %3218 = vmatmul.mubr.f32.gmra.mxu0 %v3100
  %v3219 = vpop.f32.mrf.mxu0
  %v3220 = vadd.f32 0.0, %v3219
  %v3221 = vpop.f32.mrf.mxu0
  %3222 = vmatprep.mubr.f32.mxu0 0.0
  %3223 = vmatmul.mubr.f32.gmra.mxu0 %v3103
  %v3224 = vpop.f32.mrf.mxu0
  %v3225 = vadd.f32 0.0, %v3224
  %v3226 = vpop.f32.mrf.mxu0
  %3227 = vmatprep.mubr.f32.mxu0 0.0
  %3228 = vmatmul.mubr.f32.gmra.mxu0 %v3106
  %v3229 = vpop.f32.mrf.mxu0
  %v3230 = vadd.f32 0.0, %v3229
  %v3231 = vpop.f32.mrf.mxu0
  %3232 = vmatprep.mubr.f32.mxu0 0.0
  %3233 = vmatmul.mubr.f32.gmra.mxu0 %v3109
  %v3234 = vpop.f32.mrf.mxu0
  %v3235 = vadd.f32 0.0, %v3234
  %v3236 = vpop.f32.mrf.mxu0
  %3237 = vmatprep.mubr.f32.mxu0 0.0
  %3238 = vmatmul.mubr.f32.gmra.mxu0 %v3112
  %v3239 = vpop.f32.mrf.mxu0
  %v3240 = vadd.f32 0.0, %v3239
  %v3241 = vpop.f32.mrf.mxu0
  %3242 = vmatprep.mubr.f32.mxu0 0.0
  %3243 = vmatmul.mubr.f32.gmra.mxu0 %v3115
  %v3244 = vpop.f32.mrf.mxu0
  %v3245 = vadd.f32 0.0, %v3244
  %v3246 = vpop.f32.mrf.mxu0
  %3247 = vmatprep.mubr.f32.mxu0 0.0
  %3248 = vmatmul.mubr.f32.gmra.mxu0 %v3118
  %v3249 = vpop.f32.mrf.mxu0
  %v3250 = vadd.f32 0.0, %v3249
  %v3251 = vpop.f32.mrf.mxu0
  %3252 = vmatprep.mubr.f32.mxu0 0.0
  %3253 = vmatmul.mubr.f32.gmra.mxu0 %v3121
  %v3254 = vpop.f32.mrf.mxu0
  %v3255 = vadd.f32 0.0, %v3254
  %v3256 = vpop.f32.mrf.mxu0
  %3257 = vmatprep.mubr.f32.mxu0 0.0
  %3258 = vmatmul.mubr.f32.gmra.mxu0 %v3124
  %v3259 = vpop.f32.mrf.mxu0
  %v3260 = vadd.f32 0.0, %v3259
  %v3261 = vpop.f32.mrf.mxu0
  %3262 = vmatprep.mubr.f32.mxu0 0.0
  %3263 = vmatmul.mubr.f32.gmra.mxu0 %v3127
  %v3264 = vpop.f32.mrf.mxu0
  %v3265 = vadd.f32 0.0, %v3264
  %v3266 = vpop.f32.mrf.mxu0
  %3267 = vmatprep.mubr.f32.mxu0 0.0
  %3268 = vmatmul.mubr.f32.gmra.mxu0 %v3130
  %v3269 = vpop.f32.mrf.mxu0
  %v3270 = vadd.f32 0.0, %v3269
  %v3271 = vpop.f32.mrf.mxu0
  %3272 = vmatprep.mubr.f32.mxu0 0.0
  %3273 = vmatmul.mubr.f32.gmra.mxu0 %v3133
  %v3274 = vpop.f32.mrf.mxu0
  %v3275 = vadd.f32 0.0, %v3274
  %v3276 = vpop.f32.mrf.mxu0
  %3277 = vmatprep.mubr.f32.mxu0 0.0
  %3278 = vmatmul.mubr.f32.gmra.mxu0 %v3136
  %v3279 = vpop.f32.mrf.mxu0
  %v3280 = vadd.f32 0.0, %v3279
  %v3281 = vpop.f32.mrf.mxu0
  %3282 = vdwg.mxu0
  %3283 = vmatprep.subr.mxu0 0.0
  %3284 = vmatpush1.msra.mxu0 0.0
  %3285 = vmatprep.subr.mxu0 0.0
  %3286 = vmatpush1.msra.mxu0 0.0
  %3287 = vmatprep.subr.mxu0 0.0
  %3288 = vmatpush1.msra.mxu0 0.0
  %3289 = vmatprep.subr.mxu0 0.0
  %3290 = vmatpush1.msra.mxu0 0.0
  %3291 = vmatprep.subr.mxu0 0.0
  %3292 = vmatpush1.msra.mxu0 0.0
  %3293 = vmatprep.subr.mxu0 0.0
  %3294 = vmatpush1.msra.mxu0 0.0
  %3295 = vmatprep.subr.mxu0 0.0
  %3296 = vmatpush1.msra.mxu0 0.0
  %3297 = vmatprep.subr.mxu0 0.0
  %3298 = vmatpush1.msra.mxu0 0.0
  %3299 = vmatprep.subr.mxu0 0.0
  %3300 = vmatpush1.msra.mxu0 0.0
  %3301 = vmatprep.subr.mxu0 0.0
  %3302 = vmatpush1.msra.mxu0 0.0
  %3303 = vmatprep.subr.mxu0 0.0
  %3304 = vmatpush1.msra.mxu0 0.0
  %3305 = vmatprep.subr.mxu0 0.0
  %3306 = vmatpush1.msra.mxu0 0.0
  %3307 = vmatprep.subr.mxu0 0.0
  %3308 = vmatpush1.msra.mxu0 %v3073
  %3309 = vmatprep.subr.mxu0 0.0
  %3310 = vmatpush1.msra.mxu0 %v3072
  %3311 = vmatprep.subr.mxu0 0.0
  %3312 = vmatpush1.msra.mxu0 %v3071
  %3313 = vmatprep.subr.mxu0 0.0
  %3314 = vmatpush1.msra.mxu0 %v3070
  %3315 = vmatprep.subr.mxu0 0.0
  %3316 = vmatpush2.msra.mxu0 0.0
  %3317 = vmatprep.subr.mxu0 0.0
  %3318 = vmatpush2.msra.mxu0 0.0
  %3319 = vmatprep.subr.mxu0 0.0
  %3320 = vmatpush2.msra.mxu0 0.0
  %3321 = vmatprep.subr.mxu0 0.0
  %3322 = vmatpush2.msra.mxu0 0.0
  %3323 = vmatprep.subr.mxu0 0.0
  %3324 = vmatpush2.msra.mxu0 0.0
  %3325 = vmatprep.subr.mxu0 0.0
  %3326 = vmatpush2.msra.mxu0 0.0
  %3327 = vmatprep.subr.mxu0 0.0
  %3328 = vmatpush2.msra.mxu0 0.0
  %3329 = vmatprep.subr.mxu0 0.0
  %3330 = vmatpush2.msra.mxu0 0.0
  %3331 = vmatprep.subr.mxu0 0.0
  %3332 = vmatpush2.msra.mxu0 0.0
  %3333 = vmatprep.subr.mxu0 0.0
  %3334 = vmatpush2.msra.mxu0 0.0
  %3335 = vmatprep.subr.mxu0 0.0
  %3336 = vmatpush2.msra.mxu0 0.0
  %3337 = vmatprep.subr.mxu0 0.0
  %3338 = vmatpush2.msra.mxu0 0.0
  %3339 = vmatprep.subr.mxu0 0.0
  %3340 = vmatpush2.msra.mxu0 0.0
  %3341 = vmatprep.subr.mxu0 0.0
  %3342 = vmatpush2.msra.mxu0 0.0
  %3343 = vmatprep.subr.mxu0 0.0
  %3344 = vmatpush2.msra.mxu0 0.0
  %3345 = vmatprep.subr.mxu0 0.0
  %3346 = vmatpush2.msra.mxu0 0.0
  %3347 = vmatprep.mubr.f32.mxu0 0.0
  %3348 = vmatmul.mubr.f32.gmra.mxu0 %v3091
  %v3349 = vpop.f32.mrf.mxu0
  %v3350 = vadd.f32 0.0, %v3349
  %v3351 = vpop.f32.mrf.mxu0
  %3352 = vmatprep.mubr.f32.mxu0 0.0
  %3353 = vmatmul.mubr.f32.gmra.mxu0 %v3094
  %v3354 = vpop.f32.mrf.mxu0
  %v3355 = vadd.f32 0.0, %v3354
  %v3356 = vpop.f32.mrf.mxu0
  %3357 = vmatprep.mubr.f32.mxu0 0.0
  %3358 = vmatmul.mubr.f32.gmra.mxu0 %v3097
  %v3359 = vpop.f32.mrf.mxu0
  %v3360 = vadd.f32 0.0, %v3359
  %v3361 = vpop.f32.mrf.mxu0
  %3362 = vmatprep.mubr.f32.mxu0 0.0
  %3363 = vmatmul.mubr.f32.gmra.mxu0 %v3100
  %v3364 = vpop.f32.mrf.mxu0
  %v3365 = vadd.f32 0.0, %v3364
  %v3366 = vpop.f32.mrf.mxu0
  %3367 = vmatprep.mubr.f32.mxu0 0.0
  %3368 = vmatmul.mubr.f32.gmra.mxu0 %v3103
  %v3369 = vpop.f32.mrf.mxu0
  %v3370 = vadd.f32 0.0, %v3369
  %v3371 = vpop.f32.mrf.mxu0
  %3372 = vmatprep.mubr.f32.mxu0 0.0
  %3373 = vmatmul.mubr.f32.gmra.mxu0 %v3106
  %v3374 = vpop.f32.mrf.mxu0
  %v3375 = vadd.f32 0.0, %v3374
  %v3376 = vpop.f32.mrf.mxu0
  %3377 = vmatprep.mubr.f32.mxu0 0.0
  %3378 = vmatmul.mubr.f32.gmra.mxu0 %v3109
  %v3379 = vpop.f32.mrf.mxu0
  %v3380 = vadd.f32 0.0, %v3379
  %v3381 = vpop.f32.mrf.mxu0
  %3382 = vmatprep.mubr.f32.mxu0 0.0
  %3383 = vmatmul.mubr.f32.gmra.mxu0 %v3112
  %v3384 = vpop.f32.mrf.mxu0
  %v3385 = vadd.f32 0.0, %v3384
  %v3386 = vpop.f32.mrf.mxu0
  %3387 = vmatprep.mubr.f32.mxu0 0.0
  %3388 = vmatmul.mubr.f32.gmra.mxu0 %v3115
  %v3389 = vpop.f32.mrf.mxu0
  %v3390 = vadd.f32 0.0, %v3389
  %v3391 = vpop.f32.mrf.mxu0
  %3392 = vmatprep.mubr.f32.mxu0 0.0
  %3393 = vmatmul.mubr.f32.gmra.mxu0 %v3118
  %v3394 = vpop.f32.mrf.mxu0
  %v3395 = vadd.f32 0.0, %v3394
  %v3396 = vpop.f32.mrf.mxu0
  %3397 = vmatprep.mubr.f32.mxu0 0.0
  %3398 = vmatmul.mubr.f32.gmra.mxu0 %v3121
  %v3399 = vpop.f32.mrf.mxu0
  %v3400 = vadd.f32 0.0, %v3399
  %v3401 = vpop.f32.mrf.mxu0
  %3402 = vmatprep.mubr.f32.mxu0 0.0
  %3403 = vmatmul.mubr.f32.gmra.mxu0 %v3124
  %v3404 = vpop.f32.mrf.mxu0
  %v3405 = vadd.f32 0.0, %v3404
  %v3406 = vpop.f32.mrf.mxu0
  %3407 = vmatprep.mubr.f32.mxu0 0.0
  %3408 = vmatmul.mubr.f32.gmra.mxu0 %v3127
  %v3409 = vpop.f32.mrf.mxu0
  %v3410 = vadd.f32 0.0, %v3409
  %v3411 = vpop.f32.mrf.mxu0
  %3412 = vmatprep.mubr.f32.mxu0 0.0
  %3413 = vmatmul.mubr.f32.gmra.mxu0 %v3130
  %v3414 = vpop.f32.mrf.mxu0
  %v3415 = vadd.f32 0.0, %v3414
  %v3416 = vpop.f32.mrf.mxu0
  %3417 = vmatprep.mubr.f32.mxu0 0.0
  %3418 = vmatmul.mubr.f32.gmra.mxu0 %v3133
  %v3419 = vpop.f32.mrf.mxu0
  %v3420 = vadd.f32 0.0, %v3419
  %v3421 = vpop.f32.mrf.mxu0
  %3422 = vmatprep.mubr.f32.mxu0 0.0
  %3423 = vmatmul.mubr.f32.gmra.mxu0 %v3136
  %v3424 = vpop.f32.mrf.mxu0
  %v3425 = vadd.f32 0.0, %v3424
  %v3426 = vpop.f32.mrf.mxu0
  %3427 = vdwg.mxu0
  %3429 = vset.pattern.permute.xlu0 0
  %3430 = vperm.xlu0 %3429, %v3205
  %v3431 = vpop.permute.xlu0 %3430
  %3434 = vset.pattern.permute.xlu0 0
  %3435 = vperm.xlu0 %3434, %v3210
  %v3436 = vpop.permute.xlu0 %3435
  %3439 = vset.pattern.permute.xlu0 0
  %3440 = vperm.xlu0 %3439, %v3215
  %v3441 = vpop.permute.xlu0 %3440
  %3444 = vset.pattern.permute.xlu0 0
  %3445 = vperm.xlu0 %3444, %v3220
  %v3446 = vpop.permute.xlu0 %3445
  %3449 = vset.pattern.permute.xlu0 0
  %3450 = vperm.xlu0 %3449, %v3225
  %v3451 = vpop.permute.xlu0 %3450
  %3454 = vset.pattern.permute.xlu0 0
  %3455 = vperm.xlu0 %3454, %v3230
  %v3456 = vpop.permute.xlu0 %3455
  %3459 = vset.pattern.permute.xlu0 0
  %3460 = vperm.xlu0 %3459, %v3235
  %v3461 = vpop.permute.xlu0 %3460
  %3464 = vset.pattern.permute.xlu0 0
  %3465 = vperm.xlu0 %3464, %v3240
  %v3466 = vpop.permute.xlu0 %3465
  %3469 = vset.pattern.permute.xlu0 0
  %3470 = vperm.xlu0 %3469, %v3245
  %v3471 = vpop.permute.xlu0 %3470
  %3474 = vset.pattern.permute.xlu0 0
  %3475 = vperm.xlu0 %3474, %v3250
  %v3476 = vpop.permute.xlu0 %3475
  %3479 = vset.pattern.permute.xlu0 0
  %3480 = vperm.xlu0 %3479, %v3255
  %v3481 = vpop.permute.xlu0 %3480
  %3484 = vset.pattern.permute.xlu0 0
  %3485 = vperm.xlu0 %3484, %v3260
  %v3486 = vpop.permute.xlu0 %3485
  %3489 = vset.pattern.permute.xlu0 0
  %3490 = vperm.xlu0 %3489, %v3265
  %v3491 = vpop.permute.xlu0 %3490
  %3494 = vset.pattern.permute.xlu0 0
  %3495 = vperm.xlu0 %3494, %v3270
  %v3496 = vpop.permute.xlu0 %3495
  %3499 = vset.pattern.permute.xlu0 0
  %3500 = vperm.xlu0 %3499, %v3275
  %v3501 = vpop.permute.xlu0 %3500
  %3504 = vset.pattern.permute.xlu0 0
  %3505 = vperm.xlu0 %3504, %v3280
  %v3506 = vpop.permute.xlu0 %3505
  %v3508 = vmul.f32 %v2795, %v3431
  %v3509 = vmul.f32 %v2796, %v3436
  %v3510 = vmul.f32 %v2797, %v3441
  %v3511 = vmul.f32 %v2798, %v3446
  %v3512 = vmul.f32 %v2799, %v3451
  %v3513 = vmul.f32 %v2800, %v3456
  %v3514 = vmul.f32 %v2801, %v3461
  %v3515 = vmul.f32 %v2802, %v3466
  %v3516 = vmul.f32 %v2803, %v3471
  %v3517 = vmul.f32 %v2804, %v3476
  %v3518 = vmul.f32 %v2805, %v3481
  %v3519 = vmul.f32 %v2806, %v3486
  %v3520 = vmul.f32 %v2807, %v3491
  %v3521 = vmul.f32 %v2808, %v3496
  %v3522 = vmul.f32 %v2809, %v3501
  %v3523 = vmul.f32 %v2810, %v3506
  %3525 = vset.pattern.permute.xlu0 0
  %3526 = vperm.xlu0 %3525, %v3350
  %v3527 = vpop.permute.xlu0 %3526
  %3530 = vset.pattern.permute.xlu0 0
  %3531 = vperm.xlu0 %3530, %v3355
  %v3532 = vpop.permute.xlu0 %3531
  %3535 = vset.pattern.permute.xlu0 0
  %3536 = vperm.xlu0 %3535, %v3360
  %v3537 = vpop.permute.xlu0 %3536
  %3540 = vset.pattern.permute.xlu0 0
  %3541 = vperm.xlu0 %3540, %v3365
  %v3542 = vpop.permute.xlu0 %3541
  %3545 = vset.pattern.permute.xlu0 0
  %3546 = vperm.xlu0 %3545, %v3370
  %v3547 = vpop.permute.xlu0 %3546
  %3550 = vset.pattern.permute.xlu0 0
  %3551 = vperm.xlu0 %3550, %v3375
  %v3552 = vpop.permute.xlu0 %3551
  %3555 = vset.pattern.permute.xlu0 0
  %3556 = vperm.xlu0 %3555, %v3380
  %v3557 = vpop.permute.xlu0 %3556
  %3560 = vset.pattern.permute.xlu0 0
  %3561 = vperm.xlu0 %3560, %v3385
  %v3562 = vpop.permute.xlu0 %3561
  %3565 = vset.pattern.permute.xlu0 0
  %3566 = vperm.xlu0 %3565, %v3390
  %v3567 = vpop.permute.xlu0 %3566
  %3570 = vset.pattern.permute.xlu0 0
  %3571 = vperm.xlu0 %3570, %v3395
  %v3572 = vpop.permute.xlu0 %3571
  %3575 = vset.pattern.permute.xlu0 0
  %3576 = vperm.xlu0 %3575, %v3400
  %v3577 = vpop.permute.xlu0 %3576
  %3580 = vset.pattern.permute.xlu0 0
  %3581 = vperm.xlu0 %3580, %v3405
  %v3582 = vpop.permute.xlu0 %3581
  %3585 = vset.pattern.permute.xlu0 0
  %3586 = vperm.xlu0 %3585, %v3410
  %v3587 = vpop.permute.xlu0 %3586
  %3590 = vset.pattern.permute.xlu0 0
  %3591 = vperm.xlu0 %3590, %v3415
  %v3592 = vpop.permute.xlu0 %3591
  %3595 = vset.pattern.permute.xlu0 0
  %3596 = vperm.xlu0 %3595, %v3420
  %v3597 = vpop.permute.xlu0 %3596
  %3600 = vset.pattern.permute.xlu0 0
  %3601 = vperm.xlu0 %3600, %v3425
  %v3602 = vpop.permute.xlu0 %3601
  %v3604 = vadd.f32 %v3508, %v3527
  %v3605 = vadd.f32 %v3509, %v3532
  %v3606 = vadd.f32 %v3510, %v3537
  %v3607 = vadd.f32 %v3511, %v3542
  %v3608 = vadd.f32 %v3512, %v3547
  %v3609 = vadd.f32 %v3513, %v3552
  %v3610 = vadd.f32 %v3514, %v3557
  %v3611 = vadd.f32 %v3515, %v3562
  %v3612 = vadd.f32 %v3516, %v3567
  %v3613 = vadd.f32 %v3517, %v3572
  %v3614 = vadd.f32 %v3518, %v3577
  %v3615 = vadd.f32 %v3519, %v3582
  %v3616 = vadd.f32 %v3520, %v3587
  %v3617 = vadd.f32 %v3521, %v3592
  %v3618 = vadd.f32 %v3522, %v3597
  %v3619 = vadd.f32 %v3523, %v3602
  %v3620 = vpack.c.bf16 %v3605, %v3604
  %v3621 = vpack.c.bf16 %v3607, %v3606
  %v3622 = vpack.c.bf16 %v3609, %v3608
  %v3623 = vpack.c.bf16 %v3611, %v3610
  %v3624 = vpack.c.bf16 %v3613, %v3612
  %v3625 = vpack.c.bf16 %v3615, %v3614
  %v3626 = vpack.c.bf16 %v3617, %v3616
  %v3627 = vpack.c.bf16 %v3619, %v3618
  %v3628 = vld [vmem:[%s4] sm:$0xf]
  %v3629 = vld [vmem:[%s4 + $0x4] sm:$0xf]
  %v3630 = vld [vmem:[%s4 + $0x8] sm:$0xf]
  %v3631 = vld [vmem:[%s4 + $0xc] sm:$0xf]
  %v3632 = vld [vmem:[%s6] sm:$0x1]
  %v3634 = vlaneseq
  %v3635 = vshrl.u32 %v3634, 7
  %v3636 = vsub.s32 0, %v3635
  %v3637 = vrot.slane %v3632, %v3636
  %v3643 = vunpack.c.l.b16 %v3628
  %v3644 = vunpack.c.l.b16 %v3629
  %v3645 = vunpack.c.l.b16 %v3630
  %v3646 = vunpack.c.l.b16 %v3631
  %v3647 = vpack.c.b16 %v3644, %v3643
  %v3648 = vpack.c.b16 %v3646, %v3645
  %v3652 = vsel %vm270, %v3620, 0
  %v3655 = vsel %vm270, %v3621, 0
  %v3658 = vsel %vm270, %v3622, 0
  %v3661 = vsel %vm270, %v3623, 0
  %v3664 = vsel %vm270, %v3624, 0
  %v3667 = vsel %vm270, %v3625, 0
  %v3670 = vsel %vm270, %v3626, 0
  %v3673 = vsel %vm270, %v3627, 0
  %3675 = vmatprep.subr.bf16.mxu0 0
  %3676 = vmatpush1.bf16.msra.mxu0 0
  %3677 = vmatprep.subr.bf16.mxu0 0
  %3678 = vmatpush1.bf16.msra.mxu0 0
  %3679 = vmatprep.subr.bf16.mxu0 0
  %3680 = vmatpush1.bf16.msra.mxu0 0
  %3681 = vmatprep.subr.bf16.mxu0 0
  %3682 = vmatpush1.bf16.msra.mxu0 0
  %3683 = vmatprep.subr.bf16.mxu0 0
  %3684 = vmatpush1.bf16.msra.mxu0 0
  %3685 = vmatprep.subr.bf16.mxu0 0
  %3686 = vmatpush1.bf16.msra.mxu0 0
  %3687 = vmatprep.subr.bf16.mxu0 0
  %3688 = vmatpush1.bf16.msra.mxu0 %v3648
  %3689 = vmatprep.subr.bf16.mxu0 0
  %3690 = vmatpush1.bf16.msra.mxu0 %v3647
  %3691 = vmatprep.subr.bf16.mxu0 0
  %3692 = vmatpush2.bf16.msra.mxu0 0
  %3693 = vmatprep.subr.bf16.mxu0 0
  %3694 = vmatpush2.bf16.msra.mxu0 0
  %3695 = vmatprep.subr.bf16.mxu0 0
  %3696 = vmatpush2.bf16.msra.mxu0 0
  %3697 = vmatprep.subr.bf16.mxu0 0
  %3698 = vmatpush2.bf16.msra.mxu0 0
  %3699 = vmatprep.subr.bf16.mxu0 0
  %3700 = vmatpush2.bf16.msra.mxu0 0
  %3701 = vmatprep.subr.bf16.mxu0 0
  %3702 = vmatpush2.bf16.msra.mxu0 0
  %3703 = vmatprep.subr.bf16.mxu0 0
  %3704 = vmatpush2.bf16.msra.mxu0 0
  %3705 = vmatprep.subr.bf16.mxu0 0
  %3706 = vmatpush2.bf16.msra.mxu0 0
  %3707 = vmatprep.mubr.bf16.mxu0 0
  %3708 = vmatmul.mubr.bf16.gmra.mxu0 %v3652
  %v3709 = vpop.f32.mrf.mxu0
  %v3710 = vadd.f32 %v3637, %v3709
  %v3711 = vpop.f32.mrf.mxu0
  %v3712 = vpop.f32.mrf.mxu0
  %v3713 = vadd.f32 %v3637, %v3712
  %v3714 = vpop.f32.mrf.mxu0
  %3715 = vmatprep.mubr.bf16.mxu0 0
  %3716 = vmatmul.mubr.bf16.gmra.mxu0 %v3655
  %v3717 = vpop.f32.mrf.mxu0
  %v3718 = vadd.f32 %v3637, %v3717
  %v3719 = vpop.f32.mrf.mxu0
  %v3720 = vpop.f32.mrf.mxu0
  %v3721 = vadd.f32 %v3637, %v3720
  %v3722 = vpop.f32.mrf.mxu0
  %3723 = vmatprep.mubr.bf16.mxu0 0
  %3724 = vmatmul.mubr.bf16.gmra.mxu0 %v3658
  %v3725 = vpop.f32.mrf.mxu0
  %v3726 = vadd.f32 %v3637, %v3725
  %v3727 = vpop.f32.mrf.mxu0
  %v3728 = vpop.f32.mrf.mxu0
  %v3729 = vadd.f32 %v3637, %v3728
  %v3730 = vpop.f32.mrf.mxu0
  %3731 = vmatprep.mubr.bf16.mxu0 0
  %3732 = vmatmul.mubr.bf16.gmra.mxu0 %v3661
  %v3733 = vpop.f32.mrf.mxu0
  %v3734 = vadd.f32 %v3637, %v3733
  %v3735 = vpop.f32.mrf.mxu0
  %v3736 = vpop.f32.mrf.mxu0
  %v3737 = vadd.f32 %v3637, %v3736
  %v3738 = vpop.f32.mrf.mxu0
  %3739 = vmatprep.mubr.bf16.mxu0 0
  %3740 = vmatmul.mubr.bf16.gmra.mxu0 %v3664
  %v3741 = vpop.f32.mrf.mxu0
  %v3742 = vadd.f32 %v3637, %v3741
  %v3743 = vpop.f32.mrf.mxu0
  %v3744 = vpop.f32.mrf.mxu0
  %v3745 = vadd.f32 %v3637, %v3744
  %v3746 = vpop.f32.mrf.mxu0
  %3747 = vmatprep.mubr.bf16.mxu0 0
  %3748 = vmatmul.mubr.bf16.gmra.mxu0 %v3667
  %v3749 = vpop.f32.mrf.mxu0
  %v3750 = vadd.f32 %v3637, %v3749
  %v3751 = vpop.f32.mrf.mxu0
  %v3752 = vpop.f32.mrf.mxu0
  %v3753 = vadd.f32 %v3637, %v3752
  %v3754 = vpop.f32.mrf.mxu0
  %3755 = vmatprep.mubr.bf16.mxu0 0
  %3756 = vmatmul.mubr.bf16.gmra.mxu0 %v3670
  %v3757 = vpop.f32.mrf.mxu0
  %v3758 = vadd.f32 %v3637, %v3757
  %v3759 = vpop.f32.mrf.mxu0
  %v3760 = vpop.f32.mrf.mxu0
  %v3761 = vadd.f32 %v3637, %v3760
  %v3762 = vpop.f32.mrf.mxu0
  %3763 = vmatprep.mubr.bf16.mxu0 0
  %3764 = vmatmul.mubr.bf16.gmra.mxu0 %v3673
  %v3765 = vpop.f32.mrf.mxu0
  %v3766 = vadd.f32 %v3637, %v3765
  %v3767 = vpop.f32.mrf.mxu0
  %v3768 = vpop.f32.mrf.mxu0
  %v3769 = vadd.f32 %v3637, %v3768
  %v3770 = vpop.f32.mrf.mxu0
  %3771 = vdwg.mxu0
  %3772 = vst [vmem:[#allocation2] sm:$0xff] %v3710
  %3773 = vst [vmem:[#allocation2 + $0x8] sm:$0xff] %v3713
  %3774 = vst [vmem:[#allocation2 + $0x10] sm:$0xff] %v3718
  %3775 = vst [vmem:[#allocation2 + $0x18] sm:$0xff] %v3721
  %3776 = vst [vmem:[#allocation2 + $0x20] sm:$0xff] %v3726
  %3777 = vst [vmem:[#allocation2 + $0x28] sm:$0xff] %v3729
  %3778 = vst [vmem:[#allocation2 + $0x30] sm:$0xff] %v3734
  %3779 = vst [vmem:[#allocation2 + $0x38] sm:$0xff] %v3737
  %3780 = vst [vmem:[#allocation2 + $0x40] sm:$0xff] %v3742
  %3781 = vst [vmem:[#allocation2 + $0x48] sm:$0xff] %v3745
  %3782 = vst [vmem:[#allocation2 + $0x50] sm:$0xff] %v3750
  %3783 = vst [vmem:[#allocation2 + $0x58] sm:$0xff] %v3753
  %3784 = vst [vmem:[#allocation2 + $0x60] sm:$0xff] %v3758
  %3785 = vst [vmem:[#allocation2 + $0x68] sm:$0xff] %v3761
  %3786 = vst [vmem:[#allocation2 + $0x70] sm:$0xff] %v3766
  %3787 = vst [vmem:[#allocation2 + $0x78] sm:$0xff] %v3769
  %v3788 = vld [vmem:[%s5] sm:$0xf]
  %v3789 = vld [vmem:[%s5 + $0x4] sm:$0xf]
  %v3790 = vld [vmem:[%s5 + $0x8] sm:$0xf]
  %v3791 = vld [vmem:[%s5 + $0xc] sm:$0xf]
  %v3792 = vld [vmem:[#allocation2] sm:$0xf]
  %v3797 = vunpack.c.l.b16 %v3788
  %v3798 = vunpack.c.l.b16 %v3789
  %v3799 = vunpack.c.l.b16 %v3790
  %v3800 = vunpack.c.l.b16 %v3791
  %v3801 = vpack.c.b16 %v3798, %v3797
  %v3802 = vpack.c.b16 %v3800, %v3799
  %3805 = vmatprep.subr.bf16.mxu0 0
  %3806 = vmatpush1.bf16.msra.mxu0 0
  %3807 = vmatprep.subr.bf16.mxu0 0
  %3808 = vmatpush1.bf16.msra.mxu0 0
  %3809 = vmatprep.subr.bf16.mxu0 0
  %3810 = vmatpush1.bf16.msra.mxu0 0
  %3811 = vmatprep.subr.bf16.mxu0 0
  %3812 = vmatpush1.bf16.msra.mxu0 0
  %3813 = vmatprep.subr.bf16.mxu0 0
  %3814 = vmatpush1.bf16.msra.mxu0 0
  %3815 = vmatprep.subr.bf16.mxu0 0
  %3816 = vmatpush1.bf16.msra.mxu0 0
  %3817 = vmatprep.subr.bf16.mxu0 0
  %3818 = vmatpush1.bf16.msra.mxu0 %v3802
  %3819 = vmatprep.subr.bf16.mxu0 0
  %3820 = vmatpush1.bf16.msra.mxu0 %v3801
  %3821 = vmatprep.subr.bf16.mxu0 0
  %3822 = vmatpush2.bf16.msra.mxu0 0
  %3823 = vmatprep.subr.bf16.mxu0 0
  %3824 = vmatpush2.bf16.msra.mxu0 0
  %3825 = vmatprep.subr.bf16.mxu0 0
  %3826 = vmatpush2.bf16.msra.mxu0 0
  %3827 = vmatprep.subr.bf16.mxu0 0
  %3828 = vmatpush2.bf16.msra.mxu0 0
  %3829 = vmatprep.subr.bf16.mxu0 0
  %3830 = vmatpush2.bf16.msra.mxu0 0
  %3831 = vmatprep.subr.bf16.mxu0 0
  %3832 = vmatpush2.bf16.msra.mxu0 0
  %3833 = vmatprep.subr.bf16.mxu0 0
  %3834 = vmatpush2.bf16.msra.mxu0 0
  %3835 = vmatprep.subr.bf16.mxu0 0
  %3836 = vmatpush2.bf16.msra.mxu0 0
  %3837 = vmatprep.mubr.bf16.mxu0 0
  %3838 = vmatmul.mubr.bf16.gmra.mxu0 %v272
  %v3839 = vpop.f32.mrf.mxu0
  %v3840 = vadd.f32 0.0, %v3839
  %v3841 = vpop.f32.mrf.mxu0
  %v3842 = vpop.f32.mrf.mxu0
  %v3843 = vpop.f32.mrf.mxu0
  %3844 = vdwg.mxu0
  %v3845 = vadd.f32 %v3792, %v3840
  %v3846 = vxor.u32 %v3845, 2147483648
  %v3847 = vmul.f32 %v3846, 1.442695
  %v3848 = vpow.pop %v3847
  %v3849 = vadd.f32 %v3848, 1.0
  %v3850 = vrcp.pop %v3849
  %v3851 = vmul.f32 1.0, %v3850
  %v3852 = vmul.f32 %v3851, 2.0
  %v3853 = vsub.f32 %v3852, 1.0
  %v3854 = vmul.f32 %v3851, 0.0
  %3856 = vrot.lane.b32.xlu0 %v3853, 64
  %v3857 = vpop.permute.xlu0 %3856
  %v3859 = vmul.f32 %v3851, %v3857
  %3861 = vrot.lane.b32.xlu0 %v3859, 32
  %v3862 = vpop.permute.xlu0 %3861
  %v3864 = vadd.f32 %v3854, %v3862
  %v3865 = vtanh.pop %v3864
  %3867 = vrot.lane.b32.xlu0 %v3865, 64
  %v3868 = vpop.permute.xlu0 %3867
  %v3870 = vmul.f32 %v3851, %v3868
  %3872 = vrot.lane.b32.xlu0 %v3870, 32
  %v3873 = vpop.permute.xlu0 %3872
  %3875 = vst.msk [vmem:[#allocation3] sm:$0xf] %vm344, %v3873
  %v3876 = vld [vmem:[#allocation2 + $0x4] sm:$0xf]
  %v3877 = vpack.c.bf16 %v3870, %v3870
  %3879 = vrot.lane.b32.xlu0 %v3877, 32
  %v3880 = vpop.permute.xlu0 %3879
  %v3882 = vsel %vm270, %v3880, 0
  %3884 = vmatprep.subr.bf16.mxu0 0
  %3885 = vmatpush1.bf16.msra.mxu0 0
  %3886 = vmatprep.subr.bf16.mxu0 0
  %3887 = vmatpush1.bf16.msra.mxu0 0
  %3888 = vmatprep.subr.bf16.mxu0 0
  %3889 = vmatpush1.bf16.msra.mxu0 0
  %3890 = vmatprep.subr.bf16.mxu0 0
  %3891 = vmatpush1.bf16.msra.mxu0 0
  %3892 = vmatprep.subr.bf16.mxu0 0
  %3893 = vmatpush1.bf16.msra.mxu0 0
  %3894 = vmatprep.subr.bf16.mxu0 0
  %3895 = vmatpush1.bf16.msra.mxu0 0
  %3896 = vmatprep.subr.bf16.mxu0 0
  %3897 = vmatpush1.bf16.msra.mxu0 %v3802
  %3898 = vmatprep.subr.bf16.mxu0 0
  %3899 = vmatpush1.bf16.msra.mxu0 %v3801
  %3900 = vmatprep.subr.bf16.mxu0 0
  %3901 = vmatpush2.bf16.msra.mxu0 0
  %3902 = vmatprep.subr.bf16.mxu0 0
  %3903 = vmatpush2.bf16.msra.mxu0 0
  %3904 = vmatprep.subr.bf16.mxu0 0
  %3905 = vmatpush2.bf16.msra.mxu0 0
  %3906 = vmatprep.subr.bf16.mxu0 0
  %3907 = vmatpush2.bf16.msra.mxu0 0
  %3908 = vmatprep.subr.bf16.mxu0 0
  %3909 = vmatpush2.bf16.msra.mxu0 0
  %3910 = vmatprep.subr.bf16.mxu0 0
  %3911 = vmatpush2.bf16.msra.mxu0 0
  %3912 = vmatprep.subr.bf16.mxu0 0
  %3913 = vmatpush2.bf16.msra.mxu0 0
  %3914 = vmatprep.subr.bf16.mxu0 0
  %3915 = vmatpush2.bf16.msra.mxu0 0
  %3916 = vmatprep.mubr.bf16.mxu0 0
  %3917 = vmatmul.mubr.bf16.gmra.mxu0 %v3882
  %v3918 = vpop.f32.mrf.mxu0
  %v3919 = vadd.f32 0.0, %v3918
  %v3920 = vpop.f32.mrf.mxu0
  %v3921 = vpop.f32.mrf.mxu0
  %v3922 = vpop.f32.mrf.mxu0
  %3923 = vdwg.mxu0
  %v3924 = vadd.f32 %v3876, %v3919
  %v3925 = vxor.u32 %v3924, 2147483648
  %v3926 = vmul.f32 %v3925, 1.442695
  %v3927 = vpow.pop %v3926
  %v3928 = vadd.f32 %v3927, 1.0
  %v3929 = vrcp.pop %v3928
  %v3930 = vmul.f32 1.0, %v3929
  %v3931 = vmul.f32 %v3930, 2.0
  %v3932 = vsub.f32 %v3931, 1.0
  %v3933 = vmul.f32 %v3930, %v3864
  %3935 = vrot.lane.b32.xlu0 %v3932, 64
  %v3936 = vpop.permute.xlu0 %3935
  %v3938 = vmul.f32 %v3930, %v3936
  %3940 = vrot.lane.b32.xlu0 %v3938, 32
  %v3941 = vpop.permute.xlu0 %3940
  %v3943 = vadd.f32 %v3933, %v3941
  %v3944 = vtanh.pop %v3943
  %3946 = vrot.lane.b32.xlu0 %v3944, 64
  %v3947 = vpop.permute.xlu0 %3946
  %v3949 = vmul.f32 %v3930, %v3947
  %3951 = vrot.lane.b32.xlu0 %v3949, 32
  %v3952 = vpop.permute.xlu0 %3951
  %3954 = vst.msk [vmem:[#allocation3 + $0x4] sm:$0xf] %vm344, %v3952
  %v3955 = vld [vmem:[#allocation2 + $0x8] sm:$0xf]
  %v3956 = vpack.c.bf16 %v3949, %v3949
  %3958 = vrot.lane.b32.xlu0 %v3956, 32
  %v3959 = vpop.permute.xlu0 %3958
  %v3961 = vsel %vm270, %v3959, 0
  %3963 = vmatprep.subr.bf16.mxu0 0
  %3964 = vmatpush1.bf16.msra.mxu0 0
  %3965 = vmatprep.subr.bf16.mxu0 0
  %3966 = vmatpush1.bf16.msra.mxu0 0
  %3967 = vmatprep.subr.bf16.mxu0 0
  %3968 = vmatpush1.bf16.msra.mxu0 0
  %3969 = vmatprep.subr.bf16.mxu0 0
  %3970 = vmatpush1.bf16.msra.mxu0 0
  %3971 = vmatprep.subr.bf16.mxu0 0
  %3972 = vmatpush1.bf16.msra.mxu0 0
  %3973 = vmatprep.subr.bf16.mxu0 0
  %3974 = vmatpush1.bf16.msra.mxu0 0
  %3975 = vmatprep.subr.bf16.mxu0 0
  %3976 = vmatpush1.bf16.msra.mxu0 %v3802
  %3977 = vmatprep.subr.bf16.mxu0 0
  %3978 = vmatpush1.bf16.msra.mxu0 %v3801
  %3979 = vmatprep.subr.bf16.mxu0 0
  %3980 = vmatpush2.bf16.msra.mxu0 0
  %3981 = vmatprep.subr.bf16.mxu0 0
  %3982 = vmatpush2.bf16.msra.mxu0 0
  %3983 = vmatprep.subr.bf16.mxu0 0
  %3984 = vmatpush2.bf16.msra.mxu0 0
  %3985 = vmatprep.subr.bf16.mxu0 0
  %3986 = vmatpush2.bf16.msra.mxu0 0
  %3987 = vmatprep.subr.bf16.mxu0 0
  %3988 = vmatpush2.bf16.msra.mxu0 0
  %3989 = vmatprep.subr.bf16.mxu0 0
  %3990 = vmatpush2.bf16.msra.mxu0 0
  %3991 = vmatprep.subr.bf16.mxu0 0
  %3992 = vmatpush2.bf16.msra.mxu0 0
  %3993 = vmatprep.subr.bf16.mxu0 0
  %3994 = vmatpush2.bf16.msra.mxu0 0
  %3995 = vmatprep.mubr.bf16.mxu0 0
  %3996 = vmatmul.mubr.bf16.gmra.mxu0 %v3961
  %v3997 = vpop.f32.mrf.mxu0
  %v3998 = vadd.f32 0.0, %v3997
  %v3999 = vpop.f32.mrf.mxu0
  %v4000 = vpop.f32.mrf.mxu0
  %v4001 = vpop.f32.mrf.mxu0
  %4002 = vdwg.mxu0
  %v4003 = vadd.f32 %v3955, %v3998
  %v4004 = vxor.u32 %v4003, 2147483648
  %v4005 = vmul.f32 %v4004, 1.442695
  %v4006 = vpow.pop %v4005
  %v4007 = vadd.f32 %v4006, 1.0
  %v4008 = vrcp.pop %v4007
  %v4009 = vmul.f32 1.0, %v4008
  %v4010 = vmul.f32 %v4009, 2.0
  %v4011 = vsub.f32 %v4010, 1.0
  %v4012 = vmul.f32 %v4009, %v3943
  %4014 = vrot.lane.b32.xlu0 %v4011, 64
  %v4015 = vpop.permute.xlu0 %4014
  %v4017 = vmul.f32 %v4009, %v4015
  %4019 = vrot.lane.b32.xlu0 %v4017, 32
  %v4020 = vpop.permute.xlu0 %4019
  %v4022 = vadd.f32 %v4012, %v4020
  %v4023 = vtanh.pop %v4022
  %4025 = vrot.lane.b32.xlu0 %v4023, 64
  %v4026 = vpop.permute.xlu0 %4025
  %v4028 = vmul.f32 %v4009, %v4026
  %4030 = vrot.lane.b32.xlu0 %v4028, 32
  %v4031 = vpop.permute.xlu0 %4030
  %4033 = vst.msk [vmem:[#allocation3 + $0x8] sm:$0xf] %vm344, %v4031
  %v4034 = vld [vmem:[#allocation2 + $0xc] sm:$0xf]
  %v4035 = vpack.c.bf16 %v4028, %v4028
  %4037 = vrot.lane.b32.xlu0 %v4035, 32
  %v4038 = vpop.permute.xlu0 %4037
  %v4040 = vsel %vm270, %v4038, 0
  %4042 = vmatprep.subr.bf16.mxu0 0
  %4043 = vmatpush1.bf16.msra.mxu0 0
  %4044 = vmatprep.subr.bf16.mxu0 0
  %4045 = vmatpush1.bf16.msra.mxu0 0
  %4046 = vmatprep.subr.bf16.mxu0 0
  %4047 = vmatpush1.bf16.msra.mxu0 0
  %4048 = vmatprep.subr.bf16.mxu0 0
  %4049 = vmatpush1.bf16.msra.mxu0 0
  %4050 = vmatprep.subr.bf16.mxu0 0
  %4051 = vmatpush1.bf16.msra.mxu0 0
  %4052 = vmatprep.subr.bf16.mxu0 0
  %4053 = vmatpush1.bf16.msra.mxu0 0
  %4054 = vmatprep.subr.bf16.mxu0 0
  %4055 = vmatpush1.bf16.msra.mxu0 %v3802
  %4056 = vmatprep.subr.bf16.mxu0 0
  %4057 = vmatpush1.bf16.msra.mxu0 %v3801
  %4058 = vmatprep.subr.bf16.mxu0 0
  %4059 = vmatpush2.bf16.msra.mxu0 0
  %4060 = vmatprep.subr.bf16.mxu0 0
  %4061 = vmatpush2.bf16.msra.mxu0 0
  %4062 = vmatprep.subr.bf16.mxu0 0
  %4063 = vmatpush2.bf16.msra.mxu0 0
  %4064 = vmatprep.subr.bf16.mxu0 0
  %4065 = vmatpush2.bf16.msra.mxu0 0
  %4066 = vmatprep.subr.bf16.mxu0 0
  %4067 = vmatpush2.bf16.msra.mxu0 0
  %4068 = vmatprep.subr.bf16.mxu0 0
  %4069 = vmatpush2.bf16.msra.mxu0 0
  %4070 = vmatprep.subr.bf16.mxu0 0
  %4071 = vmatpush2.bf16.msra.mxu0 0
  %4072 = vmatprep.subr.bf16.mxu0 0
  %4073 = vmatpush2.bf16.msra.mxu0 0
  %4074 = vmatprep.mubr.bf16.mxu0 0
  %4075 = vmatmul.mubr.bf16.gmra.mxu0 %v4040
  %v4076 = vpop.f32.mrf.mxu0
  %v4077 = vadd.f32 0.0, %v4076
  %v4078 = vpop.f32.mrf.mxu0
  %v4079 = vpop.f32.mrf.mxu0
  %v4080 = vpop.f32.mrf.mxu0
  %4081 = vdwg.mxu0
  %v4082 = vadd.f32 %v4034, %v4077
  %v4083 = vxor.u32 %v4082, 2147483648
  %v4084 = vmul.f32 %v4083, 1.442695
  %v4085 = vpow.pop %v4084
  %v4086 = vadd.f32 %v4085, 1.0
  %v4087 = vrcp.pop %v4086
  %v4088 = vmul.f32 1.0, %v4087
  %v4089 = vmul.f32 %v4088, 2.0
  %v4090 = vsub.f32 %v4089, 1.0
  %v4091 = vmul.f32 %v4088, %v4022
  %4093 = vrot.lane.b32.xlu0 %v4090, 64
  %v4094 = vpop.permute.xlu0 %4093
  %v4096 = vmul.f32 %v4088, %v4094
  %4098 = vrot.lane.b32.xlu0 %v4096, 32
  %v4099 = vpop.permute.xlu0 %4098
  %v4101 = vadd.f32 %v4091, %v4099
  %v4102 = vtanh.pop %v4101
  %4104 = vrot.lane.b32.xlu0 %v4102, 64
  %v4105 = vpop.permute.xlu0 %4104
  %v4107 = vmul.f32 %v4088, %v4105
  %4109 = vrot.lane.b32.xlu0 %v4107, 32
  %v4110 = vpop.permute.xlu0 %4109
  %4112 = vst.msk [vmem:[#allocation3 + $0xc] sm:$0xf] %vm344, %v4110
  %v4113 = vld [vmem:[#allocation2 + $0x10] sm:$0xf]
  %v4114 = vpack.c.bf16 %v4107, %v4107
  %4116 = vrot.lane.b32.xlu0 %v4114, 32
  %v4117 = vpop.permute.xlu0 %4116
  %v4119 = vsel %vm270, %v4117, 0
  %4121 = vmatprep.subr.bf16.mxu0 0
  %4122 = vmatpush1.bf16.msra.mxu0 0
  %4123 = vmatprep.subr.bf16.mxu0 0
  %4124 = vmatpush1.bf16.msra.mxu0 0
  %4125 = vmatprep.subr.bf16.mxu0 0
  %4126 = vmatpush1.bf16.msra.mxu0 0
  %4127 = vmatprep.subr.bf16.mxu0 0
  %4128 = vmatpush1.bf16.msra.mxu0 0
  %4129 = vmatprep.subr.bf16.mxu0 0
  %4130 = vmatpush1.bf16.msra.mxu0 0
  %4131 = vmatprep.subr.bf16.mxu0 0
  %4132 = vmatpush1.bf16.msra.mxu0 0
  %4133 = vmatprep.subr.bf16.mxu0 0
  %4134 = vmatpush1.bf16.msra.mxu0 %v3802
  %4135 = vmatprep.subr.bf16.mxu0 0
  %4136 = vmatpush1.bf16.msra.mxu0 %v3801
  %4137 = vmatprep.subr.bf16.mxu0 0
  %4138 = vmatpush2.bf16.msra.mxu0 0
  %4139 = vmatprep.subr.bf16.mxu0 0
  %4140 = vmatpush2.bf16.msra.mxu0 0
  %4141 = vmatprep.subr.bf16.mxu0 0
  %4142 = vmatpush2.bf16.msra.mxu0 0
  %4143 = vmatprep.subr.bf16.mxu0 0
  %4144 = vmatpush2.bf16.msra.mxu0 0
  %4145 = vmatprep.subr.bf16.mxu0 0
  %4146 = vmatpush2.bf16.msra.mxu0 0
  %4147 = vmatprep.subr.bf16.mxu0 0
  %4148 = vmatpush2.bf16.msra.mxu0 0
  %4149 = vmatprep.subr.bf16.mxu0 0
  %4150 = vmatpush2.bf16.msra.mxu0 0
  %4151 = vmatprep.subr.bf16.mxu0 0
  %4152 = vmatpush2.bf16.msra.mxu0 0
  %4153 = vmatprep.mubr.bf16.mxu0 0
  %4154 = vmatmul.mubr.bf16.gmra.mxu0 %v4119
  %v4155 = vpop.f32.mrf.mxu0
  %v4156 = vadd.f32 0.0, %v4155
  %v4157 = vpop.f32.mrf.mxu0
  %v4158 = vpop.f32.mrf.mxu0
  %v4159 = vpop.f32.mrf.mxu0
  %4160 = vdwg.mxu0
  %v4161 = vadd.f32 %v4113, %v4156
  %v4162 = vxor.u32 %v4161, 2147483648
  %v4163 = vmul.f32 %v4162, 1.442695
  %v4164 = vpow.pop %v4163
  %v4165 = vadd.f32 %v4164, 1.0
  %v4166 = vrcp.pop %v4165
  %v4167 = vmul.f32 1.0, %v4166
  %v4168 = vmul.f32 %v4167, 2.0
  %v4169 = vsub.f32 %v4168, 1.0
  %v4170 = vmul.f32 %v4167, %v4101
  %4172 = vrot.lane.b32.xlu0 %v4169, 64
  %v4173 = vpop.permute.xlu0 %4172
  %v4175 = vmul.f32 %v4167, %v4173
  %4177 = vrot.lane.b32.xlu0 %v4175, 32
  %v4178 = vpop.permute.xlu0 %4177
  %v4180 = vadd.f32 %v4170, %v4178
  %v4181 = vtanh.pop %v4180
  %4183 = vrot.lane.b32.xlu0 %v4181, 64
  %v4184 = vpop.permute.xlu0 %4183
  %v4186 = vmul.f32 %v4167, %v4184
  %4188 = vrot.lane.b32.xlu0 %v4186, 32
  %v4189 = vpop.permute.xlu0 %4188
  %4191 = vst.msk [vmem:[#allocation3 + $0x10] sm:$0xf] %vm344, %v4189
  %v4192 = vld [vmem:[#allocation2 + $0x14] sm:$0xf]
  %v4193 = vpack.c.bf16 %v4186, %v4186
  %4195 = vrot.lane.b32.xlu0 %v4193, 32
  %v4196 = vpop.permute.xlu0 %4195
  %v4198 = vsel %vm270, %v4196, 0
  %4200 = vmatprep.subr.bf16.mxu0 0
  %4201 = vmatpush1.bf16.msra.mxu0 0
  %4202 = vmatprep.subr.bf16.mxu0 0
  %4203 = vmatpush1.bf16.msra.mxu0 0
  %4204 = vmatprep.subr.bf16.mxu0 0
  %4205 = vmatpush1.bf16.msra.mxu0 0
  %4206 = vmatprep.subr.bf16.mxu0 0
  %4207 = vmatpush1.bf16.msra.mxu0 0
  %4208 = vmatprep.subr.bf16.mxu0 0
  %4209 = vmatpush1.bf16.msra.mxu0 0
  %4210 = vmatprep.subr.bf16.mxu0 0
  %4211 = vmatpush1.bf16.msra.mxu0 0
  %4212 = vmatprep.subr.bf16.mxu0 0
  %4213 = vmatpush1.bf16.msra.mxu0 %v3802
  %4214 = vmatprep.subr.bf16.mxu0 0
  %4215 = vmatpush1.bf16.msra.mxu0 %v3801
  %4216 = vmatprep.subr.bf16.mxu0 0
  %4217 = vmatpush2.bf16.msra.mxu0 0
  %4218 = vmatprep.subr.bf16.mxu0 0
  %4219 = vmatpush2.bf16.msra.mxu0 0
  %4220 = vmatprep.subr.bf16.mxu0 0
  %4221 = vmatpush2.bf16.msra.mxu0 0
  %4222 = vmatprep.subr.bf16.mxu0 0
  %4223 = vmatpush2.bf16.msra.mxu0 0
  %4224 = vmatprep.subr.bf16.mxu0 0
  %4225 = vmatpush2.bf16.msra.mxu0 0
  %4226 = vmatprep.subr.bf16.mxu0 0
  %4227 = vmatpush2.bf16.msra.mxu0 0
  %4228 = vmatprep.subr.bf16.mxu0 0
  %4229 = vmatpush2.bf16.msra.mxu0 0
  %4230 = vmatprep.subr.bf16.mxu0 0
  %4231 = vmatpush2.bf16.msra.mxu0 0
  %4232 = vmatprep.mubr.bf16.mxu0 0
  %4233 = vmatmul.mubr.bf16.gmra.mxu0 %v4198
  %v4234 = vpop.f32.mrf.mxu0
  %v4235 = vadd.f32 0.0, %v4234
  %v4236 = vpop.f32.mrf.mxu0
  %v4237 = vpop.f32.mrf.mxu0
  %v4238 = vpop.f32.mrf.mxu0
  %4239 = vdwg.mxu0
  %v4240 = vadd.f32 %v4192, %v4235
  %v4241 = vxor.u32 %v4240, 2147483648
  %v4242 = vmul.f32 %v4241, 1.442695
  %v4243 = vpow.pop %v4242
  %v4244 = vadd.f32 %v4243, 1.0
  %v4245 = vrcp.pop %v4244
  %v4246 = vmul.f32 1.0, %v4245
  %v4247 = vmul.f32 %v4246, 2.0
  %v4248 = vsub.f32 %v4247, 1.0
  %v4249 = vmul.f32 %v4246, %v4180
  %4251 = vrot.lane.b32.xlu0 %v4248, 64
  %v4252 = vpop.permute.xlu0 %4251
  %v4254 = vmul.f32 %v4246, %v4252
  %4256 = vrot.lane.b32.xlu0 %v4254, 32
  %v4257 = vpop.permute.xlu0 %4256
  %v4259 = vadd.f32 %v4249, %v4257
  %v4260 = vtanh.pop %v4259
  %4262 = vrot.lane.b32.xlu0 %v4260, 64
  %v4263 = vpop.permute.xlu0 %4262
  %v4265 = vmul.f32 %v4246, %v4263
  %4267 = vrot.lane.b32.xlu0 %v4265, 32
  %v4268 = vpop.permute.xlu0 %4267
  %4270 = vst.msk [vmem:[#allocation3 + $0x14] sm:$0xf] %vm344, %v4268
  %v4271 = vld [vmem:[#allocation2 + $0x18] sm:$0xf]
  %v4272 = vpack.c.bf16 %v4265, %v4265
  %4274 = vrot.lane.b32.xlu0 %v4272, 32
  %v4275 = vpop.permute.xlu0 %4274
  %v4277 = vsel %vm270, %v4275, 0
  %4279 = vmatprep.subr.bf16.mxu0 0
  %4280 = vmatpush1.bf16.msra.mxu0 0
  %4281 = vmatprep.subr.bf16.mxu0 0
  %4282 = vmatpush1.bf16.msra.mxu0 0
  %4283 = vmatprep.subr.bf16.mxu0 0
  %4284 = vmatpush1.bf16.msra.mxu0 0
  %4285 = vmatprep.subr.bf16.mxu0 0
  %4286 = vmatpush1.bf16.msra.mxu0 0
  %4287 = vmatprep.subr.bf16.mxu0 0
  %4288 = vmatpush1.bf16.msra.mxu0 0
  %4289 = vmatprep.subr.bf16.mxu0 0
  %4290 = vmatpush1.bf16.msra.mxu0 0
  %4291 = vmatprep.subr.bf16.mxu0 0
  %4292 = vmatpush1.bf16.msra.mxu0 %v3802
  %4293 = vmatprep.subr.bf16.mxu0 0
  %4294 = vmatpush1.bf16.msra.mxu0 %v3801
  %4295 = vmatprep.subr.bf16.mxu0 0
  %4296 = vmatpush2.bf16.msra.mxu0 0
  %4297 = vmatprep.subr.bf16.mxu0 0
  %4298 = vmatpush2.bf16.msra.mxu0 0
  %4299 = vmatprep.subr.bf16.mxu0 0
  %4300 = vmatpush2.bf16.msra.mxu0 0
  %4301 = vmatprep.subr.bf16.mxu0 0
  %4302 = vmatpush2.bf16.msra.mxu0 0
  %4303 = vmatprep.subr.bf16.mxu0 0
  %4304 = vmatpush2.bf16.msra.mxu0 0
  %4305 = vmatprep.subr.bf16.mxu0 0
  %4306 = vmatpush2.bf16.msra.mxu0 0
  %4307 = vmatprep.subr.bf16.mxu0 0
  %4308 = vmatpush2.bf16.msra.mxu0 0
  %4309 = vmatprep.subr.bf16.mxu0 0
  %4310 = vmatpush2.bf16.msra.mxu0 0
  %4311 = vmatprep.mubr.bf16.mxu0 0
  %4312 = vmatmul.mubr.bf16.gmra.mxu0 %v4277
  %v4313 = vpop.f32.mrf.mxu0
  %v4314 = vadd.f32 0.0, %v4313
  %v4315 = vpop.f32.mrf.mxu0
  %v4316 = vpop.f32.mrf.mxu0
  %v4317 = vpop.f32.mrf.mxu0
  %4318 = vdwg.mxu0
  %v4319 = vadd.f32 %v4271, %v4314
  %v4320 = vxor.u32 %v4319, 2147483648
  %v4321 = vmul.f32 %v4320, 1.442695
  %v4322 = vpow.pop %v4321
  %v4323 = vadd.f32 %v4322, 1.0
  %v4324 = vrcp.pop %v4323
  %v4325 = vmul.f32 1.0, %v4324
  %v4326 = vmul.f32 %v4325, 2.0
  %v4327 = vsub.f32 %v4326, 1.0
  %v4328 = vmul.f32 %v4325, %v4259
  %4330 = vrot.lane.b32.xlu0 %v4327, 64
  %v4331 = vpop.permute.xlu0 %4330
  %v4333 = vmul.f32 %v4325, %v4331
  %4335 = vrot.lane.b32.xlu0 %v4333, 32
  %v4336 = vpop.permute.xlu0 %4335
  %v4338 = vadd.f32 %v4328, %v4336
  %v4339 = vtanh.pop %v4338
  %4341 = vrot.lane.b32.xlu0 %v4339, 64
  %v4342 = vpop.permute.xlu0 %4341
  %v4344 = vmul.f32 %v4325, %v4342
  %4346 = vrot.lane.b32.xlu0 %v4344, 32
  %v4347 = vpop.permute.xlu0 %4346
  %4349 = vst.msk [vmem:[#allocation3 + $0x18] sm:$0xf] %vm344, %v4347
  %v4350 = vld [vmem:[#allocation2 + $0x1c] sm:$0xf]
  %v4351 = vpack.c.bf16 %v4344, %v4344
  %4353 = vrot.lane.b32.xlu0 %v4351, 32
  %v4354 = vpop.permute.xlu0 %4353
  %v4356 = vsel %vm270, %v4354, 0
  %4358 = vmatprep.subr.bf16.mxu0 0
  %4359 = vmatpush1.bf16.msra.mxu0 0
  %4360 = vmatprep.subr.bf16.mxu0 0
  %4361 = vmatpush1.bf16.msra.mxu0 0
  %4362 = vmatprep.subr.bf16.mxu0 0
  %4363 = vmatpush1.bf16.msra.mxu0 0
  %4364 = vmatprep.subr.bf16.mxu0 0
  %4365 = vmatpush1.bf16.msra.mxu0 0
  %4366 = vmatprep.subr.bf16.mxu0 0
  %4367 = vmatpush1.bf16.msra.mxu0 0
  %4368 = vmatprep.subr.bf16.mxu0 0
  %4369 = vmatpush1.bf16.msra.mxu0 0
  %4370 = vmatprep.subr.bf16.mxu0 0
  %4371 = vmatpush1.bf16.msra.mxu0 %v3802
  %4372 = vmatprep.subr.bf16.mxu0 0
  %4373 = vmatpush1.bf16.msra.mxu0 %v3801
  %4374 = vmatprep.subr.bf16.mxu0 0
  %4375 = vmatpush2.bf16.msra.mxu0 0
  %4376 = vmatprep.subr.bf16.mxu0 0
  %4377 = vmatpush2.bf16.msra.mxu0 0
  %4378 = vmatprep.subr.bf16.mxu0 0
  %4379 = vmatpush2.bf16.msra.mxu0 0
  %4380 = vmatprep.subr.bf16.mxu0 0
  %4381 = vmatpush2.bf16.msra.mxu0 0
  %4382 = vmatprep.subr.bf16.mxu0 0
  %4383 = vmatpush2.bf16.msra.mxu0 0
  %4384 = vmatprep.subr.bf16.mxu0 0
  %4385 = vmatpush2.bf16.msra.mxu0 0
  %4386 = vmatprep.subr.bf16.mxu0 0
  %4387 = vmatpush2.bf16.msra.mxu0 0
  %4388 = vmatprep.subr.bf16.mxu0 0
  %4389 = vmatpush2.bf16.msra.mxu0 0
  %4390 = vmatprep.mubr.bf16.mxu0 0
  %4391 = vmatmul.mubr.bf16.gmra.mxu0 %v4356
  %v4392 = vpop.f32.mrf.mxu0
  %v4393 = vadd.f32 0.0, %v4392
  %v4394 = vpop.f32.mrf.mxu0
  %v4395 = vpop.f32.mrf.mxu0
  %v4396 = vpop.f32.mrf.mxu0
  %4397 = vdwg.mxu0
  %v4398 = vadd.f32 %v4350, %v4393
  %v4399 = vxor.u32 %v4398, 2147483648
  %v4400 = vmul.f32 %v4399, 1.442695
  %v4401 = vpow.pop %v4400
  %v4402 = vadd.f32 %v4401, 1.0
  %v4403 = vrcp.pop %v4402
  %v4404 = vmul.f32 1.0, %v4403
  %v4405 = vmul.f32 %v4404, 2.0
  %v4406 = vsub.f32 %v4405, 1.0
  %v4407 = vmul.f32 %v4404, %v4338
  %4409 = vrot.lane.b32.xlu0 %v4406, 64
  %v4410 = vpop.permute.xlu0 %4409
  %v4412 = vmul.f32 %v4404, %v4410
  %4414 = vrot.lane.b32.xlu0 %v4412, 32
  %v4415 = vpop.permute.xlu0 %4414
  %v4417 = vadd.f32 %v4407, %v4415
  %v4418 = vtanh.pop %v4417
  %4420 = vrot.lane.b32.xlu0 %v4418, 64
  %v4421 = vpop.permute.xlu0 %4420
  %v4423 = vmul.f32 %v4404, %v4421
  %4425 = vrot.lane.b32.xlu0 %v4423, 32
  %v4426 = vpop.permute.xlu0 %4425
  %4428 = vst.msk [vmem:[#allocation3 + $0x1c] sm:$0xf] %vm344, %v4426
  %v4429 = vld [vmem:[#allocation2 + $0x20] sm:$0xf]
  %v4430 = vpack.c.bf16 %v4423, %v4423
  %4432 = vrot.lane.b32.xlu0 %v4430, 32
  %v4433 = vpop.permute.xlu0 %4432
  %v4435 = vsel %vm270, %v4433, 0
  %4437 = vmatprep.subr.bf16.mxu0 0
  %4438 = vmatpush1.bf16.msra.mxu0 0
  %4439 = vmatprep.subr.bf16.mxu0 0
  %4440 = vmatpush1.bf16.msra.mxu0 0
  %4441 = vmatprep.subr.bf16.mxu0 0
  %4442 = vmatpush1.bf16.msra.mxu0 0
  %4443 = vmatprep.subr.bf16.mxu0 0
  %4444 = vmatpush1.bf16.msra.mxu0 0
  %4445 = vmatprep.subr.bf16.mxu0 0
  %4446 = vmatpush1.bf16.msra.mxu0 0
  %4447 = vmatprep.subr.bf16.mxu0 0
  %4448 = vmatpush1.bf16.msra.mxu0 0
  %4449 = vmatprep.subr.bf16.mxu0 0
  %4450 = vmatpush1.bf16.msra.mxu0 %v3802
  %4451 = vmatprep.subr.bf16.mxu0 0
  %4452 = vmatpush1.bf16.msra.mxu0 %v3801
  %4453 = vmatprep.subr.bf16.mxu0 0
  %4454 = vmatpush2.bf16.msra.mxu0 0
  %4455 = vmatprep.subr.bf16.mxu0 0
  %4456 = vmatpush2.bf16.msra.mxu0 0
  %4457 = vmatprep.subr.bf16.mxu0 0
  %4458 = vmatpush2.bf16.msra.mxu0 0
  %4459 = vmatprep.subr.bf16.mxu0 0
  %4460 = vmatpush2.bf16.msra.mxu0 0
  %4461 = vmatprep.subr.bf16.mxu0 0
  %4462 = vmatpush2.bf16.msra.mxu0 0
  %4463 = vmatprep.subr.bf16.mxu0 0
  %4464 = vmatpush2.bf16.msra.mxu0 0
  %4465 = vmatprep.subr.bf16.mxu0 0
  %4466 = vmatpush2.bf16.msra.mxu0 0
  %4467 = vmatprep.subr.bf16.mxu0 0
  %4468 = vmatpush2.bf16.msra.mxu0 0
  %4469 = vmatprep.mubr.bf16.mxu0 0
  %4470 = vmatmul.mubr.bf16.gmra.mxu0 %v4435
  %v4471 = vpop.f32.mrf.mxu0
  %v4472 = vadd.f32 0.0, %v4471
  %v4473 = vpop.f32.mrf.mxu0
  %v4474 = vpop.f32.mrf.mxu0
  %v4475 = vpop.f32.mrf.mxu0
  %4476 = vdwg.mxu0
  %v4477 = vadd.f32 %v4429, %v4472
  %v4478 = vxor.u32 %v4477, 2147483648
  %v4479 = vmul.f32 %v4478, 1.442695
  %v4480 = vpow.pop %v4479
  %v4481 = vadd.f32 %v4480, 1.0
  %v4482 = vrcp.pop %v4481
  %v4483 = vmul.f32 1.0, %v4482
  %v4484 = vmul.f32 %v4483, 2.0
  %v4485 = vsub.f32 %v4484, 1.0
  %v4486 = vmul.f32 %v4483, %v4417
  %4488 = vrot.lane.b32.xlu0 %v4485, 64
  %v4489 = vpop.permute.xlu0 %4488
  %v4491 = vmul.f32 %v4483, %v4489
  %4493 = vrot.lane.b32.xlu0 %v4491, 32
  %v4494 = vpop.permute.xlu0 %4493
  %v4496 = vadd.f32 %v4486, %v4494
  %v4497 = vtanh.pop %v4496
  %4499 = vrot.lane.b32.xlu0 %v4497, 64
  %v4500 = vpop.permute.xlu0 %4499
  %v4502 = vmul.f32 %v4483, %v4500
  %4504 = vrot.lane.b32.xlu0 %v4502, 32
  %v4505 = vpop.permute.xlu0 %4504
  %4507 = vst.msk [vmem:[#allocation3 + $0x20] sm:$0xf] %vm344, %v4505
  %v4508 = vld [vmem:[#allocation2 + $0x24] sm:$0xf]
  %v4509 = vpack.c.bf16 %v4502, %v4502
  %4511 = vrot.lane.b32.xlu0 %v4509, 32
  %v4512 = vpop.permute.xlu0 %4511
  %v4514 = vsel %vm270, %v4512, 0
  %4516 = vmatprep.subr.bf16.mxu0 0
  %4517 = vmatpush1.bf16.msra.mxu0 0
  %4518 = vmatprep.subr.bf16.mxu0 0
  %4519 = vmatpush1.bf16.msra.mxu0 0
  %4520 = vmatprep.subr.bf16.mxu0 0
  %4521 = vmatpush1.bf16.msra.mxu0 0
  %4522 = vmatprep.subr.bf16.mxu0 0
  %4523 = vmatpush1.bf16.msra.mxu0 0
  %4524 = vmatprep.subr.bf16.mxu0 0
  %4525 = vmatpush1.bf16.msra.mxu0 0
  %4526 = vmatprep.subr.bf16.mxu0 0
  %4527 = vmatpush1.bf16.msra.mxu0 0
  %4528 = vmatprep.subr.bf16.mxu0 0
  %4529 = vmatpush1.bf16.msra.mxu0 %v3802
  %4530 = vmatprep.subr.bf16.mxu0 0
  %4531 = vmatpush1.bf16.msra.mxu0 %v3801
  %4532 = vmatprep.subr.bf16.mxu0 0
  %4533 = vmatpush2.bf16.msra.mxu0 0
  %4534 = vmatprep.subr.bf16.mxu0 0
  %4535 = vmatpush2.bf16.msra.mxu0 0
  %4536 = vmatprep.subr.bf16.mxu0 0
  %4537 = vmatpush2.bf16.msra.mxu0 0
  %4538 = vmatprep.subr.bf16.mxu0 0
  %4539 = vmatpush2.bf16.msra.mxu0 0
  %4540 = vmatprep.subr.bf16.mxu0 0
  %4541 = vmatpush2.bf16.msra.mxu0 0
  %4542 = vmatprep.subr.bf16.mxu0 0
  %4543 = vmatpush2.bf16.msra.mxu0 0
  %4544 = vmatprep.subr.bf16.mxu0 0
  %4545 = vmatpush2.bf16.msra.mxu0 0
  %4546 = vmatprep.subr.bf16.mxu0 0
  %4547 = vmatpush2.bf16.msra.mxu0 0
  %4548 = vmatprep.mubr.bf16.mxu0 0
  %4549 = vmatmul.mubr.bf16.gmra.mxu0 %v4514
  %v4550 = vpop.f32.mrf.mxu0
  %v4551 = vadd.f32 0.0, %v4550
  %v4552 = vpop.f32.mrf.mxu0
  %v4553 = vpop.f32.mrf.mxu0
  %v4554 = vpop.f32.mrf.mxu0
  %4555 = vdwg.mxu0
  %v4556 = vadd.f32 %v4508, %v4551
  %v4557 = vxor.u32 %v4556, 2147483648
  %v4558 = vmul.f32 %v4557, 1.442695
  %v4559 = vpow.pop %v4558
  %v4560 = vadd.f32 %v4559, 1.0
  %v4561 = vrcp.pop %v4560
  %v4562 = vmul.f32 1.0, %v4561
  %v4563 = vmul.f32 %v4562, 2.0
  %v4564 = vsub.f32 %v4563, 1.0
  %v4565 = vmul.f32 %v4562, %v4496
  %4567 = vrot.lane.b32.xlu0 %v4564, 64
  %v4568 = vpop.permute.xlu0 %4567
  %v4570 = vmul.f32 %v4562, %v4568
  %4572 = vrot.lane.b32.xlu0 %v4570, 32
  %v4573 = vpop.permute.xlu0 %4572
  %v4575 = vadd.f32 %v4565, %v4573
  %v4576 = vtanh.pop %v4575
  %4578 = vrot.lane.b32.xlu0 %v4576, 64
  %v4579 = vpop.permute.xlu0 %4578
  %v4581 = vmul.f32 %v4562, %v4579
  %4583 = vrot.lane.b32.xlu0 %v4581, 32
  %v4584 = vpop.permute.xlu0 %4583
  %4586 = vst.msk [vmem:[#allocation3 + $0x24] sm:$0xf] %vm344, %v4584
  %v4587 = vld [vmem:[#allocation2 + $0x28] sm:$0xf]
  %v4588 = vpack.c.bf16 %v4581, %v4581
  %4590 = vrot.lane.b32.xlu0 %v4588, 32
  %v4591 = vpop.permute.xlu0 %4590
  %v4593 = vsel %vm270, %v4591, 0
  %4595 = vmatprep.subr.bf16.mxu0 0
  %4596 = vmatpush1.bf16.msra.mxu0 0
  %4597 = vmatprep.subr.bf16.mxu0 0
  %4598 = vmatpush1.bf16.msra.mxu0 0
  %4599 = vmatprep.subr.bf16.mxu0 0
  %4600 = vmatpush1.bf16.msra.mxu0 0
  %4601 = vmatprep.subr.bf16.mxu0 0
  %4602 = vmatpush1.bf16.msra.mxu0 0
  %4603 = vmatprep.subr.bf16.mxu0 0
  %4604 = vmatpush1.bf16.msra.mxu0 0
  %4605 = vmatprep.subr.bf16.mxu0 0
  %4606 = vmatpush1.bf16.msra.mxu0 0
  %4607 = vmatprep.subr.bf16.mxu0 0
  %4608 = vmatpush1.bf16.msra.mxu0 %v3802
  %4609 = vmatprep.subr.bf16.mxu0 0
  %4610 = vmatpush1.bf16.msra.mxu0 %v3801
  %4611 = vmatprep.subr.bf16.mxu0 0
  %4612 = vmatpush2.bf16.msra.mxu0 0
  %4613 = vmatprep.subr.bf16.mxu0 0
  %4614 = vmatpush2.bf16.msra.mxu0 0
  %4615 = vmatprep.subr.bf16.mxu0 0
  %4616 = vmatpush2.bf16.msra.mxu0 0
  %4617 = vmatprep.subr.bf16.mxu0 0
  %4618 = vmatpush2.bf16.msra.mxu0 0
  %4619 = vmatprep.subr.bf16.mxu0 0
  %4620 = vmatpush2.bf16.msra.mxu0 0
  %4621 = vmatprep.subr.bf16.mxu0 0
  %4622 = vmatpush2.bf16.msra.mxu0 0
  %4623 = vmatprep.subr.bf16.mxu0 0
  %4624 = vmatpush2.bf16.msra.mxu0 0
  %4625 = vmatprep.subr.bf16.mxu0 0
  %4626 = vmatpush2.bf16.msra.mxu0 0
  %4627 = vmatprep.mubr.bf16.mxu0 0
  %4628 = vmatmul.mubr.bf16.gmra.mxu0 %v4593
  %v4629 = vpop.f32.mrf.mxu0
  %v4630 = vadd.f32 0.0, %v4629
  %v4631 = vpop.f32.mrf.mxu0
  %v4632 = vpop.f32.mrf.mxu0
  %v4633 = vpop.f32.mrf.mxu0
  %4634 = vdwg.mxu0
  %v4635 = vadd.f32 %v4587, %v4630
  %v4636 = vxor.u32 %v4635, 2147483648
  %v4637 = vmul.f32 %v4636, 1.442695
  %v4638 = vpow.pop %v4637
  %v4639 = vadd.f32 %v4638, 1.0
  %v4640 = vrcp.pop %v4639
  %v4641 = vmul.f32 1.0, %v4640
  %v4642 = vmul.f32 %v4641, 2.0
  %v4643 = vsub.f32 %v4642, 1.0
  %v4644 = vmul.f32 %v4641, %v4575
  %4646 = vrot.lane.b32.xlu0 %v4643, 64
  %v4647 = vpop.permute.xlu0 %4646
  %v4649 = vmul.f32 %v4641, %v4647
  %4651 = vrot.lane.b32.xlu0 %v4649, 32
  %v4652 = vpop.permute.xlu0 %4651
  %v4654 = vadd.f32 %v4644, %v4652
  %v4655 = vtanh.pop %v4654
  %4657 = vrot.lane.b32.xlu0 %v4655, 64
  %v4658 = vpop.permute.xlu0 %4657
  %v4660 = vmul.f32 %v4641, %v4658
  %4662 = vrot.lane.b32.xlu0 %v4660, 32
  %v4663 = vpop.permute.xlu0 %4662
  %4665 = vst.msk [vmem:[#allocation3 + $0x28] sm:$0xf] %vm344, %v4663
  %v4666 = vld [vmem:[#allocation2 + $0x2c] sm:$0xf]
  %v4667 = vpack.c.bf16 %v4660, %v4660
  %4669 = vrot.lane.b32.xlu0 %v4667, 32
  %v4670 = vpop.permute.xlu0 %4669
  %v4672 = vsel %vm270, %v4670, 0
  %4674 = vmatprep.subr.bf16.mxu0 0
  %4675 = vmatpush1.bf16.msra.mxu0 0
  %4676 = vmatprep.subr.bf16.mxu0 0
  %4677 = vmatpush1.bf16.msra.mxu0 0
  %4678 = vmatprep.subr.bf16.mxu0 0
  %4679 = vmatpush1.bf16.msra.mxu0 0
  %4680 = vmatprep.subr.bf16.mxu0 0
  %4681 = vmatpush1.bf16.msra.mxu0 0
  %4682 = vmatprep.subr.bf16.mxu0 0
  %4683 = vmatpush1.bf16.msra.mxu0 0
  %4684 = vmatprep.subr.bf16.mxu0 0
  %4685 = vmatpush1.bf16.msra.mxu0 0
  %4686 = vmatprep.subr.bf16.mxu0 0
  %4687 = vmatpush1.bf16.msra.mxu0 %v3802
  %4688 = vmatprep.subr.bf16.mxu0 0
  %4689 = vmatpush1.bf16.msra.mxu0 %v3801
  %4690 = vmatprep.subr.bf16.mxu0 0
  %4691 = vmatpush2.bf16.msra.mxu0 0
  %4692 = vmatprep.subr.bf16.mxu0 0
  %4693 = vmatpush2.bf16.msra.mxu0 0
  %4694 = vmatprep.subr.bf16.mxu0 0
  %4695 = vmatpush2.bf16.msra.mxu0 0
  %4696 = vmatprep.subr.bf16.mxu0 0
  %4697 = vmatpush2.bf16.msra.mxu0 0
  %4698 = vmatprep.subr.bf16.mxu0 0
  %4699 = vmatpush2.bf16.msra.mxu0 0
  %4700 = vmatprep.subr.bf16.mxu0 0
  %4701 = vmatpush2.bf16.msra.mxu0 0
  %4702 = vmatprep.subr.bf16.mxu0 0
  %4703 = vmatpush2.bf16.msra.mxu0 0
  %4704 = vmatprep.subr.bf16.mxu0 0
  %4705 = vmatpush2.bf16.msra.mxu0 0
  %4706 = vmatprep.mubr.bf16.mxu0 0
  %4707 = vmatmul.mubr.bf16.gmra.mxu0 %v4672
  %v4708 = vpop.f32.mrf.mxu0
  %v4709 = vadd.f32 0.0, %v4708
  %v4710 = vpop.f32.mrf.mxu0
  %v4711 = vpop.f32.mrf.mxu0
  %v4712 = vpop.f32.mrf.mxu0
  %4713 = vdwg.mxu0
  %v4714 = vadd.f32 %v4666, %v4709
  %v4715 = vxor.u32 %v4714, 2147483648
  %v4716 = vmul.f32 %v4715, 1.442695
  %v4717 = vpow.pop %v4716
  %v4718 = vadd.f32 %v4717, 1.0
  %v4719 = vrcp.pop %v4718
  %v4720 = vmul.f32 1.0, %v4719
  %v4721 = vmul.f32 %v4720, 2.0
  %v4722 = vsub.f32 %v4721, 1.0
  %v4723 = vmul.f32 %v4720, %v4654
  %4725 = vrot.lane.b32.xlu0 %v4722, 64
  %v4726 = vpop.permute.xlu0 %4725
  %v4728 = vmul.f32 %v4720, %v4726
  %4730 = vrot.lane.b32.xlu0 %v4728, 32
  %v4731 = vpop.permute.xlu0 %4730
  %v4733 = vadd.f32 %v4723, %v4731
  %v4734 = vtanh.pop %v4733
  %4736 = vrot.lane.b32.xlu0 %v4734, 64
  %v4737 = vpop.permute.xlu0 %4736
  %v4739 = vmul.f32 %v4720, %v4737
  %4741 = vrot.lane.b32.xlu0 %v4739, 32
  %v4742 = vpop.permute.xlu0 %4741
  %4744 = vst.msk [vmem:[#allocation3 + $0x2c] sm:$0xf] %vm344, %v4742
  %v4745 = vld [vmem:[#allocation2 + $0x30] sm:$0xf]
  %v4746 = vpack.c.bf16 %v4739, %v4739
  %4748 = vrot.lane.b32.xlu0 %v4746, 32
  %v4749 = vpop.permute.xlu0 %4748
  %v4751 = vsel %vm270, %v4749, 0
  %4753 = vmatprep.subr.bf16.mxu0 0
  %4754 = vmatpush1.bf16.msra.mxu0 0
  %4755 = vmatprep.subr.bf16.mxu0 0
  %4756 = vmatpush1.bf16.msra.mxu0 0
  %4757 = vmatprep.subr.bf16.mxu0 0
  %4758 = vmatpush1.bf16.msra.mxu0 0
  %4759 = vmatprep.subr.bf16.mxu0 0
  %4760 = vmatpush1.bf16.msra.mxu0 0
  %4761 = vmatprep.subr.bf16.mxu0 0
  %4762 = vmatpush1.bf16.msra.mxu0 0
  %4763 = vmatprep.subr.bf16.mxu0 0
  %4764 = vmatpush1.bf16.msra.mxu0 0
  %4765 = vmatprep.subr.bf16.mxu0 0
  %4766 = vmatpush1.bf16.msra.mxu0 %v3802
  %4767 = vmatprep.subr.bf16.mxu0 0
  %4768 = vmatpush1.bf16.msra.mxu0 %v3801
  %4769 = vmatprep.subr.bf16.mxu0 0
  %4770 = vmatpush2.bf16.msra.mxu0 0
  %4771 = vmatprep.subr.bf16.mxu0 0
  %4772 = vmatpush2.bf16.msra.mxu0 0
  %4773 = vmatprep.subr.bf16.mxu0 0
  %4774 = vmatpush2.bf16.msra.mxu0 0
  %4775 = vmatprep.subr.bf16.mxu0 0
  %4776 = vmatpush2.bf16.msra.mxu0 0
  %4777 = vmatprep.subr.bf16.mxu0 0
  %4778 = vmatpush2.bf16.msra.mxu0 0
  %4779 = vmatprep.subr.bf16.mxu0 0
  %4780 = vmatpush2.bf16.msra.mxu0 0
  %4781 = vmatprep.subr.bf16.mxu0 0
  %4782 = vmatpush2.bf16.msra.mxu0 0
  %4783 = vmatprep.subr.bf16.mxu0 0
  %4784 = vmatpush2.bf16.msra.mxu0 0
  %4785 = vmatprep.mubr.bf16.mxu0 0
  %4786 = vmatmul.mubr.bf16.gmra.mxu0 %v4751
  %v4787 = vpop.f32.mrf.mxu0
  %v4788 = vadd.f32 0.0, %v4787
  %v4789 = vpop.f32.mrf.mxu0
  %v4790 = vpop.f32.mrf.mxu0
  %v4791 = vpop.f32.mrf.mxu0
  %4792 = vdwg.mxu0
  %v4793 = vadd.f32 %v4745, %v4788
  %v4794 = vxor.u32 %v4793, 2147483648
  %v4795 = vmul.f32 %v4794, 1.442695
  %v4796 = vpow.pop %v4795
  %v4797 = vadd.f32 %v4796, 1.0
  %v4798 = vrcp.pop %v4797
  %v4799 = vmul.f32 1.0, %v4798
  %v4800 = vmul.f32 %v4799, 2.0
  %v4801 = vsub.f32 %v4800, 1.0
  %v4802 = vmul.f32 %v4799, %v4733
  %4804 = vrot.lane.b32.xlu0 %v4801, 64
  %v4805 = vpop.permute.xlu0 %4804
  %v4807 = vmul.f32 %v4799, %v4805
  %4809 = vrot.lane.b32.xlu0 %v4807, 32
  %v4810 = vpop.permute.xlu0 %4809
  %v4812 = vadd.f32 %v4802, %v4810
  %v4813 = vtanh.pop %v4812
  %4815 = vrot.lane.b32.xlu0 %v4813, 64
  %v4816 = vpop.permute.xlu0 %4815
  %v4818 = vmul.f32 %v4799, %v4816
  %4820 = vrot.lane.b32.xlu0 %v4818, 32
  %v4821 = vpop.permute.xlu0 %4820
  %4823 = vst.msk [vmem:[#allocation3 + $0x30] sm:$0xf] %vm344, %v4821
  %v4824 = vld [vmem:[#allocation2 + $0x34] sm:$0xf]
  %v4825 = vpack.c.bf16 %v4818, %v4818
  %4827 = vrot.lane.b32.xlu0 %v4825, 32
  %v4828 = vpop.permute.xlu0 %4827
  %v4830 = vsel %vm270, %v4828, 0
  %4832 = vmatprep.subr.bf16.mxu0 0
  %4833 = vmatpush1.bf16.msra.mxu0 0
  %4834 = vmatprep.subr.bf16.mxu0 0
  %4835 = vmatpush1.bf16.msra.mxu0 0
  %4836 = vmatprep.subr.bf16.mxu0 0
  %4837 = vmatpush1.bf16.msra.mxu0 0
  %4838 = vmatprep.subr.bf16.mxu0 0
  %4839 = vmatpush1.bf16.msra.mxu0 0
  %4840 = vmatprep.subr.bf16.mxu0 0
  %4841 = vmatpush1.bf16.msra.mxu0 0
  %4842 = vmatprep.subr.bf16.mxu0 0
  %4843 = vmatpush1.bf16.msra.mxu0 0
  %4844 = vmatprep.subr.bf16.mxu0 0
  %4845 = vmatpush1.bf16.msra.mxu0 %v3802
  %4846 = vmatprep.subr.bf16.mxu0 0
  %4847 = vmatpush1.bf16.msra.mxu0 %v3801
  %4848 = vmatprep.subr.bf16.mxu0 0
  %4849 = vmatpush2.bf16.msra.mxu0 0
  %4850 = vmatprep.subr.bf16.mxu0 0
  %4851 = vmatpush2.bf16.msra.mxu0 0
  %4852 = vmatprep.subr.bf16.mxu0 0
  %4853 = vmatpush2.bf16.msra.mxu0 0
  %4854 = vmatprep.subr.bf16.mxu0 0
  %4855 = vmatpush2.bf16.msra.mxu0 0
  %4856 = vmatprep.subr.bf16.mxu0 0
  %4857 = vmatpush2.bf16.msra.mxu0 0
  %4858 = vmatprep.subr.bf16.mxu0 0
  %4859 = vmatpush2.bf16.msra.mxu0 0
  %4860 = vmatprep.subr.bf16.mxu0 0
  %4861 = vmatpush2.bf16.msra.mxu0 0
  %4862 = vmatprep.subr.bf16.mxu0 0
  %4863 = vmatpush2.bf16.msra.mxu0 0
  %4864 = vmatprep.mubr.bf16.mxu0 0
  %4865 = vmatmul.mubr.bf16.gmra.mxu0 %v4830
  %v4866 = vpop.f32.mrf.mxu0
  %v4867 = vadd.f32 0.0, %v4866
  %v4868 = vpop.f32.mrf.mxu0
  %v4869 = vpop.f32.mrf.mxu0
  %v4870 = vpop.f32.mrf.mxu0
  %4871 = vdwg.mxu0
  %v4872 = vadd.f32 %v4824, %v4867
  %v4873 = vxor.u32 %v4872, 2147483648
  %v4874 = vmul.f32 %v4873, 1.442695
  %v4875 = vpow.pop %v4874
  %v4876 = vadd.f32 %v4875, 1.0
  %v4877 = vrcp.pop %v4876
  %v4878 = vmul.f32 1.0, %v4877
  %v4879 = vmul.f32 %v4878, 2.0
  %v4880 = vsub.f32 %v4879, 1.0
  %v4881 = vmul.f32 %v4878, %v4812
  %4883 = vrot.lane.b32.xlu0 %v4880, 64
  %v4884 = vpop.permute.xlu0 %4883
  %v4886 = vmul.f32 %v4878, %v4884
  %4888 = vrot.lane.b32.xlu0 %v4886, 32
  %v4889 = vpop.permute.xlu0 %4888
  %v4891 = vadd.f32 %v4881, %v4889
  %v4892 = vtanh.pop %v4891
  %4894 = vrot.lane.b32.xlu0 %v4892, 64
  %v4895 = vpop.permute.xlu0 %4894
  %v4897 = vmul.f32 %v4878, %v4895
  %4899 = vrot.lane.b32.xlu0 %v4897, 32
  %v4900 = vpop.permute.xlu0 %4899
  %4902 = vst.msk [vmem:[#allocation3 + $0x34] sm:$0xf] %vm344, %v4900
  %v4903 = vld [vmem:[#allocation2 + $0x38] sm:$0xf]
  %v4904 = vpack.c.bf16 %v4897, %v4897
  %4906 = vrot.lane.b32.xlu0 %v4904, 32
  %v4907 = vpop.permute.xlu0 %4906
  %v4909 = vsel %vm270, %v4907, 0
  %4911 = vmatprep.subr.bf16.mxu0 0
  %4912 = vmatpush1.bf16.msra.mxu0 0
  %4913 = vmatprep.subr.bf16.mxu0 0
  %4914 = vmatpush1.bf16.msra.mxu0 0
  %4915 = vmatprep.subr.bf16.mxu0 0
  %4916 = vmatpush1.bf16.msra.mxu0 0
  %4917 = vmatprep.subr.bf16.mxu0 0
  %4918 = vmatpush1.bf16.msra.mxu0 0
  %4919 = vmatprep.subr.bf16.mxu0 0
  %4920 = vmatpush1.bf16.msra.mxu0 0
  %4921 = vmatprep.subr.bf16.mxu0 0
  %4922 = vmatpush1.bf16.msra.mxu0 0
  %4923 = vmatprep.subr.bf16.mxu0 0
  %4924 = vmatpush1.bf16.msra.mxu0 %v3802
  %4925 = vmatprep.subr.bf16.mxu0 0
  %4926 = vmatpush1.bf16.msra.mxu0 %v3801
  %4927 = vmatprep.subr.bf16.mxu0 0
  %4928 = vmatpush2.bf16.msra.mxu0 0
  %4929 = vmatprep.subr.bf16.mxu0 0
  %4930 = vmatpush2.bf16.msra.mxu0 0
  %4931 = vmatprep.subr.bf16.mxu0 0
  %4932 = vmatpush2.bf16.msra.mxu0 0
  %4933 = vmatprep.subr.bf16.mxu0 0
  %4934 = vmatpush2.bf16.msra.mxu0 0
  %4935 = vmatprep.subr.bf16.mxu0 0
  %4936 = vmatpush2.bf16.msra.mxu0 0
  %4937 = vmatprep.subr.bf16.mxu0 0
  %4938 = vmatpush2.bf16.msra.mxu0 0
  %4939 = vmatprep.subr.bf16.mxu0 0
  %4940 = vmatpush2.bf16.msra.mxu0 0
  %4941 = vmatprep.subr.bf16.mxu0 0
  %4942 = vmatpush2.bf16.msra.mxu0 0
  %4943 = vmatprep.mubr.bf16.mxu0 0
  %4944 = vmatmul.mubr.bf16.gmra.mxu0 %v4909
  %v4945 = vpop.f32.mrf.mxu0
  %v4946 = vadd.f32 0.0, %v4945
  %v4947 = vpop.f32.mrf.mxu0
  %v4948 = vpop.f32.mrf.mxu0
  %v4949 = vpop.f32.mrf.mxu0
  %4950 = vdwg.mxu0
  %v4951 = vadd.f32 %v4903, %v4946
  %v4952 = vxor.u32 %v4951, 2147483648
  %v4953 = vmul.f32 %v4952, 1.442695
  %v4954 = vpow.pop %v4953
  %v4955 = vadd.f32 %v4954, 1.0
  %v4956 = vrcp.pop %v4955
  %v4957 = vmul.f32 1.0, %v4956
  %v4958 = vmul.f32 %v4957, 2.0
  %v4959 = vsub.f32 %v4958, 1.0
  %v4960 = vmul.f32 %v4957, %v4891
  %4962 = vrot.lane.b32.xlu0 %v4959, 64
  %v4963 = vpop.permute.xlu0 %4962
  %v4965 = vmul.f32 %v4957, %v4963
  %4967 = vrot.lane.b32.xlu0 %v4965, 32
  %v4968 = vpop.permute.xlu0 %4967
  %v4970 = vadd.f32 %v4960, %v4968
  %v4971 = vtanh.pop %v4970
  %4973 = vrot.lane.b32.xlu0 %v4971, 64
  %v4974 = vpop.permute.xlu0 %4973
  %v4976 = vmul.f32 %v4957, %v4974
  %4978 = vrot.lane.b32.xlu0 %v4976, 32
  %v4979 = vpop.permute.xlu0 %4978
  %4981 = vst.msk [vmem:[#allocation3 + $0x38] sm:$0xf] %vm344, %v4979
  %v4982 = vld [vmem:[#allocation2 + $0x3c] sm:$0xf]
  %v4983 = vpack.c.bf16 %v4976, %v4976
  %4985 = vrot.lane.b32.xlu0 %v4983, 32
  %v4986 = vpop.permute.xlu0 %4985
  %v4988 = vsel %vm270, %v4986, 0
  %4990 = vmatprep.subr.bf16.mxu0 0
  %4991 = vmatpush1.bf16.msra.mxu0 0
  %4992 = vmatprep.subr.bf16.mxu0 0
  %4993 = vmatpush1.bf16.msra.mxu0 0
  %4994 = vmatprep.subr.bf16.mxu0 0
  %4995 = vmatpush1.bf16.msra.mxu0 0
  %4996 = vmatprep.subr.bf16.mxu0 0
  %4997 = vmatpush1.bf16.msra.mxu0 0
  %4998 = vmatprep.subr.bf16.mxu0 0
  %4999 = vmatpush1.bf16.msra.mxu0 0
  %5000 = vmatprep.subr.bf16.mxu0 0
  %5001 = vmatpush1.bf16.msra.mxu0 0
  %5002 = vmatprep.subr.bf16.mxu0 0
  %5003 = vmatpush1.bf16.msra.mxu0 %v3802
  %5004 = vmatprep.subr.bf16.mxu0 0
  %5005 = vmatpush1.bf16.msra.mxu0 %v3801
  %5006 = vmatprep.subr.bf16.mxu0 0
  %5007 = vmatpush2.bf16.msra.mxu0 0
  %5008 = vmatprep.subr.bf16.mxu0 0
  %5009 = vmatpush2.bf16.msra.mxu0 0
  %5010 = vmatprep.subr.bf16.mxu0 0
  %5011 = vmatpush2.bf16.msra.mxu0 0
  %5012 = vmatprep.subr.bf16.mxu0 0
  %5013 = vmatpush2.bf16.msra.mxu0 0
  %5014 = vmatprep.subr.bf16.mxu0 0
  %5015 = vmatpush2.bf16.msra.mxu0 0
  %5016 = vmatprep.subr.bf16.mxu0 0
  %5017 = vmatpush2.bf16.msra.mxu0 0
  %5018 = vmatprep.subr.bf16.mxu0 0
  %5019 = vmatpush2.bf16.msra.mxu0 0
  %5020 = vmatprep.subr.bf16.mxu0 0
  %5021 = vmatpush2.bf16.msra.mxu0 0
  %5022 = vmatprep.mubr.bf16.mxu0 0
  %5023 = vmatmul.mubr.bf16.gmra.mxu0 %v4988
  %v5024 = vpop.f32.mrf.mxu0
  %v5025 = vadd.f32 0.0, %v5024
  %v5026 = vpop.f32.mrf.mxu0
  %v5027 = vpop.f32.mrf.mxu0
  %v5028 = vpop.f32.mrf.mxu0
  %5029 = vdwg.mxu0
  %v5030 = vadd.f32 %v4982, %v5025
  %v5031 = vxor.u32 %v5030, 2147483648
  %v5032 = vmul.f32 %v5031, 1.442695
  %v5033 = vpow.pop %v5032
  %v5034 = vadd.f32 %v5033, 1.0
  %v5035 = vrcp.pop %v5034
  %v5036 = vmul.f32 1.0, %v5035
  %v5037 = vmul.f32 %v5036, 2.0
  %v5038 = vsub.f32 %v5037, 1.0
  %v5039 = vmul.f32 %v5036, %v4970
  %5041 = vrot.lane.b32.xlu0 %v5038, 64
  %v5042 = vpop.permute.xlu0 %5041
  %v5044 = vmul.f32 %v5036, %v5042
  %5046 = vrot.lane.b32.xlu0 %v5044, 32
  %v5047 = vpop.permute.xlu0 %5046
  %v5049 = vadd.f32 %v5039, %v5047
  %v5050 = vtanh.pop %v5049
  %5052 = vrot.lane.b32.xlu0 %v5050, 64
  %v5053 = vpop.permute.xlu0 %5052
  %v5055 = vmul.f32 %v5036, %v5053
  %5057 = vrot.lane.b32.xlu0 %v5055, 32
  %v5058 = vpop.permute.xlu0 %5057
  %5060 = vst.msk [vmem:[#allocation3 + $0x3c] sm:$0xf] %vm344, %v5058
  %v5061 = vld [vmem:[#allocation2 + $0x40] sm:$0xf]
  %v5062 = vpack.c.bf16 %v5055, %v5055
  %5064 = vrot.lane.b32.xlu0 %v5062, 32
  %v5065 = vpop.permute.xlu0 %5064
  %v5067 = vsel %vm270, %v5065, 0
  %5069 = vmatprep.subr.bf16.mxu0 0
  %5070 = vmatpush1.bf16.msra.mxu0 0
  %5071 = vmatprep.subr.bf16.mxu0 0
  %5072 = vmatpush1.bf16.msra.mxu0 0
  %5073 = vmatprep.subr.bf16.mxu0 0
  %5074 = vmatpush1.bf16.msra.mxu0 0
  %5075 = vmatprep.subr.bf16.mxu0 0
  %5076 = vmatpush1.bf16.msra.mxu0 0
  %5077 = vmatprep.subr.bf16.mxu0 0
  %5078 = vmatpush1.bf16.msra.mxu0 0
  %5079 = vmatprep.subr.bf16.mxu0 0
  %5080 = vmatpush1.bf16.msra.mxu0 0
  %5081 = vmatprep.subr.bf16.mxu0 0
  %5082 = vmatpush1.bf16.msra.mxu0 %v3802
  %5083 = vmatprep.subr.bf16.mxu0 0
  %5084 = vmatpush1.bf16.msra.mxu0 %v3801
  %5085 = vmatprep.subr.bf16.mxu0 0
  %5086 = vmatpush2.bf16.msra.mxu0 0
  %5087 = vmatprep.subr.bf16.mxu0 0
  %5088 = vmatpush2.bf16.msra.mxu0 0
  %5089 = vmatprep.subr.bf16.mxu0 0
  %5090 = vmatpush2.bf16.msra.mxu0 0
  %5091 = vmatprep.subr.bf16.mxu0 0
  %5092 = vmatpush2.bf16.msra.mxu0 0
  %5093 = vmatprep.subr.bf16.mxu0 0
  %5094 = vmatpush2.bf16.msra.mxu0 0
  %5095 = vmatprep.subr.bf16.mxu0 0
  %5096 = vmatpush2.bf16.msra.mxu0 0
  %5097 = vmatprep.subr.bf16.mxu0 0
  %5098 = vmatpush2.bf16.msra.mxu0 0
  %5099 = vmatprep.subr.bf16.mxu0 0
  %5100 = vmatpush2.bf16.msra.mxu0 0
  %5101 = vmatprep.mubr.bf16.mxu0 0
  %5102 = vmatmul.mubr.bf16.gmra.mxu0 %v5067
  %v5103 = vpop.f32.mrf.mxu0
  %v5104 = vadd.f32 0.0, %v5103
  %v5105 = vpop.f32.mrf.mxu0
  %v5106 = vpop.f32.mrf.mxu0
  %v5107 = vpop.f32.mrf.mxu0
  %5108 = vdwg.mxu0
  %v5109 = vadd.f32 %v5061, %v5104
  %v5110 = vxor.u32 %v5109, 2147483648
  %v5111 = vmul.f32 %v5110, 1.442695
  %v5112 = vpow.pop %v5111
  %v5113 = vadd.f32 %v5112, 1.0
  %v5114 = vrcp.pop %v5113
  %v5115 = vmul.f32 1.0, %v5114
  %v5116 = vmul.f32 %v5115, 2.0
  %v5117 = vsub.f32 %v5116, 1.0
  %v5118 = vmul.f32 %v5115, %v5049
  %5120 = vrot.lane.b32.xlu0 %v5117, 64
  %v5121 = vpop.permute.xlu0 %5120
  %v5123 = vmul.f32 %v5115, %v5121
  %5125 = vrot.lane.b32.xlu0 %v5123, 32
  %v5126 = vpop.permute.xlu0 %5125
  %v5128 = vadd.f32 %v5118, %v5126
  %v5129 = vtanh.pop %v5128
  %5131 = vrot.lane.b32.xlu0 %v5129, 64
  %v5132 = vpop.permute.xlu0 %5131
  %v5134 = vmul.f32 %v5115, %v5132
  %5136 = vrot.lane.b32.xlu0 %v5134, 32
  %v5137 = vpop.permute.xlu0 %5136
  %5139 = vst.msk [vmem:[#allocation3 + $0x40] sm:$0xf] %vm344, %v5137
  %v5140 = vld [vmem:[#allocation2 + $0x44] sm:$0xf]
  %v5141 = vpack.c.bf16 %v5134, %v5134
  %5143 = vrot.lane.b32.xlu0 %v5141, 32
  %v5144 = vpop.permute.xlu0 %5143
  %v5146 = vsel %vm270, %v5144, 0
  %5148 = vmatprep.subr.bf16.mxu0 0
  %5149 = vmatpush1.bf16.msra.mxu0 0
  %5150 = vmatprep.subr.bf16.mxu0 0
  %5151 = vmatpush1.bf16.msra.mxu0 0
  %5152 = vmatprep.subr.bf16.mxu0 0
  %5153 = vmatpush1.bf16.msra.mxu0 0
  %5154 = vmatprep.subr.bf16.mxu0 0
  %5155 = vmatpush1.bf16.msra.mxu0 0
  %5156 = vmatprep.subr.bf16.mxu0 0
  %5157 = vmatpush1.bf16.msra.mxu0 0
  %5158 = vmatprep.subr.bf16.mxu0 0
  %5159 = vmatpush1.bf16.msra.mxu0 0
  %5160 = vmatprep.subr.bf16.mxu0 0
  %5161 = vmatpush1.bf16.msra.mxu0 %v3802
  %5162 = vmatprep.subr.bf16.mxu0 0
  %5163 = vmatpush1.bf16.msra.mxu0 %v3801
  %5164 = vmatprep.subr.bf16.mxu0 0
  %5165 = vmatpush2.bf16.msra.mxu0 0
  %5166 = vmatprep.subr.bf16.mxu0 0
  %5167 = vmatpush2.bf16.msra.mxu0 0
  %5168 = vmatprep.subr.bf16.mxu0 0
  %5169 = vmatpush2.bf16.msra.mxu0 0
  %5170 = vmatprep.subr.bf16.mxu0 0
  %5171 = vmatpush2.bf16.msra.mxu0 0
  %5172 = vmatprep.subr.bf16.mxu0 0
  %5173 = vmatpush2.bf16.msra.mxu0 0
  %5174 = vmatprep.subr.bf16.mxu0 0
  %5175 = vmatpush2.bf16.msra.mxu0 0
  %5176 = vmatprep.subr.bf16.mxu0 0
  %5177 = vmatpush2.bf16.msra.mxu0 0
  %5178 = vmatprep.subr.bf16.mxu0 0
  %5179 = vmatpush2.bf16.msra.mxu0 0
  %5180 = vmatprep.mubr.bf16.mxu0 0
  %5181 = vmatmul.mubr.bf16.gmra.mxu0 %v5146
  %v5182 = vpop.f32.mrf.mxu0
  %v5183 = vadd.f32 0.0, %v5182
  %v5184 = vpop.f32.mrf.mxu0
  %v5185 = vpop.f32.mrf.mxu0
  %v5186 = vpop.f32.mrf.mxu0
  %5187 = vdwg.mxu0
  %v5188 = vadd.f32 %v5140, %v5183
  %v5189 = vxor.u32 %v5188, 2147483648
  %v5190 = vmul.f32 %v5189, 1.442695
  %v5191 = vpow.pop %v5190
  %v5192 = vadd.f32 %v5191, 1.0
  %v5193 = vrcp.pop %v5192
  %v5194 = vmul.f32 1.0, %v5193
  %v5195 = vmul.f32 %v5194, 2.0
  %v5196 = vsub.f32 %v5195, 1.0
  %v5197 = vmul.f32 %v5194, %v5128
  %5199 = vrot.lane.b32.xlu0 %v5196, 64
  %v5200 = vpop.permute.xlu0 %5199
  %v5202 = vmul.f32 %v5194, %v5200
  %5204 = vrot.lane.b32.xlu0 %v5202, 32
  %v5205 = vpop.permute.xlu0 %5204
  %v5207 = vadd.f32 %v5197, %v5205
  %v5208 = vtanh.pop %v5207
  %5210 = vrot.lane.b32.xlu0 %v5208, 64
  %v5211 = vpop.permute.xlu0 %5210
  %v5213 = vmul.f32 %v5194, %v5211
  %5215 = vrot.lane.b32.xlu0 %v5213, 32
  %v5216 = vpop.permute.xlu0 %5215
  %5218 = vst.msk [vmem:[#allocation3 + $0x44] sm:$0xf] %vm344, %v5216
  %v5219 = vld [vmem:[#allocation2 + $0x48] sm:$0xf]
  %v5220 = vpack.c.bf16 %v5213, %v5213
  %5222 = vrot.lane.b32.xlu0 %v5220, 32
  %v5223 = vpop.permute.xlu0 %5222
  %v5225 = vsel %vm270, %v5223, 0
  %5227 = vmatprep.subr.bf16.mxu0 0
  %5228 = vmatpush1.bf16.msra.mxu0 0
  %5229 = vmatprep.subr.bf16.mxu0 0
  %5230 = vmatpush1.bf16.msra.mxu0 0
  %5231 = vmatprep.subr.bf16.mxu0 0
  %5232 = vmatpush1.bf16.msra.mxu0 0
  %5233 = vmatprep.subr.bf16.mxu0 0
  %5234 = vmatpush1.bf16.msra.mxu0 0
  %5235 = vmatprep.subr.bf16.mxu0 0
  %5236 = vmatpush1.bf16.msra.mxu0 0
  %5237 = vmatprep.subr.bf16.mxu0 0
  %5238 = vmatpush1.bf16.msra.mxu0 0
  %5239 = vmatprep.subr.bf16.mxu0 0
  %5240 = vmatpush1.bf16.msra.mxu0 %v3802
  %5241 = vmatprep.subr.bf16.mxu0 0
  %5242 = vmatpush1.bf16.msra.mxu0 %v3801
  %5243 = vmatprep.subr.bf16.mxu0 0
  %5244 = vmatpush2.bf16.msra.mxu0 0
  %5245 = vmatprep.subr.bf16.mxu0 0
  %5246 = vmatpush2.bf16.msra.mxu0 0
  %5247 = vmatprep.subr.bf16.mxu0 0
  %5248 = vmatpush2.bf16.msra.mxu0 0
  %5249 = vmatprep.subr.bf16.mxu0 0
  %5250 = vmatpush2.bf16.msra.mxu0 0
  %5251 = vmatprep.subr.bf16.mxu0 0
  %5252 = vmatpush2.bf16.msra.mxu0 0
  %5253 = vmatprep.subr.bf16.mxu0 0
  %5254 = vmatpush2.bf16.msra.mxu0 0
  %5255 = vmatprep.subr.bf16.mxu0 0
  %5256 = vmatpush2.bf16.msra.mxu0 0
  %5257 = vmatprep.subr.bf16.mxu0 0
  %5258 = vmatpush2.bf16.msra.mxu0 0
  %5259 = vmatprep.mubr.bf16.mxu0 0
  %5260 = vmatmul.mubr.bf16.gmra.mxu0 %v5225
  %v5261 = vpop.f32.mrf.mxu0
  %v5262 = vadd.f32 0.0, %v5261
  %v5263 = vpop.f32.mrf.mxu0
  %v5264 = vpop.f32.mrf.mxu0
  %v5265 = vpop.f32.mrf.mxu0
  %5266 = vdwg.mxu0
  %v5267 = vadd.f32 %v5219, %v5262
  %v5268 = vxor.u32 %v5267, 2147483648
  %v5269 = vmul.f32 %v5268, 1.442695
  %v5270 = vpow.pop %v5269
  %v5271 = vadd.f32 %v5270, 1.0
  %v5272 = vrcp.pop %v5271
  %v5273 = vmul.f32 1.0, %v5272
  %v5274 = vmul.f32 %v5273, 2.0
  %v5275 = vsub.f32 %v5274, 1.0
  %v5276 = vmul.f32 %v5273, %v5207
  %5278 = vrot.lane.b32.xlu0 %v5275, 64
  %v5279 = vpop.permute.xlu0 %5278
  %v5281 = vmul.f32 %v5273, %v5279
  %5283 = vrot.lane.b32.xlu0 %v5281, 32
  %v5284 = vpop.permute.xlu0 %5283
  %v5286 = vadd.f32 %v5276, %v5284
  %v5287 = vtanh.pop %v5286
  %5289 = vrot.lane.b32.xlu0 %v5287, 64
  %v5290 = vpop.permute.xlu0 %5289
  %v5292 = vmul.f32 %v5273, %v5290
  %5294 = vrot.lane.b32.xlu0 %v5292, 32
  %v5295 = vpop.permute.xlu0 %5294
  %5297 = vst.msk [vmem:[#allocation3 + $0x48] sm:$0xf] %vm344, %v5295
  %v5298 = vld [vmem:[#allocation2 + $0x4c] sm:$0xf]
  %v5299 = vpack.c.bf16 %v5292, %v5292
  %5301 = vrot.lane.b32.xlu0 %v5299, 32
  %v5302 = vpop.permute.xlu0 %5301
  %v5304 = vsel %vm270, %v5302, 0
  %5306 = vmatprep.subr.bf16.mxu0 0
  %5307 = vmatpush1.bf16.msra.mxu0 0
  %5308 = vmatprep.subr.bf16.mxu0 0
  %5309 = vmatpush1.bf16.msra.mxu0 0
  %5310 = vmatprep.subr.bf16.mxu0 0
  %5311 = vmatpush1.bf16.msra.mxu0 0
  %5312 = vmatprep.subr.bf16.mxu0 0
  %5313 = vmatpush1.bf16.msra.mxu0 0
  %5314 = vmatprep.subr.bf16.mxu0 0
  %5315 = vmatpush1.bf16.msra.mxu0 0
  %5316 = vmatprep.subr.bf16.mxu0 0
  %5317 = vmatpush1.bf16.msra.mxu0 0
  %5318 = vmatprep.subr.bf16.mxu0 0
  %5319 = vmatpush1.bf16.msra.mxu0 %v3802
  %5320 = vmatprep.subr.bf16.mxu0 0
  %5321 = vmatpush1.bf16.msra.mxu0 %v3801
  %5322 = vmatprep.subr.bf16.mxu0 0
  %5323 = vmatpush2.bf16.msra.mxu0 0
  %5324 = vmatprep.subr.bf16.mxu0 0
  %5325 = vmatpush2.bf16.msra.mxu0 0
  %5326 = vmatprep.subr.bf16.mxu0 0
  %5327 = vmatpush2.bf16.msra.mxu0 0
  %5328 = vmatprep.subr.bf16.mxu0 0
  %5329 = vmatpush2.bf16.msra.mxu0 0
  %5330 = vmatprep.subr.bf16.mxu0 0
  %5331 = vmatpush2.bf16.msra.mxu0 0
  %5332 = vmatprep.subr.bf16.mxu0 0
  %5333 = vmatpush2.bf16.msra.mxu0 0
  %5334 = vmatprep.subr.bf16.mxu0 0
  %5335 = vmatpush2.bf16.msra.mxu0 0
  %5336 = vmatprep.subr.bf16.mxu0 0
  %5337 = vmatpush2.bf16.msra.mxu0 0
  %5338 = vmatprep.mubr.bf16.mxu0 0
  %5339 = vmatmul.mubr.bf16.gmra.mxu0 %v5304
  %v5340 = vpop.f32.mrf.mxu0
  %v5341 = vadd.f32 0.0, %v5340
  %v5342 = vpop.f32.mrf.mxu0
  %v5343 = vpop.f32.mrf.mxu0
  %v5344 = vpop.f32.mrf.mxu0
  %5345 = vdwg.mxu0
  %v5346 = vadd.f32 %v5298, %v5341
  %v5347 = vxor.u32 %v5346, 2147483648
  %v5348 = vmul.f32 %v5347, 1.442695
  %v5349 = vpow.pop %v5348
  %v5350 = vadd.f32 %v5349, 1.0
  %v5351 = vrcp.pop %v5350
  %v5352 = vmul.f32 1.0, %v5351
  %v5353 = vmul.f32 %v5352, 2.0
  %v5354 = vsub.f32 %v5353, 1.0
  %v5355 = vmul.f32 %v5352, %v5286
  %5357 = vrot.lane.b32.xlu0 %v5354, 64
  %v5358 = vpop.permute.xlu0 %5357
  %v5360 = vmul.f32 %v5352, %v5358
  %5362 = vrot.lane.b32.xlu0 %v5360, 32
  %v5363 = vpop.permute.xlu0 %5362
  %v5365 = vadd.f32 %v5355, %v5363
  %v5366 = vtanh.pop %v5365
  %5368 = vrot.lane.b32.xlu0 %v5366, 64
  %v5369 = vpop.permute.xlu0 %5368
  %v5371 = vmul.f32 %v5352, %v5369
  %5373 = vrot.lane.b32.xlu0 %v5371, 32
  %v5374 = vpop.permute.xlu0 %5373
  %5376 = vst.msk [vmem:[#allocation3 + $0x4c] sm:$0xf] %vm344, %v5374
  %v5377 = vld [vmem:[#allocation2 + $0x50] sm:$0xf]
  %v5378 = vpack.c.bf16 %v5371, %v5371
  %5380 = vrot.lane.b32.xlu0 %v5378, 32
  %v5381 = vpop.permute.xlu0 %5380
  %v5383 = vsel %vm270, %v5381, 0
  %5385 = vmatprep.subr.bf16.mxu0 0
  %5386 = vmatpush1.bf16.msra.mxu0 0
  %5387 = vmatprep.subr.bf16.mxu0 0
  %5388 = vmatpush1.bf16.msra.mxu0 0
  %5389 = vmatprep.subr.bf16.mxu0 0
  %5390 = vmatpush1.bf16.msra.mxu0 0
  %5391 = vmatprep.subr.bf16.mxu0 0
  %5392 = vmatpush1.bf16.msra.mxu0 0
  %5393 = vmatprep.subr.bf16.mxu0 0
  %5394 = vmatpush1.bf16.msra.mxu0 0
  %5395 = vmatprep.subr.bf16.mxu0 0
  %5396 = vmatpush1.bf16.msra.mxu0 0
  %5397 = vmatprep.subr.bf16.mxu0 0
  %5398 = vmatpush1.bf16.msra.mxu0 %v3802
  %5399 = vmatprep.subr.bf16.mxu0 0
  %5400 = vmatpush1.bf16.msra.mxu0 %v3801
  %5401 = vmatprep.subr.bf16.mxu0 0
  %5402 = vmatpush2.bf16.msra.mxu0 0
  %5403 = vmatprep.subr.bf16.mxu0 0
  %5404 = vmatpush2.bf16.msra.mxu0 0
  %5405 = vmatprep.subr.bf16.mxu0 0
  %5406 = vmatpush2.bf16.msra.mxu0 0
  %5407 = vmatprep.subr.bf16.mxu0 0
  %5408 = vmatpush2.bf16.msra.mxu0 0
  %5409 = vmatprep.subr.bf16.mxu0 0
  %5410 = vmatpush2.bf16.msra.mxu0 0
  %5411 = vmatprep.subr.bf16.mxu0 0
  %5412 = vmatpush2.bf16.msra.mxu0 0
  %5413 = vmatprep.subr.bf16.mxu0 0
  %5414 = vmatpush2.bf16.msra.mxu0 0
  %5415 = vmatprep.subr.bf16.mxu0 0
  %5416 = vmatpush2.bf16.msra.mxu0 0
  %5417 = vmatprep.mubr.bf16.mxu0 0
  %5418 = vmatmul.mubr.bf16.gmra.mxu0 %v5383
  %v5419 = vpop.f32.mrf.mxu0
  %v5420 = vadd.f32 0.0, %v5419
  %v5421 = vpop.f32.mrf.mxu0
  %v5422 = vpop.f32.mrf.mxu0
  %v5423 = vpop.f32.mrf.mxu0
  %5424 = vdwg.mxu0
  %v5425 = vadd.f32 %v5377, %v5420
  %v5426 = vxor.u32 %v5425, 2147483648
  %v5427 = vmul.f32 %v5426, 1.442695
  %v5428 = vpow.pop %v5427
  %v5429 = vadd.f32 %v5428, 1.0
  %v5430 = vrcp.pop %v5429
  %v5431 = vmul.f32 1.0, %v5430
  %v5432 = vmul.f32 %v5431, 2.0
  %v5433 = vsub.f32 %v5432, 1.0
  %v5434 = vmul.f32 %v5431, %v5365
  %5436 = vrot.lane.b32.xlu0 %v5433, 64
  %v5437 = vpop.permute.xlu0 %5436
  %v5439 = vmul.f32 %v5431, %v5437
  %5441 = vrot.lane.b32.xlu0 %v5439, 32
  %v5442 = vpop.permute.xlu0 %5441
  %v5444 = vadd.f32 %v5434, %v5442
  %v5445 = vtanh.pop %v5444
  %5447 = vrot.lane.b32.xlu0 %v5445, 64
  %v5448 = vpop.permute.xlu0 %5447
  %v5450 = vmul.f32 %v5431, %v5448
  %5452 = vrot.lane.b32.xlu0 %v5450, 32
  %v5453 = vpop.permute.xlu0 %5452
  %5455 = vst.msk [vmem:[#allocation3 + $0x50] sm:$0xf] %vm344, %v5453
  %v5456 = vld [vmem:[#allocation2 + $0x54] sm:$0xf]
  %v5457 = vpack.c.bf16 %v5450, %v5450
  %5459 = vrot.lane.b32.xlu0 %v5457, 32
  %v5460 = vpop.permute.xlu0 %5459
  %v5462 = vsel %vm270, %v5460, 0
  %5464 = vmatprep.subr.bf16.mxu0 0
  %5465 = vmatpush1.bf16.msra.mxu0 0
  %5466 = vmatprep.subr.bf16.mxu0 0
  %5467 = vmatpush1.bf16.msra.mxu0 0
  %5468 = vmatprep.subr.bf16.mxu0 0
  %5469 = vmatpush1.bf16.msra.mxu0 0
  %5470 = vmatprep.subr.bf16.mxu0 0
  %5471 = vmatpush1.bf16.msra.mxu0 0
  %5472 = vmatprep.subr.bf16.mxu0 0
  %5473 = vmatpush1.bf16.msra.mxu0 0
  %5474 = vmatprep.subr.bf16.mxu0 0
  %5475 = vmatpush1.bf16.msra.mxu0 0
  %5476 = vmatprep.subr.bf16.mxu0 0
  %5477 = vmatpush1.bf16.msra.mxu0 %v3802
  %5478 = vmatprep.subr.bf16.mxu0 0
  %5479 = vmatpush1.bf16.msra.mxu0 %v3801
  %5480 = vmatprep.subr.bf16.mxu0 0
  %5481 = vmatpush2.bf16.msra.mxu0 0
  %5482 = vmatprep.subr.bf16.mxu0 0
  %5483 = vmatpush2.bf16.msra.mxu0 0
  %5484 = vmatprep.subr.bf16.mxu0 0
  %5485 = vmatpush2.bf16.msra.mxu0 0
  %5486 = vmatprep.subr.bf16.mxu0 0
  %5487 = vmatpush2.bf16.msra.mxu0 0
  %5488 = vmatprep.subr.bf16.mxu0 0
  %5489 = vmatpush2.bf16.msra.mxu0 0
  %5490 = vmatprep.subr.bf16.mxu0 0
  %5491 = vmatpush2.bf16.msra.mxu0 0
  %5492 = vmatprep.subr.bf16.mxu0 0
  %5493 = vmatpush2.bf16.msra.mxu0 0
  %5494 = vmatprep.subr.bf16.mxu0 0
  %5495 = vmatpush2.bf16.msra.mxu0 0
  %5496 = vmatprep.mubr.bf16.mxu0 0
  %5497 = vmatmul.mubr.bf16.gmra.mxu0 %v5462
  %v5498 = vpop.f32.mrf.mxu0
  %v5499 = vadd.f32 0.0, %v5498
  %v5500 = vpop.f32.mrf.mxu0
  %v5501 = vpop.f32.mrf.mxu0
  %v5502 = vpop.f32.mrf.mxu0
  %5503 = vdwg.mxu0
  %v5504 = vadd.f32 %v5456, %v5499
  %v5505 = vxor.u32 %v5504, 2147483648
  %v5506 = vmul.f32 %v5505, 1.442695
  %v5507 = vpow.pop %v5506
  %v5508 = vadd.f32 %v5507, 1.0
  %v5509 = vrcp.pop %v5508
  %v5510 = vmul.f32 1.0, %v5509
  %v5511 = vmul.f32 %v5510, 2.0
  %v5512 = vsub.f32 %v5511, 1.0
  %v5513 = vmul.f32 %v5510, %v5444
  %5515 = vrot.lane.b32.xlu0 %v5512, 64
  %v5516 = vpop.permute.xlu0 %5515
  %v5518 = vmul.f32 %v5510, %v5516
  %5520 = vrot.lane.b32.xlu0 %v5518, 32
  %v5521 = vpop.permute.xlu0 %5520
  %v5523 = vadd.f32 %v5513, %v5521
  %v5524 = vtanh.pop %v5523
  %5526 = vrot.lane.b32.xlu0 %v5524, 64
  %v5527 = vpop.permute.xlu0 %5526
  %v5529 = vmul.f32 %v5510, %v5527
  %5531 = vrot.lane.b32.xlu0 %v5529, 32
  %v5532 = vpop.permute.xlu0 %5531
  %5534 = vst.msk [vmem:[#allocation3 + $0x54] sm:$0xf] %vm344, %v5532
  %v5535 = vld [vmem:[#allocation2 + $0x58] sm:$0xf]
  %v5536 = vpack.c.bf16 %v5529, %v5529
  %5538 = vrot.lane.b32.xlu0 %v5536, 32
  %v5539 = vpop.permute.xlu0 %5538
  %v5541 = vsel %vm270, %v5539, 0
  %5543 = vmatprep.subr.bf16.mxu0 0
  %5544 = vmatpush1.bf16.msra.mxu0 0
  %5545 = vmatprep.subr.bf16.mxu0 0
  %5546 = vmatpush1.bf16.msra.mxu0 0
  %5547 = vmatprep.subr.bf16.mxu0 0
  %5548 = vmatpush1.bf16.msra.mxu0 0
  %5549 = vmatprep.subr.bf16.mxu0 0
  %5550 = vmatpush1.bf16.msra.mxu0 0
  %5551 = vmatprep.subr.bf16.mxu0 0
  %5552 = vmatpush1.bf16.msra.mxu0 0
  %5553 = vmatprep.subr.bf16.mxu0 0
  %5554 = vmatpush1.bf16.msra.mxu0 0
  %5555 = vmatprep.subr.bf16.mxu0 0
  %5556 = vmatpush1.bf16.msra.mxu0 %v3802
  %5557 = vmatprep.subr.bf16.mxu0 0
  %5558 = vmatpush1.bf16.msra.mxu0 %v3801
  %5559 = vmatprep.subr.bf16.mxu0 0
  %5560 = vmatpush2.bf16.msra.mxu0 0
  %5561 = vmatprep.subr.bf16.mxu0 0
  %5562 = vmatpush2.bf16.msra.mxu0 0
  %5563 = vmatprep.subr.bf16.mxu0 0
  %5564 = vmatpush2.bf16.msra.mxu0 0
  %5565 = vmatprep.subr.bf16.mxu0 0
  %5566 = vmatpush2.bf16.msra.mxu0 0
  %5567 = vmatprep.subr.bf16.mxu0 0
  %5568 = vmatpush2.bf16.msra.mxu0 0
  %5569 = vmatprep.subr.bf16.mxu0 0
  %5570 = vmatpush2.bf16.msra.mxu0 0
  %5571 = vmatprep.subr.bf16.mxu0 0
  %5572 = vmatpush2.bf16.msra.mxu0 0
  %5573 = vmatprep.subr.bf16.mxu0 0
  %5574 = vmatpush2.bf16.msra.mxu0 0
  %5575 = vmatprep.mubr.bf16.mxu0 0
  %5576 = vmatmul.mubr.bf16.gmra.mxu0 %v5541
  %v5577 = vpop.f32.mrf.mxu0
  %v5578 = vadd.f32 0.0, %v5577
  %v5579 = vpop.f32.mrf.mxu0
  %v5580 = vpop.f32.mrf.mxu0
  %v5581 = vpop.f32.mrf.mxu0
  %5582 = vdwg.mxu0
  %v5583 = vadd.f32 %v5535, %v5578
  %v5584 = vxor.u32 %v5583, 2147483648
  %v5585 = vmul.f32 %v5584, 1.442695
  %v5586 = vpow.pop %v5585
  %v5587 = vadd.f32 %v5586, 1.0
  %v5588 = vrcp.pop %v5587
  %v5589 = vmul.f32 1.0, %v5588
  %v5590 = vmul.f32 %v5589, 2.0
  %v5591 = vsub.f32 %v5590, 1.0
  %v5592 = vmul.f32 %v5589, %v5523
  %5594 = vrot.lane.b32.xlu0 %v5591, 64
  %v5595 = vpop.permute.xlu0 %5594
  %v5597 = vmul.f32 %v5589, %v5595
  %5599 = vrot.lane.b32.xlu0 %v5597, 32
  %v5600 = vpop.permute.xlu0 %5599
  %v5602 = vadd.f32 %v5592, %v5600
  %v5603 = vtanh.pop %v5602
  %5605 = vrot.lane.b32.xlu0 %v5603, 64
  %v5606 = vpop.permute.xlu0 %5605
  %v5608 = vmul.f32 %v5589, %v5606
  %5610 = vrot.lane.b32.xlu0 %v5608, 32
  %v5611 = vpop.permute.xlu0 %5610
  %5613 = vst.msk [vmem:[#allocation3 + $0x58] sm:$0xf] %vm344, %v5611
  %v5614 = vld [vmem:[#allocation2 + $0x5c] sm:$0xf]
  %v5615 = vpack.c.bf16 %v5608, %v5608
  %5617 = vrot.lane.b32.xlu0 %v5615, 32
  %v5618 = vpop.permute.xlu0 %5617
  %v5620 = vsel %vm270, %v5618, 0
  %5622 = vmatprep.subr.bf16.mxu0 0
  %5623 = vmatpush1.bf16.msra.mxu0 0
  %5624 = vmatprep.subr.bf16.mxu0 0
  %5625 = vmatpush1.bf16.msra.mxu0 0
  %5626 = vmatprep.subr.bf16.mxu0 0
  %5627 = vmatpush1.bf16.msra.mxu0 0
  %5628 = vmatprep.subr.bf16.mxu0 0
  %5629 = vmatpush1.bf16.msra.mxu0 0
  %5630 = vmatprep.subr.bf16.mxu0 0
  %5631 = vmatpush1.bf16.msra.mxu0 0
  %5632 = vmatprep.subr.bf16.mxu0 0
  %5633 = vmatpush1.bf16.msra.mxu0 0
  %5634 = vmatprep.subr.bf16.mxu0 0
  %5635 = vmatpush1.bf16.msra.mxu0 %v3802
  %5636 = vmatprep.subr.bf16.mxu0 0
  %5637 = vmatpush1.bf16.msra.mxu0 %v3801
  %5638 = vmatprep.subr.bf16.mxu0 0
  %5639 = vmatpush2.bf16.msra.mxu0 0
  %5640 = vmatprep.subr.bf16.mxu0 0
  %5641 = vmatpush2.bf16.msra.mxu0 0
  %5642 = vmatprep.subr.bf16.mxu0 0
  %5643 = vmatpush2.bf16.msra.mxu0 0
  %5644 = vmatprep.subr.bf16.mxu0 0
  %5645 = vmatpush2.bf16.msra.mxu0 0
  %5646 = vmatprep.subr.bf16.mxu0 0
  %5647 = vmatpush2.bf16.msra.mxu0 0
  %5648 = vmatprep.subr.bf16.mxu0 0
  %5649 = vmatpush2.bf16.msra.mxu0 0
  %5650 = vmatprep.subr.bf16.mxu0 0
  %5651 = vmatpush2.bf16.msra.mxu0 0
  %5652 = vmatprep.subr.bf16.mxu0 0
  %5653 = vmatpush2.bf16.msra.mxu0 0
  %5654 = vmatprep.mubr.bf16.mxu0 0
  %5655 = vmatmul.mubr.bf16.gmra.mxu0 %v5620
  %v5656 = vpop.f32.mrf.mxu0
  %v5657 = vadd.f32 0.0, %v5656
  %v5658 = vpop.f32.mrf.mxu0
  %v5659 = vpop.f32.mrf.mxu0
  %v5660 = vpop.f32.mrf.mxu0
  %5661 = vdwg.mxu0
  %v5662 = vadd.f32 %v5614, %v5657
  %v5663 = vxor.u32 %v5662, 2147483648
  %v5664 = vmul.f32 %v5663, 1.442695
  %v5665 = vpow.pop %v5664
  %v5666 = vadd.f32 %v5665, 1.0
  %v5667 = vrcp.pop %v5666
  %v5668 = vmul.f32 1.0, %v5667
  %v5669 = vmul.f32 %v5668, 2.0
  %v5670 = vsub.f32 %v5669, 1.0
  %v5671 = vmul.f32 %v5668, %v5602
  %5673 = vrot.lane.b32.xlu0 %v5670, 64
  %v5674 = vpop.permute.xlu0 %5673
  %v5676 = vmul.f32 %v5668, %v5674
  %5678 = vrot.lane.b32.xlu0 %v5676, 32
  %v5679 = vpop.permute.xlu0 %5678
  %v5681 = vadd.f32 %v5671, %v5679
  %v5682 = vtanh.pop %v5681
  %5684 = vrot.lane.b32.xlu0 %v5682, 64
  %v5685 = vpop.permute.xlu0 %5684
  %v5687 = vmul.f32 %v5668, %v5685
  %5689 = vrot.lane.b32.xlu0 %v5687, 32
  %v5690 = vpop.permute.xlu0 %5689
  %5692 = vst.msk [vmem:[#allocation3 + $0x5c] sm:$0xf] %vm344, %v5690
  %v5693 = vld [vmem:[#allocation2 + $0x60] sm:$0xf]
  %v5694 = vpack.c.bf16 %v5687, %v5687
  %5696 = vrot.lane.b32.xlu0 %v5694, 32
  %v5697 = vpop.permute.xlu0 %5696
  %v5699 = vsel %vm270, %v5697, 0
  %5701 = vmatprep.subr.bf16.mxu0 0
  %5702 = vmatpush1.bf16.msra.mxu0 0
  %5703 = vmatprep.subr.bf16.mxu0 0
  %5704 = vmatpush1.bf16.msra.mxu0 0
  %5705 = vmatprep.subr.bf16.mxu0 0
  %5706 = vmatpush1.bf16.msra.mxu0 0
  %5707 = vmatprep.subr.bf16.mxu0 0
  %5708 = vmatpush1.bf16.msra.mxu0 0
  %5709 = vmatprep.subr.bf16.mxu0 0
  %5710 = vmatpush1.bf16.msra.mxu0 0
  %5711 = vmatprep.subr.bf16.mxu0 0
  %5712 = vmatpush1.bf16.msra.mxu0 0
  %5713 = vmatprep.subr.bf16.mxu0 0
  %5714 = vmatpush1.bf16.msra.mxu0 %v3802
  %5715 = vmatprep.subr.bf16.mxu0 0
  %5716 = vmatpush1.bf16.msra.mxu0 %v3801
  %5717 = vmatprep.subr.bf16.mxu0 0
  %5718 = vmatpush2.bf16.msra.mxu0 0
  %5719 = vmatprep.subr.bf16.mxu0 0
  %5720 = vmatpush2.bf16.msra.mxu0 0
  %5721 = vmatprep.subr.bf16.mxu0 0
  %5722 = vmatpush2.bf16.msra.mxu0 0
  %5723 = vmatprep.subr.bf16.mxu0 0
  %5724 = vmatpush2.bf16.msra.mxu0 0
  %5725 = vmatprep.subr.bf16.mxu0 0
  %5726 = vmatpush2.bf16.msra.mxu0 0
  %5727 = vmatprep.subr.bf16.mxu0 0
  %5728 = vmatpush2.bf16.msra.mxu0 0
  %5729 = vmatprep.subr.bf16.mxu0 0
  %5730 = vmatpush2.bf16.msra.mxu0 0
  %5731 = vmatprep.subr.bf16.mxu0 0
  %5732 = vmatpush2.bf16.msra.mxu0 0
  %5733 = vmatprep.mubr.bf16.mxu0 0
  %5734 = vmatmul.mubr.bf16.gmra.mxu0 %v5699
  %v5735 = vpop.f32.mrf.mxu0
  %v5736 = vadd.f32 0.0, %v5735
  %v5737 = vpop.f32.mrf.mxu0
  %v5738 = vpop.f32.mrf.mxu0
  %v5739 = vpop.f32.mrf.mxu0
  %5740 = vdwg.mxu0
  %v5741 = vadd.f32 %v5693, %v5736
  %v5742 = vxor.u32 %v5741, 2147483648
  %v5743 = vmul.f32 %v5742, 1.442695
  %v5744 = vpow.pop %v5743
  %v5745 = vadd.f32 %v5744, 1.0
  %v5746 = vrcp.pop %v5745
  %v5747 = vmul.f32 1.0, %v5746
  %v5748 = vmul.f32 %v5747, 2.0
  %v5749 = vsub.f32 %v5748, 1.0
  %v5750 = vmul.f32 %v5747, %v5681
  %5752 = vrot.lane.b32.xlu0 %v5749, 64
  %v5753 = vpop.permute.xlu0 %5752
  %v5755 = vmul.f32 %v5747, %v5753
  %5757 = vrot.lane.b32.xlu0 %v5755, 32
  %v5758 = vpop.permute.xlu0 %5757
  %v5760 = vadd.f32 %v5750, %v5758
  %v5761 = vtanh.pop %v5760
  %5763 = vrot.lane.b32.xlu0 %v5761, 64
  %v5764 = vpop.permute.xlu0 %5763
  %v5766 = vmul.f32 %v5747, %v5764
  %5768 = vrot.lane.b32.xlu0 %v5766, 32
  %v5769 = vpop.permute.xlu0 %5768
  %5771 = vst.msk [vmem:[#allocation3 + $0x60] sm:$0xf] %vm344, %v5769
  %v5772 = vld [vmem:[#allocation2 + $0x64] sm:$0xf]
  %v5773 = vpack.c.bf16 %v5766, %v5766
  %5775 = vrot.lane.b32.xlu0 %v5773, 32
  %v5776 = vpop.permute.xlu0 %5775
  %v5778 = vsel %vm270, %v5776, 0
  %5780 = vmatprep.subr.bf16.mxu0 0
  %5781 = vmatpush1.bf16.msra.mxu0 0
  %5782 = vmatprep.subr.bf16.mxu0 0
  %5783 = vmatpush1.bf16.msra.mxu0 0
  %5784 = vmatprep.subr.bf16.mxu0 0
  %5785 = vmatpush1.bf16.msra.mxu0 0
  %5786 = vmatprep.subr.bf16.mxu0 0
  %5787 = vmatpush1.bf16.msra.mxu0 0
  %5788 = vmatprep.subr.bf16.mxu0 0
  %5789 = vmatpush1.bf16.msra.mxu0 0
  %5790 = vmatprep.subr.bf16.mxu0 0
  %5791 = vmatpush1.bf16.msra.mxu0 0
  %5792 = vmatprep.subr.bf16.mxu0 0
  %5793 = vmatpush1.bf16.msra.mxu0 %v3802
  %5794 = vmatprep.subr.bf16.mxu0 0
  %5795 = vmatpush1.bf16.msra.mxu0 %v3801
  %5796 = vmatprep.subr.bf16.mxu0 0
  %5797 = vmatpush2.bf16.msra.mxu0 0
  %5798 = vmatprep.subr.bf16.mxu0 0
  %5799 = vmatpush2.bf16.msra.mxu0 0
  %5800 = vmatprep.subr.bf16.mxu0 0
  %5801 = vmatpush2.bf16.msra.mxu0 0
  %5802 = vmatprep.subr.bf16.mxu0 0
  %5803 = vmatpush2.bf16.msra.mxu0 0
  %5804 = vmatprep.subr.bf16.mxu0 0
  %5805 = vmatpush2.bf16.msra.mxu0 0
  %5806 = vmatprep.subr.bf16.mxu0 0
  %5807 = vmatpush2.bf16.msra.mxu0 0
  %5808 = vmatprep.subr.bf16.mxu0 0
  %5809 = vmatpush2.bf16.msra.mxu0 0
  %5810 = vmatprep.subr.bf16.mxu0 0
  %5811 = vmatpush2.bf16.msra.mxu0 0
  %5812 = vmatprep.mubr.bf16.mxu0 0
  %5813 = vmatmul.mubr.bf16.gmra.mxu0 %v5778
  %v5814 = vpop.f32.mrf.mxu0
  %v5815 = vadd.f32 0.0, %v5814
  %v5816 = vpop.f32.mrf.mxu0
  %v5817 = vpop.f32.mrf.mxu0
  %v5818 = vpop.f32.mrf.mxu0
  %5819 = vdwg.mxu0
  %v5820 = vadd.f32 %v5772, %v5815
  %v5821 = vxor.u32 %v5820, 2147483648
  %v5822 = vmul.f32 %v5821, 1.442695
  %v5823 = vpow.pop %v5822
  %v5824 = vadd.f32 %v5823, 1.0
  %v5825 = vrcp.pop %v5824
  %v5826 = vmul.f32 1.0, %v5825
  %v5827 = vmul.f32 %v5826, 2.0
  %v5828 = vsub.f32 %v5827, 1.0
  %v5829 = vmul.f32 %v5826, %v5760
  %5831 = vrot.lane.b32.xlu0 %v5828, 64
  %v5832 = vpop.permute.xlu0 %5831
  %v5834 = vmul.f32 %v5826, %v5832
  %5836 = vrot.lane.b32.xlu0 %v5834, 32
  %v5837 = vpop.permute.xlu0 %5836
  %v5839 = vadd.f32 %v5829, %v5837
  %v5840 = vtanh.pop %v5839
  %5842 = vrot.lane.b32.xlu0 %v5840, 64
  %v5843 = vpop.permute.xlu0 %5842
  %v5845 = vmul.f32 %v5826, %v5843
  %5847 = vrot.lane.b32.xlu0 %v5845, 32
  %v5848 = vpop.permute.xlu0 %5847
  %5850 = vst.msk [vmem:[#allocation3 + $0x64] sm:$0xf] %vm344, %v5848
  %v5851 = vld [vmem:[#allocation2 + $0x68] sm:$0xf]
  %v5852 = vpack.c.bf16 %v5845, %v5845
  %5854 = vrot.lane.b32.xlu0 %v5852, 32
  %v5855 = vpop.permute.xlu0 %5854
  %v5857 = vsel %vm270, %v5855, 0
  %5859 = vmatprep.subr.bf16.mxu0 0
  %5860 = vmatpush1.bf16.msra.mxu0 0
  %5861 = vmatprep.subr.bf16.mxu0 0
  %5862 = vmatpush1.bf16.msra.mxu0 0
  %5863 = vmatprep.subr.bf16.mxu0 0
  %5864 = vmatpush1.bf16.msra.mxu0 0
  %5865 = vmatprep.subr.bf16.mxu0 0
  %5866 = vmatpush1.bf16.msra.mxu0 0
  %5867 = vmatprep.subr.bf16.mxu0 0
  %5868 = vmatpush1.bf16.msra.mxu0 0
  %5869 = vmatprep.subr.bf16.mxu0 0
  %5870 = vmatpush1.bf16.msra.mxu0 0
  %5871 = vmatprep.subr.bf16.mxu0 0
  %5872 = vmatpush1.bf16.msra.mxu0 %v3802
  %5873 = vmatprep.subr.bf16.mxu0 0
  %5874 = vmatpush1.bf16.msra.mxu0 %v3801
  %5875 = vmatprep.subr.bf16.mxu0 0
  %5876 = vmatpush2.bf16.msra.mxu0 0
  %5877 = vmatprep.subr.bf16.mxu0 0
  %5878 = vmatpush2.bf16.msra.mxu0 0
  %5879 = vmatprep.subr.bf16.mxu0 0
  %5880 = vmatpush2.bf16.msra.mxu0 0
  %5881 = vmatprep.subr.bf16.mxu0 0
  %5882 = vmatpush2.bf16.msra.mxu0 0
  %5883 = vmatprep.subr.bf16.mxu0 0
  %5884 = vmatpush2.bf16.msra.mxu0 0
  %5885 = vmatprep.subr.bf16.mxu0 0
  %5886 = vmatpush2.bf16.msra.mxu0 0
  %5887 = vmatprep.subr.bf16.mxu0 0
  %5888 = vmatpush2.bf16.msra.mxu0 0
  %5889 = vmatprep.subr.bf16.mxu0 0
  %5890 = vmatpush2.bf16.msra.mxu0 0
  %5891 = vmatprep.mubr.bf16.mxu0 0
  %5892 = vmatmul.mubr.bf16.gmra.mxu0 %v5857
  %v5893 = vpop.f32.mrf.mxu0
  %v5894 = vadd.f32 0.0, %v5893
  %v5895 = vpop.f32.mrf.mxu0
  %v5896 = vpop.f32.mrf.mxu0
  %v5897 = vpop.f32.mrf.mxu0
  %5898 = vdwg.mxu0
  %v5899 = vadd.f32 %v5851, %v5894
  %v5900 = vxor.u32 %v5899, 2147483648
  %v5901 = vmul.f32 %v5900, 1.442695
  %v5902 = vpow.pop %v5901
  %v5903 = vadd.f32 %v5902, 1.0
  %v5904 = vrcp.pop %v5903
  %v5905 = vmul.f32 1.0, %v5904
  %v5906 = vmul.f32 %v5905, 2.0
  %v5907 = vsub.f32 %v5906, 1.0
  %v5908 = vmul.f32 %v5905, %v5839
  %5910 = vrot.lane.b32.xlu0 %v5907, 64
  %v5911 = vpop.permute.xlu0 %5910
  %v5913 = vmul.f32 %v5905, %v5911
  %5915 = vrot.lane.b32.xlu0 %v5913, 32
  %v5916 = vpop.permute.xlu0 %5915
  %v5918 = vadd.f32 %v5908, %v5916
  %v5919 = vtanh.pop %v5918
  %5921 = vrot.lane.b32.xlu0 %v5919, 64
  %v5922 = vpop.permute.xlu0 %5921
  %v5924 = vmul.f32 %v5905, %v5922
  %5926 = vrot.lane.b32.xlu0 %v5924, 32
  %v5927 = vpop.permute.xlu0 %5926
  %5929 = vst.msk [vmem:[#allocation3 + $0x68] sm:$0xf] %vm344, %v5927
  %v5930 = vld [vmem:[#allocation2 + $0x6c] sm:$0xf]
  %v5931 = vpack.c.bf16 %v5924, %v5924
  %5933 = vrot.lane.b32.xlu0 %v5931, 32
  %v5934 = vpop.permute.xlu0 %5933
  %v5936 = vsel %vm270, %v5934, 0
  %5938 = vmatprep.subr.bf16.mxu0 0
  %5939 = vmatpush1.bf16.msra.mxu0 0
  %5940 = vmatprep.subr.bf16.mxu0 0
  %5941 = vmatpush1.bf16.msra.mxu0 0
  %5942 = vmatprep.subr.bf16.mxu0 0
  %5943 = vmatpush1.bf16.msra.mxu0 0
  %5944 = vmatprep.subr.bf16.mxu0 0
  %5945 = vmatpush1.bf16.msra.mxu0 0
  %5946 = vmatprep.subr.bf16.mxu0 0
  %5947 = vmatpush1.bf16.msra.mxu0 0
  %5948 = vmatprep.subr.bf16.mxu0 0
  %5949 = vmatpush1.bf16.msra.mxu0 0
  %5950 = vmatprep.subr.bf16.mxu0 0
  %5951 = vmatpush1.bf16.msra.mxu0 %v3802
  %5952 = vmatprep.subr.bf16.mxu0 0
  %5953 = vmatpush1.bf16.msra.mxu0 %v3801
  %5954 = vmatprep.subr.bf16.mxu0 0
  %5955 = vmatpush2.bf16.msra.mxu0 0
  %5956 = vmatprep.subr.bf16.mxu0 0
  %5957 = vmatpush2.bf16.msra.mxu0 0
  %5958 = vmatprep.subr.bf16.mxu0 0
  %5959 = vmatpush2.bf16.msra.mxu0 0
  %5960 = vmatprep.subr.bf16.mxu0 0
  %5961 = vmatpush2.bf16.msra.mxu0 0
  %5962 = vmatprep.subr.bf16.mxu0 0
  %5963 = vmatpush2.bf16.msra.mxu0 0
  %5964 = vmatprep.subr.bf16.mxu0 0
  %5965 = vmatpush2.bf16.msra.mxu0 0
  %5966 = vmatprep.subr.bf16.mxu0 0
  %5967 = vmatpush2.bf16.msra.mxu0 0
  %5968 = vmatprep.subr.bf16.mxu0 0
  %5969 = vmatpush2.bf16.msra.mxu0 0
  %5970 = vmatprep.mubr.bf16.mxu0 0
  %5971 = vmatmul.mubr.bf16.gmra.mxu0 %v5936
  %v5972 = vpop.f32.mrf.mxu0
  %v5973 = vadd.f32 0.0, %v5972
  %v5974 = vpop.f32.mrf.mxu0
  %v5975 = vpop.f32.mrf.mxu0
  %v5976 = vpop.f32.mrf.mxu0
  %5977 = vdwg.mxu0
  %v5978 = vadd.f32 %v5930, %v5973
  %v5979 = vxor.u32 %v5978, 2147483648
  %v5980 = vmul.f32 %v5979, 1.442695
  %v5981 = vpow.pop %v5980
  %v5982 = vadd.f32 %v5981, 1.0
  %v5983 = vrcp.pop %v5982
  %v5984 = vmul.f32 1.0, %v5983
  %v5985 = vmul.f32 %v5984, 2.0
  %v5986 = vsub.f32 %v5985, 1.0
  %v5987 = vmul.f32 %v5984, %v5918
  %5989 = vrot.lane.b32.xlu0 %v5986, 64
  %v5990 = vpop.permute.xlu0 %5989
  %v5992 = vmul.f32 %v5984, %v5990
  %5994 = vrot.lane.b32.xlu0 %v5992, 32
  %v5995 = vpop.permute.xlu0 %5994
  %v5997 = vadd.f32 %v5987, %v5995
  %v5998 = vtanh.pop %v5997
  %6000 = vrot.lane.b32.xlu0 %v5998, 64
  %v6001 = vpop.permute.xlu0 %6000
  %v6003 = vmul.f32 %v5984, %v6001
  %6005 = vrot.lane.b32.xlu0 %v6003, 32
  %v6006 = vpop.permute.xlu0 %6005
  %6008 = vst.msk [vmem:[#allocation3 + $0x6c] sm:$0xf] %vm344, %v6006
  %v6009 = vld [vmem:[#allocation2 + $0x70] sm:$0xf]
  %v6010 = vpack.c.bf16 %v6003, %v6003
  %6012 = vrot.lane.b32.xlu0 %v6010, 32
  %v6013 = vpop.permute.xlu0 %6012
  %v6015 = vsel %vm270, %v6013, 0
  %6017 = vmatprep.subr.bf16.mxu0 0
  %6018 = vmatpush1.bf16.msra.mxu0 0
  %6019 = vmatprep.subr.bf16.mxu0 0
  %6020 = vmatpush1.bf16.msra.mxu0 0
  %6021 = vmatprep.subr.bf16.mxu0 0
  %6022 = vmatpush1.bf16.msra.mxu0 0
  %6023 = vmatprep.subr.bf16.mxu0 0
  %6024 = vmatpush1.bf16.msra.mxu0 0
  %6025 = vmatprep.subr.bf16.mxu0 0
  %6026 = vmatpush1.bf16.msra.mxu0 0
  %6027 = vmatprep.subr.bf16.mxu0 0
  %6028 = vmatpush1.bf16.msra.mxu0 0
  %6029 = vmatprep.subr.bf16.mxu0 0
  %6030 = vmatpush1.bf16.msra.mxu0 %v3802
  %6031 = vmatprep.subr.bf16.mxu0 0
  %6032 = vmatpush1.bf16.msra.mxu0 %v3801
  %6033 = vmatprep.subr.bf16.mxu0 0
  %6034 = vmatpush2.bf16.msra.mxu0 0
  %6035 = vmatprep.subr.bf16.mxu0 0
  %6036 = vmatpush2.bf16.msra.mxu0 0
  %6037 = vmatprep.subr.bf16.mxu0 0
  %6038 = vmatpush2.bf16.msra.mxu0 0
  %6039 = vmatprep.subr.bf16.mxu0 0
  %6040 = vmatpush2.bf16.msra.mxu0 0
  %6041 = vmatprep.subr.bf16.mxu0 0
  %6042 = vmatpush2.bf16.msra.mxu0 0
  %6043 = vmatprep.subr.bf16.mxu0 0
  %6044 = vmatpush2.bf16.msra.mxu0 0
  %6045 = vmatprep.subr.bf16.mxu0 0
  %6046 = vmatpush2.bf16.msra.mxu0 0
  %6047 = vmatprep.subr.bf16.mxu0 0
  %6048 = vmatpush2.bf16.msra.mxu0 0
  %6049 = vmatprep.mubr.bf16.mxu0 0
  %6050 = vmatmul.mubr.bf16.gmra.mxu0 %v6015
  %v6051 = vpop.f32.mrf.mxu0
  %v6052 = vadd.f32 0.0, %v6051
  %v6053 = vpop.f32.mrf.mxu0
  %v6054 = vpop.f32.mrf.mxu0
  %v6055 = vpop.f32.mrf.mxu0
  %6056 = vdwg.mxu0
  %v6057 = vadd.f32 %v6009, %v6052
  %v6058 = vxor.u32 %v6057, 2147483648
  %v6059 = vmul.f32 %v6058, 1.442695
  %v6060 = vpow.pop %v6059
  %v6061 = vadd.f32 %v6060, 1.0
  %v6062 = vrcp.pop %v6061
  %v6063 = vmul.f32 1.0, %v6062
  %v6064 = vmul.f32 %v6063, 2.0
  %v6065 = vsub.f32 %v6064, 1.0
  %v6066 = vmul.f32 %v6063, %v5997
  %6068 = vrot.lane.b32.xlu0 %v6065, 64
  %v6069 = vpop.permute.xlu0 %6068
  %v6071 = vmul.f32 %v6063, %v6069
  %6073 = vrot.lane.b32.xlu0 %v6071, 32
  %v6074 = vpop.permute.xlu0 %6073
  %v6076 = vadd.f32 %v6066, %v6074
  %v6077 = vtanh.pop %v6076
  %6079 = vrot.lane.b32.xlu0 %v6077, 64
  %v6080 = vpop.permute.xlu0 %6079
  %v6082 = vmul.f32 %v6063, %v6080
  %6084 = vrot.lane.b32.xlu0 %v6082, 32
  %v6085 = vpop.permute.xlu0 %6084
  %6087 = vst.msk [vmem:[#allocation3 + $0x70] sm:$0xf] %vm344, %v6085
  %v6088 = vld [vmem:[#allocation2 + $0x74] sm:$0xf]
  %v6089 = vpack.c.bf16 %v6082, %v6082
  %6091 = vrot.lane.b32.xlu0 %v6089, 32
  %v6092 = vpop.permute.xlu0 %6091
  %v6094 = vsel %vm270, %v6092, 0
  %6096 = vmatprep.subr.bf16.mxu0 0
  %6097 = vmatpush1.bf16.msra.mxu0 0
  %6098 = vmatprep.subr.bf16.mxu0 0
  %6099 = vmatpush1.bf16.msra.mxu0 0
  %6100 = vmatprep.subr.bf16.mxu0 0
  %6101 = vmatpush1.bf16.msra.mxu0 0
  %6102 = vmatprep.subr.bf16.mxu0 0
  %6103 = vmatpush1.bf16.msra.mxu0 0
  %6104 = vmatprep.subr.bf16.mxu0 0
  %6105 = vmatpush1.bf16.msra.mxu0 0
  %6106 = vmatprep.subr.bf16.mxu0 0
  %6107 = vmatpush1.bf16.msra.mxu0 0
  %6108 = vmatprep.subr.bf16.mxu0 0
  %6109 = vmatpush1.bf16.msra.mxu0 %v3802
  %6110 = vmatprep.subr.bf16.mxu0 0
  %6111 = vmatpush1.bf16.msra.mxu0 %v3801
  %6112 = vmatprep.subr.bf16.mxu0 0
  %6113 = vmatpush2.bf16.msra.mxu0 0
  %6114 = vmatprep.subr.bf16.mxu0 0
  %6115 = vmatpush2.bf16.msra.mxu0 0
  %6116 = vmatprep.subr.bf16.mxu0 0
  %6117 = vmatpush2.bf16.msra.mxu0 0
  %6118 = vmatprep.subr.bf16.mxu0 0
  %6119 = vmatpush2.bf16.msra.mxu0 0
  %6120 = vmatprep.subr.bf16.mxu0 0
  %6121 = vmatpush2.bf16.msra.mxu0 0
  %6122 = vmatprep.subr.bf16.mxu0 0
  %6123 = vmatpush2.bf16.msra.mxu0 0
  %6124 = vmatprep.subr.bf16.mxu0 0
  %6125 = vmatpush2.bf16.msra.mxu0 0
  %6126 = vmatprep.subr.bf16.mxu0 0
  %6127 = vmatpush2.bf16.msra.mxu0 0
  %6128 = vmatprep.mubr.bf16.mxu0 0
  %6129 = vmatmul.mubr.bf16.gmra.mxu0 %v6094
  %v6130 = vpop.f32.mrf.mxu0
  %v6131 = vadd.f32 0.0, %v6130
  %v6132 = vpop.f32.mrf.mxu0
  %v6133 = vpop.f32.mrf.mxu0
  %v6134 = vpop.f32.mrf.mxu0
  %6135 = vdwg.mxu0
  %v6136 = vadd.f32 %v6088, %v6131
  %v6137 = vxor.u32 %v6136, 2147483648
  %v6138 = vmul.f32 %v6137, 1.442695
  %v6139 = vpow.pop %v6138
  %v6140 = vadd.f32 %v6139, 1.0
  %v6141 = vrcp.pop %v6140
  %v6142 = vmul.f32 1.0, %v6141
  %v6143 = vmul.f32 %v6142, 2.0
  %v6144 = vsub.f32 %v6143, 1.0
  %v6145 = vmul.f32 %v6142, %v6076
  %6147 = vrot.lane.b32.xlu0 %v6144, 64
  %v6148 = vpop.permute.xlu0 %6147
  %v6150 = vmul.f32 %v6142, %v6148
  %6152 = vrot.lane.b32.xlu0 %v6150, 32
  %v6153 = vpop.permute.xlu0 %6152
  %v6155 = vadd.f32 %v6145, %v6153
  %v6156 = vtanh.pop %v6155
  %6158 = vrot.lane.b32.xlu0 %v6156, 64
  %v6159 = vpop.permute.xlu0 %6158
  %v6161 = vmul.f32 %v6142, %v6159
  %6163 = vrot.lane.b32.xlu0 %v6161, 32
  %v6164 = vpop.permute.xlu0 %6163
  %6166 = vst.msk [vmem:[#allocation3 + $0x74] sm:$0xf] %vm344, %v6164
  %v6167 = vld [vmem:[#allocation2 + $0x78] sm:$0xf]
  %v6168 = vpack.c.bf16 %v6161, %v6161
  %6170 = vrot.lane.b32.xlu0 %v6168, 32
  %v6171 = vpop.permute.xlu0 %6170
  %v6173 = vsel %vm270, %v6171, 0
  %6175 = vmatprep.subr.bf16.mxu0 0
  %6176 = vmatpush1.bf16.msra.mxu0 0
  %6177 = vmatprep.subr.bf16.mxu0 0
  %6178 = vmatpush1.bf16.msra.mxu0 0
  %6179 = vmatprep.subr.bf16.mxu0 0
  %6180 = vmatpush1.bf16.msra.mxu0 0
  %6181 = vmatprep.subr.bf16.mxu0 0
  %6182 = vmatpush1.bf16.msra.mxu0 0
  %6183 = vmatprep.subr.bf16.mxu0 0
  %6184 = vmatpush1.bf16.msra.mxu0 0
  %6185 = vmatprep.subr.bf16.mxu0 0
  %6186 = vmatpush1.bf16.msra.mxu0 0
  %6187 = vmatprep.subr.bf16.mxu0 0
  %6188 = vmatpush1.bf16.msra.mxu0 %v3802
  %6189 = vmatprep.subr.bf16.mxu0 0
  %6190 = vmatpush1.bf16.msra.mxu0 %v3801
  %6191 = vmatprep.subr.bf16.mxu0 0
  %6192 = vmatpush2.bf16.msra.mxu0 0
  %6193 = vmatprep.subr.bf16.mxu0 0
  %6194 = vmatpush2.bf16.msra.mxu0 0
  %6195 = vmatprep.subr.bf16.mxu0 0
  %6196 = vmatpush2.bf16.msra.mxu0 0
  %6197 = vmatprep.subr.bf16.mxu0 0
  %6198 = vmatpush2.bf16.msra.mxu0 0
  %6199 = vmatprep.subr.bf16.mxu0 0
  %6200 = vmatpush2.bf16.msra.mxu0 0
  %6201 = vmatprep.subr.bf16.mxu0 0
  %6202 = vmatpush2.bf16.msra.mxu0 0
  %6203 = vmatprep.subr.bf16.mxu0 0
  %6204 = vmatpush2.bf16.msra.mxu0 0
  %6205 = vmatprep.subr.bf16.mxu0 0
  %6206 = vmatpush2.bf16.msra.mxu0 0
  %6207 = vmatprep.mubr.bf16.mxu0 0
  %6208 = vmatmul.mubr.bf16.gmra.mxu0 %v6173
  %v6209 = vpop.f32.mrf.mxu0
  %v6210 = vadd.f32 0.0, %v6209
  %v6211 = vpop.f32.mrf.mxu0
  %v6212 = vpop.f32.mrf.mxu0
  %v6213 = vpop.f32.mrf.mxu0
  %6214 = vdwg.mxu0
  %v6215 = vadd.f32 %v6167, %v6210
  %v6216 = vxor.u32 %v6215, 2147483648
  %v6217 = vmul.f32 %v6216, 1.442695
  %v6218 = vpow.pop %v6217
  %v6219 = vadd.f32 %v6218, 1.0
  %v6220 = vrcp.pop %v6219
  %v6221 = vmul.f32 1.0, %v6220
  %v6222 = vmul.f32 %v6221, 2.0
  %v6223 = vsub.f32 %v6222, 1.0
  %v6224 = vmul.f32 %v6221, %v6155
  %6226 = vrot.lane.b32.xlu0 %v6223, 64
  %v6227 = vpop.permute.xlu0 %6226
  %v6229 = vmul.f32 %v6221, %v6227
  %6231 = vrot.lane.b32.xlu0 %v6229, 32
  %v6232 = vpop.permute.xlu0 %6231
  %v6234 = vadd.f32 %v6224, %v6232
  %v6235 = vtanh.pop %v6234
  %6237 = vrot.lane.b32.xlu0 %v6235, 64
  %v6238 = vpop.permute.xlu0 %6237
  %v6240 = vmul.f32 %v6221, %v6238
  %6242 = vrot.lane.b32.xlu0 %v6240, 32
  %v6243 = vpop.permute.xlu0 %6242
  %6245 = vst.msk [vmem:[#allocation3 + $0x78] sm:$0xf] %vm344, %v6243
  %v6246 = vld [vmem:[#allocation2 + $0x7c] sm:$0xf]
  %v6247 = vpack.c.bf16 %v6240, %v6240
  %6249 = vrot.lane.b32.xlu0 %v6247, 32
  %v6250 = vpop.permute.xlu0 %6249
  %v6252 = vsel %vm270, %v6250, 0
  %6254 = vmatprep.subr.bf16.mxu0 0
  %6255 = vmatpush1.bf16.msra.mxu0 0
  %6256 = vmatprep.subr.bf16.mxu0 0
  %6257 = vmatpush1.bf16.msra.mxu0 0
  %6258 = vmatprep.subr.bf16.mxu0 0
  %6259 = vmatpush1.bf16.msra.mxu0 0
  %6260 = vmatprep.subr.bf16.mxu0 0
  %6261 = vmatpush1.bf16.msra.mxu0 0
  %6262 = vmatprep.subr.bf16.mxu0 0
  %6263 = vmatpush1.bf16.msra.mxu0 0
  %6264 = vmatprep.subr.bf16.mxu0 0
  %6265 = vmatpush1.bf16.msra.mxu0 0
  %6266 = vmatprep.subr.bf16.mxu0 0
  %6267 = vmatpush1.bf16.msra.mxu0 %v3802
  %6268 = vmatprep.subr.bf16.mxu0 0
  %6269 = vmatpush1.bf16.msra.mxu0 %v3801
  %6270 = vmatprep.subr.bf16.mxu0 0
  %6271 = vmatpush2.bf16.msra.mxu0 0
  %6272 = vmatprep.subr.bf16.mxu0 0
  %6273 = vmatpush2.bf16.msra.mxu0 0
  %6274 = vmatprep.subr.bf16.mxu0 0
  %6275 = vmatpush2.bf16.msra.mxu0 0
  %6276 = vmatprep.subr.bf16.mxu0 0
  %6277 = vmatpush2.bf16.msra.mxu0 0
  %6278 = vmatprep.subr.bf16.mxu0 0
  %6279 = vmatpush2.bf16.msra.mxu0 0
  %6280 = vmatprep.subr.bf16.mxu0 0
  %6281 = vmatpush2.bf16.msra.mxu0 0
  %6282 = vmatprep.subr.bf16.mxu0 0
  %6283 = vmatpush2.bf16.msra.mxu0 0
  %6284 = vmatprep.subr.bf16.mxu0 0
  %6285 = vmatpush2.bf16.msra.mxu0 0
  %6286 = vmatprep.mubr.bf16.mxu0 0
  %6287 = vmatmul.mubr.bf16.gmra.mxu0 %v6252
  %v6288 = vpop.f32.mrf.mxu0
  %v6289 = vadd.f32 0.0, %v6288
  %v6290 = vpop.f32.mrf.mxu0
  %v6291 = vpop.f32.mrf.mxu0
  %v6292 = vpop.f32.mrf.mxu0
  %6293 = vdwg.mxu0
  %v6294 = vadd.f32 %v6246, %v6289
  %v6295 = vxor.u32 %v6294, 2147483648
  %v6296 = vmul.f32 %v6295, 1.442695
  %v6297 = vpow.pop %v6296
  %v6298 = vadd.f32 %v6297, 1.0
  %v6299 = vrcp.pop %v6298
  %v6300 = vmul.f32 1.0, %v6299
  %v6301 = vmul.f32 %v6300, 2.0
  %v6302 = vsub.f32 %v6301, 1.0
  %v6303 = vmul.f32 %v6300, %v6234
  %6305 = vrot.lane.b32.xlu0 %v6302, 64
  %v6306 = vpop.permute.xlu0 %6305
  %v6308 = vmul.f32 %v6300, %v6306
  %6310 = vrot.lane.b32.xlu0 %v6308, 32
  %v6311 = vpop.permute.xlu0 %6310
  %v6313 = vadd.f32 %v6303, %v6311
  %v6314 = vtanh.pop %v6313
  %6316 = vrot.lane.b32.xlu0 %v6314, 64
  %v6317 = vpop.permute.xlu0 %6316
  %v6319 = vmul.f32 %v6300, %v6317
  %6321 = vrot.lane.b32.xlu0 %v6319, 32
  %v6322 = vpop.permute.xlu0 %6321
  %6324 = vst.msk [vmem:[#allocation3 + $0x7c] sm:$0xf] %vm344, %v6322
  %v6325 = vld [vmem:[#allocation3] sm:$0xff]
  %v6326 = vld [vmem:[#allocation3 + $0x8] sm:$0xff]
  %v6327 = vld [vmem:[#allocation3 + $0x10] sm:$0xff]
  %v6328 = vld [vmem:[#allocation3 + $0x18] sm:$0xff]
  %v6329 = vld [vmem:[#allocation3 + $0x20] sm:$0xff]
  %v6330 = vld [vmem:[#allocation3 + $0x28] sm:$0xff]
  %v6331 = vld [vmem:[#allocation3 + $0x30] sm:$0xff]
  %v6332 = vld [vmem:[#allocation3 + $0x38] sm:$0xff]
  %v6333 = vld [vmem:[#allocation3 + $0x40] sm:$0xff]
  %v6334 = vld [vmem:[#allocation3 + $0x48] sm:$0xff]
  %v6335 = vld [vmem:[#allocation3 + $0x50] sm:$0xff]
  %v6336 = vld [vmem:[#allocation3 + $0x58] sm:$0xff]
  %v6337 = vld [vmem:[#allocation3 + $0x60] sm:$0xff]
  %v6338 = vld [vmem:[#allocation3 + $0x68] sm:$0xff]
  %v6339 = vld [vmem:[#allocation3 + $0x70] sm:$0xff]
  %v6340 = vld [vmem:[#allocation3 + $0x78] sm:$0xff]
  %v6341 = vld [vmem:[%s7] sm:$0xff]
  %v6342 = vld [vmem:[%s7 + $0x8] sm:$0xff]
  %v6343 = vld [vmem:[%s7 + $0x10] sm:$0xff]
  %v6344 = vld [vmem:[%s7 + $0x18] sm:$0xff]
  %6345 = vmatprep.subr.mxu0 0.0
  %6346 = vmatpush1.msra.mxu0 %v6340
  %6347 = vmatprep.subr.mxu0 0.0
  %6348 = vmatpush1.msra.mxu0 %v6339
  %6349 = vmatprep.subr.mxu0 0.0
  %6350 = vmatpush1.msra.mxu0 %v6338
  %6351 = vmatprep.subr.mxu0 0.0
  %6352 = vmatpush1.msra.mxu0 %v6337
  %6353 = vmatprep.subr.mxu0 0.0
  %6354 = vmatpush1.msra.mxu0 %v6336
  %6355 = vmatprep.subr.mxu0 0.0
  %6356 = vmatpush1.msra.mxu0 %v6335
  %6357 = vmatprep.subr.mxu0 0.0
  %6358 = vmatpush1.msra.mxu0 %v6334
  %6359 = vmatprep.subr.mxu0 0.0
  %6360 = vmatpush1.msra.mxu0 %v6333
  %6361 = vmatprep.subr.mxu0 0.0
  %6362 = vmatpush1.msra.mxu0 %v6332
  %6363 = vmatprep.subr.mxu0 0.0
  %6364 = vmatpush1.msra.mxu0 %v6331
  %6365 = vmatprep.subr.mxu0 0.0
  %6366 = vmatpush1.msra.mxu0 %v6330
  %6367 = vmatprep.subr.mxu0 0.0
  %6368 = vmatpush1.msra.mxu0 %v6329
  %6369 = vmatprep.subr.mxu0 0.0
  %6370 = vmatpush1.msra.mxu0 %v6328
  %6371 = vmatprep.subr.mxu0 0.0
  %6372 = vmatpush1.msra.mxu0 %v6327
  %6373 = vmatprep.subr.mxu0 0.0
  %6374 = vmatpush1.msra.mxu0 %v6326
  %6375 = vmatprep.subr.mxu0 0.0
  %6376 = vmatpush1.msra.mxu0 %v6325
  %6377 = vmatprep.subr.mxu0 0.0
  %6378 = vmatpush2.msra.mxu0 0.0
  %6379 = vmatprep.subr.mxu0 0.0
  %6380 = vmatpush2.msra.mxu0 0.0
  %6381 = vmatprep.subr.mxu0 0.0
  %6382 = vmatpush2.msra.mxu0 0.0
  %6383 = vmatprep.subr.mxu0 0.0
  %6384 = vmatpush2.msra.mxu0 0.0
  %6385 = vmatprep.subr.mxu0 0.0
  %6386 = vmatpush2.msra.mxu0 0.0
  %6387 = vmatprep.subr.mxu0 0.0
  %6388 = vmatpush2.msra.mxu0 0.0
  %6389 = vmatprep.subr.mxu0 0.0
  %6390 = vmatpush2.msra.mxu0 0.0
  %6391 = vmatprep.subr.mxu0 0.0
  %6392 = vmatpush2.msra.mxu0 0.0
  %6393 = vmatprep.subr.mxu0 0.0
  %6394 = vmatpush2.msra.mxu0 0.0
  %6395 = vmatprep.subr.mxu0 0.0
  %6396 = vmatpush2.msra.mxu0 0.0
  %6397 = vmatprep.subr.mxu0 0.0
  %6398 = vmatpush2.msra.mxu0 0.0
  %6399 = vmatprep.subr.mxu0 0.0
  %6400 = vmatpush2.msra.mxu0 0.0
  %6401 = vmatprep.subr.mxu0 0.0
  %6402 = vmatpush2.msra.mxu0 0.0
  %6403 = vmatprep.subr.mxu0 0.0
  %6404 = vmatpush2.msra.mxu0 0.0
  %6405 = vmatprep.subr.mxu0 0.0
  %6406 = vmatpush2.msra.mxu0 0.0
  %6407 = vmatprep.subr.mxu0 0.0
  %6408 = vmatpush2.msra.mxu0 0.0
  %6409 = vmatprep.mubr.f32.mxu0 0.0
  %6410 = vmatmul.mubr.f32.gmra.mxu0 %v6341
  %v6411 = vpop.f32.mrf.mxu0
  %v6412 = vadd.f32 0.0, %v6411
  %v6413 = vpop.f32.mrf.mxu0
  %6414 = vmatprep.mubr.f32.mxu0 0.0
  %6415 = vmatmul.mubr.f32.gmra.mxu0 %v6342
  %v6416 = vpop.f32.mrf.mxu0
  %v6417 = vadd.f32 0.0, %v6416
  %v6418 = vpop.f32.mrf.mxu0
  %6419 = vmatprep.mubr.f32.mxu0 0.0
  %6420 = vmatmul.mubr.f32.gmra.mxu0 %v6343
  %v6421 = vpop.f32.mrf.mxu0
  %v6422 = vadd.f32 0.0, %v6421
  %v6423 = vpop.f32.mrf.mxu0
  %6424 = vmatprep.mubr.f32.mxu0 0.0
  %6425 = vmatmul.mubr.f32.gmra.mxu0 %v6344
  %v6426 = vpop.f32.mrf.mxu0
  %v6427 = vadd.f32 0.0, %v6426
  %v6428 = vpop.f32.mrf.mxu0
  %6429 = vdwg.mxu0
  %v6430 = vmul.f32 %v6325, %v6325
  %v6431 = vmul.f32 %v6326, %v6326
  %v6432 = vmul.f32 %v6327, %v6327
  %v6433 = vmul.f32 %v6328, %v6328
  %v6434 = vmul.f32 %v6329, %v6329
  %v6435 = vmul.f32 %v6330, %v6330
  %v6436 = vmul.f32 %v6331, %v6331
  %v6437 = vmul.f32 %v6332, %v6332
  %v6438 = vmul.f32 %v6333, %v6333
  %v6439 = vmul.f32 %v6334, %v6334
  %v6440 = vmul.f32 %v6335, %v6335
  %v6441 = vmul.f32 %v6336, %v6336
  %v6442 = vmul.f32 %v6337, %v6337
  %v6443 = vmul.f32 %v6338, %v6338
  %v6444 = vmul.f32 %v6339, %v6339
  %v6445 = vmul.f32 %v6340, %v6340
  %6446 = vmatprep.subr.mxu0 0.0
  %6447 = vmatpush1.msra.mxu0 %v6445
  %6448 = vmatprep.subr.mxu0 0.0
  %6449 = vmatpush1.msra.mxu0 %v6444
  %6450 = vmatprep.subr.mxu0 0.0
  %6451 = vmatpush1.msra.mxu0 %v6443
  %6452 = vmatprep.subr.mxu0 0.0
  %6453 = vmatpush1.msra.mxu0 %v6442
  %6454 = vmatprep.subr.mxu0 0.0
  %6455 = vmatpush1.msra.mxu0 %v6441
  %6456 = vmatprep.subr.mxu0 0.0
  %6457 = vmatpush1.msra.mxu0 %v6440
  %6458 = vmatprep.subr.mxu0 0.0
  %6459 = vmatpush1.msra.mxu0 %v6439
  %6460 = vmatprep.subr.mxu0 0.0
  %6461 = vmatpush1.msra.mxu0 %v6438
  %6462 = vmatprep.subr.mxu0 0.0
  %6463 = vmatpush1.msra.mxu0 %v6437
  %6464 = vmatprep.subr.mxu0 0.0
  %6465 = vmatpush1.msra.mxu0 %v6436
  %6466 = vmatprep.subr.mxu0 0.0
  %6467 = vmatpush1.msra.mxu0 %v6435
  %6468 = vmatprep.subr.mxu0 0.0
  %6469 = vmatpush1.msra.mxu0 %v6434
  %6470 = vmatprep.subr.mxu0 0.0
  %6471 = vmatpush1.msra.mxu0 %v6433
  %6472 = vmatprep.subr.mxu0 0.0
  %6473 = vmatpush1.msra.mxu0 %v6432
  %6474 = vmatprep.subr.mxu0 0.0
  %6475 = vmatpush1.msra.mxu0 %v6431
  %6476 = vmatprep.subr.mxu0 0.0
  %6477 = vmatpush1.msra.mxu0 %v6430
  %6478 = vmatprep.subr.mxu0 0.0
  %6479 = vmatpush2.msra.mxu0 0.0
  %6480 = vmatprep.subr.mxu0 0.0
  %6481 = vmatpush2.msra.mxu0 0.0
  %6482 = vmatprep.subr.mxu0 0.0
  %6483 = vmatpush2.msra.mxu0 0.0
  %6484 = vmatprep.subr.mxu0 0.0
  %6485 = vmatpush2.msra.mxu0 0.0
  %6486 = vmatprep.subr.mxu0 0.0
  %6487 = vmatpush2.msra.mxu0 0.0
  %6488 = vmatprep.subr.mxu0 0.0
  %6489 = vmatpush2.msra.mxu0 0.0
  %6490 = vmatprep.subr.mxu0 0.0
  %6491 = vmatpush2.msra.mxu0 0.0
  %6492 = vmatprep.subr.mxu0 0.0
  %6493 = vmatpush2.msra.mxu0 0.0
  %6494 = vmatprep.subr.mxu0 0.0
  %6495 = vmatpush2.msra.mxu0 0.0
  %6496 = vmatprep.subr.mxu0 0.0
  %6497 = vmatpush2.msra.mxu0 0.0
  %6498 = vmatprep.subr.mxu0 0.0
  %6499 = vmatpush2.msra.mxu0 0.0
  %6500 = vmatprep.subr.mxu0 0.0
  %6501 = vmatpush2.msra.mxu0 0.0
  %6502 = vmatprep.subr.mxu0 0.0
  %6503 = vmatpush2.msra.mxu0 0.0
  %6504 = vmatprep.subr.mxu0 0.0
  %6505 = vmatpush2.msra.mxu0 0.0
  %6506 = vmatprep.subr.mxu0 0.0
  %6507 = vmatpush2.msra.mxu0 0.0
  %6508 = vmatprep.subr.mxu0 0.0
  %6509 = vmatpush2.msra.mxu0 0.0
  %6510 = vmatprep.mubr.f32.mxu0 0.0
  %6511 = vmatmul.mubr.f32.gmra.mxu0 %v6341
  %v6512 = vpop.f32.mrf.mxu0
  %v6513 = vadd.f32 0.0, %v6512
  %v6514 = vpop.f32.mrf.mxu0
  %6515 = vmatprep.mubr.f32.mxu0 0.0
  %6516 = vmatmul.mubr.f32.gmra.mxu0 %v6342
  %v6517 = vpop.f32.mrf.mxu0
  %v6518 = vadd.f32 0.0, %v6517
  %v6519 = vpop.f32.mrf.mxu0
  %6520 = vmatprep.mubr.f32.mxu0 0.0
  %6521 = vmatmul.mubr.f32.gmra.mxu0 %v6343
  %v6522 = vpop.f32.mrf.mxu0
  %v6523 = vadd.f32 0.0, %v6522
  %v6524 = vpop.f32.mrf.mxu0
  %6525 = vmatprep.mubr.f32.mxu0 0.0
  %6526 = vmatmul.mubr.f32.gmra.mxu0 %v6344
  %v6527 = vpop.f32.mrf.mxu0
  %v6528 = vadd.f32 0.0, %v6527
  %v6529 = vpop.f32.mrf.mxu0
  %6530 = vdwg.mxu0
  %v6531 = vsel %vm270, %v6412, 0.0
  %6532 = vadd.xlane.f32.xlu0 %v6531
  %v6533 = vpop.xlane.xlu0 %6532
  %v6534 = vsel %vm270, %v6417, 0.0
  %6535 = vadd.xlane.f32.xlu0 %v6534
  %v6536 = vpop.xlane.xlu0 %6535
  %v6537 = vsel %vm270, %v6422, 0.0
  %6538 = vadd.xlane.f32.xlu0 %v6537
  %v6539 = vpop.xlane.xlu0 %6538
  %v6540 = vsel %vm270, %v6427, 0.0
  %6541 = vadd.xlane.f32.xlu0 %v6540
  %v6542 = vpop.xlane.xlu0 %6541
  %v6543 = vmul.f32 %v6533, %v3013
  %v6544 = vmul.f32 %v6536, %v3013
  %v6545 = vmul.f32 %v6539, %v3013
  %v6546 = vmul.f32 %v6542, %v3013
  %v6547 = vsel %vm270, %v6513, 0.0
  %6548 = vadd.xlane.f32.xlu0 %v6547
  %v6549 = vpop.xlane.xlu0 %6548
  %v6550 = vsel %vm270, %v6518, 0.0
  %6551 = vadd.xlane.f32.xlu0 %v6550
  %v6552 = vpop.xlane.xlu0 %6551
  %v6553 = vsel %vm270, %v6523, 0.0
  %6554 = vadd.xlane.f32.xlu0 %v6553
  %v6555 = vpop.xlane.xlu0 %6554
  %v6556 = vsel %vm270, %v6528, 0.0
  %6557 = vadd.xlane.f32.xlu0 %v6556
  %v6558 = vpop.xlane.xlu0 %6557
  %v6559 = vmul.f32 %v6549, %v3013
  %v6560 = vmul.f32 %v6552, %v3013
  %v6561 = vmul.f32 %v6555, %v3013
  %v6562 = vmul.f32 %v6558, %v3013
  %v6563 = vmul.f32 %v6543, %v6543
  %v6564 = vmul.f32 %v6544, %v6544
  %v6565 = vmul.f32 %v6545, %v6545
  %v6566 = vmul.f32 %v6546, %v6546
  %v6567 = vsub.f32 %v6559, %v6563
  %v6568 = vsub.f32 %v6560, %v6564
  %v6569 = vsub.f32 %v6561, %v6565
  %v6570 = vsub.f32 %v6562, %v6566
  %v6571 = vmax.f32 %v6567, 0.0
  %v6572 = vmax.f32 %v6568, 0.0
  %v6573 = vmax.f32 %v6569, 0.0
  %v6574 = vmax.f32 %v6570, 0.0
  %v6575 = vld [vmem:[%s9] sm:$0xff]
  %v6576 = vld [vmem:[%s9 + $0x8] sm:$0xff]
  %v6577 = vld [vmem:[%s9 + $0x10] sm:$0xff]
  %v6578 = vld [vmem:[%s9 + $0x18] sm:$0xff]
  %v6579 = vadd.f32 %v6571, 1e-05
  %v6580 = vadd.f32 %v6572, 1e-05
  %v6581 = vadd.f32 %v6573, 1e-05
  %v6582 = vadd.f32 %v6574, 1e-05
  %v6583 = vrsqrt.pop %v6579
  %v6584 = vrsqrt.pop %v6580
  %v6585 = vrsqrt.pop %v6581
  %v6586 = vrsqrt.pop %v6582
  %v6587 = vmul.f32 %v6575, %v6583
  %v6588 = vmul.f32 %v6576, %v6584
  %v6589 = vmul.f32 %v6577, %v6585
  %v6590 = vmul.f32 %v6578, %v6586
  %v6591 = vld [vmem:[%s10] sm:$0xff]
  %v6592 = vld [vmem:[%s10 + $0x8] sm:$0xff]
  %v6593 = vld [vmem:[%s10 + $0x10] sm:$0xff]
  %v6594 = vld [vmem:[%s10 + $0x18] sm:$0xff]
  %v6595 = vmul.f32 %v6587, %v6543
  %v6596 = vmul.f32 %v6588, %v6544
  %v6597 = vmul.f32 %v6589, %v6545
  %v6598 = vmul.f32 %v6590, %v6546
  %v6599 = vsub.f32 %v6591, %v6595
  %v6600 = vsub.f32 %v6592, %v6596
  %v6601 = vsub.f32 %v6593, %v6597
  %v6602 = vsub.f32 %v6594, %v6598
  %v6603 = vld [vmem:[%s8] sm:$0xff]
  %v6604 = vld [vmem:[%s8 + $0x8] sm:$0xff]
  %v6605 = vld [vmem:[%s8 + $0x10] sm:$0xff]
  %v6606 = vld [vmem:[%s8 + $0x18] sm:$0xff]
  %v6607 = vld [vmem:[%s8 + $0x20] sm:$0xff]
  %v6608 = vld [vmem:[%s8 + $0x28] sm:$0xff]
  %v6609 = vld [vmem:[%s8 + $0x30] sm:$0xff]
  %v6610 = vld [vmem:[%s8 + $0x38] sm:$0xff]
  %v6611 = vld [vmem:[%s8 + $0x40] sm:$0xff]
  %v6612 = vld [vmem:[%s8 + $0x48] sm:$0xff]
  %v6613 = vld [vmem:[%s8 + $0x50] sm:$0xff]
  %v6614 = vld [vmem:[%s8 + $0x58] sm:$0xff]
  %v6615 = vld [vmem:[%s8 + $0x60] sm:$0xff]
  %v6616 = vld [vmem:[%s8 + $0x68] sm:$0xff]
  %v6617 = vld [vmem:[%s8 + $0x70] sm:$0xff]
  %v6618 = vld [vmem:[%s8 + $0x78] sm:$0xff]
  %v6620 = vsel %vm270, %v6603, 0
  %v6623 = vsel %vm270, %v6604, 0
  %v6626 = vsel %vm270, %v6605, 0
  %v6629 = vsel %vm270, %v6606, 0
  %v6632 = vsel %vm270, %v6607, 0
  %v6635 = vsel %vm270, %v6608, 0
  %v6638 = vsel %vm270, %v6609, 0
  %v6641 = vsel %vm270, %v6610, 0
  %v6644 = vsel %vm270, %v6611, 0
  %v6647 = vsel %vm270, %v6612, 0
  %v6650 = vsel %vm270, %v6613, 0
  %v6653 = vsel %vm270, %v6614, 0
  %v6656 = vsel %vm270, %v6615, 0
  %v6659 = vsel %vm270, %v6616, 0
  %v6662 = vsel %vm270, %v6617, 0
  %v6665 = vsel %vm270, %v6618, 0
  %6667 = vmatprep.subr.mxu0 0.0
  %6668 = vmatpush1.msra.mxu0 0.0
  %6669 = vmatprep.subr.mxu0 0.0
  %6670 = vmatpush1.msra.mxu0 0.0
  %6671 = vmatprep.subr.mxu0 0.0
  %6672 = vmatpush1.msra.mxu0 0.0
  %6673 = vmatprep.subr.mxu0 0.0
  %6674 = vmatpush1.msra.mxu0 0.0
  %6675 = vmatprep.subr.mxu0 0.0
  %6676 = vmatpush1.msra.mxu0 0.0
  %6677 = vmatprep.subr.mxu0 0.0
  %6678 = vmatpush1.msra.mxu0 0.0
  %6679 = vmatprep.subr.mxu0 0.0
  %6680 = vmatpush1.msra.mxu0 0.0
  %6681 = vmatprep.subr.mxu0 0.0
  %6682 = vmatpush1.msra.mxu0 0.0
  %6683 = vmatprep.subr.mxu0 0.0
  %6684 = vmatpush1.msra.mxu0 0.0
  %6685 = vmatprep.subr.mxu0 0.0
  %6686 = vmatpush1.msra.mxu0 0.0
  %6687 = vmatprep.subr.mxu0 0.0
  %6688 = vmatpush1.msra.mxu0 0.0
  %6689 = vmatprep.subr.mxu0 0.0
  %6690 = vmatpush1.msra.mxu0 0.0
  %6691 = vmatprep.subr.mxu0 0.0
  %6692 = vmatpush1.msra.mxu0 %v6590
  %6693 = vmatprep.subr.mxu0 0.0
  %6694 = vmatpush1.msra.mxu0 %v6589
  %6695 = vmatprep.subr.mxu0 0.0
  %6696 = vmatpush1.msra.mxu0 %v6588
  %6697 = vmatprep.subr.mxu0 0.0
  %6698 = vmatpush1.msra.mxu0 %v6587
  %6699 = vmatprep.subr.mxu0 0.0
  %6700 = vmatpush2.msra.mxu0 0.0
  %6701 = vmatprep.subr.mxu0 0.0
  %6702 = vmatpush2.msra.mxu0 0.0
  %6703 = vmatprep.subr.mxu0 0.0
  %6704 = vmatpush2.msra.mxu0 0.0
  %6705 = vmatprep.subr.mxu0 0.0
  %6706 = vmatpush2.msra.mxu0 0.0
  %6707 = vmatprep.subr.mxu0 0.0
  %6708 = vmatpush2.msra.mxu0 0.0
  %6709 = vmatprep.subr.mxu0 0.0
  %6710 = vmatpush2.msra.mxu0 0.0
  %6711 = vmatprep.subr.mxu0 0.0
  %6712 = vmatpush2.msra.mxu0 0.0
  %6713 = vmatprep.subr.mxu0 0.0
  %6714 = vmatpush2.msra.mxu0 0.0
  %6715 = vmatprep.subr.mxu0 0.0
  %6716 = vmatpush2.msra.mxu0 0.0
  %6717 = vmatprep.subr.mxu0 0.0
  %6718 = vmatpush2.msra.mxu0 0.0
  %6719 = vmatprep.subr.mxu0 0.0
  %6720 = vmatpush2.msra.mxu0 0.0
  %6721 = vmatprep.subr.mxu0 0.0
  %6722 = vmatpush2.msra.mxu0 0.0
  %6723 = vmatprep.subr.mxu0 0.0
  %6724 = vmatpush2.msra.mxu0 0.0
  %6725 = vmatprep.subr.mxu0 0.0
  %6726 = vmatpush2.msra.mxu0 0.0
  %6727 = vmatprep.subr.mxu0 0.0
  %6728 = vmatpush2.msra.mxu0 0.0
  %6729 = vmatprep.subr.mxu0 0.0
  %6730 = vmatpush2.msra.mxu0 0.0
  %6731 = vmatprep.mubr.f32.mxu0 0.0
  %6732 = vmatmul.mubr.f32.gmra.mxu0 %v6620
  %v6733 = vpop.f32.mrf.mxu0
  %v6734 = vadd.f32 0.0, %v6733
  %v6735 = vpop.f32.mrf.mxu0
  %6736 = vmatprep.mubr.f32.mxu0 0.0
  %6737 = vmatmul.mubr.f32.gmra.mxu0 %v6623
  %v6738 = vpop.f32.mrf.mxu0
  %v6739 = vadd.f32 0.0, %v6738
  %v6740 = vpop.f32.mrf.mxu0
  %6741 = vmatprep.mubr.f32.mxu0 0.0
  %6742 = vmatmul.mubr.f32.gmra.mxu0 %v6626
  %v6743 = vpop.f32.mrf.mxu0
  %v6744 = vadd.f32 0.0, %v6743
  %v6745 = vpop.f32.mrf.mxu0
  %6746 = vmatprep.mubr.f32.mxu0 0.0
  %6747 = vmatmul.mubr.f32.gmra.mxu0 %v6629
  %v6748 = vpop.f32.mrf.mxu0
  %v6749 = vadd.f32 0.0, %v6748
  %v6750 = vpop.f32.mrf.mxu0
  %6751 = vmatprep.mubr.f32.mxu0 0.0
  %6752 = vmatmul.mubr.f32.gmra.mxu0 %v6632
  %v6753 = vpop.f32.mrf.mxu0
  %v6754 = vadd.f32 0.0, %v6753
  %v6755 = vpop.f32.mrf.mxu0
  %6756 = vmatprep.mubr.f32.mxu0 0.0
  %6757 = vmatmul.mubr.f32.gmra.mxu0 %v6635
  %v6758 = vpop.f32.mrf.mxu0
  %v6759 = vadd.f32 0.0, %v6758
  %v6760 = vpop.f32.mrf.mxu0
  %6761 = vmatprep.mubr.f32.mxu0 0.0
  %6762 = vmatmul.mubr.f32.gmra.mxu0 %v6638
  %v6763 = vpop.f32.mrf.mxu0
  %v6764 = vadd.f32 0.0, %v6763
  %v6765 = vpop.f32.mrf.mxu0
  %6766 = vmatprep.mubr.f32.mxu0 0.0
  %6767 = vmatmul.mubr.f32.gmra.mxu0 %v6641
  %v6768 = vpop.f32.mrf.mxu0
  %v6769 = vadd.f32 0.0, %v6768
  %v6770 = vpop.f32.mrf.mxu0
  %6771 = vmatprep.mubr.f32.mxu0 0.0
  %6772 = vmatmul.mubr.f32.gmra.mxu0 %v6644
  %v6773 = vpop.f32.mrf.mxu0
  %v6774 = vadd.f32 0.0, %v6773
  %v6775 = vpop.f32.mrf.mxu0
  %6776 = vmatprep.mubr.f32.mxu0 0.0
  %6777 = vmatmul.mubr.f32.gmra.mxu0 %v6647
  %v6778 = vpop.f32.mrf.mxu0
  %v6779 = vadd.f32 0.0, %v6778
  %v6780 = vpop.f32.mrf.mxu0
  %6781 = vmatprep.mubr.f32.mxu0 0.0
  %6782 = vmatmul.mubr.f32.gmra.mxu0 %v6650
  %v6783 = vpop.f32.mrf.mxu0
  %v6784 = vadd.f32 0.0, %v6783
  %v6785 = vpop.f32.mrf.mxu0
  %6786 = vmatprep.mubr.f32.mxu0 0.0
  %6787 = vmatmul.mubr.f32.gmra.mxu0 %v6653
  %v6788 = vpop.f32.mrf.mxu0
  %v6789 = vadd.f32 0.0, %v6788
  %v6790 = vpop.f32.mrf.mxu0
  %6791 = vmatprep.mubr.f32.mxu0 0.0
  %6792 = vmatmul.mubr.f32.gmra.mxu0 %v6656
  %v6793 = vpop.f32.mrf.mxu0
  %v6794 = vadd.f32 0.0, %v6793
  %v6795 = vpop.f32.mrf.mxu0
  %6796 = vmatprep.mubr.f32.mxu0 0.0
  %6797 = vmatmul.mubr.f32.gmra.mxu0 %v6659
  %v6798 = vpop.f32.mrf.mxu0
  %v6799 = vadd.f32 0.0, %v6798
  %v6800 = vpop.f32.mrf.mxu0
  %6801 = vmatprep.mubr.f32.mxu0 0.0
  %6802 = vmatmul.mubr.f32.gmra.mxu0 %v6662
  %v6803 = vpop.f32.mrf.mxu0
  %v6804 = vadd.f32 0.0, %v6803
  %v6805 = vpop.f32.mrf.mxu0
  %6806 = vmatprep.mubr.f32.mxu0 0.0
  %6807 = vmatmul.mubr.f32.gmra.mxu0 %v6665
  %v6808 = vpop.f32.mrf.mxu0
  %v6809 = vadd.f32 0.0, %v6808
  %v6810 = vpop.f32.mrf.mxu0
  %6811 = vdwg.mxu0
  %6812 = vmatprep.subr.mxu0 0.0
  %6813 = vmatpush1.msra.mxu0 0.0
  %6814 = vmatprep.subr.mxu0 0.0
  %6815 = vmatpush1.msra.mxu0 0.0
  %6816 = vmatprep.subr.mxu0 0.0
  %6817 = vmatpush1.msra.mxu0 0.0
  %6818 = vmatprep.subr.mxu0 0.0
  %6819 = vmatpush1.msra.mxu0 0.0
  %6820 = vmatprep.subr.mxu0 0.0
  %6821 = vmatpush1.msra.mxu0 0.0
  %6822 = vmatprep.subr.mxu0 0.0
  %6823 = vmatpush1.msra.mxu0 0.0
  %6824 = vmatprep.subr.mxu0 0.0
  %6825 = vmatpush1.msra.mxu0 0.0
  %6826 = vmatprep.subr.mxu0 0.0
  %6827 = vmatpush1.msra.mxu0 0.0
  %6828 = vmatprep.subr.mxu0 0.0
  %6829 = vmatpush1.msra.mxu0 0.0
  %6830 = vmatprep.subr.mxu0 0.0
  %6831 = vmatpush1.msra.mxu0 0.0
  %6832 = vmatprep.subr.mxu0 0.0
  %6833 = vmatpush1.msra.mxu0 0.0
  %6834 = vmatprep.subr.mxu0 0.0
  %6835 = vmatpush1.msra.mxu0 0.0
  %6836 = vmatprep.subr.mxu0 0.0
  %6837 = vmatpush1.msra.mxu0 %v6602
  %6838 = vmatprep.subr.mxu0 0.0
  %6839 = vmatpush1.msra.mxu0 %v6601
  %6840 = vmatprep.subr.mxu0 0.0
  %6841 = vmatpush1.msra.mxu0 %v6600
  %6842 = vmatprep.subr.mxu0 0.0
  %6843 = vmatpush1.msra.mxu0 %v6599
  %6844 = vmatprep.subr.mxu0 0.0
  %6845 = vmatpush2.msra.mxu0 0.0
  %6846 = vmatprep.subr.mxu0 0.0
  %6847 = vmatpush2.msra.mxu0 0.0
  %6848 = vmatprep.subr.mxu0 0.0
  %6849 = vmatpush2.msra.mxu0 0.0
  %6850 = vmatprep.subr.mxu0 0.0
  %6851 = vmatpush2.msra.mxu0 0.0
  %6852 = vmatprep.subr.mxu0 0.0
  %6853 = vmatpush2.msra.mxu0 0.0
  %6854 = vmatprep.subr.mxu0 0.0
  %6855 = vmatpush2.msra.mxu0 0.0
  %6856 = vmatprep.subr.mxu0 0.0
  %6857 = vmatpush2.msra.mxu0 0.0
  %6858 = vmatprep.subr.mxu0 0.0
  %6859 = vmatpush2.msra.mxu0 0.0
  %6860 = vmatprep.subr.mxu0 0.0
  %6861 = vmatpush2.msra.mxu0 0.0
  %6862 = vmatprep.subr.mxu0 0.0
  %6863 = vmatpush2.msra.mxu0 0.0
  %6864 = vmatprep.subr.mxu0 0.0
  %6865 = vmatpush2.msra.mxu0 0.0
  %6866 = vmatprep.subr.mxu0 0.0
  %6867 = vmatpush2.msra.mxu0 0.0
  %6868 = vmatprep.subr.mxu0 0.0
  %6869 = vmatpush2.msra.mxu0 0.0
  %6870 = vmatprep.subr.mxu0 0.0
  %6871 = vmatpush2.msra.mxu0 0.0
  %6872 = vmatprep.subr.mxu0 0.0
  %6873 = vmatpush2.msra.mxu0 0.0
  %6874 = vmatprep.subr.mxu0 0.0
  %6875 = vmatpush2.msra.mxu0 0.0
  %6876 = vmatprep.mubr.f32.mxu0 0.0
  %6877 = vmatmul.mubr.f32.gmra.mxu0 %v6620
  %v6878 = vpop.f32.mrf.mxu0
  %v6879 = vadd.f32 0.0, %v6878
  %v6880 = vpop.f32.mrf.mxu0
  %6881 = vmatprep.mubr.f32.mxu0 0.0
  %6882 = vmatmul.mubr.f32.gmra.mxu0 %v6623
  %v6883 = vpop.f32.mrf.mxu0
  %v6884 = vadd.f32 0.0, %v6883
  %v6885 = vpop.f32.mrf.mxu0
  %6886 = vmatprep.mubr.f32.mxu0 0.0
  %6887 = vmatmul.mubr.f32.gmra.mxu0 %v6626
  %v6888 = vpop.f32.mrf.mxu0
  %v6889 = vadd.f32 0.0, %v6888
  %v6890 = vpop.f32.mrf.mxu0
  %6891 = vmatprep.mubr.f32.mxu0 0.0
  %6892 = vmatmul.mubr.f32.gmra.mxu0 %v6629
  %v6893 = vpop.f32.mrf.mxu0
  %v6894 = vadd.f32 0.0, %v6893
  %v6895 = vpop.f32.mrf.mxu0
  %6896 = vmatprep.mubr.f32.mxu0 0.0
  %6897 = vmatmul.mubr.f32.gmra.mxu0 %v6632
  %v6898 = vpop.f32.mrf.mxu0
  %v6899 = vadd.f32 0.0, %v6898
  %v6900 = vpop.f32.mrf.mxu0
  %6901 = vmatprep.mubr.f32.mxu0 0.0
  %6902 = vmatmul.mubr.f32.gmra.mxu0 %v6635
  %v6903 = vpop.f32.mrf.mxu0
  %v6904 = vadd.f32 0.0, %v6903
  %v6905 = vpop.f32.mrf.mxu0
  %6906 = vmatprep.mubr.f32.mxu0 0.0
  %6907 = vmatmul.mubr.f32.gmra.mxu0 %v6638
  %v6908 = vpop.f32.mrf.mxu0
  %v6909 = vadd.f32 0.0, %v6908
  %v6910 = vpop.f32.mrf.mxu0
  %6911 = vmatprep.mubr.f32.mxu0 0.0
  %6912 = vmatmul.mubr.f32.gmra.mxu0 %v6641
  %v6913 = vpop.f32.mrf.mxu0
  %v6914 = vadd.f32 0.0, %v6913
  %v6915 = vpop.f32.mrf.mxu0
  %6916 = vmatprep.mubr.f32.mxu0 0.0
  %6917 = vmatmul.mubr.f32.gmra.mxu0 %v6644
  %v6918 = vpop.f32.mrf.mxu0
  %v6919 = vadd.f32 0.0, %v6918
  %v6920 = vpop.f32.mrf.mxu0
  %6921 = vmatprep.mubr.f32.mxu0 0.0
  %6922 = vmatmul.mubr.f32.gmra.mxu0 %v6647
  %v6923 = vpop.f32.mrf.mxu0
  %v6924 = vadd.f32 0.0, %v6923
  %v6925 = vpop.f32.mrf.mxu0
  %6926 = vmatprep.mubr.f32.mxu0 0.0
  %6927 = vmatmul.mubr.f32.gmra.mxu0 %v6650
  %v6928 = vpop.f32.mrf.mxu0
  %v6929 = vadd.f32 0.0, %v6928
  %v6930 = vpop.f32.mrf.mxu0
  %6931 = vmatprep.mubr.f32.mxu0 0.0
  %6932 = vmatmul.mubr.f32.gmra.mxu0 %v6653
  %v6933 = vpop.f32.mrf.mxu0
  %v6934 = vadd.f32 0.0, %v6933
  %v6935 = vpop.f32.mrf.mxu0
  %6936 = vmatprep.mubr.f32.mxu0 0.0
  %6937 = vmatmul.mubr.f32.gmra.mxu0 %v6656
  %v6938 = vpop.f32.mrf.mxu0
  %v6939 = vadd.f32 0.0, %v6938
  %v6940 = vpop.f32.mrf.mxu0
  %6941 = vmatprep.mubr.f32.mxu0 0.0
  %6942 = vmatmul.mubr.f32.gmra.mxu0 %v6659
  %v6943 = vpop.f32.mrf.mxu0
  %v6944 = vadd.f32 0.0, %v6943
  %v6945 = vpop.f32.mrf.mxu0
  %6946 = vmatprep.mubr.f32.mxu0 0.0
  %6947 = vmatmul.mubr.f32.gmra.mxu0 %v6662
  %v6948 = vpop.f32.mrf.mxu0
  %v6949 = vadd.f32 0.0, %v6948
  %v6950 = vpop.f32.mrf.mxu0
  %6951 = vmatprep.mubr.f32.mxu0 0.0
  %6952 = vmatmul.mubr.f32.gmra.mxu0 %v6665
  %v6953 = vpop.f32.mrf.mxu0
  %v6954 = vadd.f32 0.0, %v6953
  %v6955 = vpop.f32.mrf.mxu0
  %6956 = vdwg.mxu0
  %6958 = vset.pattern.permute.xlu0 0
  %6959 = vperm.xlu0 %6958, %v6734
  %v6960 = vpop.permute.xlu0 %6959
  %6963 = vset.pattern.permute.xlu0 0
  %6964 = vperm.xlu0 %6963, %v6739
  %v6965 = vpop.permute.xlu0 %6964
  %6968 = vset.pattern.permute.xlu0 0
  %6969 = vperm.xlu0 %6968, %v6744
  %v6970 = vpop.permute.xlu0 %6969
  %6973 = vset.pattern.permute.xlu0 0
  %6974 = vperm.xlu0 %6973, %v6749
  %v6975 = vpop.permute.xlu0 %6974
  %6978 = vset.pattern.permute.xlu0 0
  %6979 = vperm.xlu0 %6978, %v6754
  %v6980 = vpop.permute.xlu0 %6979
  %6983 = vset.pattern.permute.xlu0 0
  %6984 = vperm.xlu0 %6983, %v6759
  %v6985 = vpop.permute.xlu0 %6984
  %6988 = vset.pattern.permute.xlu0 0
  %6989 = vperm.xlu0 %6988, %v6764
  %v6990 = vpop.permute.xlu0 %6989
  %6993 = vset.pattern.permute.xlu0 0
  %6994 = vperm.xlu0 %6993, %v6769
  %v6995 = vpop.permute.xlu0 %6994
  %6998 = vset.pattern.permute.xlu0 0
  %6999 = vperm.xlu0 %6998, %v6774
  %v7000 = vpop.permute.xlu0 %6999
  %7003 = vset.pattern.permute.xlu0 0
  %7004 = vperm.xlu0 %7003, %v6779
  %v7005 = vpop.permute.xlu0 %7004
  %7008 = vset.pattern.permute.xlu0 0
  %7009 = vperm.xlu0 %7008, %v6784
  %v7010 = vpop.permute.xlu0 %7009
  %7013 = vset.pattern.permute.xlu0 0
  %7014 = vperm.xlu0 %7013, %v6789
  %v7015 = vpop.permute.xlu0 %7014
  %7018 = vset.pattern.permute.xlu0 0
  %7019 = vperm.xlu0 %7018, %v6794
  %v7020 = vpop.permute.xlu0 %7019
  %7023 = vset.pattern.permute.xlu0 0
  %7024 = vperm.xlu0 %7023, %v6799
  %v7025 = vpop.permute.xlu0 %7024
  %7028 = vset.pattern.permute.xlu0 0
  %7029 = vperm.xlu0 %7028, %v6804
  %v7030 = vpop.permute.xlu0 %7029
  %7033 = vset.pattern.permute.xlu0 0
  %7034 = vperm.xlu0 %7033, %v6809
  %v7035 = vpop.permute.xlu0 %7034
  %v7037 = vmul.f32 %v6325, %v6960
  %v7038 = vmul.f32 %v6326, %v6965
  %v7039 = vmul.f32 %v6327, %v6970
  %v7040 = vmul.f32 %v6328, %v6975
  %v7041 = vmul.f32 %v6329, %v6980
  %v7042 = vmul.f32 %v6330, %v6985
  %v7043 = vmul.f32 %v6331, %v6990
  %v7044 = vmul.f32 %v6332, %v6995
  %v7045 = vmul.f32 %v6333, %v7000
  %v7046 = vmul.f32 %v6334, %v7005
  %v7047 = vmul.f32 %v6335, %v7010
  %v7048 = vmul.f32 %v6336, %v7015
  %v7049 = vmul.f32 %v6337, %v7020
  %v7050 = vmul.f32 %v6338, %v7025
  %v7051 = vmul.f32 %v6339, %v7030
  %v7052 = vmul.f32 %v6340, %v7035
  %7054 = vset.pattern.permute.xlu0 0
  %7055 = vperm.xlu0 %7054, %v6879
  %v7056 = vpop.permute.xlu0 %7055
  %7059 = vset.pattern.permute.xlu0 0
  %7060 = vperm.xlu0 %7059, %v6884
  %v7061 = vpop.permute.xlu0 %7060
  %7064 = vset.pattern.permute.xlu0 0
  %7065 = vperm.xlu0 %7064, %v6889
  %v7066 = vpop.permute.xlu0 %7065
  %7069 = vset.pattern.permute.xlu0 0
  %7070 = vperm.xlu0 %7069, %v6894
  %v7071 = vpop.permute.xlu0 %7070
  %7074 = vset.pattern.permute.xlu0 0
  %7075 = vperm.xlu0 %7074, %v6899
  %v7076 = vpop.permute.xlu0 %7075
  %7079 = vset.pattern.permute.xlu0 0
  %7080 = vperm.xlu0 %7079, %v6904
  %v7081 = vpop.permute.xlu0 %7080
  %7084 = vset.pattern.permute.xlu0 0
  %7085 = vperm.xlu0 %7084, %v6909
  %v7086 = vpop.permute.xlu0 %7085
  %7089 = vset.pattern.permute.xlu0 0
  %7090 = vperm.xlu0 %7089, %v6914
  %v7091 = vpop.permute.xlu0 %7090
  %7094 = vset.pattern.permute.xlu0 0
  %7095 = vperm.xlu0 %7094, %v6919
  %v7096 = vpop.permute.xlu0 %7095
  %7099 = vset.pattern.permute.xlu0 0
  %7100 = vperm.xlu0 %7099, %v6924
  %v7101 = vpop.permute.xlu0 %7100
  %7104 = vset.pattern.permute.xlu0 0
  %7105 = vperm.xlu0 %7104, %v6929
  %v7106 = vpop.permute.xlu0 %7105
  %7109 = vset.pattern.permute.xlu0 0
  %7110 = vperm.xlu0 %7109, %v6934
  %v7111 = vpop.permute.xlu0 %7110
  %7114 = vset.pattern.permute.xlu0 0
  %7115 = vperm.xlu0 %7114, %v6939
  %v7116 = vpop.permute.xlu0 %7115
  %7119 = vset.pattern.permute.xlu0 0
  %7120 = vperm.xlu0 %7119, %v6944
  %v7121 = vpop.permute.xlu0 %7120
  %7124 = vset.pattern.permute.xlu0 0
  %7125 = vperm.xlu0 %7124, %v6949
  %v7126 = vpop.permute.xlu0 %7125
  %7129 = vset.pattern.permute.xlu0 0
  %7130 = vperm.xlu0 %7129, %v6954
  %v7131 = vpop.permute.xlu0 %7130
  %v7133 = vadd.f32 %v7037, %v7056
  %v7134 = vadd.f32 %v7038, %v7061
  %v7135 = vadd.f32 %v7039, %v7066
  %v7136 = vadd.f32 %v7040, %v7071
  %v7137 = vadd.f32 %v7041, %v7076
  %v7138 = vadd.f32 %v7042, %v7081
  %v7139 = vadd.f32 %v7043, %v7086
  %v7140 = vadd.f32 %v7044, %v7091
  %v7141 = vadd.f32 %v7045, %v7096
  %v7142 = vadd.f32 %v7046, %v7101
  %v7143 = vadd.f32 %v7047, %v7106
  %v7144 = vadd.f32 %v7048, %v7111
  %v7145 = vadd.f32 %v7049, %v7116
  %v7146 = vadd.f32 %v7050, %v7121
  %v7147 = vadd.f32 %v7051, %v7126
  %v7148 = vadd.f32 %v7052, %v7131
  %v7149 = vld [vmem:[%s11] sm:$0x1]
  %v7151 = vlaneseq
  %v7152 = vshrl.u32 %v7151, 7
  %v7153 = vsub.s32 0, %v7152
  %v7154 = vrot.slane %v7149, %v7153
  %v7156 = vmul.f32 %v7133, %v7154
  %v7157 = vmul.f32 %v7134, %v7154
  %v7158 = vmul.f32 %v7135, %v7154
  %v7159 = vmul.f32 %v7136, %v7154
  %v7160 = vmul.f32 %v7137, %v7154
  %v7161 = vmul.f32 %v7138, %v7154
  %v7162 = vmul.f32 %v7139, %v7154
  %v7163 = vmul.f32 %v7140, %v7154
  %v7164 = vmul.f32 %v7141, %v7154
  %v7165 = vmul.f32 %v7142, %v7154
  %v7166 = vmul.f32 %v7143, %v7154
  %v7167 = vmul.f32 %v7144, %v7154
  %v7168 = vmul.f32 %v7145, %v7154
  %v7169 = vmul.f32 %v7146, %v7154
  %v7170 = vmul.f32 %v7147, %v7154
  %v7171 = vmul.f32 %v7148, %v7154
  %v7172 = vsel %vm270, %v7156, 0.0
  %7173 = vadd.xlane.f32.xlu0 %v7172
  %v7174 = vpop.xlane.xlu0 %7173
  %v7175 = vsel %vm270, %v7157, 0.0
  %7176 = vadd.xlane.f32.xlu0 %v7175
  %v7177 = vpop.xlane.xlu0 %7176
  %v7178 = vsel %vm270, %v7158, 0.0
  %7179 = vadd.xlane.f32.xlu0 %v7178
  %v7180 = vpop.xlane.xlu0 %7179
  %v7181 = vsel %vm270, %v7159, 0.0
  %7182 = vadd.xlane.f32.xlu0 %v7181
  %v7183 = vpop.xlane.xlu0 %7182
  %v7184 = vsel %vm270, %v7160, 0.0
  %7185 = vadd.xlane.f32.xlu0 %v7184
  %v7186 = vpop.xlane.xlu0 %7185
  %v7187 = vsel %vm270, %v7161, 0.0
  %7188 = vadd.xlane.f32.xlu0 %v7187
  %v7189 = vpop.xlane.xlu0 %7188
  %v7190 = vsel %vm270, %v7162, 0.0
  %7191 = vadd.xlane.f32.xlu0 %v7190
  %v7192 = vpop.xlane.xlu0 %7191
  %v7193 = vsel %vm270, %v7163, 0.0
  %7194 = vadd.xlane.f32.xlu0 %v7193
  %v7195 = vpop.xlane.xlu0 %7194
  %v7196 = vsel %vm270, %v7164, 0.0
  %7197 = vadd.xlane.f32.xlu0 %v7196
  %v7198 = vpop.xlane.xlu0 %7197
  %v7199 = vsel %vm270, %v7165, 0.0
  %7200 = vadd.xlane.f32.xlu0 %v7199
  %v7201 = vpop.xlane.xlu0 %7200
  %v7202 = vsel %vm270, %v7166, 0.0
  %7203 = vadd.xlane.f32.xlu0 %v7202
  %v7204 = vpop.xlane.xlu0 %7203
  %v7205 = vsel %vm270, %v7167, 0.0
  %7206 = vadd.xlane.f32.xlu0 %v7205
  %v7207 = vpop.xlane.xlu0 %7206
  %v7208 = vsel %vm270, %v7168, 0.0
  %7209 = vadd.xlane.f32.xlu0 %v7208
  %v7210 = vpop.xlane.xlu0 %7209
  %v7211 = vsel %vm270, %v7169, 0.0
  %7212 = vadd.xlane.f32.xlu0 %v7211
  %v7213 = vpop.xlane.xlu0 %7212
  %v7214 = vsel %vm270, %v7170, 0.0
  %7215 = vadd.xlane.f32.xlu0 %v7214
  %v7216 = vpop.xlane.xlu0 %7215
  %v7217 = vsel %vm270, %v7171, 0.0
  %7218 = vadd.xlane.f32.xlu0 %v7217
  %v7219 = vpop.xlane.xlu0 %7218
  %v7220 = vld [vmem:[#allocation4] sm:$0x1]
  %v7222 = vlaneseq
  %v7223 = vshrl.u32 %v7222, 7
  %v7224 = vsub.s32 0, %v7223
  %v7225 = vrot.slane %v7220, %v7224
  %v7227 = vadd.f32 %v7174, %v7225
  %v7228 = vadd.f32 %v7177, %v7225
  %v7229 = vadd.f32 %v7180, %v7225
  %v7230 = vadd.f32 %v7183, %v7225
  %v7231 = vadd.f32 %v7186, %v7225
  %v7232 = vadd.f32 %v7189, %v7225
  %v7233 = vadd.f32 %v7192, %v7225
  %v7234 = vadd.f32 %v7195, %v7225
  %v7235 = vadd.f32 %v7198, %v7225
  %v7236 = vadd.f32 %v7201, %v7225
  %v7237 = vadd.f32 %v7204, %v7225
  %v7238 = vadd.f32 %v7207, %v7225
  %v7239 = vadd.f32 %v7210, %v7225
  %v7240 = vadd.f32 %v7213, %v7225
  %v7241 = vadd.f32 %v7216, %v7225
  %v7242 = vadd.f32 %v7219, %v7225
  %v7243 = vxor.u32 %v7227, 2147483648
  %v7244 = vxor.u32 %v7228, 2147483648
  %v7245 = vxor.u32 %v7229, 2147483648
  %v7246 = vxor.u32 %v7230, 2147483648
  %v7247 = vxor.u32 %v7231, 2147483648
  %v7248 = vxor.u32 %v7232, 2147483648
  %v7249 = vxor.u32 %v7233, 2147483648
  %v7250 = vxor.u32 %v7234, 2147483648
  %v7251 = vxor.u32 %v7235, 2147483648
  %v7252 = vxor.u32 %v7236, 2147483648
  %v7253 = vxor.u32 %v7237, 2147483648
  %v7254 = vxor.u32 %v7238, 2147483648
  %v7255 = vxor.u32 %v7239, 2147483648
  %v7256 = vxor.u32 %v7240, 2147483648
  %v7257 = vxor.u32 %v7241, 2147483648
  %v7258 = vxor.u32 %v7242, 2147483648
  %v7259 = vmul.f32 %v7243, 1.442695
  %v7260 = vpow.pop %v7259
  %v7261 = vmul.f32 %v7244, 1.442695
  %v7262 = vpow.pop %v7261
  %v7263 = vmul.f32 %v7245, 1.442695
  %v7264 = vpow.pop %v7263
  %v7265 = vmul.f32 %v7246, 1.442695
  %v7266 = vpow.pop %v7265
  %v7267 = vmul.f32 %v7247, 1.442695
  %v7268 = vpow.pop %v7267
  %v7269 = vmul.f32 %v7248, 1.442695
  %v7270 = vpow.pop %v7269
  %v7271 = vmul.f32 %v7249, 1.442695
  %v7272 = vpow.pop %v7271
  %v7273 = vmul.f32 %v7250, 1.442695
  %v7274 = vpow.pop %v7273
  %v7275 = vmul.f32 %v7251, 1.442695
  %v7276 = vpow.pop %v7275
  %v7277 = vmul.f32 %v7252, 1.442695
  %v7278 = vpow.pop %v7277
  %v7279 = vmul.f32 %v7253, 1.442695
  %v7280 = vpow.pop %v7279
  %v7281 = vmul.f32 %v7254, 1.442695
  %v7282 = vpow.pop %v7281
  %v7283 = vmul.f32 %v7255, 1.442695
  %v7284 = vpow.pop %v7283
  %v7285 = vmul.f32 %v7256, 1.442695
  %v7286 = vpow.pop %v7285
  %v7287 = vmul.f32 %v7257, 1.442695
  %v7288 = vpow.pop %v7287
  %v7289 = vmul.f32 %v7258, 1.442695
  %v7290 = vpow.pop %v7289
  %v7291 = vadd.f32 %v7260, 1.0
  %v7292 = vadd.f32 %v7262, 1.0
  %v7293 = vadd.f32 %v7264, 1.0
  %v7294 = vadd.f32 %v7266, 1.0
  %v7295 = vadd.f32 %v7268, 1.0
  %v7296 = vadd.f32 %v7270, 1.0
  %v7297 = vadd.f32 %v7272, 1.0
  %v7298 = vadd.f32 %v7274, 1.0
  %v7299 = vadd.f32 %v7276, 1.0
  %v7300 = vadd.f32 %v7278, 1.0
  %v7301 = vadd.f32 %v7280, 1.0
  %v7302 = vadd.f32 %v7282, 1.0
  %v7303 = vadd.f32 %v7284, 1.0
  %v7304 = vadd.f32 %v7286, 1.0
  %v7305 = vadd.f32 %v7288, 1.0
  %v7306 = vadd.f32 %v7290, 1.0
  %v7307 = vrcp.pop %v7291
  %v7308 = vmul.f32 1.0, %v7307
  %v7309 = vrcp.pop %v7292
  %v7310 = vmul.f32 1.0, %v7309
  %v7311 = vrcp.pop %v7293
  %v7312 = vmul.f32 1.0, %v7311
  %v7313 = vrcp.pop %v7294
  %v7314 = vmul.f32 1.0, %v7313
  %v7315 = vrcp.pop %v7295
  %v7316 = vmul.f32 1.0, %v7315
  %v7317 = vrcp.pop %v7296
  %v7318 = vmul.f32 1.0, %v7317
  %v7319 = vrcp.pop %v7297
  %v7320 = vmul.f32 1.0, %v7319
  %v7321 = vrcp.pop %v7298
  %v7322 = vmul.f32 1.0, %v7321
  %v7323 = vrcp.pop %v7299
  %v7324 = vmul.f32 1.0, %v7323
  %v7325 = vrcp.pop %v7300
  %v7326 = vmul.f32 1.0, %v7325
  %v7327 = vrcp.pop %v7301
  %v7328 = vmul.f32 1.0, %v7327
  %v7329 = vrcp.pop %v7302
  %v7330 = vmul.f32 1.0, %v7329
  %v7331 = vrcp.pop %v7303
  %v7332 = vmul.f32 1.0, %v7331
  %v7333 = vrcp.pop %v7304
  %v7334 = vmul.f32 1.0, %v7333
  %v7335 = vrcp.pop %v7305
  %v7336 = vmul.f32 1.0, %v7335
  %v7337 = vrcp.pop %v7306
  %v7338 = vmul.f32 1.0, %v7337
  %vm7339 = vcmask 7168
  %7340 = vst.msk [vmem:[%s13] sm:$0xff] %vm7339, %v7308
  %7341 = vst.msk [vmem:[%s13 + $0x8] sm:$0xff] %vm7339, %v7310
  %7342 = vst.msk [vmem:[%s13 + $0x10] sm:$0xff] %vm7339, %v7312
  %7343 = vst.msk [vmem:[%s13 + $0x18] sm:$0xff] %vm7339, %v7314
  %7344 = vst.msk [vmem:[%s13 + $0x20] sm:$0xff] %vm7339, %v7316
  %7345 = vst.msk [vmem:[%s13 + $0x28] sm:$0xff] %vm7339, %v7318
  %7346 = vst.msk [vmem:[%s13 + $0x30] sm:$0xff] %vm7339, %v7320
  %7347 = vst.msk [vmem:[%s13 + $0x38] sm:$0xff] %vm7339, %v7322
  %7348 = vst.msk [vmem:[%s13 + $0x40] sm:$0xff] %vm7339, %v7324
  %7349 = vst.msk [vmem:[%s13 + $0x48] sm:$0xff] %vm7339, %v7326
  %7350 = vst.msk [vmem:[%s13 + $0x50] sm:$0xff] %vm7339, %v7328
  %7351 = vst.msk [vmem:[%s13 + $0x58] sm:$0xff] %vm7339, %v7330
  %7352 = vst.msk [vmem:[%s13 + $0x60] sm:$0xff] %vm7339, %v7332
  %7353 = vst.msk [vmem:[%s13 + $0x68] sm:$0xff] %vm7339, %v7334
  %7354 = vst.msk [vmem:[%s13 + $0x70] sm:$0xff] %vm7339, %v7336
  %7355 = vst.msk [vmem:[%s13 + $0x78] sm:$0xff] %vm7339, %v7338
  // Predicated region
  $region54: #{tpu_custom_call.1} parent=0 // pred_check
    _
  $region55: #{tpu_custom_call.1} parent=0 // pred_check_branch
    %7357 = sbr.rel (0) target = $region57
  $region56: #{tpu_custom_call.1} parent=0 // pred_region
    _
  $region57: #{tpu_custom_call.1} parent=0 // pred_fallthru
    _
  // Predicated region
  $region58: #{tpu_custom_call.1} parent=0 // pred_check
    _
  $region59: #{tpu_custom_call.1} parent=0 // pred_check_branch
    %7359 = sbr.rel (0) target = $region61
  $region60: #{tpu_custom_call.1} parent=0 // pred_region
    _
  $region61: #{tpu_custom_call.1} parent=0 // pred_fallthru
    _

</llo_original>
